<compile_context>
chip_gen: v5e
topology: v5e:2x2
jax: 0.10.0
libtpu: 0.0.40
codegen_flags: <defaults>
</compile_context>

<pallas_src>
import functools

import jax
import jax.numpy as jnp
from jax.experimental import pallas as pl
from jax.experimental.pallas import tpu as pltpu


def _round_up(n, m):
    return ((n + m - 1) // m) * m


def _pick_time_block(T):
    """Time-steps per grid block.  Must be a multiple of 8 dividing T, or T itself
    (full-dim blocks are always layout-legal)."""
    for cand in (32, 16, 8):
        if T % cand == 0:
            return cand
    return T


def _pack_gate_weight(w, H, Hp, in_pad=None):
    """PyTorch-layout weight (4H, Din) -> transposed, gate-blocked, zero-padded
    (Din_p, 4*Hp) so that  x @ result  yields gates [i | f | g | o], each Hp wide."""
    four_h, d_in = w.shape
    assert four_h == 4 * H
    d_out = d_in if in_pad is None else in_pad
    w4 = w.reshape(4, H, d_in)
    w4 = jnp.pad(w4, ((0, 0), (0, Hp - H), (0, d_out - d_in)))
    return jnp.transpose(w4.reshape(4 * Hp, d_out))  # (Din_p, 4Hp)


def _pack_bias(b, H, Hp):
    """(4H,) -> (4Hp,) gate-blocked, zero-padded."""
    return jnp.pad(b.reshape(4, H), ((0, 0), (0, Hp - H))).reshape(4 * Hp)


def _fused_lstm_kernel(pre0_ref, w_hh_ref, w_ih_ref, b_ref,
                       out_ref, h_out_ref, c_out_ref,
                       h_scr, c_scr, *, hidden_p, num_layers, time_block):
    tb = pl.program_id(0)
    Hp = hidden_p

    @pl.when(tb == 0)
    def _init():
        h_scr[...] = jnp.zeros_like(h_scr)
        c_scr[...] = jnp.zeros_like(c_scr)

    acc = jnp.float32
    w_dtype = w_hh_ref.dtype

    # Static unroll over the TS time steps of this block and the (static) L
    # layers: every ref slice below is static -> zero-cost views.
    for s in range(time_block):
        # Layer-0 input projection (x @ W_ih0 + b0) was hoisted out of the
        # recurrence; just read the precomputed pre-activation row for step s.
        x_gates = pre0_ref[:, s, :].astype(acc)                 # (Bp, 4Hp)
        h_down = None                                           # h from layer below
        for j in range(num_layers):
            h_j = h_scr[j]                                      # (Bp, Hp) f32
            c_j = c_scr[j]
            if j == 0:
                gates = x_gates
            else:
                gates = (jnp.dot(h_down.astype(w_dtype), w_ih_ref[j - 1],
                                 preferred_element_type=acc)
                         + b_ref[j - 1])                        # (Bp, 4Hp)
            gates = gates + jnp.dot(h_j.astype(w_dtype), w_hh_ref[j],
                                    preferred_element_type=acc)

            i_g = jax.nn.sigmoid(gates[:, 0 * Hp:1 * Hp])
            f_g = jax.nn.sigmoid(gates[:, 1 * Hp:2 * Hp])
            g_g = jnp.tanh(gates[:, 2 * Hp:3 * Hp])
            o_g = jax.nn.sigmoid(gates[:, 3 * Hp:4 * Hp])

            c_new = f_g * c_j + i_g * g_g
            h_new = o_g * jnp.tanh(c_new)
            h_scr[j] = h_new
            c_scr[j] = c_new
            h_down = h_new

        out_ref[:, s, :] = h_down.astype(out_ref.dtype)         # lane-dense Hp store

    @pl.when(tb == pl.num_programs(0) - 1)
    def _final():
        h_out_ref[...] = h_scr[...].astype(h_out_ref.dtype)
        c_out_ref[...] = c_scr[...].astype(c_out_ref.dtype)


def lstm_encoder_forward(x, params, hidden_size, *, compute_dtype=jnp.float32):
    """Mirrors LSTM_Encoder.forward.

    x: (B, T, input_size) batch-major (like PyTorch).
    params: list of (w_ih (4H,Din), w_hh (4H,H), b_ih (4H,), b_hh (4H,)) per layer.
    Returns (out (B,T,H), (h (L,B,H), c (L,B,H))).
    """
    B, T, D = x.shape
    H = hidden_size
    L = len(params)
    assert T >= 1 and L >= 1
    f32 = jnp.float32

    Hp = max(_round_up(H, 128), 128)      # lane-aligned hidden width
    Bp = max(_round_up(B, 8), 8)          # sublane-aligned batch
    TS = _pick_time_block(T)
    Lr = max(L - 1, 1)

    # ---- Hoisted layer-0 input projection: one big (B*T, D) x (D, 4Hp) matmul.
    w_ih0, _, b_ih0, b_hh0 = params[0]
    w_ih0_p = _pack_gate_weight(w_ih0.astype(f32), H, Hp)               # (D, 4Hp)
    b0_p = _pack_bias((b_ih0 + b_hh0).astype(f32), H, Hp)               # (4Hp,)
    x_p = jnp.pad(x.astype(f32), ((0, Bp - B), (0, 0), (0, 0)))         # (Bp, T, D)
    pre0 = jnp.einsum('btd,dg->btg', x_p, w_ih0_p) + b0_p               # (Bp, T, 4Hp)

    # ---- Recurrent weights for all layers, gate-blocked and padded.
    w_hh_all = jnp.stack(
        [_pack_gate_weight(params[j][1].astype(f32), H, Hp, in_pad=Hp)
         for j in range(L)]).astype(compute_dtype)                      # (L, Hp, 4Hp)
    if L > 1:
        w_ih_rest = jnp.stack(
            [_pack_gate_weight(params[j][0].astype(f32), H, Hp, in_pad=Hp)
             for j in range(1, L)]).astype(compute_dtype)               # (L-1, Hp, 4Hp)
        b_rest = jnp.stack(
            [_pack_bias((params[j][2] + params[j][3]).astype(f32), H, Hp)[None, :]
             for j in range(1, L)])                                     # (L-1, 1, 4Hp)
    else:
        w_ih_rest = jnp.zeros((1, Hp, 4 * Hp), compute_dtype)           # unused
        b_rest = jnp.zeros((1, 1, 4 * Hp), f32)                         # unused

    kernel = functools.partial(_fused_lstm_kernel, hidden_p=Hp,
                               num_layers=L, time_block=TS)

    out_shapes = (
        jax.ShapeDtypeStruct((Bp, T, Hp), x.dtype),   # per-step top-layer hidden
        jax.ShapeDtypeStruct((L, Bp, Hp), x.dtype),   # final h (all layers)
        jax.ShapeDtypeStruct((L, Bp, Hp), x.dtype),   # final c (all layers)
    )

    grid_spec = pltpu.PrefetchScalarGridSpec(
        num_scalar_prefetch=0,
        grid=(T // TS,),
        in_specs=[
            pl.BlockSpec((Bp, TS, 4 * Hp), lambda tb: (0, tb, 0)),   # pre_act block
            pl.BlockSpec((L, Hp, 4 * Hp), lambda tb: (0, 0, 0)),     # W_hh (resident)
            pl.BlockSpec((Lr, Hp, 4 * Hp), lambda tb: (0, 0, 0)),    # W_ih layers > 0
            pl.BlockSpec((Lr, 1, 4 * Hp), lambda tb: (0, 0, 0)),     # biases layers > 0
        ],
        out_specs=[
            pl.BlockSpec((Bp, TS, Hp), lambda tb: (0, tb, 0)),       # out block
            pl.BlockSpec((L, Bp, Hp), lambda tb: (0, 0, 0)),         # final h
            pl.BlockSpec((L, Bp, Hp), lambda tb: (0, 0, 0)),         # final c
        ],
        scratch_shapes=[
            pltpu.VMEM((L, Bp, Hp), jnp.float32),   # h state (persists over time)
            pltpu.VMEM((L, Bp, Hp), jnp.float32),   # c state
        ],
    )

    # ---- Explicit VMEM budget (double-buffered blocks + resident weights + state).
    w_item = jnp.dtype(compute_dtype).itemsize
    wbytes = (L + Lr) * Hp * 4 * Hp * w_item + Lr * 4 * Hp * 4
    blk_bytes = Bp * TS * 4 * Hp * 4 + Bp * TS * Hp * 4
    state_bytes = 4 * L * Bp * Hp * 4
    vmem_need = 2 * blk_bytes + 2 * wbytes + 2 * state_bytes + (2 << 20)
    vmem_limit = int(min(max(vmem_need, 16 * 2 ** 20), 128 * 2 ** 20))

    matmul_flops = 2 * T * Bp * Hp * 4 * Hp * (2 * L - 1)
    cost = pl.CostEstimate(
        flops=int(matmul_flops + T * L * Bp * 10 * Hp),
        transcendentals=int(T * L * Bp * 5 * Hp),
        bytes_accessed=int(Bp * T * 4 * Hp * 4 + wbytes
                           + Bp * T * Hp * 4 + 2 * L * Bp * Hp * 4),
    )

    out_p, h_p, c_p = pl.pallas_call(
        kernel,
        out_shape=out_shapes,
        grid_spec=grid_spec,
        compiler_params=pltpu.CompilerParams(
            dimension_semantics=("arbitrary",),      # time axis is a recurrence
            vmem_limit_bytes=vmem_limit),
        cost_estimate=cost,
    )(pre0, w_hh_all, w_ih_rest, b_rest)

    # Strip padding back to the PyTorch-visible shapes.
    out = out_p[:B, :, :H]
    h = h_p[:, :B, :H]
    c = c_p[:, :B, :H]
    return out, (h, c)


def _reference_forward(x, params, hidden_size):
    """Pure-JAX reference of the same stacked LSTMCell loop."""
    B, T, _ = x.shape
    H = hidden_size
    h_in = [jnp.zeros((B, H), jnp.float32) for _ in params]
    c_in = [jnp.zeros((B, H), jnp.float32) for _ in params]
    outs = []
    for t in range(T):
        h_i = x[:, t, :]
        for j, (w_ih, w_hh, b_ih, b_hh) in enumerate(params):
            gates = h_i @ w_ih.T + b_ih + h_in[j] @ w_hh.T + b_hh
            i_g = jax.nn.sigmoid(gates[:, 0 * H:1 * H])
            f_g = jax.nn.sigmoid(gates[:, 1 * H:2 * H])
            g_g = jnp.tanh(gates[:, 2 * H:3 * H])
            o_g = jax.nn.sigmoid(gates[:, 3 * H:4 * H])
            c_new = f_g * c_in[j] + i_g * g_g
            h_new = o_g * jnp.tanh(c_new)
            h_in[j], c_in[j] = h_new, c_new
            h_i = h_new
        outs.append(h_i)
    out = jnp.stack(outs, axis=1)
    return out, (jnp.stack(h_in, 0), jnp.stack(c_in, 0))


def init_params(key, input_size, hidden_size, num_layers):
    """Deterministic PyTorch-style init: U(-1/sqrt(H), 1/sqrt(H))."""
    params = []
    bound = 1.0 / (hidden_size ** 0.5)
    d_in = input_size
    for _ in range(num_layers):
        key, k1, k2, k3, k4 = jax.random.split(key, 5)
        w_ih = jax.random.uniform(k1, (4 * hidden_size, d_in), jnp.float32, -bound, bound)
        w_hh = jax.random.uniform(k2, (4 * hidden_size, hidden_size), jnp.float32, -bound, bound)
        b_ih = jax.random.uniform(k3, (4 * hidden_size,), jnp.float32, -bound, bound)
        b_hh = jax.random.uniform(k4, (4 * hidden_size,), jnp.float32, -bound, bound)
        params.append((w_ih, w_hh, b_ih, b_hh))
        d_in = hidden_size
    return params


if __name__ == "__main__":
    # TODO(synk): pack_padded_sequence / seq_length masking is unused in the
    # reference forward (seq_length is accepted but ignored), so it is omitted.
    B, T, INPUT_SIZE, HIDDEN, LAYERS = 2, 8, 16, 32, 2

    key = jax.random.PRNGKey(0)
    kx, kp = jax.random.split(key)
    x = jax.random.normal(kx, (B, T, INPUT_SIZE), jnp.float32)
    params = init_params(kp, INPUT_SIZE, HIDDEN, LAYERS)

    out, (h, c) = lstm_encoder_forward(x, params, HIDDEN)
    jax.block_until_ready((out, h, c))

    out_ref, (h_ref, c_ref) = _reference_forward(x, params, HIDDEN)
    assert out.shape == (B, T, HIDDEN)
    assert h.shape == (LAYERS, B, HIDDEN) and c.shape == (LAYERS, B, HIDDEN)
    assert jnp.allclose(out, out_ref, atol=5e-5, rtol=5e-5)
    assert jnp.allclose(h, h_ref, atol=5e-5, rtol=5e-5)
    assert jnp.allclose(c, c_ref, atol=5e-5, rtol=5e-5)

    print("KERNEL_OK")
</pallas_src>

<mosaic_0001>
module attributes {stable_mosaic.version = 11 : i64} {
  func.func @_fused_lstm_kernel(%arg0: i32, %arg1: memref<8x8x512xf32, #tpu.memory_space<vmem>>, %arg2: memref<2x128x512xf32, #tpu.memory_space<vmem>>, %arg3: memref<1x128x512xf32, #tpu.memory_space<vmem>>, %arg4: memref<1x1x512xf32, #tpu.memory_space<vmem>>, %arg5: memref<8x8x128xf32, #tpu.memory_space<vmem>>, %arg6: memref<2x8x128xf32, #tpu.memory_space<vmem>>, %arg7: memref<2x8x128xf32, #tpu.memory_space<vmem>>, %arg8: memref<2x8x128xf32, #tpu.memory_space<vmem>>, %arg9: memref<2x8x128xf32, #tpu.memory_space<vmem>>) attributes {dimension_semantics = [#tpu.dimension_semantics<arbitrary>], iteration_bounds = array<i64: 1>, scalar_prefetch = 0 : i64, scratch_operands = 2 : i64, tpu.core_type = #tpu.core_type<tc>, window_params = [{transform_indices = @transform_0, window_bounds = array<i64: 8, 8, 512>}, {pipeline_mode = #tpu.pipeline_mode<synchronous>, transform_indices = @transform_1, window_bounds = array<i64: 2, 128, 512>}, {pipeline_mode = #tpu.pipeline_mode<synchronous>, transform_indices = @transform_2, window_bounds = array<i64: 1, 128, 512>}, {pipeline_mode = #tpu.pipeline_mode<synchronous>, transform_indices = @transform_3, window_bounds = array<i64: 1, 1, 512>}, {transform_indices = @transform_4, window_bounds = array<i64: 8, 8, 128>}, {pipeline_mode = #tpu.pipeline_mode<synchronous>, transform_indices = @transform_5, window_bounds = array<i64: 2, 8, 128>}, {pipeline_mode = #tpu.pipeline_mode<synchronous>, transform_indices = @transform_6, window_bounds = array<i64: 2, 8, 128>}]} {
    %c0_i32 = arith.constant 0 : i32
    %0 = arith.cmpi eq, %arg0, %c0_i32 : i32
    %1 = arith.extui %0 : i1 to i32
    %c0_i32_0 = arith.constant 0 : i32
    %2 = arith.cmpi ne, %1, %c0_i32_0 : i32
    scf.if %2 {
      %cst_402 = arith.constant 0.000000e+00 : f32
      %726 = vector.broadcast %cst_402 : f32 to vector<2x8x128xf32>
      %c0_403 = arith.constant 0 : index
      %c0_404 = arith.constant 0 : index
      %c0_405 = arith.constant 0 : index
      %727 = vector.load %arg8[%c0_403, %c0_404, %c0_405] : memref<2x8x128xf32, #tpu.memory_space<vmem>>, vector<2x8x128xf32>
      tpu.vector_store %arg8[%c0_403, %c0_404, %c0_405], %726 {strides = array<i32>} : memref<2x8x128xf32, #tpu.memory_space<vmem>>, vector<2x8x128xf32>,
      %cst_406 = arith.constant 0.000000e+00 : f32
      %728 = vector.broadcast %cst_406 : f32 to vector<2x8x128xf32>
      %c0_407 = arith.constant 0 : index
      %c0_408 = arith.constant 0 : index
      %c0_409 = arith.constant 0 : index
      %729 = vector.load %arg9[%c0_407, %c0_408, %c0_409] : memref<2x8x128xf32, #tpu.memory_space<vmem>>, vector<2x8x128xf32>
      tpu.vector_store %arg9[%c0_407, %c0_408, %c0_409], %728 {strides = array<i32>} : memref<2x8x128xf32, #tpu.memory_space<vmem>>, vector<2x8x128xf32>,
    } else {
    }
    %c0 = arith.constant 0 : index
    %c0_1 = arith.constant 0 : index
    %c0_2 = arith.constant 0 : index
    %3 = vector.load %arg1[%c0, %c0_1, %c0_2] : memref<8x8x512xf32, #tpu.memory_space<vmem>>, vector<8x1x512xf32>
    %4 = vector.shape_cast %3 : vector<8x1x512xf32> to vector<8x512xf32>
    %c0_3 = arith.constant 0 : index
    %c0_4 = arith.constant 0 : index
    %c0_5 = arith.constant 0 : index
    %5 = vector.load %arg8[%c0_3, %c0_4, %c0_5] : memref<2x8x128xf32, #tpu.memory_space<vmem>>, vector<1x8x128xf32>
    %6 = vector.shape_cast %5 : vector<1x8x128xf32> to vector<8x128xf32>
    %c0_6 = arith.constant 0 : index
    %c0_7 = arith.constant 0 : index
    %c0_8 = arith.constant 0 : index
    %7 = vector.load %arg9[%c0_6, %c0_7, %c0_8] : memref<2x8x128xf32, #tpu.memory_space<vmem>>, vector<1x8x128xf32>
    %8 = vector.shape_cast %7 : vector<1x8x128xf32> to vector<8x128xf32>
    %c0_9 = arith.constant 0 : index
    %c0_10 = arith.constant 0 : index
    %c0_11 = arith.constant 0 : index
    %9 = vector.load %arg2[%c0_9, %c0_10, %c0_11] : memref<2x128x512xf32, #tpu.memory_space<vmem>>, vector<1x128x512xf32>
    %10 = vector.shape_cast %9 : vector<1x128x512xf32> to vector<128x512xf32>
    %cst = arith.constant dense<0.000000e+00> : vector<8x512xf32>
    %11 = tpu.matmul %6, %10, %cst {dimension_numbers = #tpu.dot_dimension_numbers<[1], [0], [0], [1], [0, 0, 1, 1], [], []>} : vector<8x128xf32>, vector<128x512xf32>, vector<8x512xf32> -> vector<8x512xf32>
    %12 = arith.addf %4, %11 : vector<8x512xf32>
    %13 = vector.extract_strided_slice %12 {offsets = [0, 0], sizes = [8, 128], strides = [1, 1]} : vector<8x512xf32> to vector<8x128xf32>
    %14 = arith.negf %13 : vector<8x128xf32>
    %15 = math.exp %14 : vector<8x128xf32>
    %cst_12 = arith.constant 1.000000e+00 : f32
    %16 = vector.broadcast %cst_12 : f32 to vector<8x128xf32>
    %17 = arith.addf %16, %15 : vector<8x128xf32>
    %18 = arith.divf %16, %17 : vector<8x128xf32>
    %19 = vector.extract_strided_slice %12 {offsets = [0, 128], sizes = [8, 128], strides = [1, 1]} : vector<8x512xf32> to vector<8x128xf32>
    %20 = arith.negf %19 : vector<8x128xf32>
    %21 = math.exp %20 : vector<8x128xf32>
    %cst_13 = arith.constant 1.000000e+00 : f32
    %22 = vector.broadcast %cst_13 : f32 to vector<8x128xf32>
    %23 = arith.addf %22, %21 : vector<8x128xf32>
    %24 = arith.divf %22, %23 : vector<8x128xf32>
    %25 = vector.extract_strided_slice %12 {offsets = [0, 256], sizes = [8, 128], strides = [1, 1]} : vector<8x512xf32> to vector<8x128xf32>
    %26 = math.tanh %25 : vector<8x128xf32>
    %27 = vector.extract_strided_slice %12 {offsets = [0, 384], sizes = [8, 128], strides = [1, 1]} : vector<8x512xf32> to vector<8x128xf32>
    %28 = arith.negf %27 : vector<8x128xf32>
    %29 = math.exp %28 : vector<8x128xf32>
    %cst_14 = arith.constant 1.000000e+00 : f32
    %30 = vector.broadcast %cst_14 : f32 to vector<8x128xf32>
    %31 = arith.addf %30, %29 : vector<8x128xf32>
    %32 = arith.divf %30, %31 : vector<8x128xf32>
    %33 = arith.mulf %24, %8 : vector<8x128xf32>
    %34 = arith.mulf %18, %26 : vector<8x128xf32>
    %35 = arith.addf %33, %34 : vector<8x128xf32>
    %36 = math.tanh %35 : vector<8x128xf32>
    %37 = arith.mulf %32, %36 : vector<8x128xf32>
    %c0_15 = arith.constant 0 : index
    %c0_16 = arith.constant 0 : index
    %c0_17 = arith.constant 0 : index
    %38 = vector.load %arg8[%c0_15, %c0_16, %c0_17] : memref<2x8x128xf32, #tpu.memory_space<vmem>>, vector<1x8x128xf32>
    %39 = vector.shape_cast %38 : vector<1x8x128xf32> to vector<8x128xf32>
    %40 = vector.shape_cast %37 : vector<8x128xf32> to vector<1x8x128xf32>
    tpu.vector_store %arg8[%c0_15, %c0_16, %c0_17], %40 {strides = array<i32>} : memref<2x8x128xf32, #tpu.memory_space<vmem>>, vector<1x8x128xf32>,
    %c0_18 = arith.constant 0 : index
    %c0_19 = arith.constant 0 : index
    %c0_20 = arith.constant 0 : index
    %41 = vector.load %arg9[%c0_18, %c0_19, %c0_20] : memref<2x8x128xf32, #tpu.memory_space<vmem>>, vector<1x8x128xf32>
    %42 = vector.shape_cast %41 : vector<1x8x128xf32> to vector<8x128xf32>
    %43 = vector.shape_cast %35 : vector<8x128xf32> to vector<1x8x128xf32>
    tpu.vector_store %arg9[%c0_18, %c0_19, %c0_20], %43 {strides = array<i32>} : memref<2x8x128xf32, #tpu.memory_space<vmem>>, vector<1x8x128xf32>,
    %c1 = arith.constant 1 : index
    %c0_21 = arith.constant 0 : index
    %c0_22 = arith.constant 0 : index
    %44 = vector.load %arg8[%c1, %c0_21, %c0_22] : memref<2x8x128xf32, #tpu.memory_space<vmem>>, vector<1x8x128xf32>
    %45 = vector.shape_cast %44 : vector<1x8x128xf32> to vector<8x128xf32>
    %c1_23 = arith.constant 1 : index
    %c0_24 = arith.constant 0 : index
    %c0_25 = arith.constant 0 : index
    %46 = vector.load %arg9[%c1_23, %c0_24, %c0_25] : memref<2x8x128xf32, #tpu.memory_space<vmem>>, vector<1x8x128xf32>
    %47 = vector.shape_cast %46 : vector<1x8x128xf32> to vector<8x128xf32>
    %c0_26 = arith.constant 0 : index
    %c0_27 = arith.constant 0 : index
    %c0_28 = arith.constant 0 : index
    %48 = vector.load %arg3[%c0_26, %c0_27, %c0_28] : memref<1x128x512xf32, #tpu.memory_space<vmem>>, vector<1x128x512xf32>
    %49 = vector.shape_cast %48 : vector<1x128x512xf32> to vector<128x512xf32>
    %cst_29 = arith.constant dense<0.000000e+00> : vector<8x512xf32>
    %50 = tpu.matmul %37, %49, %cst_29 {dimension_numbers = #tpu.dot_dimension_numbers<[1], [0], [0], [1], [0, 0, 1, 1], [], []>} : vector<8x128xf32>, vector<128x512xf32>, vector<8x512xf32> -> vector<8x512xf32>
    %c0_30 = arith.constant 0 : index
    %c0_31 = arith.constant 0 : index
    %c0_32 = arith.constant 0 : index
    %51 = vector.load %arg4[%c0_30, %c0_31, %c0_32] : memref<1x1x512xf32, #tpu.memory_space<vmem>>, vector<1x1x512xf32>
    %52 = vector.shape_cast %51 : vector<1x1x512xf32> to vector<1x512xf32>
    %53 = vector.broadcast %52 : vector<1x512xf32> to vector<8x512xf32>
    %54 = arith.addf %50, %53 : vector<8x512xf32>
    %c1_33 = arith.constant 1 : index
    %c0_34 = arith.constant 0 : index
    %c0_35 = arith.constant 0 : index
    %55 = vector.load %arg2[%c1_33, %c0_34, %c0_35] : memref<2x128x512xf32, #tpu.memory_space<vmem>>, vector<1x128x512xf32>
    %56 = vector.shape_cast %55 : vector<1x128x512xf32> to vector<128x512xf32>
    %cst_36 = arith.constant dense<0.000000e+00> : vector<8x512xf32>
    %57 = tpu.matmul %45, %56, %cst_36 {dimension_numbers = #tpu.dot_dimension_numbers<[1], [0], [0], [1], [0, 0, 1, 1], [], []>} : vector<8x128xf32>, vector<128x512xf32>, vector<8x512xf32> -> vector<8x512xf32>
    %58 = arith.addf %54, %57 : vector<8x512xf32>
    %59 = vector.extract_strided_slice %58 {offsets = [0, 0], sizes = [8, 128], strides = [1, 1]} : vector<8x512xf32> to vector<8x128xf32>
    %60 = arith.negf %59 : vector<8x128xf32>
    %61 = math.exp %60 : vector<8x128xf32>
    %cst_37 = arith.constant 1.000000e+00 : f32
    %62 = vector.broadcast %cst_37 : f32 to vector<8x128xf32>
    %63 = arith.addf %62, %61 : vector<8x128xf32>
    %64 = arith.divf %62, %63 : vector<8x128xf32>
    %65 = vector.extract_strided_slice %58 {offsets = [0, 128], sizes = [8, 128], strides = [1, 1]} : vector<8x512xf32> to vector<8x128xf32>
    %66 = arith.negf %65 : vector<8x128xf32>
    %67 = math.exp %66 : vector<8x128xf32>
    %cst_38 = arith.constant 1.000000e+00 : f32
    %68 = vector.broadcast %cst_38 : f32 to vector<8x128xf32>
    %69 = arith.addf %68, %67 : vector<8x128xf32>
    %70 = arith.divf %68, %69 : vector<8x128xf32>
    %71 = vector.extract_strided_slice %58 {offsets = [0, 256], sizes = [8, 128], strides = [1, 1]} : vector<8x512xf32> to vector<8x128xf32>
    %72 = math.tanh %71 : vector<8x128xf32>
    %73 = vector.extract_strided_slice %58 {offsets = [0, 384], sizes = [8, 128], strides = [1, 1]} : vector<8x512xf32> to vector<8x128xf32>
    %74 = arith.negf %73 : vector<8x128xf32>
    %75 = math.exp %74 : vector<8x128xf32>
    %cst_39 = arith.constant 1.000000e+00 : f32
    %76 = vector.broadcast %cst_39 : f32 to vector<8x128xf32>
    %77 = arith.addf %76, %75 : vector<8x128xf32>
    %78 = arith.divf %76, %77 : vector<8x128xf32>
    %79 = arith.mulf %70, %47 : vector<8x128xf32>
    %80 = arith.mulf %64, %72 : vector<8x128xf32>
    %81 = arith.addf %79, %80 : vector<8x128xf32>
    %82 = math.tanh %81 : vector<8x128xf32>
    %83 = arith.mulf %78, %82 : vector<8x128xf32>
    %c1_40 = arith.constant 1 : index
    %c0_41 = arith.constant 0 : index
    %c0_42 = arith.constant 0 : index
    %84 = vector.load %arg8[%c1_40, %c0_41, %c0_42] : memref<2x8x128xf32, #tpu.memory_space<vmem>>, vector<1x8x128xf32>
    %85 = vector.shape_cast %84 : vector<1x8x128xf32> to vector<8x128xf32>
    %86 = vector.shape_cast %83 : vector<8x128xf32> to vector<1x8x128xf32>
    tpu.vector_store %arg8[%c1_40, %c0_41, %c0_42], %86 {strides = array<i32>} : memref<2x8x128xf32, #tpu.memory_space<vmem>>, vector<1x8x128xf32>,
    %c1_43 = arith.constant 1 : index
    %c0_44 = arith.constant 0 : index
    %c0_45 = arith.constant 0 : index
    %87 = vector.load %arg9[%c1_43, %c0_44, %c0_45] : memref<2x8x128xf32, #tpu.memory_space<vmem>>, vector<1x8x128xf32>
    %88 = vector.shape_cast %87 : vector<1x8x128xf32> to vector<8x128xf32>
    %89 = vector.shape_cast %81 : vector<8x128xf32> to vector<1x8x128xf32>
    tpu.vector_store %arg9[%c1_43, %c0_44, %c0_45], %89 {strides = array<i32>} : memref<2x8x128xf32, #tpu.memory_space<vmem>>, vector<1x8x128xf32>,
    %c0_46 = arith.constant 0 : index
    %c0_47 = arith.constant 0 : index
    %c0_48 = arith.constant 0 : index
    %90 = vector.load %arg5[%c0_46, %c0_47, %c0_48] : memref<8x8x128xf32, #tpu.memory_space<vmem>>, vector<8x1x128xf32>
    %91 = vector.shape_cast %90 : vector<8x1x128xf32> to vector<8x128xf32>
    %92 = vector.shape_cast %83 : vector<8x128xf32> to vector<8x1x128xf32>
    tpu.vector_store %arg5[%c0_46, %c0_47, %c0_48], %92 {strides = array<i32>} : memref<8x8x128xf32, #tpu.memory_space<vmem>>, vector<8x1x128xf32>,
    %c0_49 = arith.constant 0 : index
    %c1_50 = arith.constant 1 : index
    %c0_51 = arith.constant 0 : index
    %93 = vector.load %arg1[%c0_49, %c1_50, %c0_51] : memref<8x8x512xf32, #tpu.memory_space<vmem>>, vector<8x1x512xf32>
    %94 = vector.shape_cast %93 : vector<8x1x512xf32> to vector<8x512xf32>
    %c0_52 = arith.constant 0 : index
    %c0_53 = arith.constant 0 : index
    %c0_54 = arith.constant 0 : index
    %95 = vector.load %arg8[%c0_52, %c0_53, %c0_54] : memref<2x8x128xf32, #tpu.memory_space<vmem>>, vector<1x8x128xf32>
    %96 = vector.shape_cast %95 : vector<1x8x128xf32> to vector<8x128xf32>
    %c0_55 = arith.constant 0 : index
    %c0_56 = arith.constant 0 : index
    %c0_57 = arith.constant 0 : index
    %97 = vector.load %arg9[%c0_55, %c0_56, %c0_57] : memref<2x8x128xf32, #tpu.memory_space<vmem>>, vector<1x8x128xf32>
    %98 = vector.shape_cast %97 : vector<1x8x128xf32> to vector<8x128xf32>
    %c0_58 = arith.constant 0 : index
    %c0_59 = arith.constant 0 : index
    %c0_60 = arith.constant 0 : index
    %99 = vector.load %arg2[%c0_58, %c0_59, %c0_60] : memref<2x128x512xf32, #tpu.memory_space<vmem>>, vector<1x128x512xf32>
    %100 = vector.shape_cast %99 : vector<1x128x512xf32> to vector<128x512xf32>
    %cst_61 = arith.constant dense<0.000000e+00> : vector<8x512xf32>
    %101 = tpu.matmul %96, %100, %cst_61 {dimension_numbers = #tpu.dot_dimension_numbers<[1], [0], [0], [1], [0, 0, 1, 1], [], []>} : vector<8x128xf32>, vector<128x512xf32>, vector<8x512xf32> -> vector<8x512xf32>
    %102 = arith.addf %94, %101 : vector<8x512xf32>
    %103 = vector.extract_strided_slice %102 {offsets = [0, 0], sizes = [8, 128], strides = [1, 1]} : vector<8x512xf32> to vector<8x128xf32>
    %104 = arith.negf %103 : vector<8x128xf32>
    %105 = math.exp %104 : vector<8x128xf32>
    %cst_62 = arith.constant 1.000000e+00 : f32
    %106 = vector.broadcast %cst_62 : f32 to vector<8x128xf32>
    %107 = arith.addf %106, %105 : vector<8x128xf32>
    %108 = arith.divf %106, %107 : vector<8x128xf32>
    %109 = vector.extract_strided_slice %102 {offsets = [0, 128], sizes = [8, 128], strides = [1, 1]} : vector<8x512xf32> to vector<8x128xf32>
    %110 = arith.negf %109 : vector<8x128xf32>
    %111 = math.exp %110 : vector<8x128xf32>
    %cst_63 = arith.constant 1.000000e+00 : f32
    %112 = vector.broadcast %cst_63 : f32 to vector<8x128xf32>
    %113 = arith.addf %112, %111 : vector<8x128xf32>
    %114 = arith.divf %112, %113 : vector<8x128xf32>
    %115 = vector.extract_strided_slice %102 {offsets = [0, 256], sizes = [8, 128], strides = [1, 1]} : vector<8x512xf32> to vector<8x128xf32>
    %116 = math.tanh %115 : vector<8x128xf32>
    %117 = vector.extract_strided_slice %102 {offsets = [0, 384], sizes = [8, 128], strides = [1, 1]} : vector<8x512xf32> to vector<8x128xf32>
    %118 = arith.negf %117 : vector<8x128xf32>
    %119 = math.exp %118 : vector<8x128xf32>
    %cst_64 = arith.constant 1.000000e+00 : f32
    %120 = vector.broadcast %cst_64 : f32 to vector<8x128xf32>
    %121 = arith.addf %120, %119 : vector<8x128xf32>
    %122 = arith.divf %120, %121 : vector<8x128xf32>
    %123 = arith.mulf %114, %98 : vector<8x128xf32>
    %124 = arith.mulf %108, %116 : vector<8x128xf32>
    %125 = arith.addf %123, %124 : vector<8x128xf32>
    %126 = math.tanh %125 : vector<8x128xf32>
    %127 = arith.mulf %122, %126 : vector<8x128xf32>
    %c0_65 = arith.constant 0 : index
    %c0_66 = arith.constant 0 : index
    %c0_67 = arith.constant 0 : index
    %128 = vector.load %arg8[%c0_65, %c0_66, %c0_67] : memref<2x8x128xf32, #tpu.memory_space<vmem>>, vector<1x8x128xf32>
    %129 = vector.shape_cast %128 : vector<1x8x128xf32> to vector<8x128xf32>
    %130 = vector.shape_cast %127 : vector<8x128xf32> to vector<1x8x128xf32>
    tpu.vector_store %arg8[%c0_65, %c0_66, %c0_67], %130 {strides = array<i32>} : memref<2x8x128xf32, #tpu.memory_space<vmem>>, vector<1x8x128xf32>,
    %c0_68 = arith.constant 0 : index
    %c0_69 = arith.constant 0 : index
    %c0_70 = arith.constant 0 : index
    %131 = vector.load %arg9[%c0_68, %c0_69, %c0_70] : memref<2x8x128xf32, #tpu.memory_space<vmem>>, vector<1x8x128xf32>
    %132 = vector.shape_cast %131 : vector<1x8x128xf32> to vector<8x128xf32>
    %133 = vector.shape_cast %125 : vector<8x128xf32> to vector<1x8x128xf32>
    tpu.vector_store %arg9[%c0_68, %c0_69, %c0_70], %133 {strides = array<i32>} : memref<2x8x128xf32, #tpu.memory_space<vmem>>, vector<1x8x128xf32>,
    %c1_71 = arith.constant 1 : index
    %c0_72 = arith.constant 0 : index
    %c0_73 = arith.constant 0 : index
    %134 = vector.load %arg8[%c1_71, %c0_72, %c0_73] : memref<2x8x128xf32, #tpu.memory_space<vmem>>, vector<1x8x128xf32>
    %135 = vector.shape_cast %134 : vector<1x8x128xf32> to vector<8x128xf32>
    %c1_74 = arith.constant 1 : index
    %c0_75 = arith.constant 0 : index
    %c0_76 = arith.constant 0 : index
    %136 = vector.load %arg9[%c1_74, %c0_75, %c0_76] : memref<2x8x128xf32, #tpu.memory_space<vmem>>, vector<1x8x128xf32>
    %137 = vector.shape_cast %136 : vector<1x8x128xf32> to vector<8x128xf32>
    %c0_77 = arith.constant 0 : index
    %c0_78 = arith.constant 0 : index
    %c0_79 = arith.constant 0 : index
    %138 = vector.load %arg3[%c0_77, %c0_78, %c0_79] : memref<1x128x512xf32, #tpu.memory_space<vmem>>, vector<1x128x512xf32>
    %139 = vector.shape_cast %138 : vector<1x128x512xf32> to vector<128x512xf32>
    %cst_80 = arith.constant dense<0.000000e+00> : vector<8x512xf32>
    %140 = tpu.matmul %127, %139, %cst_80 {dimension_numbers = #tpu.dot_dimension_numbers<[1], [0], [0], [1], [0, 0, 1, 1], [], []>} : vector<8x128xf32>, vector<128x512xf32>, vector<8x512xf32> -> vector<8x512xf32>
    %c0_81 = arith.constant 0 : index
    %c0_82 = arith.constant 0 : index
    %c0_83 = arith.constant 0 : index
    %141 = vector.load %arg4[%c0_81, %c0_82, %c0_83] : memref<1x1x512xf32, #tpu.memory_space<vmem>>, vector<1x1x512xf32>
    %142 = vector.shape_cast %141 : vector<1x1x512xf32> to vector<1x512xf32>
    %143 = vector.broadcast %142 : vector<1x512xf32> to vector<8x512xf32>
    %144 = arith.addf %140, %143 : vector<8x512xf32>
    %c1_84 = arith.constant 1 : index
    %c0_85 = arith.constant 0 : index
    %c0_86 = arith.constant 0 : index
    %145 = vector.load %arg2[%c1_84, %c0_85, %c0_86] : memref<2x128x512xf32, #tpu.memory_space<vmem>>, vector<1x128x512xf32>
    %146 = vector.shape_cast %145 : vector<1x128x512xf32> to vector<128x512xf32>
    %cst_87 = arith.constant dense<0.000000e+00> : vector<8x512xf32>
    %147 = tpu.matmul %135, %146, %cst_87 {dimension_numbers = #tpu.dot_dimension_numbers<[1], [0], [0], [1], [0, 0, 1, 1], [], []>} : vector<8x128xf32>, vector<128x512xf32>, vector<8x512xf32> -> vector<8x512xf32>
    %148 = arith.addf %144, %147 : vector<8x512xf32>
    %149 = vector.extract_strided_slice %148 {offsets = [0, 0], sizes = [8, 128], strides = [1, 1]} : vector<8x512xf32> to vector<8x128xf32>
    %150 = arith.negf %149 : vector<8x128xf32>
    %151 = math.exp %150 : vector<8x128xf32>
    %cst_88 = arith.constant 1.000000e+00 : f32
    %152 = vector.broadcast %cst_88 : f32 to vector<8x128xf32>
    %153 = arith.addf %152, %151 : vector<8x128xf32>
    %154 = arith.divf %152, %153 : vector<8x128xf32>
    %155 = vector.extract_strided_slice %148 {offsets = [0, 128], sizes = [8, 128], strides = [1, 1]} : vector<8x512xf32> to vector<8x128xf32>
    %156 = arith.negf %155 : vector<8x128xf32>
    %157 = math.exp %156 : vector<8x128xf32>
    %cst_89 = arith.constant 1.000000e+00 : f32
    %158 = vector.broadcast %cst_89 : f32 to vector<8x128xf32>
    %159 = arith.addf %158, %157 : vector<8x128xf32>
    %160 = arith.divf %158, %159 : vector<8x128xf32>
    %161 = vector.extract_strided_slice %148 {offsets = [0, 256], sizes = [8, 128], strides = [1, 1]} : vector<8x512xf32> to vector<8x128xf32>
    %162 = math.tanh %161 : vector<8x128xf32>
    %163 = vector.extract_strided_slice %148 {offsets = [0, 384], sizes = [8, 128], strides = [1, 1]} : vector<8x512xf32> to vector<8x128xf32>
    %164 = arith.negf %163 : vector<8x128xf32>
    %165 = math.exp %164 : vector<8x128xf32>
    %cst_90 = arith.constant 1.000000e+00 : f32
    %166 = vector.broadcast %cst_90 : f32 to vector<8x128xf32>
    %167 = arith.addf %166, %165 : vector<8x128xf32>
    %168 = arith.divf %166, %167 : vector<8x128xf32>
    %169 = arith.mulf %160, %137 : vector<8x128xf32>
    %170 = arith.mulf %154, %162 : vector<8x128xf32>
    %171 = arith.addf %169, %170 : vector<8x128xf32>
    %172 = math.tanh %171 : vector<8x128xf32>
    %173 = arith.mulf %168, %172 : vector<8x128xf32>
    %c1_91 = arith.constant 1 : index
    %c0_92 = arith.constant 0 : index
    %c0_93 = arith.constant 0 : index
    %174 = vector.load %arg8[%c1_91, %c0_92, %c0_93] : memref<2x8x128xf32, #tpu.memory_space<vmem>>, vector<1x8x128xf32>
    %175 = vector.shape_cast %174 : vector<1x8x128xf32> to vector<8x128xf32>
    %176 = vector.shape_cast %173 : vector<8x128xf32> to vector<1x8x128xf32>
    tpu.vector_store %arg8[%c1_91, %c0_92, %c0_93], %176 {strides = array<i32>} : memref<2x8x128xf32, #tpu.memory_space<vmem>>, vector<1x8x128xf32>,
    %c1_94 = arith.constant 1 : index
    %c0_95 = arith.constant 0 : index
    %c0_96 = arith.constant 0 : index
    %177 = vector.load %arg9[%c1_94, %c0_95, %c0_96] : memref<2x8x128xf32, #tpu.memory_space<vmem>>, vector<1x8x128xf32>
    %178 = vector.shape_cast %177 : vector<1x8x128xf32> to vector<8x128xf32>
    %179 = vector.shape_cast %171 : vector<8x128xf32> to vector<1x8x128xf32>
    tpu.vector_store %arg9[%c1_94, %c0_95, %c0_96], %179 {strides = array<i32>} : memref<2x8x128xf32, #tpu.memory_space<vmem>>, vector<1x8x128xf32>,
    %c0_97 = arith.constant 0 : index
    %c1_98 = arith.constant 1 : index
    %c0_99 = arith.constant 0 : index
    %180 = vector.load %arg5[%c0_97, %c1_98, %c0_99] : memref<8x8x128xf32, #tpu.memory_space<vmem>>, vector<8x1x128xf32>
    %181 = vector.shape_cast %180 : vector<8x1x128xf32> to vector<8x128xf32>
    %182 = vector.shape_cast %173 : vector<8x128xf32> to vector<8x1x128xf32>
    tpu.vector_store %arg5[%c0_97, %c1_98, %c0_99], %182 {strides = array<i32>} : memref<8x8x128xf32, #tpu.memory_space<vmem>>, vector<8x1x128xf32>,
    %c0_100 = arith.constant 0 : index
    %c2 = arith.constant 2 : index
    %c0_101 = arith.constant 0 : index
    %183 = vector.load %arg1[%c0_100, %c2, %c0_101] : memref<8x8x512xf32, #tpu.memory_space<vmem>>, vector<8x1x512xf32>
    %184 = vector.shape_cast %183 : vector<8x1x512xf32> to vector<8x512xf32>
    %c0_102 = arith.constant 0 : index
    %c0_103 = arith.constant 0 : index
    %c0_104 = arith.constant 0 : index
    %185 = vector.load %arg8[%c0_102, %c0_103, %c0_104] : memref<2x8x128xf32, #tpu.memory_space<vmem>>, vector<1x8x128xf32>
    %186 = vector.shape_cast %185 : vector<1x8x128xf32> to vector<8x128xf32>
    %c0_105 = arith.constant 0 : index
    %c0_106 = arith.constant 0 : index
    %c0_107 = arith.constant 0 : index
    %187 = vector.load %arg9[%c0_105, %c0_106, %c0_107] : memref<2x8x128xf32, #tpu.memory_space<vmem>>, vector<1x8x128xf32>
    %188 = vector.shape_cast %187 : vector<1x8x128xf32> to vector<8x128xf32>
    %c0_108 = arith.constant 0 : index
    %c0_109 = arith.constant 0 : index
    %c0_110 = arith.constant 0 : index
    %189 = vector.load %arg2[%c0_108, %c0_109, %c0_110] : memref<2x128x512xf32, #tpu.memory_space<vmem>>, vector<1x128x512xf32>
    %190 = vector.shape_cast %189 : vector<1x128x512xf32> to vector<128x512xf32>
    %cst_111 = arith.constant dense<0.000000e+00> : vector<8x512xf32>
    %191 = tpu.matmul %186, %190, %cst_111 {dimension_numbers = #tpu.dot_dimension_numbers<[1], [0], [0], [1], [0, 0, 1, 1], [], []>} : vector<8x128xf32>, vector<128x512xf32>, vector<8x512xf32> -> vector<8x512xf32>
    %192 = arith.addf %184, %191 : vector<8x512xf32>
    %193 = vector.extract_strided_slice %192 {offsets = [0, 0], sizes = [8, 128], strides = [1, 1]} : vector<8x512xf32> to vector<8x128xf32>
    %194 = arith.negf %193 : vector<8x128xf32>
    %195 = math.exp %194 : vector<8x128xf32>
    %cst_112 = arith.constant 1.000000e+00 : f32
    %196 = vector.broadcast %cst_112 : f32 to vector<8x128xf32>
    %197 = arith.addf %196, %195 : vector<8x128xf32>
    %198 = arith.divf %196, %197 : vector<8x128xf32>
    %199 = vector.extract_strided_slice %192 {offsets = [0, 128], sizes = [8, 128], strides = [1, 1]} : vector<8x512xf32> to vector<8x128xf32>
    %200 = arith.negf %199 : vector<8x128xf32>
    %201 = math.exp %200 : vector<8x128xf32>
    %cst_113 = arith.constant 1.000000e+00 : f32
    %202 = vector.broadcast %cst_113 : f32 to vector<8x128xf32>
    %203 = arith.addf %202, %201 : vector<8x128xf32>
    %204 = arith.divf %202, %203 : vector<8x128xf32>
    %205 = vector.extract_strided_slice %192 {offsets = [0, 256], sizes = [8, 128], strides = [1, 1]} : vector<8x512xf32> to vector<8x128xf32>
    %206 = math.tanh %205 : vector<8x128xf32>
    %207 = vector.extract_strided_slice %192 {offsets = [0, 384], sizes = [8, 128], strides = [1, 1]} : vector<8x512xf32> to vector<8x128xf32>
    %208 = arith.negf %207 : vector<8x128xf32>
    %209 = math.exp %208 : vector<8x128xf32>
    %cst_114 = arith.constant 1.000000e+00 : f32
    %210 = vector.broadcast %cst_114 : f32 to vector<8x128xf32>
    %211 = arith.addf %210, %209 : vector<8x128xf32>
    %212 = arith.divf %210, %211 : vector<8x128xf32>
    %213 = arith.mulf %204, %188 : vector<8x128xf32>
    %214 = arith.mulf %198, %206 : vector<8x128xf32>
    %215 = arith.addf %213, %214 : vector<8x128xf32>
    %216 = math.tanh %215 : vector<8x128xf32>
    %217 = arith.mulf %212, %216 : vector<8x128xf32>
    %c0_115 = arith.constant 0 : index
    %c0_116 = arith.constant 0 : index
    %c0_117 = arith.constant 0 : index
    %218 = vector.load %arg8[%c0_115, %c0_116, %c0_117] : memref<2x8x128xf32, #tpu.memory_space<vmem>>, vector<1x8x128xf32>
    %219 = vector.shape_cast %218 : vector<1x8x128xf32> to vector<8x128xf32>
    %220 = vector.shape_cast %217 : vector<8x128xf32> to vector<1x8x128xf32>
    tpu.vector_store %arg8[%c0_115, %c0_116, %c0_117], %220 {strides = array<i32>} : memref<2x8x128xf32, #tpu.memory_space<vmem>>, vector<1x8x128xf32>,
    %c0_118 = arith.constant 0 : index
    %c0_119 = arith.constant 0 : index
    %c0_120 = arith.constant 0 : index
    %221 = vector.load %arg9[%c0_118, %c0_119, %c0_120] : memref<2x8x128xf32, #tpu.memory_space<vmem>>, vector<1x8x128xf32>
    %222 = vector.shape_cast %221 : vector<1x8x128xf32> to vector<8x128xf32>
    %223 = vector.shape_cast %215 : vector<8x128xf32> to vector<1x8x128xf32>
    tpu.vector_store %arg9[%c0_118, %c0_119, %c0_120], %223 {strides = array<i32>} : memref<2x8x128xf32, #tpu.memory_space<vmem>>, vector<1x8x128xf32>,
    %c1_121 = arith.constant 1 : index
    %c0_122 = arith.constant 0 : index
    %c0_123 = arith.constant 0 : index
    %224 = vector.load %arg8[%c1_121, %c0_122, %c0_123] : memref<2x8x128xf32, #tpu.memory_space<vmem>>, vector<1x8x128xf32>
    %225 = vector.shape_cast %224 : vector<1x8x128xf32> to vector<8x128xf32>
    %c1_124 = arith.constant 1 : index
    %c0_125 = arith.constant 0 : index
    %c0_126 = arith.constant 0 : index
    %226 = vector.load %arg9[%c1_124, %c0_125, %c0_126] : memref<2x8x128xf32, #tpu.memory_space<vmem>>, vector<1x8x128xf32>
    %227 = vector.shape_cast %226 : vector<1x8x128xf32> to vector<8x128xf32>
    %c0_127 = arith.constant 0 : index
    %c0_128 = arith.constant 0 : index
    %c0_129 = arith.constant 0 : index
    %228 = vector.load %arg3[%c0_127, %c0_128, %c0_129] : memref<1x128x512xf32, #tpu.memory_space<vmem>>, vector<1x128x512xf32>
    %229 = vector.shape_cast %228 : vector<1x128x512xf32> to vector<128x512xf32>
    %cst_130 = arith.constant dense<0.000000e+00> : vector<8x512xf32>
    %230 = tpu.matmul %217, %229, %cst_130 {dimension_numbers = #tpu.dot_dimension_numbers<[1], [0], [0], [1], [0, 0, 1, 1], [], []>} : vector<8x128xf32>, vector<128x512xf32>, vector<8x512xf32> -> vector<8x512xf32>
    %c0_131 = arith.constant 0 : index
    %c0_132 = arith.constant 0 : index
    %c0_133 = arith.constant 0 : index
    %231 = vector.load %arg4[%c0_131, %c0_132, %c0_133] : memref<1x1x512xf32, #tpu.memory_space<vmem>>, vector<1x1x512xf32>
    %232 = vector.shape_cast %231 : vector<1x1x512xf32> to vector<1x512xf32>
    %233 = vector.broadcast %232 : vector<1x512xf32> to vector<8x512xf32>
    %234 = arith.addf %230, %233 : vector<8x512xf32>
    %c1_134 = arith.constant 1 : index
    %c0_135 = arith.constant 0 : index
    %c0_136 = arith.constant 0 : index
    %235 = vector.load %arg2[%c1_134, %c0_135, %c0_136] : memref<2x128x512xf32, #tpu.memory_space<vmem>>, vector<1x128x512xf32>
    %236 = vector.shape_cast %235 : vector<1x128x512xf32> to vector<128x512xf32>
    %cst_137 = arith.constant dense<0.000000e+00> : vector<8x512xf32>
    %237 = tpu.matmul %225, %236, %cst_137 {dimension_numbers = #tpu.dot_dimension_numbers<[1], [0], [0], [1], [0, 0, 1, 1], [], []>} : vector<8x128xf32>, vector<128x512xf32>, vector<8x512xf32> -> vector<8x512xf32>
    %238 = arith.addf %234, %237 : vector<8x512xf32>
    %239 = vector.extract_strided_slice %238 {offsets = [0, 0], sizes = [8, 128], strides = [1, 1]} : vector<8x512xf32> to vector<8x128xf32>
    %240 = arith.negf %239 : vector<8x128xf32>
    %241 = math.exp %240 : vector<8x128xf32>
    %cst_138 = arith.constant 1.000000e+00 : f32
    %242 = vector.broadcast %cst_138 : f32 to vector<8x128xf32>
    %243 = arith.addf %242, %241 : vector<8x128xf32>
    %244 = arith.divf %242, %243 : vector<8x128xf32>
    %245 = vector.extract_strided_slice %238 {offsets = [0, 128], sizes = [8, 128], strides = [1, 1]} : vector<8x512xf32> to vector<8x128xf32>
    %246 = arith.negf %245 : vector<8x128xf32>
    %247 = math.exp %246 : vector<8x128xf32>
    %cst_139 = arith.constant 1.000000e+00 : f32
    %248 = vector.broadcast %cst_139 : f32 to vector<8x128xf32>
    %249 = arith.addf %248, %247 : vector<8x128xf32>
    %250 = arith.divf %248, %249 : vector<8x128xf32>
    %251 = vector.extract_strided_slice %238 {offsets = [0, 256], sizes = [8, 128], strides = [1, 1]} : vector<8x512xf32> to vector<8x128xf32>
    %252 = math.tanh %251 : vector<8x128xf32>
    %253 = vector.extract_strided_slice %238 {offsets = [0, 384], sizes = [8, 128], strides = [1, 1]} : vector<8x512xf32> to vector<8x128xf32>
    %254 = arith.negf %253 : vector<8x128xf32>
    %255 = math.exp %254 : vector<8x128xf32>
    %cst_140 = arith.constant 1.000000e+00 : f32
    %256 = vector.broadcast %cst_140 : f32 to vector<8x128xf32>
    %257 = arith.addf %256, %255 : vector<8x128xf32>
    %258 = arith.divf %256, %257 : vector<8x128xf32>
    %259 = arith.mulf %250, %227 : vector<8x128xf32>
    %260 = arith.mulf %244, %252 : vector<8x128xf32>
    %261 = arith.addf %259, %260 : vector<8x128xf32>
    %262 = math.tanh %261 : vector<8x128xf32>
    %263 = arith.mulf %258, %262 : vector<8x128xf32>
    %c1_141 = arith.constant 1 : index
    %c0_142 = arith.constant 0 : index
    %c0_143 = arith.constant 0 : index
    %264 = vector.load %arg8[%c1_141, %c0_142, %c0_143] : memref<2x8x128xf32, #tpu.memory_space<vmem>>, vector<1x8x128xf32>
    %265 = vector.shape_cast %264 : vector<1x8x128xf32> to vector<8x128xf32>
    %266 = vector.shape_cast %263 : vector<8x128xf32> to vector<1x8x128xf32>
    tpu.vector_store %arg8[%c1_141, %c0_142, %c0_143], %266 {strides = array<i32>} : memref<2x8x128xf32, #tpu.memory_space<vmem>>, vector<1x8x128xf32>,
    %c1_144 = arith.constant 1 : index
    %c0_145 = arith.constant 0 : index
    %c0_146 = arith.constant 0 : index
    %267 = vector.load %arg9[%c1_144, %c0_145, %c0_146] : memref<2x8x128xf32, #tpu.memory_space<vmem>>, vector<1x8x128xf32>
    %268 = vector.shape_cast %267 : vector<1x8x128xf32> to vector<8x128xf32>
    %269 = vector.shape_cast %261 : vector<8x128xf32> to vector<1x8x128xf32>
    tpu.vector_store %arg9[%c1_144, %c0_145, %c0_146], %269 {strides = array<i32>} : memref<2x8x128xf32, #tpu.memory_space<vmem>>, vector<1x8x128xf32>,
    %c0_147 = arith.constant 0 : index
    %c2_148 = arith.constant 2 : index
    %c0_149 = arith.constant 0 : index
    %270 = vector.load %arg5[%c0_147, %c2_148, %c0_149] : memref<8x8x128xf32, #tpu.memory_space<vmem>>, vector<8x1x128xf32>
    %271 = vector.shape_cast %270 : vector<8x1x128xf32> to vector<8x128xf32>
    %272 = vector.shape_cast %263 : vector<8x128xf32> to vector<8x1x128xf32>
    tpu.vector_store %arg5[%c0_147, %c2_148, %c0_149], %272 {strides = array<i32>} : memref<8x8x128xf32, #tpu.memory_space<vmem>>, vector<8x1x128xf32>,
    %c0_150 = arith.constant 0 : index
    %c3 = arith.constant 3 : index
    %c0_151 = arith.constant 0 : index
    %273 = vector.load %arg1[%c0_150, %c3, %c0_151] : memref<8x8x512xf32, #tpu.memory_space<vmem>>, vector<8x1x512xf32>
    %274 = vector.shape_cast %273 : vector<8x1x512xf32> to vector<8x512xf32>
    %c0_152 = arith.constant 0 : index
    %c0_153 = arith.constant 0 : index
    %c0_154 = arith.constant 0 : index
    %275 = vector.load %arg8[%c0_152, %c0_153, %c0_154] : memref<2x8x128xf32, #tpu.memory_space<vmem>>, vector<1x8x128xf32>
    %276 = vector.shape_cast %275 : vector<1x8x128xf32> to vector<8x128xf32>
    %c0_155 = arith.constant 0 : index
    %c0_156 = arith.constant 0 : index
    %c0_157 = arith.constant 0 : index
    %277 = vector.load %arg9[%c0_155, %c0_156, %c0_157] : memref<2x8x128xf32, #tpu.memory_space<vmem>>, vector<1x8x128xf32>
    %278 = vector.shape_cast %277 : vector<1x8x128xf32> to vector<8x128xf32>
    %c0_158 = arith.constant 0 : index
    %c0_159 = arith.constant 0 : index
    %c0_160 = arith.constant 0 : index
    %279 = vector.load %arg2[%c0_158, %c0_159, %c0_160] : memref<2x128x512xf32, #tpu.memory_space<vmem>>, vector<1x128x512xf32>
    %280 = vector.shape_cast %279 : vector<1x128x512xf32> to vector<128x512xf32>
    %cst_161 = arith.constant dense<0.000000e+00> : vector<8x512xf32>
    %281 = tpu.matmul %276, %280, %cst_161 {dimension_numbers = #tpu.dot_dimension_numbers<[1], [0], [0], [1], [0, 0, 1, 1], [], []>} : vector<8x128xf32>, vector<128x512xf32>, vector<8x512xf32> -> vector<8x512xf32>
    %282 = arith.addf %274, %281 : vector<8x512xf32>
    %283 = vector.extract_strided_slice %282 {offsets = [0, 0], sizes = [8, 128], strides = [1, 1]} : vector<8x512xf32> to vector<8x128xf32>
    %284 = arith.negf %283 : vector<8x128xf32>
    %285 = math.exp %284 : vector<8x128xf32>
    %cst_162 = arith.constant 1.000000e+00 : f32
    %286 = vector.broadcast %cst_162 : f32 to vector<8x128xf32>
    %287 = arith.addf %286, %285 : vector<8x128xf32>
    %288 = arith.divf %286, %287 : vector<8x128xf32>
    %289 = vector.extract_strided_slice %282 {offsets = [0, 128], sizes = [8, 128], strides = [1, 1]} : vector<8x512xf32> to vector<8x128xf32>
    %290 = arith.negf %289 : vector<8x128xf32>
    %291 = math.exp %290 : vector<8x128xf32>
    %cst_163 = arith.constant 1.000000e+00 : f32
    %292 = vector.broadcast %cst_163 : f32 to vector<8x128xf32>
    %293 = arith.addf %292, %291 : vector<8x128xf32>
    %294 = arith.divf %292, %293 : vector<8x128xf32>
    %295 = vector.extract_strided_slice %282 {offsets = [0, 256], sizes = [8, 128], strides = [1, 1]} : vector<8x512xf32> to vector<8x128xf32>
    %296 = math.tanh %295 : vector<8x128xf32>
    %297 = vector.extract_strided_slice %282 {offsets = [0, 384], sizes = [8, 128], strides = [1, 1]} : vector<8x512xf32> to vector<8x128xf32>
    %298 = arith.negf %297 : vector<8x128xf32>
    %299 = math.exp %298 : vector<8x128xf32>
    %cst_164 = arith.constant 1.000000e+00 : f32
    %300 = vector.broadcast %cst_164 : f32 to vector<8x128xf32>
    %301 = arith.addf %300, %299 : vector<8x128xf32>
    %302 = arith.divf %300, %301 : vector<8x128xf32>
    %303 = arith.mulf %294, %278 : vector<8x128xf32>
    %304 = arith.mulf %288, %296 : vector<8x128xf32>
    %305 = arith.addf %303, %304 : vector<8x128xf32>
    %306 = math.tanh %305 : vector<8x128xf32>
    %307 = arith.mulf %302, %306 : vector<8x128xf32>
    %c0_165 = arith.constant 0 : index
    %c0_166 = arith.constant 0 : index
    %c0_167 = arith.constant 0 : index
    %308 = vector.load %arg8[%c0_165, %c0_166, %c0_167] : memref<2x8x128xf32, #tpu.memory_space<vmem>>, vector<1x8x128xf32>
    %309 = vector.shape_cast %308 : vector<1x8x128xf32> to vector<8x128xf32>
    %310 = vector.shape_cast %307 : vector<8x128xf32> to vector<1x8x128xf32>
    tpu.vector_store %arg8[%c0_165, %c0_166, %c0_167], %310 {strides = array<i32>} : memref<2x8x128xf32, #tpu.memory_space<vmem>>, vector<1x8x128xf32>,
    %c0_168 = arith.constant 0 : index
    %c0_169 = arith.constant 0 : index
    %c0_170 = arith.constant 0 : index
    %311 = vector.load %arg9[%c0_168, %c0_169, %c0_170] : memref<2x8x128xf32, #tpu.memory_space<vmem>>, vector<1x8x128xf32>
    %312 = vector.shape_cast %311 : vector<1x8x128xf32> to vector<8x128xf32>
    %313 = vector.shape_cast %305 : vector<8x128xf32> to vector<1x8x128xf32>
    tpu.vector_store %arg9[%c0_168, %c0_169, %c0_170], %313 {strides = array<i32>} : memref<2x8x128xf32, #tpu.memory_space<vmem>>, vector<1x8x128xf32>,
    %c1_171 = arith.constant 1 : index
    %c0_172 = arith.constant 0 : index
    %c0_173 = arith.constant 0 : index
    %314 = vector.load %arg8[%c1_171, %c0_172, %c0_173] : memref<2x8x128xf32, #tpu.memory_space<vmem>>, vector<1x8x128xf32>
    %315 = vector.shape_cast %314 : vector<1x8x128xf32> to vector<8x128xf32>
    %c1_174 = arith.constant 1 : index
    %c0_175 = arith.constant 0 : index
    %c0_176 = arith.constant 0 : index
    %316 = vector.load %arg9[%c1_174, %c0_175, %c0_176] : memref<2x8x128xf32, #tpu.memory_space<vmem>>, vector<1x8x128xf32>
    %317 = vector.shape_cast %316 : vector<1x8x128xf32> to vector<8x128xf32>
    %c0_177 = arith.constant 0 : index
    %c0_178 = arith.constant 0 : index
    %c0_179 = arith.constant 0 : index
    %318 = vector.load %arg3[%c0_177, %c0_178, %c0_179] : memref<1x128x512xf32, #tpu.memory_space<vmem>>, vector<1x128x512xf32>
    %319 = vector.shape_cast %318 : vector<1x128x512xf32> to vector<128x512xf32>
    %cst_180 = arith.constant dense<0.000000e+00> : vector<8x512xf32>
    %320 = tpu.matmul %307, %319, %cst_180 {dimension_numbers = #tpu.dot_dimension_numbers<[1], [0], [0], [1], [0, 0, 1, 1], [], []>} : vector<8x128xf32>, vector<128x512xf32>, vector<8x512xf32> -> vector<8x512xf32>
    %c0_181 = arith.constant 0 : index
    %c0_182 = arith.constant 0 : index
    %c0_183 = arith.constant 0 : index
    %321 = vector.load %arg4[%c0_181, %c0_182, %c0_183] : memref<1x1x512xf32, #tpu.memory_space<vmem>>, vector<1x1x512xf32>
    %322 = vector.shape_cast %321 : vector<1x1x512xf32> to vector<1x512xf32>
    %323 = vector.broadcast %322 : vector<1x512xf32> to vector<8x512xf32>
    %324 = arith.addf %320, %323 : vector<8x512xf32>
    %c1_184 = arith.constant 1 : index
    %c0_185 = arith.constant 0 : index
    %c0_186 = arith.constant 0 : index
    %325 = vector.load %arg2[%c1_184, %c0_185, %c0_186] : memref<2x128x512xf32, #tpu.memory_space<vmem>>, vector<1x128x512xf32>
    %326 = vector.shape_cast %325 : vector<1x128x512xf32> to vector<128x512xf32>
    %cst_187 = arith.constant dense<0.000000e+00> : vector<8x512xf32>
    %327 = tpu.matmul %315, %326, %cst_187 {dimension_numbers = #tpu.dot_dimension_numbers<[1], [0], [0], [1], [0, 0, 1, 1], [], []>} : vector<8x128xf32>, vector<128x512xf32>, vector<8x512xf32> -> vector<8x512xf32>
    %328 = arith.addf %324, %327 : vector<8x512xf32>
    %329 = vector.extract_strided_slice %328 {offsets = [0, 0], sizes = [8, 128], strides = [1, 1]} : vector<8x512xf32> to vector<8x128xf32>
    %330 = arith.negf %329 : vector<8x128xf32>
    %331 = math.exp %330 : vector<8x128xf32>
    %cst_188 = arith.constant 1.000000e+00 : f32
    %332 = vector.broadcast %cst_188 : f32 to vector<8x128xf32>
    %333 = arith.addf %332, %331 : vector<8x128xf32>
    %334 = arith.divf %332, %333 : vector<8x128xf32>
    %335 = vector.extract_strided_slice %328 {offsets = [0, 128], sizes = [8, 128], strides = [1, 1]} : vector<8x512xf32> to vector<8x128xf32>
    %336 = arith.negf %335 : vector<8x128xf32>
    %337 = math.exp %336 : vector<8x128xf32>
    %cst_189 = arith.constant 1.000000e+00 : f32
    %338 = vector.broadcast %cst_189 : f32 to vector<8x128xf32>
    %339 = arith.addf %338, %337 : vector<8x128xf32>
    %340 = arith.divf %338, %339 : vector<8x128xf32>
    %341 = vector.extract_strided_slice %328 {offsets = [0, 256], sizes = [8, 128], strides = [1, 1]} : vector<8x512xf32> to vector<8x128xf32>
    %342 = math.tanh %341 : vector<8x128xf32>
    %343 = vector.extract_strided_slice %328 {offsets = [0, 384], sizes = [8, 128], strides = [1, 1]} : vector<8x512xf32> to vector<8x128xf32>
    %344 = arith.negf %343 : vector<8x128xf32>
    %345 = math.exp %344 : vector<8x128xf32>
    %cst_190 = arith.constant 1.000000e+00 : f32
    %346 = vector.broadcast %cst_190 : f32 to vector<8x128xf32>
    %347 = arith.addf %346, %345 : vector<8x128xf32>
    %348 = arith.divf %346, %347 : vector<8x128xf32>
    %349 = arith.mulf %340, %317 : vector<8x128xf32>
    %350 = arith.mulf %334, %342 : vector<8x128xf32>
    %351 = arith.addf %349, %350 : vector<8x128xf32>
    %352 = math.tanh %351 : vector<8x128xf32>
    %353 = arith.mulf %348, %352 : vector<8x128xf32>
    %c1_191 = arith.constant 1 : index
    %c0_192 = arith.constant 0 : index
    %c0_193 = arith.constant 0 : index
    %354 = vector.load %arg8[%c1_191, %c0_192, %c0_193] : memref<2x8x128xf32, #tpu.memory_space<vmem>>, vector<1x8x128xf32>
    %355 = vector.shape_cast %354 : vector<1x8x128xf32> to vector<8x128xf32>
    %356 = vector.shape_cast %353 : vector<8x128xf32> to vector<1x8x128xf32>
    tpu.vector_store %arg8[%c1_191, %c0_192, %c0_193], %356 {strides = array<i32>} : memref<2x8x128xf32, #tpu.memory_space<vmem>>, vector<1x8x128xf32>,
    %c1_194 = arith.constant 1 : index
    %c0_195 = arith.constant 0 : index
    %c0_196 = arith.constant 0 : index
    %357 = vector.load %arg9[%c1_194, %c0_195, %c0_196] : memref<2x8x128xf32, #tpu.memory_space<vmem>>, vector<1x8x128xf32>
    %358 = vector.shape_cast %357 : vector<1x8x128xf32> to vector<8x128xf32>
    %359 = vector.shape_cast %351 : vector<8x128xf32> to vector<1x8x128xf32>
    tpu.vector_store %arg9[%c1_194, %c0_195, %c0_196], %359 {strides = array<i32>} : memref<2x8x128xf32, #tpu.memory_space<vmem>>, vector<1x8x128xf32>,
    %c0_197 = arith.constant 0 : index
    %c3_198 = arith.constant 3 : index
    %c0_199 = arith.constant 0 : index
    %360 = vector.load %arg5[%c0_197, %c3_198, %c0_199] : memref<8x8x128xf32, #tpu.memory_space<vmem>>, vector<8x1x128xf32>
    %361 = vector.shape_cast %360 : vector<8x1x128xf32> to vector<8x128xf32>
    %362 = vector.shape_cast %353 : vector<8x128xf32> to vector<8x1x128xf32>
    tpu.vector_store %arg5[%c0_197, %c3_198, %c0_199], %362 {strides = array<i32>} : memref<8x8x128xf32, #tpu.memory_space<vmem>>, vector<8x1x128xf32>,
    %c0_200 = arith.constant 0 : index
    %c4 = arith.constant 4 : index
    %c0_201 = arith.constant 0 : index
    %363 = vector.load %arg1[%c0_200, %c4, %c0_201] : memref<8x8x512xf32, #tpu.memory_space<vmem>>, vector<8x1x512xf32>
    %364 = vector.shape_cast %363 : vector<8x1x512xf32> to vector<8x512xf32>
    %c0_202 = arith.constant 0 : index
    %c0_203 = arith.constant 0 : index
    %c0_204 = arith.constant 0 : index
    %365 = vector.load %arg8[%c0_202, %c0_203, %c0_204] : memref<2x8x128xf32, #tpu.memory_space<vmem>>, vector<1x8x128xf32>
    %366 = vector.shape_cast %365 : vector<1x8x128xf32> to vector<8x128xf32>
    %c0_205 = arith.constant 0 : index
    %c0_206 = arith.constant 0 : index
    %c0_207 = arith.constant 0 : index
    %367 = vector.load %arg9[%c0_205, %c0_206, %c0_207] : memref<2x8x128xf32, #tpu.memory_space<vmem>>, vector<1x8x128xf32>
    %368 = vector.shape_cast %367 : vector<1x8x128xf32> to vector<8x128xf32>
    %c0_208 = arith.constant 0 : index
    %c0_209 = arith.constant 0 : index
    %c0_210 = arith.constant 0 : index
    %369 = vector.load %arg2[%c0_208, %c0_209, %c0_210] : memref<2x128x512xf32, #tpu.memory_space<vmem>>, vector<1x128x512xf32>
    %370 = vector.shape_cast %369 : vector<1x128x512xf32> to vector<128x512xf32>
    %cst_211 = arith.constant dense<0.000000e+00> : vector<8x512xf32>
    %371 = tpu.matmul %366, %370, %cst_211 {dimension_numbers = #tpu.dot_dimension_numbers<[1], [0], [0], [1], [0, 0, 1, 1], [], []>} : vector<8x128xf32>, vector<128x512xf32>, vector<8x512xf32> -> vector<8x512xf32>
    %372 = arith.addf %364, %371 : vector<8x512xf32>
    %373 = vector.extract_strided_slice %372 {offsets = [0, 0], sizes = [8, 128], strides = [1, 1]} : vector<8x512xf32> to vector<8x128xf32>
    %374 = arith.negf %373 : vector<8x128xf32>
    %375 = math.exp %374 : vector<8x128xf32>
    %cst_212 = arith.constant 1.000000e+00 : f32
    %376 = vector.broadcast %cst_212 : f32 to vector<8x128xf32>
    %377 = arith.addf %376, %375 : vector<8x128xf32>
    %378 = arith.divf %376, %377 : vector<8x128xf32>
    %379 = vector.extract_strided_slice %372 {offsets = [0, 128], sizes = [8, 128], strides = [1, 1]} : vector<8x512xf32> to vector<8x128xf32>
    %380 = arith.negf %379 : vector<8x128xf32>
    %381 = math.exp %380 : vector<8x128xf32>
    %cst_213 = arith.constant 1.000000e+00 : f32
    %382 = vector.broadcast %cst_213 : f32 to vector<8x128xf32>
    %383 = arith.addf %382, %381 : vector<8x128xf32>
    %384 = arith.divf %382, %383 : vector<8x128xf32>
    %385 = vector.extract_strided_slice %372 {offsets = [0, 256], sizes = [8, 128], strides = [1, 1]} : vector<8x512xf32> to vector<8x128xf32>
    %386 = math.tanh %385 : vector<8x128xf32>
    %387 = vector.extract_strided_slice %372 {offsets = [0, 384], sizes = [8, 128], strides = [1, 1]} : vector<8x512xf32> to vector<8x128xf32>
    %388 = arith.negf %387 : vector<8x128xf32>
    %389 = math.exp %388 : vector<8x128xf32>
    %cst_214 = arith.constant 1.000000e+00 : f32
    %390 = vector.broadcast %cst_214 : f32 to vector<8x128xf32>
    %391 = arith.addf %390, %389 : vector<8x128xf32>
    %392 = arith.divf %390, %391 : vector<8x128xf32>
    %393 = arith.mulf %384, %368 : vector<8x128xf32>
    %394 = arith.mulf %378, %386 : vector<8x128xf32>
    %395 = arith.addf %393, %394 : vector<8x128xf32>
    %396 = math.tanh %395 : vector<8x128xf32>
    %397 = arith.mulf %392, %396 : vector<8x128xf32>
    %c0_215 = arith.constant 0 : index
    %c0_216 = arith.constant 0 : index
    %c0_217 = arith.constant 0 : index
    %398 = vector.load %arg8[%c0_215, %c0_216, %c0_217] : memref<2x8x128xf32, #tpu.memory_space<vmem>>, vector<1x8x128xf32>
    %399 = vector.shape_cast %398 : vector<1x8x128xf32> to vector<8x128xf32>
    %400 = vector.shape_cast %397 : vector<8x128xf32> to vector<1x8x128xf32>
    tpu.vector_store %arg8[%c0_215, %c0_216, %c0_217], %400 {strides = array<i32>} : memref<2x8x128xf32, #tpu.memory_space<vmem>>, vector<1x8x128xf32>,
    %c0_218 = arith.constant 0 : index
    %c0_219 = arith.constant 0 : index
    %c0_220 = arith.constant 0 : index
    %401 = vector.load %arg9[%c0_218, %c0_219, %c0_220] : memref<2x8x128xf32, #tpu.memory_space<vmem>>, vector<1x8x128xf32>
    %402 = vector.shape_cast %401 : vector<1x8x128xf32> to vector<8x128xf32>
    %403 = vector.shape_cast %395 : vector<8x128xf32> to vector<1x8x128xf32>
    tpu.vector_store %arg9[%c0_218, %c0_219, %c0_220], %403 {strides = array<i32>} : memref<2x8x128xf32, #tpu.memory_space<vmem>>, vector<1x8x128xf32>,
    %c1_221 = arith.constant 1 : index
    %c0_222 = arith.constant 0 : index
    %c0_223 = arith.constant 0 : index
    %404 = vector.load %arg8[%c1_221, %c0_222, %c0_223] : memref<2x8x128xf32, #tpu.memory_space<vmem>>, vector<1x8x128xf32>
    %405 = vector.shape_cast %404 : vector<1x8x128xf32> to vector<8x128xf32>
    %c1_224 = arith.constant 1 : index
    %c0_225 = arith.constant 0 : index
    %c0_226 = arith.constant 0 : index
    %406 = vector.load %arg9[%c1_224, %c0_225, %c0_226] : memref<2x8x128xf32, #tpu.memory_space<vmem>>, vector<1x8x128xf32>
    %407 = vector.shape_cast %406 : vector<1x8x128xf32> to vector<8x128xf32>
    %c0_227 = arith.constant 0 : index
    %c0_228 = arith.constant 0 : index
    %c0_229 = arith.constant 0 : index
    %408 = vector.load %arg3[%c0_227, %c0_228, %c0_229] : memref<1x128x512xf32, #tpu.memory_space<vmem>>, vector<1x128x512xf32>
    %409 = vector.shape_cast %408 : vector<1x128x512xf32> to vector<128x512xf32>
    %cst_230 = arith.constant dense<0.000000e+00> : vector<8x512xf32>
    %410 = tpu.matmul %397, %409, %cst_230 {dimension_numbers = #tpu.dot_dimension_numbers<[1], [0], [0], [1], [0, 0, 1, 1], [], []>} : vector<8x128xf32>, vector<128x512xf32>, vector<8x512xf32> -> vector<8x512xf32>
    %c0_231 = arith.constant 0 : index
    %c0_232 = arith.constant 0 : index
    %c0_233 = arith.constant 0 : index
    %411 = vector.load %arg4[%c0_231, %c0_232, %c0_233] : memref<1x1x512xf32, #tpu.memory_space<vmem>>, vector<1x1x512xf32>
    %412 = vector.shape_cast %411 : vector<1x1x512xf32> to vector<1x512xf32>
    %413 = vector.broadcast %412 : vector<1x512xf32> to vector<8x512xf32>
    %414 = arith.addf %410, %413 : vector<8x512xf32>
    %c1_234 = arith.constant 1 : index
    %c0_235 = arith.constant 0 : index
    %c0_236 = arith.constant 0 : index
    %415 = vector.load %arg2[%c1_234, %c0_235, %c0_236] : memref<2x128x512xf32, #tpu.memory_space<vmem>>, vector<1x128x512xf32>
    %416 = vector.shape_cast %415 : vector<1x128x512xf32> to vector<128x512xf32>
    %cst_237 = arith.constant dense<0.000000e+00> : vector<8x512xf32>
    %417 = tpu.matmul %405, %416, %cst_237 {dimension_numbers = #tpu.dot_dimension_numbers<[1], [0], [0], [1], [0, 0, 1, 1], [], []>} : vector<8x128xf32>, vector<128x512xf32>, vector<8x512xf32> -> vector<8x512xf32>
    %418 = arith.addf %414, %417 : vector<8x512xf32>
    %419 = vector.extract_strided_slice %418 {offsets = [0, 0], sizes = [8, 128], strides = [1, 1]} : vector<8x512xf32> to vector<8x128xf32>
    %420 = arith.negf %419 : vector<8x128xf32>
    %421 = math.exp %420 : vector<8x128xf32>
    %cst_238 = arith.constant 1.000000e+00 : f32
    %422 = vector.broadcast %cst_238 : f32 to vector<8x128xf32>
    %423 = arith.addf %422, %421 : vector<8x128xf32>
    %424 = arith.divf %422, %423 : vector<8x128xf32>
    %425 = vector.extract_strided_slice %418 {offsets = [0, 128], sizes = [8, 128], strides = [1, 1]} : vector<8x512xf32> to vector<8x128xf32>
    %426 = arith.negf %425 : vector<8x128xf32>
    %427 = math.exp %426 : vector<8x128xf32>
    %cst_239 = arith.constant 1.000000e+00 : f32
    %428 = vector.broadcast %cst_239 : f32 to vector<8x128xf32>
    %429 = arith.addf %428, %427 : vector<8x128xf32>
    %430 = arith.divf %428, %429 : vector<8x128xf32>
    %431 = vector.extract_strided_slice %418 {offsets = [0, 256], sizes = [8, 128], strides = [1, 1]} : vector<8x512xf32> to vector<8x128xf32>
    %432 = math.tanh %431 : vector<8x128xf32>
    %433 = vector.extract_strided_slice %418 {offsets = [0, 384], sizes = [8, 128], strides = [1, 1]} : vector<8x512xf32> to vector<8x128xf32>
    %434 = arith.negf %433 : vector<8x128xf32>
    %435 = math.exp %434 : vector<8x128xf32>
    %cst_240 = arith.constant 1.000000e+00 : f32
    %436 = vector.broadcast %cst_240 : f32 to vector<8x128xf32>
    %437 = arith.addf %436, %435 : vector<8x128xf32>
    %438 = arith.divf %436, %437 : vector<8x128xf32>
    %439 = arith.mulf %430, %407 : vector<8x128xf32>
    %440 = arith.mulf %424, %432 : vector<8x128xf32>
    %441 = arith.addf %439, %440 : vector<8x128xf32>
    %442 = math.tanh %441 : vector<8x128xf32>
    %443 = arith.mulf %438, %442 : vector<8x128xf32>
    %c1_241 = arith.constant 1 : index
    %c0_242 = arith.constant 0 : index
    %c0_243 = arith.constant 0 : index
    %444 = vector.load %arg8[%c1_241, %c0_242, %c0_243] : memref<2x8x128xf32, #tpu.memory_space<vmem>>, vector<1x8x128xf32>
    %445 = vector.shape_cast %444 : vector<1x8x128xf32> to vector<8x128xf32>
    %446 = vector.shape_cast %443 : vector<8x128xf32> to vector<1x8x128xf32>
    tpu.vector_store %arg8[%c1_241, %c0_242, %c0_243], %446 {strides = array<i32>} : memref<2x8x128xf32, #tpu.memory_space<vmem>>, vector<1x8x128xf32>,
    %c1_244 = arith.constant 1 : index
    %c0_245 = arith.constant 0 : index
    %c0_246 = arith.constant 0 : index
    %447 = vector.load %arg9[%c1_244, %c0_245, %c0_246] : memref<2x8x128xf32, #tpu.memory_space<vmem>>, vector<1x8x128xf32>
    %448 = vector.shape_cast %447 : vector<1x8x128xf32> to vector<8x128xf32>
    %449 = vector.shape_cast %441 : vector<8x128xf32> to vector<1x8x128xf32>
    tpu.vector_store %arg9[%c1_244, %c0_245, %c0_246], %449 {strides = array<i32>} : memref<2x8x128xf32, #tpu.memory_space<vmem>>, vector<1x8x128xf32>,
    %c0_247 = arith.constant 0 : index
    %c4_248 = arith.constant 4 : index
    %c0_249 = arith.constant 0 : index
    %450 = vector.load %arg5[%c0_247, %c4_248, %c0_249] : memref<8x8x128xf32, #tpu.memory_space<vmem>>, vector<8x1x128xf32>
    %451 = vector.shape_cast %450 : vector<8x1x128xf32> to vector<8x128xf32>
    %452 = vector.shape_cast %443 : vector<8x128xf32> to vector<8x1x128xf32>
    tpu.vector_store %arg5[%c0_247, %c4_248, %c0_249], %452 {strides = array<i32>} : memref<8x8x128xf32, #tpu.memory_space<vmem>>, vector<8x1x128xf32>,
    %c0_250 = arith.constant 0 : index
    %c5 = arith.constant 5 : index
    %c0_251 = arith.constant 0 : index
    %453 = vector.load %arg1[%c0_250, %c5, %c0_251] : memref<8x8x512xf32, #tpu.memory_space<vmem>>, vector<8x1x512xf32>
    %454 = vector.shape_cast %453 : vector<8x1x512xf32> to vector<8x512xf32>
    %c0_252 = arith.constant 0 : index
    %c0_253 = arith.constant 0 : index
    %c0_254 = arith.constant 0 : index
    %455 = vector.load %arg8[%c0_252, %c0_253, %c0_254] : memref<2x8x128xf32, #tpu.memory_space<vmem>>, vector<1x8x128xf32>
    %456 = vector.shape_cast %455 : vector<1x8x128xf32> to vector<8x128xf32>
    %c0_255 = arith.constant 0 : index
    %c0_256 = arith.constant 0 : index
    %c0_257 = arith.constant 0 : index
    %457 = vector.load %arg9[%c0_255, %c0_256, %c0_257] : memref<2x8x128xf32, #tpu.memory_space<vmem>>, vector<1x8x128xf32>
    %458 = vector.shape_cast %457 : vector<1x8x128xf32> to vector<8x128xf32>
    %c0_258 = arith.constant 0 : index
    %c0_259 = arith.constant 0 : index
    %c0_260 = arith.constant 0 : index
    %459 = vector.load %arg2[%c0_258, %c0_259, %c0_260] : memref<2x128x512xf32, #tpu.memory_space<vmem>>, vector<1x128x512xf32>
    %460 = vector.shape_cast %459 : vector<1x128x512xf32> to vector<128x512xf32>
    %cst_261 = arith.constant dense<0.000000e+00> : vector<8x512xf32>
    %461 = tpu.matmul %456, %460, %cst_261 {dimension_numbers = #tpu.dot_dimension_numbers<[1], [0], [0], [1], [0, 0, 1, 1], [], []>} : vector<8x128xf32>, vector<128x512xf32>, vector<8x512xf32> -> vector<8x512xf32>
    %462 = arith.addf %454, %461 : vector<8x512xf32>
    %463 = vector.extract_strided_slice %462 {offsets = [0, 0], sizes = [8, 128], strides = [1, 1]} : vector<8x512xf32> to vector<8x128xf32>
    %464 = arith.negf %463 : vector<8x128xf32>
    %465 = math.exp %464 : vector<8x128xf32>
    %cst_262 = arith.constant 1.000000e+00 : f32
    %466 = vector.broadcast %cst_262 : f32 to vector<8x128xf32>
    %467 = arith.addf %466, %465 : vector<8x128xf32>
    %468 = arith.divf %466, %467 : vector<8x128xf32>
    %469 = vector.extract_strided_slice %462 {offsets = [0, 128], sizes = [8, 128], strides = [1, 1]} : vector<8x512xf32> to vector<8x128xf32>
    %470 = arith.negf %469 : vector<8x128xf32>
    %471 = math.exp %470 : vector<8x128xf32>
    %cst_263 = arith.constant 1.000000e+00 : f32
    %472 = vector.broadcast %cst_263 : f32 to vector<8x128xf32>
    %473 = arith.addf %472, %471 : vector<8x128xf32>
    %474 = arith.divf %472, %473 : vector<8x128xf32>
    %475 = vector.extract_strided_slice %462 {offsets = [0, 256], sizes = [8, 128], strides = [1, 1]} : vector<8x512xf32> to vector<8x128xf32>
    %476 = math.tanh %475 : vector<8x128xf32>
    %477 = vector.extract_strided_slice %462 {offsets = [0, 384], sizes = [8, 128], strides = [1, 1]} : vector<8x512xf32> to vector<8x128xf32>
    %478 = arith.negf %477 : vector<8x128xf32>
    %479 = math.exp %478 : vector<8x128xf32>
    %cst_264 = arith.constant 1.000000e+00 : f32
    %480 = vector.broadcast %cst_264 : f32 to vector<8x128xf32>
    %481 = arith.addf %480, %479 : vector<8x128xf32>
    %482 = arith.divf %480, %481 : vector<8x128xf32>
    %483 = arith.mulf %474, %458 : vector<8x128xf32>
    %484 = arith.mulf %468, %476 : vector<8x128xf32>
    %485 = arith.addf %483, %484 : vector<8x128xf32>
    %486 = math.tanh %485 : vector<8x128xf32>
    %487 = arith.mulf %482, %486 : vector<8x128xf32>
    %c0_265 = arith.constant 0 : index
    %c0_266 = arith.constant 0 : index
    %c0_267 = arith.constant 0 : index
    %488 = vector.load %arg8[%c0_265, %c0_266, %c0_267] : memref<2x8x128xf32, #tpu.memory_space<vmem>>, vector<1x8x128xf32>
    %489 = vector.shape_cast %488 : vector<1x8x128xf32> to vector<8x128xf32>
    %490 = vector.shape_cast %487 : vector<8x128xf32> to vector<1x8x128xf32>
    tpu.vector_store %arg8[%c0_265, %c0_266, %c0_267], %490 {strides = array<i32>} : memref<2x8x128xf32, #tpu.memory_space<vmem>>, vector<1x8x128xf32>,
    %c0_268 = arith.constant 0 : index
    %c0_269 = arith.constant 0 : index
    %c0_270 = arith.constant 0 : index
    %491 = vector.load %arg9[%c0_268, %c0_269, %c0_270] : memref<2x8x128xf32, #tpu.memory_space<vmem>>, vector<1x8x128xf32>
    %492 = vector.shape_cast %491 : vector<1x8x128xf32> to vector<8x128xf32>
    %493 = vector.shape_cast %485 : vector<8x128xf32> to vector<1x8x128xf32>
    tpu.vector_store %arg9[%c0_268, %c0_269, %c0_270], %493 {strides = array<i32>} : memref<2x8x128xf32, #tpu.memory_space<vmem>>, vector<1x8x128xf32>,
    %c1_271 = arith.constant 1 : index
    %c0_272 = arith.constant 0 : index
    %c0_273 = arith.constant 0 : index
    %494 = vector.load %arg8[%c1_271, %c0_272, %c0_273] : memref<2x8x128xf32, #tpu.memory_space<vmem>>, vector<1x8x128xf32>
    %495 = vector.shape_cast %494 : vector<1x8x128xf32> to vector<8x128xf32>
    %c1_274 = arith.constant 1 : index
    %c0_275 = arith.constant 0 : index
    %c0_276 = arith.constant 0 : index
    %496 = vector.load %arg9[%c1_274, %c0_275, %c0_276] : memref<2x8x128xf32, #tpu.memory_space<vmem>>, vector<1x8x128xf32>
    %497 = vector.shape_cast %496 : vector<1x8x128xf32> to vector<8x128xf32>
    %c0_277 = arith.constant 0 : index
    %c0_278 = arith.constant 0 : index
    %c0_279 = arith.constant 0 : index
    %498 = vector.load %arg3[%c0_277, %c0_278, %c0_279] : memref<1x128x512xf32, #tpu.memory_space<vmem>>, vector<1x128x512xf32>
    %499 = vector.shape_cast %498 : vector<1x128x512xf32> to vector<128x512xf32>
    %cst_280 = arith.constant dense<0.000000e+00> : vector<8x512xf32>
    %500 = tpu.matmul %487, %499, %cst_280 {dimension_numbers = #tpu.dot_dimension_numbers<[1], [0], [0], [1], [0, 0, 1, 1], [], []>} : vector<8x128xf32>, vector<128x512xf32>, vector<8x512xf32> -> vector<8x512xf32>
    %c0_281 = arith.constant 0 : index
    %c0_282 = arith.constant 0 : index
    %c0_283 = arith.constant 0 : index
    %501 = vector.load %arg4[%c0_281, %c0_282, %c0_283] : memref<1x1x512xf32, #tpu.memory_space<vmem>>, vector<1x1x512xf32>
    %502 = vector.shape_cast %501 : vector<1x1x512xf32> to vector<1x512xf32>
    %503 = vector.broadcast %502 : vector<1x512xf32> to vector<8x512xf32>
    %504 = arith.addf %500, %503 : vector<8x512xf32>
    %c1_284 = arith.constant 1 : index
    %c0_285 = arith.constant 0 : index
    %c0_286 = arith.constant 0 : index
    %505 = vector.load %arg2[%c1_284, %c0_285, %c0_286] : memref<2x128x512xf32, #tpu.memory_space<vmem>>, vector<1x128x512xf32>
    %506 = vector.shape_cast %505 : vector<1x128x512xf32> to vector<128x512xf32>
    %cst_287 = arith.constant dense<0.000000e+00> : vector<8x512xf32>
    %507 = tpu.matmul %495, %506, %cst_287 {dimension_numbers = #tpu.dot_dimension_numbers<[1], [0], [0], [1], [0, 0, 1, 1], [], []>} : vector<8x128xf32>, vector<128x512xf32>, vector<8x512xf32> -> vector<8x512xf32>
    %508 = arith.addf %504, %507 : vector<8x512xf32>
    %509 = vector.extract_strided_slice %508 {offsets = [0, 0], sizes = [8, 128], strides = [1, 1]} : vector<8x512xf32> to vector<8x128xf32>
    %510 = arith.negf %509 : vector<8x128xf32>
    %511 = math.exp %510 : vector<8x128xf32>
    %cst_288 = arith.constant 1.000000e+00 : f32
    %512 = vector.broadcast %cst_288 : f32 to vector<8x128xf32>
    %513 = arith.addf %512, %511 : vector<8x128xf32>
    %514 = arith.divf %512, %513 : vector<8x128xf32>
    %515 = vector.extract_strided_slice %508 {offsets = [0, 128], sizes = [8, 128], strides = [1, 1]} : vector<8x512xf32> to vector<8x128xf32>
    %516 = arith.negf %515 : vector<8x128xf32>
    %517 = math.exp %516 : vector<8x128xf32>
    %cst_289 = arith.constant 1.000000e+00 : f32
    %518 = vector.broadcast %cst_289 : f32 to vector<8x128xf32>
    %519 = arith.addf %518, %517 : vector<8x128xf32>
    %520 = arith.divf %518, %519 : vector<8x128xf32>
    %521 = vector.extract_strided_slice %508 {offsets = [0, 256], sizes = [8, 128], strides = [1, 1]} : vector<8x512xf32> to vector<8x128xf32>
    %522 = math.tanh %521 : vector<8x128xf32>
    %523 = vector.extract_strided_slice %508 {offsets = [0, 384], sizes = [8, 128], strides = [1, 1]} : vector<8x512xf32> to vector<8x128xf32>
    %524 = arith.negf %523 : vector<8x128xf32>
    %525 = math.exp %524 : vector<8x128xf32>
    %cst_290 = arith.constant 1.000000e+00 : f32
    %526 = vector.broadcast %cst_290 : f32 to vector<8x128xf32>
    %527 = arith.addf %526, %525 : vector<8x128xf32>
    %528 = arith.divf %526, %527 : vector<8x128xf32>
    %529 = arith.mulf %520, %497 : vector<8x128xf32>
    %530 = arith.mulf %514, %522 : vector<8x128xf32>
    %531 = arith.addf %529, %530 : vector<8x128xf32>
    %532 = math.tanh %531 : vector<8x128xf32>
    %533 = arith.mulf %528, %532 : vector<8x128xf32>
    %c1_291 = arith.constant 1 : index
    %c0_292 = arith.constant 0 : index
    %c0_293 = arith.constant 0 : index
    %534 = vector.load %arg8[%c1_291, %c0_292, %c0_293] : memref<2x8x128xf32, #tpu.memory_space<vmem>>, vector<1x8x128xf32>
    %535 = vector.shape_cast %534 : vector<1x8x128xf32> to vector<8x128xf32>
    %536 = vector.shape_cast %533 : vector<8x128xf32> to vector<1x8x128xf32>
    tpu.vector_store %arg8[%c1_291, %c0_292, %c0_293], %536 {strides = array<i32>} : memref<2x8x128xf32, #tpu.memory_space<vmem>>, vector<1x8x128xf32>,
    %c1_294 = arith.constant 1 : index
    %c0_295 = arith.constant 0 : index
    %c0_296 = arith.constant 0 : index
    %537 = vector.load %arg9[%c1_294, %c0_295, %c0_296] : memref<2x8x128xf32, #tpu.memory_space<vmem>>, vector<1x8x128xf32>
    %538 = vector.shape_cast %537 : vector<1x8x128xf32> to vector<8x128xf32>
    %539 = vector.shape_cast %531 : vector<8x128xf32> to vector<1x8x128xf32>
    tpu.vector_store %arg9[%c1_294, %c0_295, %c0_296], %539 {strides = array<i32>} : memref<2x8x128xf32, #tpu.memory_space<vmem>>, vector<1x8x128xf32>,
    %c0_297 = arith.constant 0 : index
    %c5_298 = arith.constant 5 : index
    %c0_299 = arith.constant 0 : index
    %540 = vector.load %arg5[%c0_297, %c5_298, %c0_299] : memref<8x8x128xf32, #tpu.memory_space<vmem>>, vector<8x1x128xf32>
    %541 = vector.shape_cast %540 : vector<8x1x128xf32> to vector<8x128xf32>
    %542 = vector.shape_cast %533 : vector<8x128xf32> to vector<8x1x128xf32>
    tpu.vector_store %arg5[%c0_297, %c5_298, %c0_299], %542 {strides = array<i32>} : memref<8x8x128xf32, #tpu.memory_space<vmem>>, vector<8x1x128xf32>,
    %c0_300 = arith.constant 0 : index
    %c6 = arith.constant 6 : index
    %c0_301 = arith.constant 0 : index
    %543 = vector.load %arg1[%c0_300, %c6, %c0_301] : memref<8x8x512xf32, #tpu.memory_space<vmem>>, vector<8x1x512xf32>
    %544 = vector.shape_cast %543 : vector<8x1x512xf32> to vector<8x512xf32>
    %c0_302 = arith.constant 0 : index
    %c0_303 = arith.constant 0 : index
    %c0_304 = arith.constant 0 : index
    %545 = vector.load %arg8[%c0_302, %c0_303, %c0_304] : memref<2x8x128xf32, #tpu.memory_space<vmem>>, vector<1x8x128xf32>
    %546 = vector.shape_cast %545 : vector<1x8x128xf32> to vector<8x128xf32>
    %c0_305 = arith.constant 0 : index
    %c0_306 = arith.constant 0 : index
    %c0_307 = arith.constant 0 : index
    %547 = vector.load %arg9[%c0_305, %c0_306, %c0_307] : memref<2x8x128xf32, #tpu.memory_space<vmem>>, vector<1x8x128xf32>
    %548 = vector.shape_cast %547 : vector<1x8x128xf32> to vector<8x128xf32>
    %c0_308 = arith.constant 0 : index
    %c0_309 = arith.constant 0 : index
    %c0_310 = arith.constant 0 : index
    %549 = vector.load %arg2[%c0_308, %c0_309, %c0_310] : memref<2x128x512xf32, #tpu.memory_space<vmem>>, vector<1x128x512xf32>
    %550 = vector.shape_cast %549 : vector<1x128x512xf32> to vector<128x512xf32>
    %cst_311 = arith.constant dense<0.000000e+00> : vector<8x512xf32>
    %551 = tpu.matmul %546, %550, %cst_311 {dimension_numbers = #tpu.dot_dimension_numbers<[1], [0], [0], [1], [0, 0, 1, 1], [], []>} : vector<8x128xf32>, vector<128x512xf32>, vector<8x512xf32> -> vector<8x512xf32>
    %552 = arith.addf %544, %551 : vector<8x512xf32>
    %553 = vector.extract_strided_slice %552 {offsets = [0, 0], sizes = [8, 128], strides = [1, 1]} : vector<8x512xf32> to vector<8x128xf32>
    %554 = arith.negf %553 : vector<8x128xf32>
    %555 = math.exp %554 : vector<8x128xf32>
    %cst_312 = arith.constant 1.000000e+00 : f32
    %556 = vector.broadcast %cst_312 : f32 to vector<8x128xf32>
    %557 = arith.addf %556, %555 : vector<8x128xf32>
    %558 = arith.divf %556, %557 : vector<8x128xf32>
    %559 = vector.extract_strided_slice %552 {offsets = [0, 128], sizes = [8, 128], strides = [1, 1]} : vector<8x512xf32> to vector<8x128xf32>
    %560 = arith.negf %559 : vector<8x128xf32>
    %561 = math.exp %560 : vector<8x128xf32>
    %cst_313 = arith.constant 1.000000e+00 : f32
    %562 = vector.broadcast %cst_313 : f32 to vector<8x128xf32>
    %563 = arith.addf %562, %561 : vector<8x128xf32>
    %564 = arith.divf %562, %563 : vector<8x128xf32>
    %565 = vector.extract_strided_slice %552 {offsets = [0, 256], sizes = [8, 128], strides = [1, 1]} : vector<8x512xf32> to vector<8x128xf32>
    %566 = math.tanh %565 : vector<8x128xf32>
    %567 = vector.extract_strided_slice %552 {offsets = [0, 384], sizes = [8, 128], strides = [1, 1]} : vector<8x512xf32> to vector<8x128xf32>
    %568 = arith.negf %567 : vector<8x128xf32>
    %569 = math.exp %568 : vector<8x128xf32>
    %cst_314 = arith.constant 1.000000e+00 : f32
    %570 = vector.broadcast %cst_314 : f32 to vector<8x128xf32>
    %571 = arith.addf %570, %569 : vector<8x128xf32>
    %572 = arith.divf %570, %571 : vector<8x128xf32>
    %573 = arith.mulf %564, %548 : vector<8x128xf32>
    %574 = arith.mulf %558, %566 : vector<8x128xf32>
    %575 = arith.addf %573, %574 : vector<8x128xf32>
    %576 = math.tanh %575 : vector<8x128xf32>
    %577 = arith.mulf %572, %576 : vector<8x128xf32>
    %c0_315 = arith.constant 0 : index
    %c0_316 = arith.constant 0 : index
    %c0_317 = arith.constant 0 : index
    %578 = vector.load %arg8[%c0_315, %c0_316, %c0_317] : memref<2x8x128xf32, #tpu.memory_space<vmem>>, vector<1x8x128xf32>
    %579 = vector.shape_cast %578 : vector<1x8x128xf32> to vector<8x128xf32>
    %580 = vector.shape_cast %577 : vector<8x128xf32> to vector<1x8x128xf32>
    tpu.vector_store %arg8[%c0_315, %c0_316, %c0_317], %580 {strides = array<i32>} : memref<2x8x128xf32, #tpu.memory_space<vmem>>, vector<1x8x128xf32>,
    %c0_318 = arith.constant 0 : index
    %c0_319 = arith.constant 0 : index
    %c0_320 = arith.constant 0 : index
    %581 = vector.load %arg9[%c0_318, %c0_319, %c0_320] : memref<2x8x128xf32, #tpu.memory_space<vmem>>, vector<1x8x128xf32>
    %582 = vector.shape_cast %581 : vector<1x8x128xf32> to vector<8x128xf32>
    %583 = vector.shape_cast %575 : vector<8x128xf32> to vector<1x8x128xf32>
    tpu.vector_store %arg9[%c0_318, %c0_319, %c0_320], %583 {strides = array<i32>} : memref<2x8x128xf32, #tpu.memory_space<vmem>>, vector<1x8x128xf32>,
    %c1_321 = arith.constant 1 : index
    %c0_322 = arith.constant 0 : index
    %c0_323 = arith.constant 0 : index
    %584 = vector.load %arg8[%c1_321, %c0_322, %c0_323] : memref<2x8x128xf32, #tpu.memory_space<vmem>>, vector<1x8x128xf32>
    %585 = vector.shape_cast %584 : vector<1x8x128xf32> to vector<8x128xf32>
    %c1_324 = arith.constant 1 : index
    %c0_325 = arith.constant 0 : index
    %c0_326 = arith.constant 0 : index
    %586 = vector.load %arg9[%c1_324, %c0_325, %c0_326] : memref<2x8x128xf32, #tpu.memory_space<vmem>>, vector<1x8x128xf32>
    %587 = vector.shape_cast %586 : vector<1x8x128xf32> to vector<8x128xf32>
    %c0_327 = arith.constant 0 : index
    %c0_328 = arith.constant 0 : index
    %c0_329 = arith.constant 0 : index
    %588 = vector.load %arg3[%c0_327, %c0_328, %c0_329] : memref<1x128x512xf32, #tpu.memory_space<vmem>>, vector<1x128x512xf32>
    %589 = vector.shape_cast %588 : vector<1x128x512xf32> to vector<128x512xf32>
    %cst_330 = arith.constant dense<0.000000e+00> : vector<8x512xf32>
    %590 = tpu.matmul %577, %589, %cst_330 {dimension_numbers = #tpu.dot_dimension_numbers<[1], [0], [0], [1], [0, 0, 1, 1], [], []>} : vector<8x128xf32>, vector<128x512xf32>, vector<8x512xf32> -> vector<8x512xf32>
    %c0_331 = arith.constant 0 : index
    %c0_332 = arith.constant 0 : index
    %c0_333 = arith.constant 0 : index
    %591 = vector.load %arg4[%c0_331, %c0_332, %c0_333] : memref<1x1x512xf32, #tpu.memory_space<vmem>>, vector<1x1x512xf32>
    %592 = vector.shape_cast %591 : vector<1x1x512xf32> to vector<1x512xf32>
    %593 = vector.broadcast %592 : vector<1x512xf32> to vector<8x512xf32>
    %594 = arith.addf %590, %593 : vector<8x512xf32>
    %c1_334 = arith.constant 1 : index
    %c0_335 = arith.constant 0 : index
    %c0_336 = arith.constant 0 : index
    %595 = vector.load %arg2[%c1_334, %c0_335, %c0_336] : memref<2x128x512xf32, #tpu.memory_space<vmem>>, vector<1x128x512xf32>
    %596 = vector.shape_cast %595 : vector<1x128x512xf32> to vector<128x512xf32>
    %cst_337 = arith.constant dense<0.000000e+00> : vector<8x512xf32>
    %597 = tpu.matmul %585, %596, %cst_337 {dimension_numbers = #tpu.dot_dimension_numbers<[1], [0], [0], [1], [0, 0, 1, 1], [], []>} : vector<8x128xf32>, vector<128x512xf32>, vector<8x512xf32> -> vector<8x512xf32>
    %598 = arith.addf %594, %597 : vector<8x512xf32>
    %599 = vector.extract_strided_slice %598 {offsets = [0, 0], sizes = [8, 128], strides = [1, 1]} : vector<8x512xf32> to vector<8x128xf32>
    %600 = arith.negf %599 : vector<8x128xf32>
    %601 = math.exp %600 : vector<8x128xf32>
    %cst_338 = arith.constant 1.000000e+00 : f32
    %602 = vector.broadcast %cst_338 : f32 to vector<8x128xf32>
    %603 = arith.addf %602, %601 : vector<8x128xf32>
    %604 = arith.divf %602, %603 : vector<8x128xf32>
    %605 = vector.extract_strided_slice %598 {offsets = [0, 128], sizes = [8, 128], strides = [1, 1]} : vector<8x512xf32> to vector<8x128xf32>
    %606 = arith.negf %605 : vector<8x128xf32>
    %607 = math.exp %606 : vector<8x128xf32>
    %cst_339 = arith.constant 1.000000e+00 : f32
    %608 = vector.broadcast %cst_339 : f32 to vector<8x128xf32>
    %609 = arith.addf %608, %607 : vector<8x128xf32>
    %610 = arith.divf %608, %609 : vector<8x128xf32>
    %611 = vector.extract_strided_slice %598 {offsets = [0, 256], sizes = [8, 128], strides = [1, 1]} : vector<8x512xf32> to vector<8x128xf32>
    %612 = math.tanh %611 : vector<8x128xf32>
    %613 = vector.extract_strided_slice %598 {offsets = [0, 384], sizes = [8, 128], strides = [1, 1]} : vector<8x512xf32> to vector<8x128xf32>
    %614 = arith.negf %613 : vector<8x128xf32>
    %615 = math.exp %614 : vector<8x128xf32>
    %cst_340 = arith.constant 1.000000e+00 : f32
    %616 = vector.broadcast %cst_340 : f32 to vector<8x128xf32>
    %617 = arith.addf %616, %615 : vector<8x128xf32>
    %618 = arith.divf %616, %617 : vector<8x128xf32>
    %619 = arith.mulf %610, %587 : vector<8x128xf32>
    %620 = arith.mulf %604, %612 : vector<8x128xf32>
    %621 = arith.addf %619, %620 : vector<8x128xf32>
    %622 = math.tanh %621 : vector<8x128xf32>
    %623 = arith.mulf %618, %622 : vector<8x128xf32>
    %c1_341 = arith.constant 1 : index
    %c0_342 = arith.constant 0 : index
    %c0_343 = arith.constant 0 : index
    %624 = vector.load %arg8[%c1_341, %c0_342, %c0_343] : memref<2x8x128xf32, #tpu.memory_space<vmem>>, vector<1x8x128xf32>
    %625 = vector.shape_cast %624 : vector<1x8x128xf32> to vector<8x128xf32>
    %626 = vector.shape_cast %623 : vector<8x128xf32> to vector<1x8x128xf32>
    tpu.vector_store %arg8[%c1_341, %c0_342, %c0_343], %626 {strides = array<i32>} : memref<2x8x128xf32, #tpu.memory_space<vmem>>, vector<1x8x128xf32>,
    %c1_344 = arith.constant 1 : index
    %c0_345 = arith.constant 0 : index
    %c0_346 = arith.constant 0 : index
    %627 = vector.load %arg9[%c1_344, %c0_345, %c0_346] : memref<2x8x128xf32, #tpu.memory_space<vmem>>, vector<1x8x128xf32>
    %628 = vector.shape_cast %627 : vector<1x8x128xf32> to vector<8x128xf32>
    %629 = vector.shape_cast %621 : vector<8x128xf32> to vector<1x8x128xf32>
    tpu.vector_store %arg9[%c1_344, %c0_345, %c0_346], %629 {strides = array<i32>} : memref<2x8x128xf32, #tpu.memory_space<vmem>>, vector<1x8x128xf32>,
    %c0_347 = arith.constant 0 : index
    %c6_348 = arith.constant 6 : index
    %c0_349 = arith.constant 0 : index
    %630 = vector.load %arg5[%c0_347, %c6_348, %c0_349] : memref<8x8x128xf32, #tpu.memory_space<vmem>>, vector<8x1x128xf32>
    %631 = vector.shape_cast %630 : vector<8x1x128xf32> to vector<8x128xf32>
    %632 = vector.shape_cast %623 : vector<8x128xf32> to vector<8x1x128xf32>
    tpu.vector_store %arg5[%c0_347, %c6_348, %c0_349], %632 {strides = array<i32>} : memref<8x8x128xf32, #tpu.memory_space<vmem>>, vector<8x1x128xf32>,
    %c0_350 = arith.constant 0 : index
    %c7 = arith.constant 7 : index
    %c0_351 = arith.constant 0 : index
    %633 = vector.load %arg1[%c0_350, %c7, %c0_351] : memref<8x8x512xf32, #tpu.memory_space<vmem>>, vector<8x1x512xf32>
    %634 = vector.shape_cast %633 : vector<8x1x512xf32> to vector<8x512xf32>
    %c0_352 = arith.constant 0 : index
    %c0_353 = arith.constant 0 : index
    %c0_354 = arith.constant 0 : index
    %635 = vector.load %arg8[%c0_352, %c0_353, %c0_354] : memref<2x8x128xf32, #tpu.memory_space<vmem>>, vector<1x8x128xf32>
    %636 = vector.shape_cast %635 : vector<1x8x128xf32> to vector<8x128xf32>
    %c0_355 = arith.constant 0 : index
    %c0_356 = arith.constant 0 : index
    %c0_357 = arith.constant 0 : index
    %637 = vector.load %arg9[%c0_355, %c0_356, %c0_357] : memref<2x8x128xf32, #tpu.memory_space<vmem>>, vector<1x8x128xf32>
    %638 = vector.shape_cast %637 : vector<1x8x128xf32> to vector<8x128xf32>
    %c0_358 = arith.constant 0 : index
    %c0_359 = arith.constant 0 : index
    %c0_360 = arith.constant 0 : index
    %639 = vector.load %arg2[%c0_358, %c0_359, %c0_360] : memref<2x128x512xf32, #tpu.memory_space<vmem>>, vector<1x128x512xf32>
    %640 = vector.shape_cast %639 : vector<1x128x512xf32> to vector<128x512xf32>
    %cst_361 = arith.constant dense<0.000000e+00> : vector<8x512xf32>
    %641 = tpu.matmul %636, %640, %cst_361 {dimension_numbers = #tpu.dot_dimension_numbers<[1], [0], [0], [1], [0, 0, 1, 1], [], []>} : vector<8x128xf32>, vector<128x512xf32>, vector<8x512xf32> -> vector<8x512xf32>
    %642 = arith.addf %634, %641 : vector<8x512xf32>
    %643 = vector.extract_strided_slice %642 {offsets = [0, 0], sizes = [8, 128], strides = [1, 1]} : vector<8x512xf32> to vector<8x128xf32>
    %644 = arith.negf %643 : vector<8x128xf32>
    %645 = math.exp %644 : vector<8x128xf32>
    %cst_362 = arith.constant 1.000000e+00 : f32
    %646 = vector.broadcast %cst_362 : f32 to vector<8x128xf32>
    %647 = arith.addf %646, %645 : vector<8x128xf32>
    %648 = arith.divf %646, %647 : vector<8x128xf32>
    %649 = vector.extract_strided_slice %642 {offsets = [0, 128], sizes = [8, 128], strides = [1, 1]} : vector<8x512xf32> to vector<8x128xf32>
    %650 = arith.negf %649 : vector<8x128xf32>
    %651 = math.exp %650 : vector<8x128xf32>
    %cst_363 = arith.constant 1.000000e+00 : f32
    %652 = vector.broadcast %cst_363 : f32 to vector<8x128xf32>
    %653 = arith.addf %652, %651 : vector<8x128xf32>
    %654 = arith.divf %652, %653 : vector<8x128xf32>
    %655 = vector.extract_strided_slice %642 {offsets = [0, 256], sizes = [8, 128], strides = [1, 1]} : vector<8x512xf32> to vector<8x128xf32>
    %656 = math.tanh %655 : vector<8x128xf32>
    %657 = vector.extract_strided_slice %642 {offsets = [0, 384], sizes = [8, 128], strides = [1, 1]} : vector<8x512xf32> to vector<8x128xf32>
    %658 = arith.negf %657 : vector<8x128xf32>
    %659 = math.exp %658 : vector<8x128xf32>
    %cst_364 = arith.constant 1.000000e+00 : f32
    %660 = vector.broadcast %cst_364 : f32 to vector<8x128xf32>
    %661 = arith.addf %660, %659 : vector<8x128xf32>
    %662 = arith.divf %660, %661 : vector<8x128xf32>
    %663 = arith.mulf %654, %638 : vector<8x128xf32>
    %664 = arith.mulf %648, %656 : vector<8x128xf32>
    %665 = arith.addf %663, %664 : vector<8x128xf32>
    %666 = math.tanh %665 : vector<8x128xf32>
    %667 = arith.mulf %662, %666 : vector<8x128xf32>
    %c0_365 = arith.constant 0 : index
    %c0_366 = arith.constant 0 : index
    %c0_367 = arith.constant 0 : index
    %668 = vector.load %arg8[%c0_365, %c0_366, %c0_367] : memref<2x8x128xf32, #tpu.memory_space<vmem>>, vector<1x8x128xf32>
    %669 = vector.shape_cast %668 : vector<1x8x128xf32> to vector<8x128xf32>
    %670 = vector.shape_cast %667 : vector<8x128xf32> to vector<1x8x128xf32>
    tpu.vector_store %arg8[%c0_365, %c0_366, %c0_367], %670 {strides = array<i32>} : memref<2x8x128xf32, #tpu.memory_space<vmem>>, vector<1x8x128xf32>,
    %c0_368 = arith.constant 0 : index
    %c0_369 = arith.constant 0 : index
    %c0_370 = arith.constant 0 : index
    %671 = vector.load %arg9[%c0_368, %c0_369, %c0_370] : memref<2x8x128xf32, #tpu.memory_space<vmem>>, vector<1x8x128xf32>
    %672 = vector.shape_cast %671 : vector<1x8x128xf32> to vector<8x128xf32>
    %673 = vector.shape_cast %665 : vector<8x128xf32> to vector<1x8x128xf32>
    tpu.vector_store %arg9[%c0_368, %c0_369, %c0_370], %673 {strides = array<i32>} : memref<2x8x128xf32, #tpu.memory_space<vmem>>, vector<1x8x128xf32>,
    %c1_371 = arith.constant 1 : index
    %c0_372 = arith.constant 0 : index
    %c0_373 = arith.constant 0 : index
    %674 = vector.load %arg8[%c1_371, %c0_372, %c0_373] : memref<2x8x128xf32, #tpu.memory_space<vmem>>, vector<1x8x128xf32>
    %675 = vector.shape_cast %674 : vector<1x8x128xf32> to vector<8x128xf32>
    %c1_374 = arith.constant 1 : index
    %c0_375 = arith.constant 0 : index
    %c0_376 = arith.constant 0 : index
    %676 = vector.load %arg9[%c1_374, %c0_375, %c0_376] : memref<2x8x128xf32, #tpu.memory_space<vmem>>, vector<1x8x128xf32>
    %677 = vector.shape_cast %676 : vector<1x8x128xf32> to vector<8x128xf32>
    %c0_377 = arith.constant 0 : index
    %c0_378 = arith.constant 0 : index
    %c0_379 = arith.constant 0 : index
    %678 = vector.load %arg3[%c0_377, %c0_378, %c0_379] : memref<1x128x512xf32, #tpu.memory_space<vmem>>, vector<1x128x512xf32>
    %679 = vector.shape_cast %678 : vector<1x128x512xf32> to vector<128x512xf32>
    %cst_380 = arith.constant dense<0.000000e+00> : vector<8x512xf32>
    %680 = tpu.matmul %667, %679, %cst_380 {dimension_numbers = #tpu.dot_dimension_numbers<[1], [0], [0], [1], [0, 0, 1, 1], [], []>} : vector<8x128xf32>, vector<128x512xf32>, vector<8x512xf32> -> vector<8x512xf32>
    %c0_381 = arith.constant 0 : index
    %c0_382 = arith.constant 0 : index
    %c0_383 = arith.constant 0 : index
    %681 = vector.load %arg4[%c0_381, %c0_382, %c0_383] : memref<1x1x512xf32, #tpu.memory_space<vmem>>, vector<1x1x512xf32>
    %682 = vector.shape_cast %681 : vector<1x1x512xf32> to vector<1x512xf32>
    %683 = vector.broadcast %682 : vector<1x512xf32> to vector<8x512xf32>
    %684 = arith.addf %680, %683 : vector<8x512xf32>
    %c1_384 = arith.constant 1 : index
    %c0_385 = arith.constant 0 : index
    %c0_386 = arith.constant 0 : index
    %685 = vector.load %arg2[%c1_384, %c0_385, %c0_386] : memref<2x128x512xf32, #tpu.memory_space<vmem>>, vector<1x128x512xf32>
    %686 = vector.shape_cast %685 : vector<1x128x512xf32> to vector<128x512xf32>
    %cst_387 = arith.constant dense<0.000000e+00> : vector<8x512xf32>
    %687 = tpu.matmul %675, %686, %cst_387 {dimension_numbers = #tpu.dot_dimension_numbers<[1], [0], [0], [1], [0, 0, 1, 1], [], []>} : vector<8x128xf32>, vector<128x512xf32>, vector<8x512xf32> -> vector<8x512xf32>
    %688 = arith.addf %684, %687 : vector<8x512xf32>
    %689 = vector.extract_strided_slice %688 {offsets = [0, 0], sizes = [8, 128], strides = [1, 1]} : vector<8x512xf32> to vector<8x128xf32>
    %690 = arith.negf %689 : vector<8x128xf32>
    %691 = math.exp %690 : vector<8x128xf32>
    %cst_388 = arith.constant 1.000000e+00 : f32
    %692 = vector.broadcast %cst_388 : f32 to vector<8x128xf32>
    %693 = arith.addf %692, %691 : vector<8x128xf32>
    %694 = arith.divf %692, %693 : vector<8x128xf32>
    %695 = vector.extract_strided_slice %688 {offsets = [0, 128], sizes = [8, 128], strides = [1, 1]} : vector<8x512xf32> to vector<8x128xf32>
    %696 = arith.negf %695 : vector<8x128xf32>
    %697 = math.exp %696 : vector<8x128xf32>
    %cst_389 = arith.constant 1.000000e+00 : f32
    %698 = vector.broadcast %cst_389 : f32 to vector<8x128xf32>
    %699 = arith.addf %698, %697 : vector<8x128xf32>
    %700 = arith.divf %698, %699 : vector<8x128xf32>
    %701 = vector.extract_strided_slice %688 {offsets = [0, 256], sizes = [8, 128], strides = [1, 1]} : vector<8x512xf32> to vector<8x128xf32>
    %702 = math.tanh %701 : vector<8x128xf32>
    %703 = vector.extract_strided_slice %688 {offsets = [0, 384], sizes = [8, 128], strides = [1, 1]} : vector<8x512xf32> to vector<8x128xf32>
    %704 = arith.negf %703 : vector<8x128xf32>
    %705 = math.exp %704 : vector<8x128xf32>
    %cst_390 = arith.constant 1.000000e+00 : f32
    %706 = vector.broadcast %cst_390 : f32 to vector<8x128xf32>
    %707 = arith.addf %706, %705 : vector<8x128xf32>
    %708 = arith.divf %706, %707 : vector<8x128xf32>
    %709 = arith.mulf %700, %677 : vector<8x128xf32>
    %710 = arith.mulf %694, %702 : vector<8x128xf32>
    %711 = arith.addf %709, %710 : vector<8x128xf32>
    %712 = math.tanh %711 : vector<8x128xf32>
    %713 = arith.mulf %708, %712 : vector<8x128xf32>
    %c1_391 = arith.constant 1 : index
    %c0_392 = arith.constant 0 : index
    %c0_393 = arith.constant 0 : index
    %714 = vector.load %arg8[%c1_391, %c0_392, %c0_393] : memref<2x8x128xf32, #tpu.memory_space<vmem>>, vector<1x8x128xf32>
    %715 = vector.shape_cast %714 : vector<1x8x128xf32> to vector<8x128xf32>
    %716 = vector.shape_cast %713 : vector<8x128xf32> to vector<1x8x128xf32>
    tpu.vector_store %arg8[%c1_391, %c0_392, %c0_393], %716 {strides = array<i32>} : memref<2x8x128xf32, #tpu.memory_space<vmem>>, vector<1x8x128xf32>,
    %c1_394 = arith.constant 1 : index
    %c0_395 = arith.constant 0 : index
    %c0_396 = arith.constant 0 : index
    %717 = vector.load %arg9[%c1_394, %c0_395, %c0_396] : memref<2x8x128xf32, #tpu.memory_space<vmem>>, vector<1x8x128xf32>
    %718 = vector.shape_cast %717 : vector<1x8x128xf32> to vector<8x128xf32>
    %719 = vector.shape_cast %711 : vector<8x128xf32> to vector<1x8x128xf32>
    tpu.vector_store %arg9[%c1_394, %c0_395, %c0_396], %719 {strides = array<i32>} : memref<2x8x128xf32, #tpu.memory_space<vmem>>, vector<1x8x128xf32>,
    %c0_397 = arith.constant 0 : index
    %c7_398 = arith.constant 7 : index
    %c0_399 = arith.constant 0 : index
    %720 = vector.load %arg5[%c0_397, %c7_398, %c0_399] : memref<8x8x128xf32, #tpu.memory_space<vmem>>, vector<8x1x128xf32>
    %721 = vector.shape_cast %720 : vector<8x1x128xf32> to vector<8x128xf32>
    %722 = vector.shape_cast %713 : vector<8x128xf32> to vector<8x1x128xf32>
    tpu.vector_store %arg5[%c0_397, %c7_398, %c0_399], %722 {strides = array<i32>} : memref<8x8x128xf32, #tpu.memory_space<vmem>>, vector<8x1x128xf32>,
    %c0_i32_400 = arith.constant 0 : i32
    %723 = arith.cmpi eq, %arg0, %c0_i32_400 : i32
    %724 = arith.extui %723 : i1 to i32
    %c0_i32_401 = arith.constant 0 : i32
    %725 = arith.cmpi ne, %724, %c0_i32_401 : i32
    scf.if %725 {
      %c0_402 = arith.constant 0 : index
      %c0_403 = arith.constant 0 : index
      %c0_404 = arith.constant 0 : index
      %726 = vector.load %arg8[%c0_402, %c0_403, %c0_404] : memref<2x8x128xf32, #tpu.memory_space<vmem>>, vector<2x8x128xf32>
      %c0_405 = arith.constant 0 : index
      %c0_406 = arith.constant 0 : index
      %c0_407 = arith.constant 0 : index
      %727 = vector.load %arg6[%c0_405, %c0_406, %c0_407] : memref<2x8x128xf32, #tpu.memory_space<vmem>>, vector<2x8x128xf32>
      tpu.vector_store %arg6[%c0_405, %c0_406, %c0_407], %726 {strides = array<i32>} : memref<2x8x128xf32, #tpu.memory_space<vmem>>, vector<2x8x128xf32>,
      %c0_408 = arith.constant 0 : index
      %c0_409 = arith.constant 0 : index
      %c0_410 = arith.constant 0 : index
      %728 = vector.load %arg9[%c0_408, %c0_409, %c0_410] : memref<2x8x128xf32, #tpu.memory_space<vmem>>, vector<2x8x128xf32>
      %c0_411 = arith.constant 0 : index
      %c0_412 = arith.constant 0 : index
      %c0_413 = arith.constant 0 : index
      %729 = vector.load %arg7[%c0_411, %c0_412, %c0_413] : memref<2x8x128xf32, #tpu.memory_space<vmem>>, vector<2x8x128xf32>
      tpu.vector_store %arg7[%c0_411, %c0_412, %c0_413], %728 {strides = array<i32>} : memref<2x8x128xf32, #tpu.memory_space<vmem>>, vector<2x8x128xf32>,
    } else {
    }
    return
  }
  func.func @transform_0(%arg0: i32) -> (i32, i32, i32) {
    %c0_i32 = arith.constant 0 : i32
    %c0_i32_0 = arith.constant 0 : i32
    %c0_i32_1 = arith.constant 0 : i32
    return %c0_i32, %arg0, %c0_i32_0 : i32, i32, i32
  }
  func.func @transform_1(%arg0: i32) -> (i32, i32, i32) {
    %c0_i32 = arith.constant 0 : i32
    %c0_i32_0 = arith.constant 0 : i32
    %c0_i32_1 = arith.constant 0 : i32
    %c0_i32_2 = arith.constant 0 : i32
    return %c0_i32, %c0_i32_0, %c0_i32_1 : i32, i32, i32
  }
  func.func @transform_2(%arg0: i32) -> (i32, i32, i32) {
    %c0_i32 = arith.constant 0 : i32
    %c0_i32_0 = arith.constant 0 : i32
    %c0_i32_1 = arith.constant 0 : i32
    %c0_i32_2 = arith.constant 0 : i32
    return %c0_i32, %c0_i32_0, %c0_i32_1 : i32, i32, i32
  }
  func.func @transform_3(%arg0: i32) -> (i32, i32, i32) {
    %c0_i32 = arith.constant 0 : i32
    %c0_i32_0 = arith.constant 0 : i32
    %c0_i32_1 = arith.constant 0 : i32
    %c0_i32_2 = arith.constant 0 : i32
    return %c0_i32, %c0_i32_0, %c0_i32_1 : i32, i32, i32
  }
  func.func @transform_4(%arg0: i32) -> (i32, i32, i32) {
    %c0_i32 = arith.constant 0 : i32
    %c0_i32_0 = arith.constant 0 : i32
    %c0_i32_1 = arith.constant 0 : i32
    return %c0_i32, %arg0, %c0_i32_0 : i32, i32, i32
  }
  func.func @transform_5(%arg0: i32) -> (i32, i32, i32) {
    %c0_i32 = arith.constant 0 : i32
    %c0_i32_0 = arith.constant 0 : i32
    %c0_i32_1 = arith.constant 0 : i32
    %c0_i32_2 = arith.constant 0 : i32
    return %c0_i32, %c0_i32_0, %c0_i32_1 : i32, i32, i32
  }
  func.func @transform_6(%arg0: i32) -> (i32, i32, i32) {
    %c0_i32 = arith.constant 0 : i32
    %c0_i32_0 = arith.constant 0 : i32
    %c0_i32_1 = arith.constant 0 : i32
    %c0_i32_2 = arith.constant 0 : i32
    return %c0_i32, %c0_i32_0, %c0_i32_1 : i32, i32, i32
  }
}

</mosaic_0001>

<llo_original>
// kernel: tpu_custom_call.1
$region0: #{tpu_custom_call.1}
  #allocation0 [shape = 'u32[]', space=smem, size = 0x4, offset = 0x4, fixed_abs, tag = 'smem constant byte address 0x4 - core index']
  #allocation1 [shape = 'u32[72,128]{1,0:T(1,128)}', space=vmem, size = 0x9000, scoped, tag = 'internal scratch']
  #allocation2 [shape = 'f32[2,8,128]{2,1,0:T(8,128)}', space=vmem, size = 0x2000, scoped, tag = 'scratch operand']
  #allocation3 [shape = 'f32[2,8,128]{2,1,0:T(8,128)}', space=vmem, size = 0x2000, scoped, tag = 'scratch operand']
  %s0 = inlined_call_operand.hbm [shape: f32[8,8,512], index: 0, kind: input, shape index: {}]
  %s1 = inlined_call_operand.hbm [shape: f32[2,128,512], index: 1, kind: input, shape index: {}]
  %s2 = inlined_call_operand.hbm [shape: f32[1,128,512], index: 2, kind: input, shape index: {}]
  %s3 = inlined_call_operand.hbm [shape: f32[1,1,512], index: 3, kind: input, shape index: {}]
  %s4 = inlined_call_operand.hbm [shape: f32[8,8,128], index: 4, kind: output, shape index: {0}]
  %s5 = inlined_call_operand.hbm [shape: f32[2,8,128], index: 5, kind: output, shape index: {1}]
  %s6 = inlined_call_operand.hbm [shape: f32[2,8,128], index: 6, kind: output, shape index: {2}]
  %7 = xla_tuple %s4, %s5, %s6
  %s8 = sld [smem:[#allocation0]]
  $region66: #{tpu_custom_call.1} parent=0
    _
  %s10 = ssub.s32 1, %s8
  %s11 = scalar_select 0, %s10, %s8
  $region1: #{tpu_custom_call.1} parent=0
    #allocation4 [shape = 'u8[131072]{0}', space=vmem, size = 0x20000, scoped, tag = 'input window, operand 0, single buffered']
    #allocation5 [shape = 's32[1]{0}', space=sflag, size = 0x4, scoped, tag = 'scoped memory for tpu_custom_call.1']
    #allocation6 [shape = 's32[1]{0}', space=sflag, size = 0x4, scoped, tag = 'scoped memory for tpu_custom_call.1']
    #allocation7 [shape = 'u8[524288]{0}', space=vmem, size = 0x80000, scoped, tag = 'input window, operand 1, single buffered']
    #allocation8 [shape = 's32[1]{0}', space=sflag, size = 0x4, scoped, tag = 'scoped memory for tpu_custom_call.1']
    #allocation9 [shape = 'u8[262144]{0}', space=vmem, size = 0x40000, scoped, tag = 'input window, operand 2, single buffered']
    #allocation10 [shape = 'u8[2048]{0}', space=vmem, size = 0x800, scoped, tag = 'input window, operand 3, single buffered']
    #allocation11 [shape = 's32[1]{0}', space=sflag, size = 0x4, scoped, tag = 'scoped memory for tpu_custom_call.1']
    #allocation12 [shape = 'u8[32768]{0}', space=vmem, size = 0x8000, scoped, tag = 'output window, operand 0, single buffered']
    #allocation13 [shape = 'u8[8192]{0}', space=vmem, size = 0x2000, scoped, tag = 'output window, operand 1, single buffered']
    #allocation14 [shape = 's32[1]{0}', space=sflag, size = 0x4, scoped, tag = 'scoped memory for tpu_custom_call.1']
    #allocation15 [shape = 'u8[8192]{0}', space=vmem, size = 0x2000, scoped, tag = 'output window, operand 2, single buffered']
    %12 = vsyncpa [#allocation5], 0
    %13 = vsyncpa [#allocation8], 0
    %14 = vsyncpa [#allocation11], 0
    %15 = vsyncpa [#allocation6], 0
    %16 = vsyncpa [#allocation14], 0
    // Predicated region
    $region2: #{tpu_custom_call.1} parent=1 // pred_check
      _
    $region3: #{tpu_custom_call.1} parent=1 // pred_check_branch
      %18 = sbr.rel (0) target = $region5
    $region4: #{tpu_custom_call.1} parent=1 // pred_region
      %20 = vsyncadd [#allocation5], 0
      %s21 = sshll.u32 %s0, 4
      %s22 = int_to_ptr.hbm [resolvable:$true] %s21
      %s23 = sshll.u32 [#allocation4], 4
      %s24 = int_to_ptr.vmem [resolvable:$true] %s23
      %29 = dma.hbm_to_vmem [thread:$0]  %s22, 4096, %s24, [#allocation5], 512, 512, 32
    $region5: #{tpu_custom_call.1} parent=1 // pred_fallthru
      _
    // Predicated region
    $region6: #{tpu_custom_call.1} parent=1 // pred_check
      _
    $region7: #{tpu_custom_call.1} parent=1 // pred_check_branch
      %31 = sbr.rel (0) target = $region9
    $region8: #{tpu_custom_call.1} parent=1 // pred_region
      %33 = vsyncadd [#allocation8], 0
      %s34 = sshll.u32 %s1, 4
      %s35 = int_to_ptr.hbm [resolvable:$true] %s34
      %s36 = sshll.u32 [#allocation7], 4
      %s37 = int_to_ptr.vmem [resolvable:$true] %s36
      %42 = dma.hbm_to_vmem [thread:$0]  %s35, 16384, %s37, [#allocation8], 512, 512, 32
    $region9: #{tpu_custom_call.1} parent=1 // pred_fallthru
      _
    // Predicated region
    $region10: #{tpu_custom_call.1} parent=1 // pred_check
      _
    $region11: #{tpu_custom_call.1} parent=1 // pred_check_branch
      %44 = sbr.rel (0) target = $region13
    $region12: #{tpu_custom_call.1} parent=1 // pred_region
      %46 = vsyncadd [#allocation8], 0
      %s47 = sshll.u32 %s2, 4
      %s48 = int_to_ptr.hbm [resolvable:$true] %s47
      %s49 = sshll.u32 [#allocation9], 4
      %s50 = int_to_ptr.vmem [resolvable:$true] %s49
      %55 = dma.hbm_to_vmem [thread:$0]  %s48, 8192, %s50, [#allocation8], 512, 512, 32
    $region13: #{tpu_custom_call.1} parent=1 // pred_fallthru
      _
    // Predicated region
    $region14: #{tpu_custom_call.1} parent=1 // pred_check
      _
    $region15: #{tpu_custom_call.1} parent=1 // pred_check_branch
      %57 = sbr.rel (0) target = $region17
    $region16: #{tpu_custom_call.1} parent=1 // pred_region
      %59 = vsyncadd [#allocation11], 0
      %s61 = sshll.u32 %s3, 4
      %s62 = int_to_ptr.hbm [resolvable:$true] %s61
      %s63 = sshll.u32 [#allocation10], 4
      %s64 = int_to_ptr.vmem [resolvable:$true] %s63
      %66 = dma.hbm_to_vmem [thread:$0]  %s62, 64, %s64, [#allocation11]
    $region17: #{tpu_custom_call.1} parent=1 // pred_fallthru
      _
    // Predicated region
    $region18: #{tpu_custom_call.1} parent=1 // pred_check
      _
    $region19: #{tpu_custom_call.1} parent=1 // pred_check_branch
      %68 = sbr.rel (0) target = $region21
    $region20: #{tpu_custom_call.1} parent=1 // pred_region
      %70 = dma.done [#allocation5], 4096
    $region21: #{tpu_custom_call.1} parent=1 // pred_fallthru
      _
    // Predicated region
    $region22: #{tpu_custom_call.1} parent=1 // pred_check
      _
    $region23: #{tpu_custom_call.1} parent=1 // pred_check_branch
      %72 = sbr.rel (0) target = $region25
    $region24: #{tpu_custom_call.1} parent=1 // pred_region
      %74 = dma.done [#allocation8], 16384
    $region25: #{tpu_custom_call.1} parent=1 // pred_fallthru
      _
    // Predicated region
    $region26: #{tpu_custom_call.1} parent=1 // pred_check
      _
    $region27: #{tpu_custom_call.1} parent=1 // pred_check_branch
      %76 = sbr.rel (0) target = $region29
    $region28: #{tpu_custom_call.1} parent=1 // pred_region
      %78 = dma.done [#allocation8], 8192
    $region29: #{tpu_custom_call.1} parent=1 // pred_fallthru
      _
    // Predicated region
    $region30: #{tpu_custom_call.1} parent=1 // pred_check
      _
    $region31: #{tpu_custom_call.1} parent=1 // pred_check_branch
      %80 = sbr.rel (0) target = $region33
    $region32: #{tpu_custom_call.1} parent=1 // pred_region
      %82 = dma.done [#allocation11], 64
    $region33: #{tpu_custom_call.1} parent=1 // pred_fallthru
      _
    %p83 = scmp.eq.s32.totalorder 0, 0
    // Predicated region
    $region34: #{tpu_custom_call.1} parent=1 // pred_check
      %p84 = pneg %p83
    $region35: #{tpu_custom_call.1} parent=1 // pred_check_branch
      %86 = sbr.rel (%p84) target = $region37
    $region36: #{tpu_custom_call.1} parent=1 // pred_region
      %87 = vst [vmem:[#allocation2] sm:$0xff] 0.0
      %88 = vst [vmem:[#allocation2 + $0x8] sm:$0xff] 0.0
      %89 = vst [vmem:[#allocation3] sm:$0xff] 0.0
      %90 = vst [vmem:[#allocation3 + $0x8] sm:$0xff] 0.0
    $region37: #{tpu_custom_call.1} parent=1 // pred_fallthru
      _
    %v91 = vld [vmem:[#allocation4] ss:$8 sm:$0xf]
    %s92 = scalar_lea.vmem [#allocation4], 32
    %v93 = vld [vmem:[%s92] ss:$8 sm:$0xf]
    %s94 = scalar_lea.vmem [#allocation4], 64
    %v95 = vld [vmem:[%s94] ss:$8 sm:$0xf]
    %s96 = scalar_lea.vmem [#allocation4], 96
    %v97 = vld [vmem:[%s96] ss:$8 sm:$0xf]
    %s98 = scalar_lea.vmem [#allocation4], 128
    %v99 = vld [vmem:[%s98] ss:$8 sm:$0xf]
    %s100 = scalar_lea.vmem [#allocation4], 160
    %v101 = vld [vmem:[%s100] ss:$8 sm:$0xf]
    %s102 = scalar_lea.vmem [#allocation4], 192
    %v103 = vld [vmem:[%s102] ss:$8 sm:$0xf]
    %s104 = scalar_lea.vmem [#allocation4], 224
    %v105 = vld [vmem:[%s104] ss:$8 sm:$0xf]
    %v106 = vld [vmem:[#allocation2] sm:$0xff]
    %v107 = vld [vmem:[#allocation3] sm:$0xff]
    %v108 = vld [vmem:[#allocation7] sm:$0xff]
    %v109 = vld [vmem:[#allocation7 + $0x8] sm:$0xff]
    %v110 = vld [vmem:[#allocation7 + $0x10] sm:$0xff]
    %v111 = vld [vmem:[#allocation7 + $0x18] sm:$0xff]
    %v112 = vld [vmem:[#allocation7 + $0x20] sm:$0xff]
    %v113 = vld [vmem:[#allocation7 + $0x28] sm:$0xff]
    %v114 = vld [vmem:[#allocation7 + $0x30] sm:$0xff]
    %v115 = vld [vmem:[#allocation7 + $0x38] sm:$0xff]
    %v116 = vld [vmem:[#allocation7 + $0x40] sm:$0xff]
    %v117 = vld [vmem:[#allocation7 + $0x48] sm:$0xff]
    %v118 = vld [vmem:[#allocation7 + $0x50] sm:$0xff]
    %v119 = vld [vmem:[#allocation7 + $0x58] sm:$0xff]
    %v120 = vld [vmem:[#allocation7 + $0x60] sm:$0xff]
    %v121 = vld [vmem:[#allocation7 + $0x68] sm:$0xff]
    %v122 = vld [vmem:[#allocation7 + $0x70] sm:$0xff]
    %v123 = vld [vmem:[#allocation7 + $0x78] sm:$0xff]
    %v124 = vld [vmem:[#allocation7 + $0x80] sm:$0xff]
    %v125 = vld [vmem:[#allocation7 + $0x88] sm:$0xff]
    %v126 = vld [vmem:[#allocation7 + $0x90] sm:$0xff]
    %v127 = vld [vmem:[#allocation7 + $0x98] sm:$0xff]
    %v128 = vld [vmem:[#allocation7 + $0xa0] sm:$0xff]
    %v129 = vld [vmem:[#allocation7 + $0xa8] sm:$0xff]
    %v130 = vld [vmem:[#allocation7 + $0xb0] sm:$0xff]
    %v131 = vld [vmem:[#allocation7 + $0xb8] sm:$0xff]
    %v132 = vld [vmem:[#allocation7 + $0xc0] sm:$0xff]
    %v133 = vld [vmem:[#allocation7 + $0xc8] sm:$0xff]
    %v134 = vld [vmem:[#allocation7 + $0xd0] sm:$0xff]
    %v135 = vld [vmem:[#allocation7 + $0xd8] sm:$0xff]
    %v136 = vld [vmem:[#allocation7 + $0xe0] sm:$0xff]
    %v137 = vld [vmem:[#allocation7 + $0xe8] sm:$0xff]
    %v138 = vld [vmem:[#allocation7 + $0xf0] sm:$0xff]
    %v139 = vld [vmem:[#allocation7 + $0xf8] sm:$0xff]
    %v140 = vld [vmem:[#allocation7 + $0x100] sm:$0xff]
    %v141 = vld [vmem:[#allocation7 + $0x108] sm:$0xff]
    %v142 = vld [vmem:[#allocation7 + $0x110] sm:$0xff]
    %v143 = vld [vmem:[#allocation7 + $0x118] sm:$0xff]
    %v144 = vld [vmem:[#allocation7 + $0x120] sm:$0xff]
    %v145 = vld [vmem:[#allocation7 + $0x128] sm:$0xff]
    %v146 = vld [vmem:[#allocation7 + $0x130] sm:$0xff]
    %v147 = vld [vmem:[#allocation7 + $0x138] sm:$0xff]
    %v148 = vld [vmem:[#allocation7 + $0x140] sm:$0xff]
    %v149 = vld [vmem:[#allocation7 + $0x148] sm:$0xff]
    %v150 = vld [vmem:[#allocation7 + $0x150] sm:$0xff]
    %v151 = vld [vmem:[#allocation7 + $0x158] sm:$0xff]
    %v152 = vld [vmem:[#allocation7 + $0x160] sm:$0xff]
    %v153 = vld [vmem:[#allocation7 + $0x168] sm:$0xff]
    %v154 = vld [vmem:[#allocation7 + $0x170] sm:$0xff]
    %v155 = vld [vmem:[#allocation7 + $0x178] sm:$0xff]
    %v156 = vld [vmem:[#allocation7 + $0x180] sm:$0xff]
    %v157 = vld [vmem:[#allocation7 + $0x188] sm:$0xff]
    %v158 = vld [vmem:[#allocation7 + $0x190] sm:$0xff]
    %v159 = vld [vmem:[#allocation7 + $0x198] sm:$0xff]
    %v160 = vld [vmem:[#allocation7 + $0x1a0] sm:$0xff]
    %v161 = vld [vmem:[#allocation7 + $0x1a8] sm:$0xff]
    %v162 = vld [vmem:[#allocation7 + $0x1b0] sm:$0xff]
    %v163 = vld [vmem:[#allocation7 + $0x1b8] sm:$0xff]
    %v164 = vld [vmem:[#allocation7 + $0x1c0] sm:$0xff]
    %v165 = vld [vmem:[#allocation7 + $0x1c8] sm:$0xff]
    %v166 = vld [vmem:[#allocation7 + $0x1d0] sm:$0xff]
    %v167 = vld [vmem:[#allocation7 + $0x1d8] sm:$0xff]
    %v168 = vld [vmem:[#allocation7 + $0x1e0] sm:$0xff]
    %v169 = vld [vmem:[#allocation7 + $0x1e8] sm:$0xff]
    %v170 = vld [vmem:[#allocation7 + $0x1f0] sm:$0xff]
    %v171 = vld [vmem:[#allocation7 + $0x1f8] sm:$0xff]
    %172 = vmatpush.msra.mxu0 %v168
    %173 = vmatpush.msra.mxu0 %v164
    %174 = vmatpush.msra.mxu0 %v160
    %175 = vmatpush.msra.mxu0 %v156
    %176 = vmatpush.msra.mxu0 %v152
    %177 = vmatpush.msra.mxu0 %v148
    %178 = vmatpush.msra.mxu0 %v144
    %179 = vmatpush.msra.mxu0 %v140
    %180 = vmatpush.msra.mxu0 %v136
    %181 = vmatpush.msra.mxu0 %v132
    %182 = vmatpush.msra.mxu0 %v128
    %183 = vmatpush.msra.mxu0 %v124
    %184 = vmatpush.msra.mxu0 %v120
    %185 = vmatpush.msra.mxu0 %v116
    %186 = vmatpush.msra.mxu0 %v112
    %187 = vmatpush.msra.mxu0 %v108
    %188 = vmatmul.f32.gmra.mxu0 %v106
    %v189 = vpop.f32.mrf.mxu0
    %v190 = vadd.f32 0.0, %v189
    %191 = vdwg.mxu0
    %192 = vmatpush.msra.mxu0 %v169
    %193 = vmatpush.msra.mxu0 %v165
    %194 = vmatpush.msra.mxu0 %v161
    %195 = vmatpush.msra.mxu0 %v157
    %196 = vmatpush.msra.mxu0 %v153
    %197 = vmatpush.msra.mxu0 %v149
    %198 = vmatpush.msra.mxu0 %v145
    %199 = vmatpush.msra.mxu0 %v141
    %200 = vmatpush.msra.mxu0 %v137
    %201 = vmatpush.msra.mxu0 %v133
    %202 = vmatpush.msra.mxu0 %v129
    %203 = vmatpush.msra.mxu0 %v125
    %204 = vmatpush.msra.mxu0 %v121
    %205 = vmatpush.msra.mxu0 %v117
    %206 = vmatpush.msra.mxu0 %v113
    %207 = vmatpush.msra.mxu0 %v109
    %208 = vmatmul.f32.gmra.mxu0 %v106
    %v209 = vpop.f32.mrf.mxu0
    %v210 = vadd.f32 0.0, %v209
    %211 = vdwg.mxu0
    %212 = vmatpush.msra.mxu0 %v170
    %213 = vmatpush.msra.mxu0 %v166
    %214 = vmatpush.msra.mxu0 %v162
    %215 = vmatpush.msra.mxu0 %v158
    %216 = vmatpush.msra.mxu0 %v154
    %217 = vmatpush.msra.mxu0 %v150
    %218 = vmatpush.msra.mxu0 %v146
    %219 = vmatpush.msra.mxu0 %v142
    %220 = vmatpush.msra.mxu0 %v138
    %221 = vmatpush.msra.mxu0 %v134
    %222 = vmatpush.msra.mxu0 %v130
    %223 = vmatpush.msra.mxu0 %v126
    %224 = vmatpush.msra.mxu0 %v122
    %225 = vmatpush.msra.mxu0 %v118
    %226 = vmatpush.msra.mxu0 %v114
    %227 = vmatpush.msra.mxu0 %v110
    %228 = vmatmul.f32.gmra.mxu0 %v106
    %v229 = vpop.f32.mrf.mxu0
    %v230 = vadd.f32 0.0, %v229
    %231 = vdwg.mxu0
    %232 = vmatpush.msra.mxu0 %v171
    %233 = vmatpush.msra.mxu0 %v167
    %234 = vmatpush.msra.mxu0 %v163
    %235 = vmatpush.msra.mxu0 %v159
    %236 = vmatpush.msra.mxu0 %v155
    %237 = vmatpush.msra.mxu0 %v151
    %238 = vmatpush.msra.mxu0 %v147
    %239 = vmatpush.msra.mxu0 %v143
    %240 = vmatpush.msra.mxu0 %v139
    %241 = vmatpush.msra.mxu0 %v135
    %242 = vmatpush.msra.mxu0 %v131
    %243 = vmatpush.msra.mxu0 %v127
    %244 = vmatpush.msra.mxu0 %v123
    %245 = vmatpush.msra.mxu0 %v119
    %246 = vmatpush.msra.mxu0 %v115
    %247 = vmatpush.msra.mxu0 %v111
    %248 = vmatmul.f32.gmra.mxu0 %v106
    %v249 = vpop.f32.mrf.mxu0
    %v250 = vadd.f32 0.0, %v249
    %251 = vdwg.mxu0
    %v256 = vrot.slane %v210, 7
    %v257 = vrot.slane %v230, 6
    %v258 = vrot.slane %v250, 5
    %vm259 = vcmask 1040384
    %v260 = vsel %vm259, %v190, %v256
    %vm261 = vcmask 1042434
    %v262 = vsel %vm261, %v257, %v258
    %vm263 = vcmask 1041408
    %v264 = vsel %vm263, %v260, %v262
    %vm265 = vcmask 1041409
    %v266 = vsel %vm265, %v190, %v256
    %vm267 = vcmask 1043459
    %v268 = vsel %vm267, %v257, %v258
    %vm269 = vcmask 1042433
    %v270 = vsel %vm269, %v266, %v268
    %v271 = vrot.slane %v270, 1
    %v272 = vsel %vm261, %v190, %v256
    %vm273 = vcmask 1044484
    %v274 = vsel %vm273, %v257, %v258
    %vm275 = vcmask 1043458
    %v276 = vsel %vm275, %v272, %v274
    %v277 = vrot.slane %v276, 2
    %v278 = vsel %vm267, %v190, %v256
    %vm279 = vcmask 1045509
    %v280 = vsel %vm279, %v257, %v258
    %vm281 = vcmask 1044483
    %v282 = vsel %vm281, %v278, %v280
    %v283 = vrot.slane %v282, 3
    %v284 = vsel %vm273, %v190, %v256
    %vm285 = vcmask 1046534
    %v286 = vsel %vm285, %v257, %v258
    %vm287 = vcmask 1045508
    %v288 = vsel %vm287, %v284, %v286
    %v289 = vrot.slane %v288, 4
    %v290 = vsel %vm279, %v190, %v256
    %vm291 = vcmask 1046528
    %v292 = vsel %vm291, %v258, %v257
    %vm293 = vcmask 1046533
    %v294 = vsel %vm293, %v290, %v292
    %v295 = vrot.slane %v294, 5
    %v296 = vsel %vm285, %v190, %v256
    %v297 = vsel %vm259, %v257, %v258
    %vm298 = vcmask 1045504
    %v299 = vsel %vm298, %v297, %v296
    %v300 = vrot.slane %v299, 6
    %v301 = vsel %vm291, %v256, %v190
    %v302 = vsel %vm265, %v257, %v258
    %vm303 = vcmask 1046529
    %v304 = vsel %vm303, %v302, %v301
    %v305 = vrot.slane %v304, 7
    %v314 = vadd.f32 %v91, %v264
    %v315 = vadd.f32 %v93, %v271
    %v316 = vadd.f32 %v95, %v277
    %v317 = vadd.f32 %v97, %v283
    %v318 = vadd.f32 %v99, %v289
    %v319 = vadd.f32 %v101, %v295
    %v320 = vadd.f32 %v103, %v300
    %v321 = vadd.f32 %v105, %v305
    %v322 = vxor.u32 %v314, 2147483648
    %v323 = vxor.u32 %v315, 2147483648
    %v324 = vxor.u32 %v316, 2147483648
    %v325 = vxor.u32 %v317, 2147483648
    %v326 = vxor.u32 %v318, 2147483648
    %v327 = vxor.u32 %v319, 2147483648
    %v328 = vxor.u32 %v320, 2147483648
    %v329 = vxor.u32 %v321, 2147483648
    %v330 = vmul.f32 %v322, 1.442695
    %v331 = vpow.pop %v330
    %v332 = vmul.f32 %v323, 1.442695
    %v333 = vpow.pop %v332
    %v334 = vmul.f32 %v324, 1.442695
    %v335 = vpow.pop %v334
    %v336 = vmul.f32 %v325, 1.442695
    %v337 = vpow.pop %v336
    %v338 = vmul.f32 %v326, 1.442695
    %v339 = vpow.pop %v338
    %v340 = vmul.f32 %v327, 1.442695
    %v341 = vpow.pop %v340
    %v342 = vmul.f32 %v328, 1.442695
    %v343 = vpow.pop %v342
    %v344 = vmul.f32 %v329, 1.442695
    %v345 = vpow.pop %v344
    %v346 = vadd.f32 %v331, 1.0
    %v347 = vadd.f32 %v333, 1.0
    %v348 = vadd.f32 %v335, 1.0
    %v349 = vadd.f32 %v337, 1.0
    %v350 = vadd.f32 %v339, 1.0
    %v351 = vadd.f32 %v341, 1.0
    %v352 = vadd.f32 %v343, 1.0
    %v353 = vadd.f32 %v345, 1.0
    %v354 = vrcp.pop %v346
    %v355 = vmul.f32 %v346, %v354
    %v356 = vsub.f32 1.0, %v355
    %v357 = vmul.f32 %v354, %v356
    %v358 = vadd.f32 %v354, %v357
    %vm359 = vweird.f32 %v346
    %vm360 = vweird.f32 %v354
    %vm361 = vmor %vm359, %vm360
    %v362 = vsel %vm361, %v354, %v358
    %v363 = vand.u32 2147483647, %v346
    %vm364 = vcmp.eq.f32.partialorder %v363, 8.507059e+37
    %v365 = vand.u32 %v346, 2147483648
    %v366 = vor.u32 1.1754944e-38, %v365
    %v367 = vsel %vm364, %v366, %v362
    %v368 = vmul.f32 1.0, %v367
    %v369 = vrcp.pop %v347
    %v370 = vmul.f32 %v347, %v369
    %v371 = vsub.f32 1.0, %v370
    %v372 = vmul.f32 %v369, %v371
    %v373 = vadd.f32 %v369, %v372
    %vm374 = vweird.f32 %v347
    %vm375 = vweird.f32 %v369
    %vm376 = vmor %vm374, %vm375
    %v377 = vsel %vm376, %v369, %v373
    %v378 = vand.u32 2147483647, %v347
    %vm379 = vcmp.eq.f32.partialorder %v378, 8.507059e+37
    %v380 = vand.u32 %v347, 2147483648
    %v381 = vor.u32 1.1754944e-38, %v380
    %v382 = vsel %vm379, %v381, %v377
    %v383 = vmul.f32 1.0, %v382
    %v384 = vrcp.pop %v348
    %v385 = vmul.f32 %v348, %v384
    %v386 = vsub.f32 1.0, %v385
    %v387 = vmul.f32 %v384, %v386
    %v388 = vadd.f32 %v384, %v387
    %vm389 = vweird.f32 %v348
    %vm390 = vweird.f32 %v384
    %vm391 = vmor %vm389, %vm390
    %v392 = vsel %vm391, %v384, %v388
    %v393 = vand.u32 2147483647, %v348
    %vm394 = vcmp.eq.f32.partialorder %v393, 8.507059e+37
    %v395 = vand.u32 %v348, 2147483648
    %v396 = vor.u32 1.1754944e-38, %v395
    %v397 = vsel %vm394, %v396, %v392
    %v398 = vmul.f32 1.0, %v397
    %v399 = vrcp.pop %v349
    %v400 = vmul.f32 %v349, %v399
    %v401 = vsub.f32 1.0, %v400
    %v402 = vmul.f32 %v399, %v401
    %v403 = vadd.f32 %v399, %v402
    %vm404 = vweird.f32 %v349
    %vm405 = vweird.f32 %v399
    %vm406 = vmor %vm404, %vm405
    %v407 = vsel %vm406, %v399, %v403
    %v408 = vand.u32 2147483647, %v349
    %vm409 = vcmp.eq.f32.partialorder %v408, 8.507059e+37
    %v410 = vand.u32 %v349, 2147483648
    %v411 = vor.u32 1.1754944e-38, %v410
    %v412 = vsel %vm409, %v411, %v407
    %v413 = vmul.f32 1.0, %v412
    %v414 = vrcp.pop %v350
    %v415 = vmul.f32 %v350, %v414
    %v416 = vsub.f32 1.0, %v415
    %v417 = vmul.f32 %v414, %v416
    %v418 = vadd.f32 %v414, %v417
    %vm419 = vweird.f32 %v350
    %vm420 = vweird.f32 %v414
    %vm421 = vmor %vm419, %vm420
    %v422 = vsel %vm421, %v414, %v418
    %v423 = vand.u32 2147483647, %v350
    %vm424 = vcmp.eq.f32.partialorder %v423, 8.507059e+37
    %v425 = vand.u32 %v350, 2147483648
    %v426 = vor.u32 1.1754944e-38, %v425
    %v427 = vsel %vm424, %v426, %v422
    %v428 = vmul.f32 1.0, %v427
    %v429 = vrcp.pop %v351
    %v430 = vmul.f32 %v351, %v429
    %v431 = vsub.f32 1.0, %v430
    %v432 = vmul.f32 %v429, %v431
    %v433 = vadd.f32 %v429, %v432
    %vm434 = vweird.f32 %v351
    %vm435 = vweird.f32 %v429
    %vm436 = vmor %vm434, %vm435
    %v437 = vsel %vm436, %v429, %v433
    %v438 = vand.u32 2147483647, %v351
    %vm439 = vcmp.eq.f32.partialorder %v438, 8.507059e+37
    %v440 = vand.u32 %v351, 2147483648
    %v441 = vor.u32 1.1754944e-38, %v440
    %v442 = vsel %vm439, %v441, %v437
    %v443 = vmul.f32 1.0, %v442
    %v444 = vrcp.pop %v352
    %v445 = vmul.f32 %v352, %v444
    %v446 = vsub.f32 1.0, %v445
    %v447 = vmul.f32 %v444, %v446
    %v448 = vadd.f32 %v444, %v447
    %vm449 = vweird.f32 %v352
    %vm450 = vweird.f32 %v444
    %vm451 = vmor %vm449, %vm450
    %v452 = vsel %vm451, %v444, %v448
    %v453 = vand.u32 2147483647, %v352
    %vm454 = vcmp.eq.f32.partialorder %v453, 8.507059e+37
    %v455 = vand.u32 %v352, 2147483648
    %v456 = vor.u32 1.1754944e-38, %v455
    %v457 = vsel %vm454, %v456, %v452
    %v458 = vmul.f32 1.0, %v457
    %v459 = vrcp.pop %v353
    %v460 = vmul.f32 %v353, %v459
    %v461 = vsub.f32 1.0, %v460
    %v462 = vmul.f32 %v459, %v461
    %v463 = vadd.f32 %v459, %v462
    %vm464 = vweird.f32 %v353
    %vm465 = vweird.f32 %v459
    %vm466 = vmor %vm464, %vm465
    %v467 = vsel %vm466, %v459, %v463
    %v468 = vand.u32 2147483647, %v353
    %vm469 = vcmp.eq.f32.partialorder %v468, 8.507059e+37
    %v470 = vand.u32 %v353, 2147483648
    %v471 = vor.u32 1.1754944e-38, %v470
    %v472 = vsel %vm469, %v471, %v467
    %v473 = vmul.f32 1.0, %v472
    %v482 = vrot.slane %v314, 1
    %v483 = vrot.slane %v315, 1
    %v484 = vrot.slane %v316, 1
    %v485 = vrot.slane %v317, 1
    %v486 = vrot.slane %v318, 1
    %v487 = vrot.slane %v319, 1
    %v488 = vrot.slane %v320, 1
    %v489 = vrot.slane %v321, 1
    %v498 = vxor.u32 %v482, 2147483648
    %v499 = vxor.u32 %v483, 2147483648
    %v500 = vxor.u32 %v484, 2147483648
    %v501 = vxor.u32 %v485, 2147483648
    %v502 = vxor.u32 %v486, 2147483648
    %v503 = vxor.u32 %v487, 2147483648
    %v504 = vxor.u32 %v488, 2147483648
    %v505 = vxor.u32 %v489, 2147483648
    %v506 = vmul.f32 %v498, 1.442695
    %v507 = vpow.pop %v506
    %v508 = vmul.f32 %v499, 1.442695
    %v509 = vpow.pop %v508
    %v510 = vmul.f32 %v500, 1.442695
    %v511 = vpow.pop %v510
    %v512 = vmul.f32 %v501, 1.442695
    %v513 = vpow.pop %v512
    %v514 = vmul.f32 %v502, 1.442695
    %v515 = vpow.pop %v514
    %v516 = vmul.f32 %v503, 1.442695
    %v517 = vpow.pop %v516
    %v518 = vmul.f32 %v504, 1.442695
    %v519 = vpow.pop %v518
    %v520 = vmul.f32 %v505, 1.442695
    %v521 = vpow.pop %v520
    %v522 = vadd.f32 %v507, 1.0
    %v523 = vadd.f32 %v509, 1.0
    %v524 = vadd.f32 %v511, 1.0
    %v525 = vadd.f32 %v513, 1.0
    %v526 = vadd.f32 %v515, 1.0
    %v527 = vadd.f32 %v517, 1.0
    %v528 = vadd.f32 %v519, 1.0
    %v529 = vadd.f32 %v521, 1.0
    %v530 = vrcp.pop %v522
    %v531 = vmul.f32 %v522, %v530
    %v532 = vsub.f32 1.0, %v531
    %v533 = vmul.f32 %v530, %v532
    %v534 = vadd.f32 %v530, %v533
    %vm535 = vweird.f32 %v522
    %vm536 = vweird.f32 %v530
    %vm537 = vmor %vm535, %vm536
    %v538 = vsel %vm537, %v530, %v534
    %v539 = vand.u32 2147483647, %v522
    %vm540 = vcmp.eq.f32.partialorder %v539, 8.507059e+37
    %v541 = vand.u32 %v522, 2147483648
    %v542 = vor.u32 1.1754944e-38, %v541
    %v543 = vsel %vm540, %v542, %v538
    %v544 = vmul.f32 1.0, %v543
    %v545 = vrcp.pop %v523
    %v546 = vmul.f32 %v523, %v545
    %v547 = vsub.f32 1.0, %v546
    %v548 = vmul.f32 %v545, %v547
    %v549 = vadd.f32 %v545, %v548
    %vm550 = vweird.f32 %v523
    %vm551 = vweird.f32 %v545
    %vm552 = vmor %vm550, %vm551
    %v553 = vsel %vm552, %v545, %v549
    %v554 = vand.u32 2147483647, %v523
    %vm555 = vcmp.eq.f32.partialorder %v554, 8.507059e+37
    %v556 = vand.u32 %v523, 2147483648
    %v557 = vor.u32 1.1754944e-38, %v556
    %v558 = vsel %vm555, %v557, %v553
    %v559 = vmul.f32 1.0, %v558
    %v560 = vrcp.pop %v524
    %v561 = vmul.f32 %v524, %v560
    %v562 = vsub.f32 1.0, %v561
    %v563 = vmul.f32 %v560, %v562
    %v564 = vadd.f32 %v560, %v563
    %vm565 = vweird.f32 %v524
    %vm566 = vweird.f32 %v560
    %vm567 = vmor %vm565, %vm566
    %v568 = vsel %vm567, %v560, %v564
    %v569 = vand.u32 2147483647, %v524
    %vm570 = vcmp.eq.f32.partialorder %v569, 8.507059e+37
    %v571 = vand.u32 %v524, 2147483648
    %v572 = vor.u32 1.1754944e-38, %v571
    %v573 = vsel %vm570, %v572, %v568
    %v574 = vmul.f32 1.0, %v573
    %v575 = vrcp.pop %v525
    %v576 = vmul.f32 %v525, %v575
    %v577 = vsub.f32 1.0, %v576
    %v578 = vmul.f32 %v575, %v577
    %v579 = vadd.f32 %v575, %v578
    %vm580 = vweird.f32 %v525
    %vm581 = vweird.f32 %v575
    %vm582 = vmor %vm580, %vm581
    %v583 = vsel %vm582, %v575, %v579
    %v584 = vand.u32 2147483647, %v525
    %vm585 = vcmp.eq.f32.partialorder %v584, 8.507059e+37
    %v586 = vand.u32 %v525, 2147483648
    %v587 = vor.u32 1.1754944e-38, %v586
    %v588 = vsel %vm585, %v587, %v583
    %v589 = vmul.f32 1.0, %v588
    %v590 = vrcp.pop %v526
    %v591 = vmul.f32 %v526, %v590
    %v592 = vsub.f32 1.0, %v591
    %v593 = vmul.f32 %v590, %v592
    %v594 = vadd.f32 %v590, %v593
    %vm595 = vweird.f32 %v526
    %vm596 = vweird.f32 %v590
    %vm597 = vmor %vm595, %vm596
    %v598 = vsel %vm597, %v590, %v594
    %v599 = vand.u32 2147483647, %v526
    %vm600 = vcmp.eq.f32.partialorder %v599, 8.507059e+37
    %v601 = vand.u32 %v526, 2147483648
    %v602 = vor.u32 1.1754944e-38, %v601
    %v603 = vsel %vm600, %v602, %v598
    %v604 = vmul.f32 1.0, %v603
    %v605 = vrcp.pop %v527
    %v606 = vmul.f32 %v527, %v605
    %v607 = vsub.f32 1.0, %v606
    %v608 = vmul.f32 %v605, %v607
    %v609 = vadd.f32 %v605, %v608
    %vm610 = vweird.f32 %v527
    %vm611 = vweird.f32 %v605
    %vm612 = vmor %vm610, %vm611
    %v613 = vsel %vm612, %v605, %v609
    %v614 = vand.u32 2147483647, %v527
    %vm615 = vcmp.eq.f32.partialorder %v614, 8.507059e+37
    %v616 = vand.u32 %v527, 2147483648
    %v617 = vor.u32 1.1754944e-38, %v616
    %v618 = vsel %vm615, %v617, %v613
    %v619 = vmul.f32 1.0, %v618
    %v620 = vrcp.pop %v528
    %v621 = vmul.f32 %v528, %v620
    %v622 = vsub.f32 1.0, %v621
    %v623 = vmul.f32 %v620, %v622
    %v624 = vadd.f32 %v620, %v623
    %vm625 = vweird.f32 %v528
    %vm626 = vweird.f32 %v620
    %vm627 = vmor %vm625, %vm626
    %v628 = vsel %vm627, %v620, %v624
    %v629 = vand.u32 2147483647, %v528
    %vm630 = vcmp.eq.f32.partialorder %v629, 8.507059e+37
    %v631 = vand.u32 %v528, 2147483648
    %v632 = vor.u32 1.1754944e-38, %v631
    %v633 = vsel %vm630, %v632, %v628
    %v634 = vmul.f32 1.0, %v633
    %v635 = vrcp.pop %v529
    %v636 = vmul.f32 %v529, %v635
    %v637 = vsub.f32 1.0, %v636
    %v638 = vmul.f32 %v635, %v637
    %v639 = vadd.f32 %v635, %v638
    %vm640 = vweird.f32 %v529
    %vm641 = vweird.f32 %v635
    %vm642 = vmor %vm640, %vm641
    %v643 = vsel %vm642, %v635, %v639
    %v644 = vand.u32 2147483647, %v529
    %vm645 = vcmp.eq.f32.partialorder %v644, 8.507059e+37
    %v646 = vand.u32 %v529, 2147483648
    %v647 = vor.u32 1.1754944e-38, %v646
    %v648 = vsel %vm645, %v647, %v643
    %v649 = vmul.f32 1.0, %v648
    %v650 = vrot.slane %v314, 2
    %v651 = vrot.slane %v315, 2
    %v652 = vrot.slane %v316, 2
    %v653 = vrot.slane %v317, 2
    %v654 = vrot.slane %v318, 2
    %v655 = vrot.slane %v319, 2
    %v656 = vrot.slane %v320, 2
    %v657 = vrot.slane %v321, 2
    %v666 = vtanh.pop %v650
    %v667 = vtanh.pop %v651
    %v668 = vtanh.pop %v652
    %v669 = vtanh.pop %v653
    %v670 = vtanh.pop %v654
    %v671 = vtanh.pop %v655
    %v672 = vtanh.pop %v656
    %v673 = vtanh.pop %v657
    %v674 = vrot.slane %v314, 3
    %v675 = vrot.slane %v315, 3
    %v676 = vrot.slane %v316, 3
    %v677 = vrot.slane %v317, 3
    %v678 = vrot.slane %v318, 3
    %v679 = vrot.slane %v319, 3
    %v680 = vrot.slane %v320, 3
    %v681 = vrot.slane %v321, 3
    %v690 = vxor.u32 %v674, 2147483648
    %v691 = vxor.u32 %v675, 2147483648
    %v692 = vxor.u32 %v676, 2147483648
    %v693 = vxor.u32 %v677, 2147483648
    %v694 = vxor.u32 %v678, 2147483648
    %v695 = vxor.u32 %v679, 2147483648
    %v696 = vxor.u32 %v680, 2147483648
    %v697 = vxor.u32 %v681, 2147483648
    %v698 = vmul.f32 %v690, 1.442695
    %v699 = vpow.pop %v698
    %v700 = vmul.f32 %v691, 1.442695
    %v701 = vpow.pop %v700
    %v702 = vmul.f32 %v692, 1.442695
    %v703 = vpow.pop %v702
    %v704 = vmul.f32 %v693, 1.442695
    %v705 = vpow.pop %v704
    %v706 = vmul.f32 %v694, 1.442695
    %v707 = vpow.pop %v706
    %v708 = vmul.f32 %v695, 1.442695
    %v709 = vpow.pop %v708
    %v710 = vmul.f32 %v696, 1.442695
    %v711 = vpow.pop %v710
    %v712 = vmul.f32 %v697, 1.442695
    %v713 = vpow.pop %v712
    %v714 = vadd.f32 %v699, 1.0
    %v715 = vadd.f32 %v701, 1.0
    %v716 = vadd.f32 %v703, 1.0
    %v717 = vadd.f32 %v705, 1.0
    %v718 = vadd.f32 %v707, 1.0
    %v719 = vadd.f32 %v709, 1.0
    %v720 = vadd.f32 %v711, 1.0
    %v721 = vadd.f32 %v713, 1.0
    %v722 = vrcp.pop %v714
    %v723 = vmul.f32 %v714, %v722
    %v724 = vsub.f32 1.0, %v723
    %v725 = vmul.f32 %v722, %v724
    %v726 = vadd.f32 %v722, %v725
    %vm727 = vweird.f32 %v714
    %vm728 = vweird.f32 %v722
    %vm729 = vmor %vm727, %vm728
    %v730 = vsel %vm729, %v722, %v726
    %v731 = vand.u32 2147483647, %v714
    %vm732 = vcmp.eq.f32.partialorder %v731, 8.507059e+37
    %v733 = vand.u32 %v714, 2147483648
    %v734 = vor.u32 1.1754944e-38, %v733
    %v735 = vsel %vm732, %v734, %v730
    %v736 = vmul.f32 1.0, %v735
    %v737 = vrcp.pop %v715
    %v738 = vmul.f32 %v715, %v737
    %v739 = vsub.f32 1.0, %v738
    %v740 = vmul.f32 %v737, %v739
    %v741 = vadd.f32 %v737, %v740
    %vm742 = vweird.f32 %v715
    %vm743 = vweird.f32 %v737
    %vm744 = vmor %vm742, %vm743
    %v745 = vsel %vm744, %v737, %v741
    %v746 = vand.u32 2147483647, %v715
    %vm747 = vcmp.eq.f32.partialorder %v746, 8.507059e+37
    %v748 = vand.u32 %v715, 2147483648
    %v749 = vor.u32 1.1754944e-38, %v748
    %v750 = vsel %vm747, %v749, %v745
    %v751 = vmul.f32 1.0, %v750
    %v752 = vrcp.pop %v716
    %v753 = vmul.f32 %v716, %v752
    %v754 = vsub.f32 1.0, %v753
    %v755 = vmul.f32 %v752, %v754
    %v756 = vadd.f32 %v752, %v755
    %vm757 = vweird.f32 %v716
    %vm758 = vweird.f32 %v752
    %vm759 = vmor %vm757, %vm758
    %v760 = vsel %vm759, %v752, %v756
    %v761 = vand.u32 2147483647, %v716
    %vm762 = vcmp.eq.f32.partialorder %v761, 8.507059e+37
    %v763 = vand.u32 %v716, 2147483648
    %v764 = vor.u32 1.1754944e-38, %v763
    %v765 = vsel %vm762, %v764, %v760
    %v766 = vmul.f32 1.0, %v765
    %v767 = vrcp.pop %v717
    %v768 = vmul.f32 %v717, %v767
    %v769 = vsub.f32 1.0, %v768
    %v770 = vmul.f32 %v767, %v769
    %v771 = vadd.f32 %v767, %v770
    %vm772 = vweird.f32 %v717
    %vm773 = vweird.f32 %v767
    %vm774 = vmor %vm772, %vm773
    %v775 = vsel %vm774, %v767, %v771
    %v776 = vand.u32 2147483647, %v717
    %vm777 = vcmp.eq.f32.partialorder %v776, 8.507059e+37
    %v778 = vand.u32 %v717, 2147483648
    %v779 = vor.u32 1.1754944e-38, %v778
    %v780 = vsel %vm777, %v779, %v775
    %v781 = vmul.f32 1.0, %v780
    %v782 = vrcp.pop %v718
    %v783 = vmul.f32 %v718, %v782
    %v784 = vsub.f32 1.0, %v783
    %v785 = vmul.f32 %v782, %v784
    %v786 = vadd.f32 %v782, %v785
    %vm787 = vweird.f32 %v718
    %vm788 = vweird.f32 %v782
    %vm789 = vmor %vm787, %vm788
    %v790 = vsel %vm789, %v782, %v786
    %v791 = vand.u32 2147483647, %v718
    %vm792 = vcmp.eq.f32.partialorder %v791, 8.507059e+37
    %v793 = vand.u32 %v718, 2147483648
    %v794 = vor.u32 1.1754944e-38, %v793
    %v795 = vsel %vm792, %v794, %v790
    %v796 = vmul.f32 1.0, %v795
    %v797 = vrcp.pop %v719
    %v798 = vmul.f32 %v719, %v797
    %v799 = vsub.f32 1.0, %v798
    %v800 = vmul.f32 %v797, %v799
    %v801 = vadd.f32 %v797, %v800
    %vm802 = vweird.f32 %v719
    %vm803 = vweird.f32 %v797
    %vm804 = vmor %vm802, %vm803
    %v805 = vsel %vm804, %v797, %v801
    %v806 = vand.u32 2147483647, %v719
    %vm807 = vcmp.eq.f32.partialorder %v806, 8.507059e+37
    %v808 = vand.u32 %v719, 2147483648
    %v809 = vor.u32 1.1754944e-38, %v808
    %v810 = vsel %vm807, %v809, %v805
    %v811 = vmul.f32 1.0, %v810
    %v812 = vrcp.pop %v720
    %v813 = vmul.f32 %v720, %v812
    %v814 = vsub.f32 1.0, %v813
    %v815 = vmul.f32 %v812, %v814
    %v816 = vadd.f32 %v812, %v815
    %vm817 = vweird.f32 %v720
    %vm818 = vweird.f32 %v812
    %vm819 = vmor %vm817, %vm818
    %v820 = vsel %vm819, %v812, %v816
    %v821 = vand.u32 2147483647, %v720
    %vm822 = vcmp.eq.f32.partialorder %v821, 8.507059e+37
    %v823 = vand.u32 %v720, 2147483648
    %v824 = vor.u32 1.1754944e-38, %v823
    %v825 = vsel %vm822, %v824, %v820
    %v826 = vmul.f32 1.0, %v825
    %v827 = vrcp.pop %v721
    %v828 = vmul.f32 %v721, %v827
    %v829 = vsub.f32 1.0, %v828
    %v830 = vmul.f32 %v827, %v829
    %v831 = vadd.f32 %v827, %v830
    %vm832 = vweird.f32 %v721
    %vm833 = vweird.f32 %v827
    %vm834 = vmor %vm832, %vm833
    %v835 = vsel %vm834, %v827, %v831
    %v836 = vand.u32 2147483647, %v721
    %vm837 = vcmp.eq.f32.partialorder %v836, 8.507059e+37
    %v838 = vand.u32 %v721, 2147483648
    %v839 = vor.u32 1.1754944e-38, %v838
    %v840 = vsel %vm837, %v839, %v835
    %v841 = vmul.f32 1.0, %v840
    %v843 = vrot.slane %v107, 1
    %v844 = vrot.slane %v107, 2
    %v845 = vrot.slane %v107, 3
    %v846 = vrot.slane %v107, 4
    %v847 = vrot.slane %v107, 5
    %v848 = vrot.slane %v107, 6
    %v849 = vrot.slane %v107, 7
    %v857 = vmul.f32 %v544, %v107
    %v858 = vmul.f32 %v559, %v843
    %v859 = vmul.f32 %v574, %v844
    %v860 = vmul.f32 %v589, %v845
    %v861 = vmul.f32 %v604, %v846
    %v862 = vmul.f32 %v619, %v847
    %v863 = vmul.f32 %v634, %v848
    %v864 = vmul.f32 %v649, %v849
    %v865 = vmul.f32 %v368, %v666
    %v866 = vmul.f32 %v383, %v667
    %v867 = vmul.f32 %v398, %v668
    %v868 = vmul.f32 %v413, %v669
    %v869 = vmul.f32 %v428, %v670
    %v870 = vmul.f32 %v443, %v671
    %v871 = vmul.f32 %v458, %v672
    %v872 = vmul.f32 %v473, %v673
    %v873 = vadd.f32 %v857, %v865
    %v874 = vadd.f32 %v858, %v866
    %v875 = vadd.f32 %v859, %v867
    %v876 = vadd.f32 %v860, %v868
    %v877 = vadd.f32 %v861, %v869
    %v878 = vadd.f32 %v862, %v870
    %v879 = vadd.f32 %v863, %v871
    %v880 = vadd.f32 %v864, %v872
    %v881 = vtanh.pop %v873
    %v882 = vtanh.pop %v874
    %v883 = vtanh.pop %v875
    %v884 = vtanh.pop %v876
    %v885 = vtanh.pop %v877
    %v886 = vtanh.pop %v878
    %v887 = vtanh.pop %v879
    %v888 = vtanh.pop %v880
    %v889 = vmul.f32 %v736, %v881
    %v890 = vmul.f32 %v751, %v882
    %v891 = vmul.f32 %v766, %v883
    %v892 = vmul.f32 %v781, %v884
    %v893 = vmul.f32 %v796, %v885
    %v894 = vmul.f32 %v811, %v886
    %v895 = vmul.f32 %v826, %v887
    %v896 = vmul.f32 %v841, %v888
    %905 = vst [vmem:[#allocation1] ss:$9 sm:$0xff] %v889
    %s906 = scalar_lea.vmem [#allocation1], 1
    %907 = vst [vmem:[%s906] ss:$9 sm:$0xff] %v890
    %s908 = scalar_lea.vmem [#allocation1], 2
    %909 = vst [vmem:[%s908] ss:$9 sm:$0xff] %v891
    %s910 = scalar_lea.vmem [#allocation1], 3
    %911 = vst [vmem:[%s910] ss:$9 sm:$0xff] %v892
    %s912 = scalar_lea.vmem [#allocation1], 4
    %913 = vst [vmem:[%s912] ss:$9 sm:$0xff] %v893
    %s914 = scalar_lea.vmem [#allocation1], 5
    %915 = vst [vmem:[%s914] ss:$9 sm:$0xff] %v894
    %s916 = scalar_lea.vmem [#allocation1], 6
    %917 = vst [vmem:[%s916] ss:$9 sm:$0xff] %v895
    %s918 = scalar_lea.vmem [#allocation1], 7
    %919 = vst [vmem:[%s918] ss:$9 sm:$0xff] %v896
    %v920 = vld [vmem:[#allocation1] sm:$0xff]
    %922 = vst [vmem:[#allocation2] sm:$0xff] %v920
    %931 = vst [vmem:[#allocation1] ss:$9 sm:$0xff] %v873
    %s932 = scalar_lea.vmem [#allocation1], 1
    %933 = vst [vmem:[%s932] ss:$9 sm:$0xff] %v874
    %s934 = scalar_lea.vmem [#allocation1], 2
    %935 = vst [vmem:[%s934] ss:$9 sm:$0xff] %v875
    %s936 = scalar_lea.vmem [#allocation1], 3
    %937 = vst [vmem:[%s936] ss:$9 sm:$0xff] %v876
    %s938 = scalar_lea.vmem [#allocation1], 4
    %939 = vst [vmem:[%s938] ss:$9 sm:$0xff] %v877
    %s940 = scalar_lea.vmem [#allocation1], 5
    %941 = vst [vmem:[%s940] ss:$9 sm:$0xff] %v878
    %s942 = scalar_lea.vmem [#allocation1], 6
    %943 = vst [vmem:[%s942] ss:$9 sm:$0xff] %v879
    %s944 = scalar_lea.vmem [#allocation1], 7
    %945 = vst [vmem:[%s944] ss:$9 sm:$0xff] %v880
    %v946 = vld [vmem:[#allocation1] sm:$0xff]
    %948 = vst [vmem:[#allocation3] sm:$0xff] %v946
    %s949 = scalar_lea.vmem [#allocation2], 8
    %v950 = vld [vmem:[%s949] sm:$0xff]
    %s951 = scalar_lea.vmem [#allocation3], 8
    %v952 = vld [vmem:[%s951] sm:$0xff]
    %v953 = vld [vmem:[#allocation9] sm:$0xff]
    %v954 = vld [vmem:[#allocation9 + $0x8] sm:$0xff]
    %v955 = vld [vmem:[#allocation9 + $0x10] sm:$0xff]
    %v956 = vld [vmem:[#allocation9 + $0x18] sm:$0xff]
    %v957 = vld [vmem:[#allocation9 + $0x20] sm:$0xff]
    %v958 = vld [vmem:[#allocation9 + $0x28] sm:$0xff]
    %v959 = vld [vmem:[#allocation9 + $0x30] sm:$0xff]
    %v960 = vld [vmem:[#allocation9 + $0x38] sm:$0xff]
    %v961 = vld [vmem:[#allocation9 + $0x40] sm:$0xff]
    %v962 = vld [vmem:[#allocation9 + $0x48] sm:$0xff]
    %v963 = vld [vmem:[#allocation9 + $0x50] sm:$0xff]
    %v964 = vld [vmem:[#allocation9 + $0x58] sm:$0xff]
    %v965 = vld [vmem:[#allocation9 + $0x60] sm:$0xff]
    %v966 = vld [vmem:[#allocation9 + $0x68] sm:$0xff]
    %v967 = vld [vmem:[#allocation9 + $0x70] sm:$0xff]
    %v968 = vld [vmem:[#allocation9 + $0x78] sm:$0xff]
    %v969 = vld [vmem:[#allocation9 + $0x80] sm:$0xff]
    %v970 = vld [vmem:[#allocation9 + $0x88] sm:$0xff]
    %v971 = vld [vmem:[#allocation9 + $0x90] sm:$0xff]
    %v972 = vld [vmem:[#allocation9 + $0x98] sm:$0xff]
    %v973 = vld [vmem:[#allocation9 + $0xa0] sm:$0xff]
    %v974 = vld [vmem:[#allocation9 + $0xa8] sm:$0xff]
    %v975 = vld [vmem:[#allocation9 + $0xb0] sm:$0xff]
    %v976 = vld [vmem:[#allocation9 + $0xb8] sm:$0xff]
    %v977 = vld [vmem:[#allocation9 + $0xc0] sm:$0xff]
    %v978 = vld [vmem:[#allocation9 + $0xc8] sm:$0xff]
    %v979 = vld [vmem:[#allocation9 + $0xd0] sm:$0xff]
    %v980 = vld [vmem:[#allocation9 + $0xd8] sm:$0xff]
    %v981 = vld [vmem:[#allocation9 + $0xe0] sm:$0xff]
    %v982 = vld [vmem:[#allocation9 + $0xe8] sm:$0xff]
    %v983 = vld [vmem:[#allocation9 + $0xf0] sm:$0xff]
    %v984 = vld [vmem:[#allocation9 + $0xf8] sm:$0xff]
    %v985 = vld [vmem:[#allocation9 + $0x100] sm:$0xff]
    %v986 = vld [vmem:[#allocation9 + $0x108] sm:$0xff]
    %v987 = vld [vmem:[#allocation9 + $0x110] sm:$0xff]
    %v988 = vld [vmem:[#allocation9 + $0x118] sm:$0xff]
    %v989 = vld [vmem:[#allocation9 + $0x120] sm:$0xff]
    %v990 = vld [vmem:[#allocation9 + $0x128] sm:$0xff]
    %v991 = vld [vmem:[#allocation9 + $0x130] sm:$0xff]
    %v992 = vld [vmem:[#allocation9 + $0x138] sm:$0xff]
    %v993 = vld [vmem:[#allocation9 + $0x140] sm:$0xff]
    %v994 = vld [vmem:[#allocation9 + $0x148] sm:$0xff]
    %v995 = vld [vmem:[#allocation9 + $0x150] sm:$0xff]
    %v996 = vld [vmem:[#allocation9 + $0x158] sm:$0xff]
    %v997 = vld [vmem:[#allocation9 + $0x160] sm:$0xff]
    %v998 = vld [vmem:[#allocation9 + $0x168] sm:$0xff]
    %v999 = vld [vmem:[#allocation9 + $0x170] sm:$0xff]
    %v1000 = vld [vmem:[#allocation9 + $0x178] sm:$0xff]
    %v1001 = vld [vmem:[#allocation9 + $0x180] sm:$0xff]
    %v1002 = vld [vmem:[#allocation9 + $0x188] sm:$0xff]
    %v1003 = vld [vmem:[#allocation9 + $0x190] sm:$0xff]
    %v1004 = vld [vmem:[#allocation9 + $0x198] sm:$0xff]
    %v1005 = vld [vmem:[#allocation9 + $0x1a0] sm:$0xff]
    %v1006 = vld [vmem:[#allocation9 + $0x1a8] sm:$0xff]
    %v1007 = vld [vmem:[#allocation9 + $0x1b0] sm:$0xff]
    %v1008 = vld [vmem:[#allocation9 + $0x1b8] sm:$0xff]
    %v1009 = vld [vmem:[#allocation9 + $0x1c0] sm:$0xff]
    %v1010 = vld [vmem:[#allocation9 + $0x1c8] sm:$0xff]
    %v1011 = vld [vmem:[#allocation9 + $0x1d0] sm:$0xff]
    %v1012 = vld [vmem:[#allocation9 + $0x1d8] sm:$0xff]
    %v1013 = vld [vmem:[#allocation9 + $0x1e0] sm:$0xff]
    %v1014 = vld [vmem:[#allocation9 + $0x1e8] sm:$0xff]
    %v1015 = vld [vmem:[#allocation9 + $0x1f0] sm:$0xff]
    %v1016 = vld [vmem:[#allocation9 + $0x1f8] sm:$0xff]
    %v1017 = vld [vmem:[#allocation10] sm:$0xf]
    %v1019 = vperm.slane %v1017, 0
    %v1020 = vperm.slane %v1017, 1
    %v1021 = vperm.slane %v1017, 2
    %v1022 = vperm.slane %v1017, 3
    %1027 = vst [vmem:[#allocation1] ss:$9 sm:$0xff] %v889
    %s1028 = scalar_lea.vmem [#allocation1], 1
    %1029 = vst [vmem:[%s1028] ss:$9 sm:$0xff] %v890
    %s1030 = scalar_lea.vmem [#allocation1], 2
    %1031 = vst [vmem:[%s1030] ss:$9 sm:$0xff] %v891
    %s1032 = scalar_lea.vmem [#allocation1], 3
    %1033 = vst [vmem:[%s1032] ss:$9 sm:$0xff] %v892
    %s1034 = scalar_lea.vmem [#allocation1], 4
    %1035 = vst [vmem:[%s1034] ss:$9 sm:$0xff] %v893
    %s1036 = scalar_lea.vmem [#allocation1], 5
    %1037 = vst [vmem:[%s1036] ss:$9 sm:$0xff] %v894
    %s1038 = scalar_lea.vmem [#allocation1], 6
    %1039 = vst [vmem:[%s1038] ss:$9 sm:$0xff] %v895
    %s1040 = scalar_lea.vmem [#allocation1], 7
    %1041 = vst [vmem:[%s1040] ss:$9 sm:$0xff] %v896
    %v1042 = vld [vmem:[#allocation1] sm:$0xff]
    %1044 = vmatpush.msra.mxu0 %v1013
    %1045 = vmatpush.msra.mxu0 %v1009
    %1046 = vmatpush.msra.mxu0 %v1005
    %1047 = vmatpush.msra.mxu0 %v1001
    %1048 = vmatpush.msra.mxu0 %v997
    %1049 = vmatpush.msra.mxu0 %v993
    %1050 = vmatpush.msra.mxu0 %v989
    %1051 = vmatpush.msra.mxu0 %v985
    %1052 = vmatpush.msra.mxu0 %v981
    %1053 = vmatpush.msra.mxu0 %v977
    %1054 = vmatpush.msra.mxu0 %v973
    %1055 = vmatpush.msra.mxu0 %v969
    %1056 = vmatpush.msra.mxu0 %v965
    %1057 = vmatpush.msra.mxu0 %v961
    %1058 = vmatpush.msra.mxu0 %v957
    %1059 = vmatpush.msra.mxu0 %v953
    %1060 = vmatmul.f32.gmra.mxu0 %v1042
    %v1061 = vpop.f32.mrf.mxu0
    %v1062 = vadd.f32 %v1019, %v1061
    %1063 = vdwg.mxu0
    %1064 = vmatpush.msra.mxu0 %v1014
    %1065 = vmatpush.msra.mxu0 %v1010
    %1066 = vmatpush.msra.mxu0 %v1006
    %1067 = vmatpush.msra.mxu0 %v1002
    %1068 = vmatpush.msra.mxu0 %v998
    %1069 = vmatpush.msra.mxu0 %v994
    %1070 = vmatpush.msra.mxu0 %v990
    %1071 = vmatpush.msra.mxu0 %v986
    %1072 = vmatpush.msra.mxu0 %v982
    %1073 = vmatpush.msra.mxu0 %v978
    %1074 = vmatpush.msra.mxu0 %v974
    %1075 = vmatpush.msra.mxu0 %v970
    %1076 = vmatpush.msra.mxu0 %v966
    %1077 = vmatpush.msra.mxu0 %v962
    %1078 = vmatpush.msra.mxu0 %v958
    %1079 = vmatpush.msra.mxu0 %v954
    %1080 = vmatmul.f32.gmra.mxu0 %v1042
    %v1081 = vpop.f32.mrf.mxu0
    %v1082 = vadd.f32 %v1020, %v1081
    %1083 = vdwg.mxu0
    %1084 = vmatpush.msra.mxu0 %v1015
    %1085 = vmatpush.msra.mxu0 %v1011
    %1086 = vmatpush.msra.mxu0 %v1007
    %1087 = vmatpush.msra.mxu0 %v1003
    %1088 = vmatpush.msra.mxu0 %v999
    %1089 = vmatpush.msra.mxu0 %v995
    %1090 = vmatpush.msra.mxu0 %v991
    %1091 = vmatpush.msra.mxu0 %v987
    %1092 = vmatpush.msra.mxu0 %v983
    %1093 = vmatpush.msra.mxu0 %v979
    %1094 = vmatpush.msra.mxu0 %v975
    %1095 = vmatpush.msra.mxu0 %v971
    %1096 = vmatpush.msra.mxu0 %v967
    %1097 = vmatpush.msra.mxu0 %v963
    %1098 = vmatpush.msra.mxu0 %v959
    %1099 = vmatpush.msra.mxu0 %v955
    %1100 = vmatmul.f32.gmra.mxu0 %v1042
    %v1101 = vpop.f32.mrf.mxu0
    %v1102 = vadd.f32 %v1021, %v1101
    %1103 = vdwg.mxu0
    %1104 = vmatpush.msra.mxu0 %v1016
    %1105 = vmatpush.msra.mxu0 %v1012
    %1106 = vmatpush.msra.mxu0 %v1008
    %1107 = vmatpush.msra.mxu0 %v1004
    %1108 = vmatpush.msra.mxu0 %v1000
    %1109 = vmatpush.msra.mxu0 %v996
    %1110 = vmatpush.msra.mxu0 %v992
    %1111 = vmatpush.msra.mxu0 %v988
    %1112 = vmatpush.msra.mxu0 %v984
    %1113 = vmatpush.msra.mxu0 %v980
    %1114 = vmatpush.msra.mxu0 %v976
    %1115 = vmatpush.msra.mxu0 %v972
    %1116 = vmatpush.msra.mxu0 %v968
    %1117 = vmatpush.msra.mxu0 %v964
    %1118 = vmatpush.msra.mxu0 %v960
    %1119 = vmatpush.msra.mxu0 %v956
    %1120 = vmatmul.f32.gmra.mxu0 %v1042
    %v1121 = vpop.f32.mrf.mxu0
    %v1122 = vadd.f32 %v1022, %v1121
    %1123 = vdwg.mxu0
    %s1124 = scalar_lea.vmem [#allocation7], 512
    %v1125 = vld [vmem:[%s1124] sm:$0xff]
    %v1126 = vld [vmem:[%s1124 + $0x8] sm:$0xff]
    %v1127 = vld [vmem:[%s1124 + $0x10] sm:$0xff]
    %v1128 = vld [vmem:[%s1124 + $0x18] sm:$0xff]
    %v1129 = vld [vmem:[%s1124 + $0x20] sm:$0xff]
    %v1130 = vld [vmem:[%s1124 + $0x28] sm:$0xff]
    %v1131 = vld [vmem:[%s1124 + $0x30] sm:$0xff]
    %v1132 = vld [vmem:[%s1124 + $0x38] sm:$0xff]
    %v1133 = vld [vmem:[%s1124 + $0x40] sm:$0xff]
    %v1134 = vld [vmem:[%s1124 + $0x48] sm:$0xff]
    %v1135 = vld [vmem:[%s1124 + $0x50] sm:$0xff]
    %v1136 = vld [vmem:[%s1124 + $0x58] sm:$0xff]
    %v1137 = vld [vmem:[%s1124 + $0x60] sm:$0xff]
    %v1138 = vld [vmem:[%s1124 + $0x68] sm:$0xff]
    %v1139 = vld [vmem:[%s1124 + $0x70] sm:$0xff]
    %v1140 = vld [vmem:[%s1124 + $0x78] sm:$0xff]
    %v1141 = vld [vmem:[%s1124 + $0x80] sm:$0xff]
    %v1142 = vld [vmem:[%s1124 + $0x88] sm:$0xff]
    %v1143 = vld [vmem:[%s1124 + $0x90] sm:$0xff]
    %v1144 = vld [vmem:[%s1124 + $0x98] sm:$0xff]
    %v1145 = vld [vmem:[%s1124 + $0xa0] sm:$0xff]
    %v1146 = vld [vmem:[%s1124 + $0xa8] sm:$0xff]
    %v1147 = vld [vmem:[%s1124 + $0xb0] sm:$0xff]
    %v1148 = vld [vmem:[%s1124 + $0xb8] sm:$0xff]
    %v1149 = vld [vmem:[%s1124 + $0xc0] sm:$0xff]
    %v1150 = vld [vmem:[%s1124 + $0xc8] sm:$0xff]
    %v1151 = vld [vmem:[%s1124 + $0xd0] sm:$0xff]
    %v1152 = vld [vmem:[%s1124 + $0xd8] sm:$0xff]
    %v1153 = vld [vmem:[%s1124 + $0xe0] sm:$0xff]
    %v1154 = vld [vmem:[%s1124 + $0xe8] sm:$0xff]
    %v1155 = vld [vmem:[%s1124 + $0xf0] sm:$0xff]
    %v1156 = vld [vmem:[%s1124 + $0xf8] sm:$0xff]
    %v1157 = vld [vmem:[%s1124 + $0x100] sm:$0xff]
    %v1158 = vld [vmem:[%s1124 + $0x108] sm:$0xff]
    %v1159 = vld [vmem:[%s1124 + $0x110] sm:$0xff]
    %v1160 = vld [vmem:[%s1124 + $0x118] sm:$0xff]
    %v1161 = vld [vmem:[%s1124 + $0x120] sm:$0xff]
    %v1162 = vld [vmem:[%s1124 + $0x128] sm:$0xff]
    %v1163 = vld [vmem:[%s1124 + $0x130] sm:$0xff]
    %v1164 = vld [vmem:[%s1124 + $0x138] sm:$0xff]
    %v1165 = vld [vmem:[%s1124 + $0x140] sm:$0xff]
    %v1166 = vld [vmem:[%s1124 + $0x148] sm:$0xff]
    %v1167 = vld [vmem:[%s1124 + $0x150] sm:$0xff]
    %v1168 = vld [vmem:[%s1124 + $0x158] sm:$0xff]
    %v1169 = vld [vmem:[%s1124 + $0x160] sm:$0xff]
    %v1170 = vld [vmem:[%s1124 + $0x168] sm:$0xff]
    %v1171 = vld [vmem:[%s1124 + $0x170] sm:$0xff]
    %v1172 = vld [vmem:[%s1124 + $0x178] sm:$0xff]
    %v1173 = vld [vmem:[%s1124 + $0x180] sm:$0xff]
    %v1174 = vld [vmem:[%s1124 + $0x188] sm:$0xff]
    %v1175 = vld [vmem:[%s1124 + $0x190] sm:$0xff]
    %v1176 = vld [vmem:[%s1124 + $0x198] sm:$0xff]
    %v1177 = vld [vmem:[%s1124 + $0x1a0] sm:$0xff]
    %v1178 = vld [vmem:[%s1124 + $0x1a8] sm:$0xff]
    %v1179 = vld [vmem:[%s1124 + $0x1b0] sm:$0xff]
    %v1180 = vld [vmem:[%s1124 + $0x1b8] sm:$0xff]
    %v1181 = vld [vmem:[%s1124 + $0x1c0] sm:$0xff]
    %v1182 = vld [vmem:[%s1124 + $0x1c8] sm:$0xff]
    %v1183 = vld [vmem:[%s1124 + $0x1d0] sm:$0xff]
    %v1184 = vld [vmem:[%s1124 + $0x1d8] sm:$0xff]
    %v1185 = vld [vmem:[%s1124 + $0x1e0] sm:$0xff]
    %v1186 = vld [vmem:[%s1124 + $0x1e8] sm:$0xff]
    %v1187 = vld [vmem:[%s1124 + $0x1f0] sm:$0xff]
    %v1188 = vld [vmem:[%s1124 + $0x1f8] sm:$0xff]
    %1189 = vmatpush.msra.mxu0 %v1185
    %1190 = vmatpush.msra.mxu0 %v1181
    %1191 = vmatpush.msra.mxu0 %v1177
    %1192 = vmatpush.msra.mxu0 %v1173
    %1193 = vmatpush.msra.mxu0 %v1169
    %1194 = vmatpush.msra.mxu0 %v1165
    %1195 = vmatpush.msra.mxu0 %v1161
    %1196 = vmatpush.msra.mxu0 %v1157
    %1197 = vmatpush.msra.mxu0 %v1153
    %1198 = vmatpush.msra.mxu0 %v1149
    %1199 = vmatpush.msra.mxu0 %v1145
    %1200 = vmatpush.msra.mxu0 %v1141
    %1201 = vmatpush.msra.mxu0 %v1137
    %1202 = vmatpush.msra.mxu0 %v1133
    %1203 = vmatpush.msra.mxu0 %v1129
    %1204 = vmatpush.msra.mxu0 %v1125
    %1205 = vmatmul.f32.gmra.mxu0 %v950
    %v1206 = vpop.f32.mrf.mxu0
    %v1207 = vadd.f32 0.0, %v1206
    %1208 = vdwg.mxu0
    %1209 = vmatpush.msra.mxu0 %v1186
    %1210 = vmatpush.msra.mxu0 %v1182
    %1211 = vmatpush.msra.mxu0 %v1178
    %1212 = vmatpush.msra.mxu0 %v1174
    %1213 = vmatpush.msra.mxu0 %v1170
    %1214 = vmatpush.msra.mxu0 %v1166
    %1215 = vmatpush.msra.mxu0 %v1162
    %1216 = vmatpush.msra.mxu0 %v1158
    %1217 = vmatpush.msra.mxu0 %v1154
    %1218 = vmatpush.msra.mxu0 %v1150
    %1219 = vmatpush.msra.mxu0 %v1146
    %1220 = vmatpush.msra.mxu0 %v1142
    %1221 = vmatpush.msra.mxu0 %v1138
    %1222 = vmatpush.msra.mxu0 %v1134
    %1223 = vmatpush.msra.mxu0 %v1130
    %1224 = vmatpush.msra.mxu0 %v1126
    %1225 = vmatmul.f32.gmra.mxu0 %v950
    %v1226 = vpop.f32.mrf.mxu0
    %v1227 = vadd.f32 0.0, %v1226
    %1228 = vdwg.mxu0
    %1229 = vmatpush.msra.mxu0 %v1187
    %1230 = vmatpush.msra.mxu0 %v1183
    %1231 = vmatpush.msra.mxu0 %v1179
    %1232 = vmatpush.msra.mxu0 %v1175
    %1233 = vmatpush.msra.mxu0 %v1171
    %1234 = vmatpush.msra.mxu0 %v1167
    %1235 = vmatpush.msra.mxu0 %v1163
    %1236 = vmatpush.msra.mxu0 %v1159
    %1237 = vmatpush.msra.mxu0 %v1155
    %1238 = vmatpush.msra.mxu0 %v1151
    %1239 = vmatpush.msra.mxu0 %v1147
    %1240 = vmatpush.msra.mxu0 %v1143
    %1241 = vmatpush.msra.mxu0 %v1139
    %1242 = vmatpush.msra.mxu0 %v1135
    %1243 = vmatpush.msra.mxu0 %v1131
    %1244 = vmatpush.msra.mxu0 %v1127
    %1245 = vmatmul.f32.gmra.mxu0 %v950
    %v1246 = vpop.f32.mrf.mxu0
    %v1247 = vadd.f32 0.0, %v1246
    %1248 = vdwg.mxu0
    %1249 = vmatpush.msra.mxu0 %v1188
    %1250 = vmatpush.msra.mxu0 %v1184
    %1251 = vmatpush.msra.mxu0 %v1180
    %1252 = vmatpush.msra.mxu0 %v1176
    %1253 = vmatpush.msra.mxu0 %v1172
    %1254 = vmatpush.msra.mxu0 %v1168
    %1255 = vmatpush.msra.mxu0 %v1164
    %1256 = vmatpush.msra.mxu0 %v1160
    %1257 = vmatpush.msra.mxu0 %v1156
    %1258 = vmatpush.msra.mxu0 %v1152
    %1259 = vmatpush.msra.mxu0 %v1148
    %1260 = vmatpush.msra.mxu0 %v1144
    %1261 = vmatpush.msra.mxu0 %v1140
    %1262 = vmatpush.msra.mxu0 %v1136
    %1263 = vmatpush.msra.mxu0 %v1132
    %1264 = vmatpush.msra.mxu0 %v1128
    %1265 = vmatmul.f32.gmra.mxu0 %v950
    %v1266 = vpop.f32.mrf.mxu0
    %v1267 = vadd.f32 0.0, %v1266
    %1268 = vdwg.mxu0
    %v1269 = vadd.f32 %v1062, %v1207
    %v1270 = vadd.f32 %v1082, %v1227
    %v1271 = vadd.f32 %v1102, %v1247
    %v1272 = vadd.f32 %v1122, %v1267
    %v1273 = vxor.u32 %v1269, 2147483648
    %v1274 = vmul.f32 %v1273, 1.442695
    %v1275 = vpow.pop %v1274
    %v1276 = vadd.f32 %v1275, 1.0
    %v1277 = vrcp.pop %v1276
    %v1278 = vmul.f32 %v1276, %v1277
    %v1279 = vsub.f32 1.0, %v1278
    %v1280 = vmul.f32 %v1277, %v1279
    %v1281 = vadd.f32 %v1277, %v1280
    %vm1282 = vweird.f32 %v1276
    %vm1283 = vweird.f32 %v1277
    %vm1284 = vmor %vm1282, %vm1283
    %v1285 = vsel %vm1284, %v1277, %v1281
    %v1286 = vand.u32 2147483647, %v1276
    %vm1287 = vcmp.eq.f32.partialorder %v1286, 8.507059e+37
    %v1288 = vand.u32 %v1276, 2147483648
    %v1289 = vor.u32 1.1754944e-38, %v1288
    %v1290 = vsel %vm1287, %v1289, %v1285
    %v1291 = vmul.f32 1.0, %v1290
    %v1292 = vxor.u32 %v1270, 2147483648
    %v1293 = vmul.f32 %v1292, 1.442695
    %v1294 = vpow.pop %v1293
    %v1295 = vadd.f32 %v1294, 1.0
    %v1296 = vrcp.pop %v1295
    %v1297 = vmul.f32 %v1295, %v1296
    %v1298 = vsub.f32 1.0, %v1297
    %v1299 = vmul.f32 %v1296, %v1298
    %v1300 = vadd.f32 %v1296, %v1299
    %vm1301 = vweird.f32 %v1295
    %vm1302 = vweird.f32 %v1296
    %vm1303 = vmor %vm1301, %vm1302
    %v1304 = vsel %vm1303, %v1296, %v1300
    %v1305 = vand.u32 2147483647, %v1295
    %vm1306 = vcmp.eq.f32.partialorder %v1305, 8.507059e+37
    %v1307 = vand.u32 %v1295, 2147483648
    %v1308 = vor.u32 1.1754944e-38, %v1307
    %v1309 = vsel %vm1306, %v1308, %v1304
    %v1310 = vmul.f32 1.0, %v1309
    %v1311 = vtanh.pop %v1271
    %v1312 = vxor.u32 %v1272, 2147483648
    %v1313 = vmul.f32 %v1312, 1.442695
    %v1314 = vpow.pop %v1313
    %v1315 = vadd.f32 %v1314, 1.0
    %v1316 = vrcp.pop %v1315
    %v1317 = vmul.f32 %v1315, %v1316
    %v1318 = vsub.f32 1.0, %v1317
    %v1319 = vmul.f32 %v1316, %v1318
    %v1320 = vadd.f32 %v1316, %v1319
    %vm1321 = vweird.f32 %v1315
    %vm1322 = vweird.f32 %v1316
    %vm1323 = vmor %vm1321, %vm1322
    %v1324 = vsel %vm1323, %v1316, %v1320
    %v1325 = vand.u32 2147483647, %v1315
    %vm1326 = vcmp.eq.f32.partialorder %v1325, 8.507059e+37
    %v1327 = vand.u32 %v1315, 2147483648
    %v1328 = vor.u32 1.1754944e-38, %v1327
    %v1329 = vsel %vm1326, %v1328, %v1324
    %v1330 = vmul.f32 1.0, %v1329
    %v1331 = vmul.f32 %v1310, %v952
    %v1332 = vmul.f32 %v1291, %v1311
    %v1333 = vadd.f32 %v1331, %v1332
    %v1334 = vtanh.pop %v1333
    %v1335 = vmul.f32 %v1330, %v1334
    %1336 = vst [vmem:[%s949] sm:$0xff] %v1335
    %1337 = vst [vmem:[%s951] sm:$0xff] %v1333
    %v1339 = vrot.slane %v1335, 1
    %v1340 = vrot.slane %v1335, 2
    %v1341 = vrot.slane %v1335, 3
    %v1342 = vrot.slane %v1335, 4
    %v1343 = vrot.slane %v1335, 5
    %v1344 = vrot.slane %v1335, 6
    %v1345 = vrot.slane %v1335, 7
    %1353 = vst [vmem:[#allocation12] sm:$0x1] %v1335
    %1354 = vst [vmem:[#allocation12 + $0x8] sm:$0x1] %v1339
    %1355 = vst [vmem:[#allocation12 + $0x10] sm:$0x1] %v1340
    %1356 = vst [vmem:[#allocation12 + $0x18] sm:$0x1] %v1341
    %1357 = vst [vmem:[#allocation12 + $0x20] sm:$0x1] %v1342
    %1358 = vst [vmem:[#allocation12 + $0x28] sm:$0x1] %v1343
    %1359 = vst [vmem:[#allocation12 + $0x30] sm:$0x1] %v1344
    %1360 = vst [vmem:[#allocation12 + $0x38] sm:$0x1] %v1345
    %s1361 = scalar_lea.vmem [#allocation4], 1
    %v1362 = vld [vmem:[%s1361] ss:$8 sm:$0xf]
    %s1363 = scalar_lea.vmem [#allocation4], 33
    %v1364 = vld [vmem:[%s1363] ss:$8 sm:$0xf]
    %s1365 = scalar_lea.vmem [#allocation4], 65
    %v1366 = vld [vmem:[%s1365] ss:$8 sm:$0xf]
    %s1367 = scalar_lea.vmem [#allocation4], 97
    %v1368 = vld [vmem:[%s1367] ss:$8 sm:$0xf]
    %s1369 = scalar_lea.vmem [#allocation4], 129
    %v1370 = vld [vmem:[%s1369] ss:$8 sm:$0xf]
    %s1371 = scalar_lea.vmem [#allocation4], 161
    %v1372 = vld [vmem:[%s1371] ss:$8 sm:$0xf]
    %s1373 = scalar_lea.vmem [#allocation4], 193
    %v1374 = vld [vmem:[%s1373] ss:$8 sm:$0xf]
    %s1375 = scalar_lea.vmem [#allocation4], 225
    %v1376 = vld [vmem:[%s1375] ss:$8 sm:$0xf]
    %v1377 = vld [vmem:[#allocation2] sm:$0xff]
    %v1378 = vld [vmem:[#allocation3] sm:$0xff]
    %v1379 = vld [vmem:[#allocation7] sm:$0xff]
    %v1380 = vld [vmem:[#allocation7 + $0x8] sm:$0xff]
    %v1381 = vld [vmem:[#allocation7 + $0x10] sm:$0xff]
    %v1382 = vld [vmem:[#allocation7 + $0x18] sm:$0xff]
    %v1383 = vld [vmem:[#allocation7 + $0x20] sm:$0xff]
    %v1384 = vld [vmem:[#allocation7 + $0x28] sm:$0xff]
    %v1385 = vld [vmem:[#allocation7 + $0x30] sm:$0xff]
    %v1386 = vld [vmem:[#allocation7 + $0x38] sm:$0xff]
    %v1387 = vld [vmem:[#allocation7 + $0x40] sm:$0xff]
    %v1388 = vld [vmem:[#allocation7 + $0x48] sm:$0xff]
    %v1389 = vld [vmem:[#allocation7 + $0x50] sm:$0xff]
    %v1390 = vld [vmem:[#allocation7 + $0x58] sm:$0xff]
    %v1391 = vld [vmem:[#allocation7 + $0x60] sm:$0xff]
    %v1392 = vld [vmem:[#allocation7 + $0x68] sm:$0xff]
    %v1393 = vld [vmem:[#allocation7 + $0x70] sm:$0xff]
    %v1394 = vld [vmem:[#allocation7 + $0x78] sm:$0xff]
    %v1395 = vld [vmem:[#allocation7 + $0x80] sm:$0xff]
    %v1396 = vld [vmem:[#allocation7 + $0x88] sm:$0xff]
    %v1397 = vld [vmem:[#allocation7 + $0x90] sm:$0xff]
    %v1398 = vld [vmem:[#allocation7 + $0x98] sm:$0xff]
    %v1399 = vld [vmem:[#allocation7 + $0xa0] sm:$0xff]
    %v1400 = vld [vmem:[#allocation7 + $0xa8] sm:$0xff]
    %v1401 = vld [vmem:[#allocation7 + $0xb0] sm:$0xff]
    %v1402 = vld [vmem:[#allocation7 + $0xb8] sm:$0xff]
    %v1403 = vld [vmem:[#allocation7 + $0xc0] sm:$0xff]
    %v1404 = vld [vmem:[#allocation7 + $0xc8] sm:$0xff]
    %v1405 = vld [vmem:[#allocation7 + $0xd0] sm:$0xff]
    %v1406 = vld [vmem:[#allocation7 + $0xd8] sm:$0xff]
    %v1407 = vld [vmem:[#allocation7 + $0xe0] sm:$0xff]
    %v1408 = vld [vmem:[#allocation7 + $0xe8] sm:$0xff]
    %v1409 = vld [vmem:[#allocation7 + $0xf0] sm:$0xff]
    %v1410 = vld [vmem:[#allocation7 + $0xf8] sm:$0xff]
    %v1411 = vld [vmem:[#allocation7 + $0x100] sm:$0xff]
    %v1412 = vld [vmem:[#allocation7 + $0x108] sm:$0xff]
    %v1413 = vld [vmem:[#allocation7 + $0x110] sm:$0xff]
    %v1414 = vld [vmem:[#allocation7 + $0x118] sm:$0xff]
    %v1415 = vld [vmem:[#allocation7 + $0x120] sm:$0xff]
    %v1416 = vld [vmem:[#allocation7 + $0x128] sm:$0xff]
    %v1417 = vld [vmem:[#allocation7 + $0x130] sm:$0xff]
    %v1418 = vld [vmem:[#allocation7 + $0x138] sm:$0xff]
    %v1419 = vld [vmem:[#allocation7 + $0x140] sm:$0xff]
    %v1420 = vld [vmem:[#allocation7 + $0x148] sm:$0xff]
    %v1421 = vld [vmem:[#allocation7 + $0x150] sm:$0xff]
    %v1422 = vld [vmem:[#allocation7 + $0x158] sm:$0xff]
    %v1423 = vld [vmem:[#allocation7 + $0x160] sm:$0xff]
    %v1424 = vld [vmem:[#allocation7 + $0x168] sm:$0xff]
    %v1425 = vld [vmem:[#allocation7 + $0x170] sm:$0xff]
    %v1426 = vld [vmem:[#allocation7 + $0x178] sm:$0xff]
    %v1427 = vld [vmem:[#allocation7 + $0x180] sm:$0xff]
    %v1428 = vld [vmem:[#allocation7 + $0x188] sm:$0xff]
    %v1429 = vld [vmem:[#allocation7 + $0x190] sm:$0xff]
    %v1430 = vld [vmem:[#allocation7 + $0x198] sm:$0xff]
    %v1431 = vld [vmem:[#allocation7 + $0x1a0] sm:$0xff]
    %v1432 = vld [vmem:[#allocation7 + $0x1a8] sm:$0xff]
    %v1433 = vld [vmem:[#allocation7 + $0x1b0] sm:$0xff]
    %v1434 = vld [vmem:[#allocation7 + $0x1b8] sm:$0xff]
    %v1435 = vld [vmem:[#allocation7 + $0x1c0] sm:$0xff]
    %v1436 = vld [vmem:[#allocation7 + $0x1c8] sm:$0xff]
    %v1437 = vld [vmem:[#allocation7 + $0x1d0] sm:$0xff]
    %v1438 = vld [vmem:[#allocation7 + $0x1d8] sm:$0xff]
    %v1439 = vld [vmem:[#allocation7 + $0x1e0] sm:$0xff]
    %v1440 = vld [vmem:[#allocation7 + $0x1e8] sm:$0xff]
    %v1441 = vld [vmem:[#allocation7 + $0x1f0] sm:$0xff]
    %v1442 = vld [vmem:[#allocation7 + $0x1f8] sm:$0xff]
    %1443 = vmatpush.msra.mxu0 %v1439
    %1444 = vmatpush.msra.mxu0 %v1435
    %1445 = vmatpush.msra.mxu0 %v1431
    %1446 = vmatpush.msra.mxu0 %v1427
    %1447 = vmatpush.msra.mxu0 %v1423
    %1448 = vmatpush.msra.mxu0 %v1419
    %1449 = vmatpush.msra.mxu0 %v1415
    %1450 = vmatpush.msra.mxu0 %v1411
    %1451 = vmatpush.msra.mxu0 %v1407
    %1452 = vmatpush.msra.mxu0 %v1403
    %1453 = vmatpush.msra.mxu0 %v1399
    %1454 = vmatpush.msra.mxu0 %v1395
    %1455 = vmatpush.msra.mxu0 %v1391
    %1456 = vmatpush.msra.mxu0 %v1387
    %1457 = vmatpush.msra.mxu0 %v1383
    %1458 = vmatpush.msra.mxu0 %v1379
    %1459 = vmatmul.f32.gmra.mxu0 %v1377
    %v1460 = vpop.f32.mrf.mxu0
    %v1461 = vadd.f32 0.0, %v1460
    %1462 = vdwg.mxu0
    %1463 = vmatpush.msra.mxu0 %v1440
    %1464 = vmatpush.msra.mxu0 %v1436
    %1465 = vmatpush.msra.mxu0 %v1432
    %1466 = vmatpush.msra.mxu0 %v1428
    %1467 = vmatpush.msra.mxu0 %v1424
    %1468 = vmatpush.msra.mxu0 %v1420
    %1469 = vmatpush.msra.mxu0 %v1416
    %1470 = vmatpush.msra.mxu0 %v1412
    %1471 = vmatpush.msra.mxu0 %v1408
    %1472 = vmatpush.msra.mxu0 %v1404
    %1473 = vmatpush.msra.mxu0 %v1400
    %1474 = vmatpush.msra.mxu0 %v1396
    %1475 = vmatpush.msra.mxu0 %v1392
    %1476 = vmatpush.msra.mxu0 %v1388
    %1477 = vmatpush.msra.mxu0 %v1384
    %1478 = vmatpush.msra.mxu0 %v1380
    %1479 = vmatmul.f32.gmra.mxu0 %v1377
    %v1480 = vpop.f32.mrf.mxu0
    %v1481 = vadd.f32 0.0, %v1480
    %1482 = vdwg.mxu0
    %1483 = vmatpush.msra.mxu0 %v1441
    %1484 = vmatpush.msra.mxu0 %v1437
    %1485 = vmatpush.msra.mxu0 %v1433
    %1486 = vmatpush.msra.mxu0 %v1429
    %1487 = vmatpush.msra.mxu0 %v1425
    %1488 = vmatpush.msra.mxu0 %v1421
    %1489 = vmatpush.msra.mxu0 %v1417
    %1490 = vmatpush.msra.mxu0 %v1413
    %1491 = vmatpush.msra.mxu0 %v1409
    %1492 = vmatpush.msra.mxu0 %v1405
    %1493 = vmatpush.msra.mxu0 %v1401
    %1494 = vmatpush.msra.mxu0 %v1397
    %1495 = vmatpush.msra.mxu0 %v1393
    %1496 = vmatpush.msra.mxu0 %v1389
    %1497 = vmatpush.msra.mxu0 %v1385
    %1498 = vmatpush.msra.mxu0 %v1381
    %1499 = vmatmul.f32.gmra.mxu0 %v1377
    %v1500 = vpop.f32.mrf.mxu0
    %v1501 = vadd.f32 0.0, %v1500
    %1502 = vdwg.mxu0
    %1503 = vmatpush.msra.mxu0 %v1442
    %1504 = vmatpush.msra.mxu0 %v1438
    %1505 = vmatpush.msra.mxu0 %v1434
    %1506 = vmatpush.msra.mxu0 %v1430
    %1507 = vmatpush.msra.mxu0 %v1426
    %1508 = vmatpush.msra.mxu0 %v1422
    %1509 = vmatpush.msra.mxu0 %v1418
    %1510 = vmatpush.msra.mxu0 %v1414
    %1511 = vmatpush.msra.mxu0 %v1410
    %1512 = vmatpush.msra.mxu0 %v1406
    %1513 = vmatpush.msra.mxu0 %v1402
    %1514 = vmatpush.msra.mxu0 %v1398
    %1515 = vmatpush.msra.mxu0 %v1394
    %1516 = vmatpush.msra.mxu0 %v1390
    %1517 = vmatpush.msra.mxu0 %v1386
    %1518 = vmatpush.msra.mxu0 %v1382
    %1519 = vmatmul.f32.gmra.mxu0 %v1377
    %v1520 = vpop.f32.mrf.mxu0
    %v1521 = vadd.f32 0.0, %v1520
    %1522 = vdwg.mxu0
    %v1527 = vrot.slane %v1481, 7
    %v1528 = vrot.slane %v1501, 6
    %v1529 = vrot.slane %v1521, 5
    %v1530 = vsel %vm259, %v1461, %v1527
    %v1531 = vsel %vm261, %v1528, %v1529
    %v1532 = vsel %vm263, %v1530, %v1531
    %v1533 = vsel %vm265, %v1461, %v1527
    %v1534 = vsel %vm267, %v1528, %v1529
    %v1535 = vsel %vm269, %v1533, %v1534
    %v1536 = vrot.slane %v1535, 1
    %v1537 = vsel %vm261, %v1461, %v1527
    %v1538 = vsel %vm273, %v1528, %v1529
    %v1539 = vsel %vm275, %v1537, %v1538
    %v1540 = vrot.slane %v1539, 2
    %v1541 = vsel %vm267, %v1461, %v1527
    %v1542 = vsel %vm279, %v1528, %v1529
    %v1543 = vsel %vm281, %v1541, %v1542
    %v1544 = vrot.slane %v1543, 3
    %v1545 = vsel %vm273, %v1461, %v1527
    %v1546 = vsel %vm285, %v1528, %v1529
    %v1547 = vsel %vm287, %v1545, %v1546
    %v1548 = vrot.slane %v1547, 4
    %v1549 = vsel %vm279, %v1461, %v1527
    %v1550 = vsel %vm291, %v1529, %v1528
    %v1551 = vsel %vm293, %v1549, %v1550
    %v1552 = vrot.slane %v1551, 5
    %v1553 = vsel %vm285, %v1461, %v1527
    %v1554 = vsel %vm259, %v1528, %v1529
    %v1555 = vsel %vm298, %v1554, %v1553
    %v1556 = vrot.slane %v1555, 6
    %v1557 = vsel %vm291, %v1527, %v1461
    %v1558 = vsel %vm265, %v1528, %v1529
    %v1559 = vsel %vm303, %v1558, %v1557
    %v1560 = vrot.slane %v1559, 7
    %v1569 = vadd.f32 %v1362, %v1532
    %v1570 = vadd.f32 %v1364, %v1536
    %v1571 = vadd.f32 %v1366, %v1540
    %v1572 = vadd.f32 %v1368, %v1544
    %v1573 = vadd.f32 %v1370, %v1548
    %v1574 = vadd.f32 %v1372, %v1552
    %v1575 = vadd.f32 %v1374, %v1556
    %v1576 = vadd.f32 %v1376, %v1560
    %v1577 = vxor.u32 %v1569, 2147483648
    %v1578 = vxor.u32 %v1570, 2147483648
    %v1579 = vxor.u32 %v1571, 2147483648
    %v1580 = vxor.u32 %v1572, 2147483648
    %v1581 = vxor.u32 %v1573, 2147483648
    %v1582 = vxor.u32 %v1574, 2147483648
    %v1583 = vxor.u32 %v1575, 2147483648
    %v1584 = vxor.u32 %v1576, 2147483648
    %v1585 = vmul.f32 %v1577, 1.442695
    %v1586 = vpow.pop %v1585
    %v1587 = vmul.f32 %v1578, 1.442695
    %v1588 = vpow.pop %v1587
    %v1589 = vmul.f32 %v1579, 1.442695
    %v1590 = vpow.pop %v1589
    %v1591 = vmul.f32 %v1580, 1.442695
    %v1592 = vpow.pop %v1591
    %v1593 = vmul.f32 %v1581, 1.442695
    %v1594 = vpow.pop %v1593
    %v1595 = vmul.f32 %v1582, 1.442695
    %v1596 = vpow.pop %v1595
    %v1597 = vmul.f32 %v1583, 1.442695
    %v1598 = vpow.pop %v1597
    %v1599 = vmul.f32 %v1584, 1.442695
    %v1600 = vpow.pop %v1599
    %v1601 = vadd.f32 %v1586, 1.0
    %v1602 = vadd.f32 %v1588, 1.0
    %v1603 = vadd.f32 %v1590, 1.0
    %v1604 = vadd.f32 %v1592, 1.0
    %v1605 = vadd.f32 %v1594, 1.0
    %v1606 = vadd.f32 %v1596, 1.0
    %v1607 = vadd.f32 %v1598, 1.0
    %v1608 = vadd.f32 %v1600, 1.0
    %v1609 = vrcp.pop %v1601
    %v1610 = vmul.f32 %v1601, %v1609
    %v1611 = vsub.f32 1.0, %v1610
    %v1612 = vmul.f32 %v1609, %v1611
    %v1613 = vadd.f32 %v1609, %v1612
    %vm1614 = vweird.f32 %v1601
    %vm1615 = vweird.f32 %v1609
    %vm1616 = vmor %vm1614, %vm1615
    %v1617 = vsel %vm1616, %v1609, %v1613
    %v1618 = vand.u32 2147483647, %v1601
    %vm1619 = vcmp.eq.f32.partialorder %v1618, 8.507059e+37
    %v1620 = vand.u32 %v1601, 2147483648
    %v1621 = vor.u32 1.1754944e-38, %v1620
    %v1622 = vsel %vm1619, %v1621, %v1617
    %v1623 = vmul.f32 1.0, %v1622
    %v1624 = vrcp.pop %v1602
    %v1625 = vmul.f32 %v1602, %v1624
    %v1626 = vsub.f32 1.0, %v1625
    %v1627 = vmul.f32 %v1624, %v1626
    %v1628 = vadd.f32 %v1624, %v1627
    %vm1629 = vweird.f32 %v1602
    %vm1630 = vweird.f32 %v1624
    %vm1631 = vmor %vm1629, %vm1630
    %v1632 = vsel %vm1631, %v1624, %v1628
    %v1633 = vand.u32 2147483647, %v1602
    %vm1634 = vcmp.eq.f32.partialorder %v1633, 8.507059e+37
    %v1635 = vand.u32 %v1602, 2147483648
    %v1636 = vor.u32 1.1754944e-38, %v1635
    %v1637 = vsel %vm1634, %v1636, %v1632
    %v1638 = vmul.f32 1.0, %v1637
    %v1639 = vrcp.pop %v1603
    %v1640 = vmul.f32 %v1603, %v1639
    %v1641 = vsub.f32 1.0, %v1640
    %v1642 = vmul.f32 %v1639, %v1641
    %v1643 = vadd.f32 %v1639, %v1642
    %vm1644 = vweird.f32 %v1603
    %vm1645 = vweird.f32 %v1639
    %vm1646 = vmor %vm1644, %vm1645
    %v1647 = vsel %vm1646, %v1639, %v1643
    %v1648 = vand.u32 2147483647, %v1603
    %vm1649 = vcmp.eq.f32.partialorder %v1648, 8.507059e+37
    %v1650 = vand.u32 %v1603, 2147483648
    %v1651 = vor.u32 1.1754944e-38, %v1650
    %v1652 = vsel %vm1649, %v1651, %v1647
    %v1653 = vmul.f32 1.0, %v1652
    %v1654 = vrcp.pop %v1604
    %v1655 = vmul.f32 %v1604, %v1654
    %v1656 = vsub.f32 1.0, %v1655
    %v1657 = vmul.f32 %v1654, %v1656
    %v1658 = vadd.f32 %v1654, %v1657
    %vm1659 = vweird.f32 %v1604
    %vm1660 = vweird.f32 %v1654
    %vm1661 = vmor %vm1659, %vm1660
    %v1662 = vsel %vm1661, %v1654, %v1658
    %v1663 = vand.u32 2147483647, %v1604
    %vm1664 = vcmp.eq.f32.partialorder %v1663, 8.507059e+37
    %v1665 = vand.u32 %v1604, 2147483648
    %v1666 = vor.u32 1.1754944e-38, %v1665
    %v1667 = vsel %vm1664, %v1666, %v1662
    %v1668 = vmul.f32 1.0, %v1667
    %v1669 = vrcp.pop %v1605
    %v1670 = vmul.f32 %v1605, %v1669
    %v1671 = vsub.f32 1.0, %v1670
    %v1672 = vmul.f32 %v1669, %v1671
    %v1673 = vadd.f32 %v1669, %v1672
    %vm1674 = vweird.f32 %v1605
    %vm1675 = vweird.f32 %v1669
    %vm1676 = vmor %vm1674, %vm1675
    %v1677 = vsel %vm1676, %v1669, %v1673
    %v1678 = vand.u32 2147483647, %v1605
    %vm1679 = vcmp.eq.f32.partialorder %v1678, 8.507059e+37
    %v1680 = vand.u32 %v1605, 2147483648
    %v1681 = vor.u32 1.1754944e-38, %v1680
    %v1682 = vsel %vm1679, %v1681, %v1677
    %v1683 = vmul.f32 1.0, %v1682
    %v1684 = vrcp.pop %v1606
    %v1685 = vmul.f32 %v1606, %v1684
    %v1686 = vsub.f32 1.0, %v1685
    %v1687 = vmul.f32 %v1684, %v1686
    %v1688 = vadd.f32 %v1684, %v1687
    %vm1689 = vweird.f32 %v1606
    %vm1690 = vweird.f32 %v1684
    %vm1691 = vmor %vm1689, %vm1690
    %v1692 = vsel %vm1691, %v1684, %v1688
    %v1693 = vand.u32 2147483647, %v1606
    %vm1694 = vcmp.eq.f32.partialorder %v1693, 8.507059e+37
    %v1695 = vand.u32 %v1606, 2147483648
    %v1696 = vor.u32 1.1754944e-38, %v1695
    %v1697 = vsel %vm1694, %v1696, %v1692
    %v1698 = vmul.f32 1.0, %v1697
    %v1699 = vrcp.pop %v1607
    %v1700 = vmul.f32 %v1607, %v1699
    %v1701 = vsub.f32 1.0, %v1700
    %v1702 = vmul.f32 %v1699, %v1701
    %v1703 = vadd.f32 %v1699, %v1702
    %vm1704 = vweird.f32 %v1607
    %vm1705 = vweird.f32 %v1699
    %vm1706 = vmor %vm1704, %vm1705
    %v1707 = vsel %vm1706, %v1699, %v1703
    %v1708 = vand.u32 2147483647, %v1607
    %vm1709 = vcmp.eq.f32.partialorder %v1708, 8.507059e+37
    %v1710 = vand.u32 %v1607, 2147483648
    %v1711 = vor.u32 1.1754944e-38, %v1710
    %v1712 = vsel %vm1709, %v1711, %v1707
    %v1713 = vmul.f32 1.0, %v1712
    %v1714 = vrcp.pop %v1608
    %v1715 = vmul.f32 %v1608, %v1714
    %v1716 = vsub.f32 1.0, %v1715
    %v1717 = vmul.f32 %v1714, %v1716
    %v1718 = vadd.f32 %v1714, %v1717
    %vm1719 = vweird.f32 %v1608
    %vm1720 = vweird.f32 %v1714
    %vm1721 = vmor %vm1719, %vm1720
    %v1722 = vsel %vm1721, %v1714, %v1718
    %v1723 = vand.u32 2147483647, %v1608
    %vm1724 = vcmp.eq.f32.partialorder %v1723, 8.507059e+37
    %v1725 = vand.u32 %v1608, 2147483648
    %v1726 = vor.u32 1.1754944e-38, %v1725
    %v1727 = vsel %vm1724, %v1726, %v1722
    %v1728 = vmul.f32 1.0, %v1727
    %v1737 = vrot.slane %v1569, 1
    %v1738 = vrot.slane %v1570, 1
    %v1739 = vrot.slane %v1571, 1
    %v1740 = vrot.slane %v1572, 1
    %v1741 = vrot.slane %v1573, 1
    %v1742 = vrot.slane %v1574, 1
    %v1743 = vrot.slane %v1575, 1
    %v1744 = vrot.slane %v1576, 1
    %v1753 = vxor.u32 %v1737, 2147483648
    %v1754 = vxor.u32 %v1738, 2147483648
    %v1755 = vxor.u32 %v1739, 2147483648
    %v1756 = vxor.u32 %v1740, 2147483648
    %v1757 = vxor.u32 %v1741, 2147483648
    %v1758 = vxor.u32 %v1742, 2147483648
    %v1759 = vxor.u32 %v1743, 2147483648
    %v1760 = vxor.u32 %v1744, 2147483648
    %v1761 = vmul.f32 %v1753, 1.442695
    %v1762 = vpow.pop %v1761
    %v1763 = vmul.f32 %v1754, 1.442695
    %v1764 = vpow.pop %v1763
    %v1765 = vmul.f32 %v1755, 1.442695
    %v1766 = vpow.pop %v1765
    %v1767 = vmul.f32 %v1756, 1.442695
    %v1768 = vpow.pop %v1767
    %v1769 = vmul.f32 %v1757, 1.442695
    %v1770 = vpow.pop %v1769
    %v1771 = vmul.f32 %v1758, 1.442695
    %v1772 = vpow.pop %v1771
    %v1773 = vmul.f32 %v1759, 1.442695
    %v1774 = vpow.pop %v1773
    %v1775 = vmul.f32 %v1760, 1.442695
    %v1776 = vpow.pop %v1775
    %v1777 = vadd.f32 %v1762, 1.0
    %v1778 = vadd.f32 %v1764, 1.0
    %v1779 = vadd.f32 %v1766, 1.0
    %v1780 = vadd.f32 %v1768, 1.0
    %v1781 = vadd.f32 %v1770, 1.0
    %v1782 = vadd.f32 %v1772, 1.0
    %v1783 = vadd.f32 %v1774, 1.0
    %v1784 = vadd.f32 %v1776, 1.0
    %v1785 = vrcp.pop %v1777
    %v1786 = vmul.f32 %v1777, %v1785
    %v1787 = vsub.f32 1.0, %v1786
    %v1788 = vmul.f32 %v1785, %v1787
    %v1789 = vadd.f32 %v1785, %v1788
    %vm1790 = vweird.f32 %v1777
    %vm1791 = vweird.f32 %v1785
    %vm1792 = vmor %vm1790, %vm1791
    %v1793 = vsel %vm1792, %v1785, %v1789
    %v1794 = vand.u32 2147483647, %v1777
    %vm1795 = vcmp.eq.f32.partialorder %v1794, 8.507059e+37
    %v1796 = vand.u32 %v1777, 2147483648
    %v1797 = vor.u32 1.1754944e-38, %v1796
    %v1798 = vsel %vm1795, %v1797, %v1793
    %v1799 = vmul.f32 1.0, %v1798
    %v1800 = vrcp.pop %v1778
    %v1801 = vmul.f32 %v1778, %v1800
    %v1802 = vsub.f32 1.0, %v1801
    %v1803 = vmul.f32 %v1800, %v1802
    %v1804 = vadd.f32 %v1800, %v1803
    %vm1805 = vweird.f32 %v1778
    %vm1806 = vweird.f32 %v1800
    %vm1807 = vmor %vm1805, %vm1806
    %v1808 = vsel %vm1807, %v1800, %v1804
    %v1809 = vand.u32 2147483647, %v1778
    %vm1810 = vcmp.eq.f32.partialorder %v1809, 8.507059e+37
    %v1811 = vand.u32 %v1778, 2147483648
    %v1812 = vor.u32 1.1754944e-38, %v1811
    %v1813 = vsel %vm1810, %v1812, %v1808
    %v1814 = vmul.f32 1.0, %v1813
    %v1815 = vrcp.pop %v1779
    %v1816 = vmul.f32 %v1779, %v1815
    %v1817 = vsub.f32 1.0, %v1816
    %v1818 = vmul.f32 %v1815, %v1817
    %v1819 = vadd.f32 %v1815, %v1818
    %vm1820 = vweird.f32 %v1779
    %vm1821 = vweird.f32 %v1815
    %vm1822 = vmor %vm1820, %vm1821
    %v1823 = vsel %vm1822, %v1815, %v1819
    %v1824 = vand.u32 2147483647, %v1779
    %vm1825 = vcmp.eq.f32.partialorder %v1824, 8.507059e+37
    %v1826 = vand.u32 %v1779, 2147483648
    %v1827 = vor.u32 1.1754944e-38, %v1826
    %v1828 = vsel %vm1825, %v1827, %v1823
    %v1829 = vmul.f32 1.0, %v1828
    %v1830 = vrcp.pop %v1780
    %v1831 = vmul.f32 %v1780, %v1830
    %v1832 = vsub.f32 1.0, %v1831
    %v1833 = vmul.f32 %v1830, %v1832
    %v1834 = vadd.f32 %v1830, %v1833
    %vm1835 = vweird.f32 %v1780
    %vm1836 = vweird.f32 %v1830
    %vm1837 = vmor %vm1835, %vm1836
    %v1838 = vsel %vm1837, %v1830, %v1834
    %v1839 = vand.u32 2147483647, %v1780
    %vm1840 = vcmp.eq.f32.partialorder %v1839, 8.507059e+37
    %v1841 = vand.u32 %v1780, 2147483648
    %v1842 = vor.u32 1.1754944e-38, %v1841
    %v1843 = vsel %vm1840, %v1842, %v1838
    %v1844 = vmul.f32 1.0, %v1843
    %v1845 = vrcp.pop %v1781
    %v1846 = vmul.f32 %v1781, %v1845
    %v1847 = vsub.f32 1.0, %v1846
    %v1848 = vmul.f32 %v1845, %v1847
    %v1849 = vadd.f32 %v1845, %v1848
    %vm1850 = vweird.f32 %v1781
    %vm1851 = vweird.f32 %v1845
    %vm1852 = vmor %vm1850, %vm1851
    %v1853 = vsel %vm1852, %v1845, %v1849
    %v1854 = vand.u32 2147483647, %v1781
    %vm1855 = vcmp.eq.f32.partialorder %v1854, 8.507059e+37
    %v1856 = vand.u32 %v1781, 2147483648
    %v1857 = vor.u32 1.1754944e-38, %v1856
    %v1858 = vsel %vm1855, %v1857, %v1853
    %v1859 = vmul.f32 1.0, %v1858
    %v1860 = vrcp.pop %v1782
    %v1861 = vmul.f32 %v1782, %v1860
    %v1862 = vsub.f32 1.0, %v1861
    %v1863 = vmul.f32 %v1860, %v1862
    %v1864 = vadd.f32 %v1860, %v1863
    %vm1865 = vweird.f32 %v1782
    %vm1866 = vweird.f32 %v1860
    %vm1867 = vmor %vm1865, %vm1866
    %v1868 = vsel %vm1867, %v1860, %v1864
    %v1869 = vand.u32 2147483647, %v1782
    %vm1870 = vcmp.eq.f32.partialorder %v1869, 8.507059e+37
    %v1871 = vand.u32 %v1782, 2147483648
    %v1872 = vor.u32 1.1754944e-38, %v1871
    %v1873 = vsel %vm1870, %v1872, %v1868
    %v1874 = vmul.f32 1.0, %v1873
    %v1875 = vrcp.pop %v1783
    %v1876 = vmul.f32 %v1783, %v1875
    %v1877 = vsub.f32 1.0, %v1876
    %v1878 = vmul.f32 %v1875, %v1877
    %v1879 = vadd.f32 %v1875, %v1878
    %vm1880 = vweird.f32 %v1783
    %vm1881 = vweird.f32 %v1875
    %vm1882 = vmor %vm1880, %vm1881
    %v1883 = vsel %vm1882, %v1875, %v1879
    %v1884 = vand.u32 2147483647, %v1783
    %vm1885 = vcmp.eq.f32.partialorder %v1884, 8.507059e+37
    %v1886 = vand.u32 %v1783, 2147483648
    %v1887 = vor.u32 1.1754944e-38, %v1886
    %v1888 = vsel %vm1885, %v1887, %v1883
    %v1889 = vmul.f32 1.0, %v1888
    %v1890 = vrcp.pop %v1784
    %v1891 = vmul.f32 %v1784, %v1890
    %v1892 = vsub.f32 1.0, %v1891
    %v1893 = vmul.f32 %v1890, %v1892
    %v1894 = vadd.f32 %v1890, %v1893
    %vm1895 = vweird.f32 %v1784
    %vm1896 = vweird.f32 %v1890
    %vm1897 = vmor %vm1895, %vm1896
    %v1898 = vsel %vm1897, %v1890, %v1894
    %v1899 = vand.u32 2147483647, %v1784
    %vm1900 = vcmp.eq.f32.partialorder %v1899, 8.507059e+37
    %v1901 = vand.u32 %v1784, 2147483648
    %v1902 = vor.u32 1.1754944e-38, %v1901
    %v1903 = vsel %vm1900, %v1902, %v1898
    %v1904 = vmul.f32 1.0, %v1903
    %v1905 = vrot.slane %v1569, 2
    %v1906 = vrot.slane %v1570, 2
    %v1907 = vrot.slane %v1571, 2
    %v1908 = vrot.slane %v1572, 2
    %v1909 = vrot.slane %v1573, 2
    %v1910 = vrot.slane %v1574, 2
    %v1911 = vrot.slane %v1575, 2
    %v1912 = vrot.slane %v1576, 2
    %v1921 = vtanh.pop %v1905
    %v1922 = vtanh.pop %v1906
    %v1923 = vtanh.pop %v1907
    %v1924 = vtanh.pop %v1908
    %v1925 = vtanh.pop %v1909
    %v1926 = vtanh.pop %v1910
    %v1927 = vtanh.pop %v1911
    %v1928 = vtanh.pop %v1912
    %v1929 = vrot.slane %v1569, 3
    %v1930 = vrot.slane %v1570, 3
    %v1931 = vrot.slane %v1571, 3
    %v1932 = vrot.slane %v1572, 3
    %v1933 = vrot.slane %v1573, 3
    %v1934 = vrot.slane %v1574, 3
    %v1935 = vrot.slane %v1575, 3
    %v1936 = vrot.slane %v1576, 3
    %v1945 = vxor.u32 %v1929, 2147483648
    %v1946 = vxor.u32 %v1930, 2147483648
    %v1947 = vxor.u32 %v1931, 2147483648
    %v1948 = vxor.u32 %v1932, 2147483648
    %v1949 = vxor.u32 %v1933, 2147483648
    %v1950 = vxor.u32 %v1934, 2147483648
    %v1951 = vxor.u32 %v1935, 2147483648
    %v1952 = vxor.u32 %v1936, 2147483648
    %v1953 = vmul.f32 %v1945, 1.442695
    %v1954 = vpow.pop %v1953
    %v1955 = vmul.f32 %v1946, 1.442695
    %v1956 = vpow.pop %v1955
    %v1957 = vmul.f32 %v1947, 1.442695
    %v1958 = vpow.pop %v1957
    %v1959 = vmul.f32 %v1948, 1.442695
    %v1960 = vpow.pop %v1959
    %v1961 = vmul.f32 %v1949, 1.442695
    %v1962 = vpow.pop %v1961
    %v1963 = vmul.f32 %v1950, 1.442695
    %v1964 = vpow.pop %v1963
    %v1965 = vmul.f32 %v1951, 1.442695
    %v1966 = vpow.pop %v1965
    %v1967 = vmul.f32 %v1952, 1.442695
    %v1968 = vpow.pop %v1967
    %v1969 = vadd.f32 %v1954, 1.0
    %v1970 = vadd.f32 %v1956, 1.0
    %v1971 = vadd.f32 %v1958, 1.0
    %v1972 = vadd.f32 %v1960, 1.0
    %v1973 = vadd.f32 %v1962, 1.0
    %v1974 = vadd.f32 %v1964, 1.0
    %v1975 = vadd.f32 %v1966, 1.0
    %v1976 = vadd.f32 %v1968, 1.0
    %v1977 = vrcp.pop %v1969
    %v1978 = vmul.f32 %v1969, %v1977
    %v1979 = vsub.f32 1.0, %v1978
    %v1980 = vmul.f32 %v1977, %v1979
    %v1981 = vadd.f32 %v1977, %v1980
    %vm1982 = vweird.f32 %v1969
    %vm1983 = vweird.f32 %v1977
    %vm1984 = vmor %vm1982, %vm1983
    %v1985 = vsel %vm1984, %v1977, %v1981
    %v1986 = vand.u32 2147483647, %v1969
    %vm1987 = vcmp.eq.f32.partialorder %v1986, 8.507059e+37
    %v1988 = vand.u32 %v1969, 2147483648
    %v1989 = vor.u32 1.1754944e-38, %v1988
    %v1990 = vsel %vm1987, %v1989, %v1985
    %v1991 = vmul.f32 1.0, %v1990
    %v1992 = vrcp.pop %v1970
    %v1993 = vmul.f32 %v1970, %v1992
    %v1994 = vsub.f32 1.0, %v1993
    %v1995 = vmul.f32 %v1992, %v1994
    %v1996 = vadd.f32 %v1992, %v1995
    %vm1997 = vweird.f32 %v1970
    %vm1998 = vweird.f32 %v1992
    %vm1999 = vmor %vm1997, %vm1998
    %v2000 = vsel %vm1999, %v1992, %v1996
    %v2001 = vand.u32 2147483647, %v1970
    %vm2002 = vcmp.eq.f32.partialorder %v2001, 8.507059e+37
    %v2003 = vand.u32 %v1970, 2147483648
    %v2004 = vor.u32 1.1754944e-38, %v2003
    %v2005 = vsel %vm2002, %v2004, %v2000
    %v2006 = vmul.f32 1.0, %v2005
    %v2007 = vrcp.pop %v1971
    %v2008 = vmul.f32 %v1971, %v2007
    %v2009 = vsub.f32 1.0, %v2008
    %v2010 = vmul.f32 %v2007, %v2009
    %v2011 = vadd.f32 %v2007, %v2010
    %vm2012 = vweird.f32 %v1971
    %vm2013 = vweird.f32 %v2007
    %vm2014 = vmor %vm2012, %vm2013
    %v2015 = vsel %vm2014, %v2007, %v2011
    %v2016 = vand.u32 2147483647, %v1971
    %vm2017 = vcmp.eq.f32.partialorder %v2016, 8.507059e+37
    %v2018 = vand.u32 %v1971, 2147483648
    %v2019 = vor.u32 1.1754944e-38, %v2018
    %v2020 = vsel %vm2017, %v2019, %v2015
    %v2021 = vmul.f32 1.0, %v2020
    %v2022 = vrcp.pop %v1972
    %v2023 = vmul.f32 %v1972, %v2022
    %v2024 = vsub.f32 1.0, %v2023
    %v2025 = vmul.f32 %v2022, %v2024
    %v2026 = vadd.f32 %v2022, %v2025
    %vm2027 = vweird.f32 %v1972
    %vm2028 = vweird.f32 %v2022
    %vm2029 = vmor %vm2027, %vm2028
    %v2030 = vsel %vm2029, %v2022, %v2026
    %v2031 = vand.u32 2147483647, %v1972
    %vm2032 = vcmp.eq.f32.partialorder %v2031, 8.507059e+37
    %v2033 = vand.u32 %v1972, 2147483648
    %v2034 = vor.u32 1.1754944e-38, %v2033
    %v2035 = vsel %vm2032, %v2034, %v2030
    %v2036 = vmul.f32 1.0, %v2035
    %v2037 = vrcp.pop %v1973
    %v2038 = vmul.f32 %v1973, %v2037
    %v2039 = vsub.f32 1.0, %v2038
    %v2040 = vmul.f32 %v2037, %v2039
    %v2041 = vadd.f32 %v2037, %v2040
    %vm2042 = vweird.f32 %v1973
    %vm2043 = vweird.f32 %v2037
    %vm2044 = vmor %vm2042, %vm2043
    %v2045 = vsel %vm2044, %v2037, %v2041
    %v2046 = vand.u32 2147483647, %v1973
    %vm2047 = vcmp.eq.f32.partialorder %v2046, 8.507059e+37
    %v2048 = vand.u32 %v1973, 2147483648
    %v2049 = vor.u32 1.1754944e-38, %v2048
    %v2050 = vsel %vm2047, %v2049, %v2045
    %v2051 = vmul.f32 1.0, %v2050
    %v2052 = vrcp.pop %v1974
    %v2053 = vmul.f32 %v1974, %v2052
    %v2054 = vsub.f32 1.0, %v2053
    %v2055 = vmul.f32 %v2052, %v2054
    %v2056 = vadd.f32 %v2052, %v2055
    %vm2057 = vweird.f32 %v1974
    %vm2058 = vweird.f32 %v2052
    %vm2059 = vmor %vm2057, %vm2058
    %v2060 = vsel %vm2059, %v2052, %v2056
    %v2061 = vand.u32 2147483647, %v1974
    %vm2062 = vcmp.eq.f32.partialorder %v2061, 8.507059e+37
    %v2063 = vand.u32 %v1974, 2147483648
    %v2064 = vor.u32 1.1754944e-38, %v2063
    %v2065 = vsel %vm2062, %v2064, %v2060
    %v2066 = vmul.f32 1.0, %v2065
    %v2067 = vrcp.pop %v1975
    %v2068 = vmul.f32 %v1975, %v2067
    %v2069 = vsub.f32 1.0, %v2068
    %v2070 = vmul.f32 %v2067, %v2069
    %v2071 = vadd.f32 %v2067, %v2070
    %vm2072 = vweird.f32 %v1975
    %vm2073 = vweird.f32 %v2067
    %vm2074 = vmor %vm2072, %vm2073
    %v2075 = vsel %vm2074, %v2067, %v2071
    %v2076 = vand.u32 2147483647, %v1975
    %vm2077 = vcmp.eq.f32.partialorder %v2076, 8.507059e+37
    %v2078 = vand.u32 %v1975, 2147483648
    %v2079 = vor.u32 1.1754944e-38, %v2078
    %v2080 = vsel %vm2077, %v2079, %v2075
    %v2081 = vmul.f32 1.0, %v2080
    %v2082 = vrcp.pop %v1976
    %v2083 = vmul.f32 %v1976, %v2082
    %v2084 = vsub.f32 1.0, %v2083
    %v2085 = vmul.f32 %v2082, %v2084
    %v2086 = vadd.f32 %v2082, %v2085
    %vm2087 = vweird.f32 %v1976
    %vm2088 = vweird.f32 %v2082
    %vm2089 = vmor %vm2087, %vm2088
    %v2090 = vsel %vm2089, %v2082, %v2086
    %v2091 = vand.u32 2147483647, %v1976
    %vm2092 = vcmp.eq.f32.partialorder %v2091, 8.507059e+37
    %v2093 = vand.u32 %v1976, 2147483648
    %v2094 = vor.u32 1.1754944e-38, %v2093
    %v2095 = vsel %vm2092, %v2094, %v2090
    %v2096 = vmul.f32 1.0, %v2095
    %v2098 = vrot.slane %v1378, 1
    %v2099 = vrot.slane %v1378, 2
    %v2100 = vrot.slane %v1378, 3
    %v2101 = vrot.slane %v1378, 4
    %v2102 = vrot.slane %v1378, 5
    %v2103 = vrot.slane %v1378, 6
    %v2104 = vrot.slane %v1378, 7
    %v2112 = vmul.f32 %v1799, %v1378
    %v2113 = vmul.f32 %v1814, %v2098
    %v2114 = vmul.f32 %v1829, %v2099
    %v2115 = vmul.f32 %v1844, %v2100
    %v2116 = vmul.f32 %v1859, %v2101
    %v2117 = vmul.f32 %v1874, %v2102
    %v2118 = vmul.f32 %v1889, %v2103
    %v2119 = vmul.f32 %v1904, %v2104
    %v2120 = vmul.f32 %v1623, %v1921
    %v2121 = vmul.f32 %v1638, %v1922
    %v2122 = vmul.f32 %v1653, %v1923
    %v2123 = vmul.f32 %v1668, %v1924
    %v2124 = vmul.f32 %v1683, %v1925
    %v2125 = vmul.f32 %v1698, %v1926
    %v2126 = vmul.f32 %v1713, %v1927
    %v2127 = vmul.f32 %v1728, %v1928
    %v2128 = vadd.f32 %v2112, %v2120
    %v2129 = vadd.f32 %v2113, %v2121
    %v2130 = vadd.f32 %v2114, %v2122
    %v2131 = vadd.f32 %v2115, %v2123
    %v2132 = vadd.f32 %v2116, %v2124
    %v2133 = vadd.f32 %v2117, %v2125
    %v2134 = vadd.f32 %v2118, %v2126
    %v2135 = vadd.f32 %v2119, %v2127
    %v2136 = vtanh.pop %v2128
    %v2137 = vtanh.pop %v2129
    %v2138 = vtanh.pop %v2130
    %v2139 = vtanh.pop %v2131
    %v2140 = vtanh.pop %v2132
    %v2141 = vtanh.pop %v2133
    %v2142 = vtanh.pop %v2134
    %v2143 = vtanh.pop %v2135
    %v2144 = vmul.f32 %v1991, %v2136
    %v2145 = vmul.f32 %v2006, %v2137
    %v2146 = vmul.f32 %v2021, %v2138
    %v2147 = vmul.f32 %v2036, %v2139
    %v2148 = vmul.f32 %v2051, %v2140
    %v2149 = vmul.f32 %v2066, %v2141
    %v2150 = vmul.f32 %v2081, %v2142
    %v2151 = vmul.f32 %v2096, %v2143
    %2160 = vst [vmem:[#allocation1] ss:$9 sm:$0xff] %v2144
    %s2161 = scalar_lea.vmem [#allocation1], 1
    %2162 = vst [vmem:[%s2161] ss:$9 sm:$0xff] %v2145
    %s2163 = scalar_lea.vmem [#allocation1], 2
    %2164 = vst [vmem:[%s2163] ss:$9 sm:$0xff] %v2146
    %s2165 = scalar_lea.vmem [#allocation1], 3
    %2166 = vst [vmem:[%s2165] ss:$9 sm:$0xff] %v2147
    %s2167 = scalar_lea.vmem [#allocation1], 4
    %2168 = vst [vmem:[%s2167] ss:$9 sm:$0xff] %v2148
    %s2169 = scalar_lea.vmem [#allocation1], 5
    %2170 = vst [vmem:[%s2169] ss:$9 sm:$0xff] %v2149
    %s2171 = scalar_lea.vmem [#allocation1], 6
    %2172 = vst [vmem:[%s2171] ss:$9 sm:$0xff] %v2150
    %s2173 = scalar_lea.vmem [#allocation1], 7
    %2174 = vst [vmem:[%s2173] ss:$9 sm:$0xff] %v2151
    %v2175 = vld [vmem:[#allocation1] sm:$0xff]
    %2177 = vst [vmem:[#allocation2] sm:$0xff] %v2175
    %2186 = vst [vmem:[#allocation1] ss:$9 sm:$0xff] %v2128
    %s2187 = scalar_lea.vmem [#allocation1], 1
    %2188 = vst [vmem:[%s2187] ss:$9 sm:$0xff] %v2129
    %s2189 = scalar_lea.vmem [#allocation1], 2
    %2190 = vst [vmem:[%s2189] ss:$9 sm:$0xff] %v2130
    %s2191 = scalar_lea.vmem [#allocation1], 3
    %2192 = vst [vmem:[%s2191] ss:$9 sm:$0xff] %v2131
    %s2193 = scalar_lea.vmem [#allocation1], 4
    %2194 = vst [vmem:[%s2193] ss:$9 sm:$0xff] %v2132
    %s2195 = scalar_lea.vmem [#allocation1], 5
    %2196 = vst [vmem:[%s2195] ss:$9 sm:$0xff] %v2133
    %s2197 = scalar_lea.vmem [#allocation1], 6
    %2198 = vst [vmem:[%s2197] ss:$9 sm:$0xff] %v2134
    %s2199 = scalar_lea.vmem [#allocation1], 7
    %2200 = vst [vmem:[%s2199] ss:$9 sm:$0xff] %v2135
    %v2201 = vld [vmem:[#allocation1] sm:$0xff]
    %2203 = vst [vmem:[#allocation3] sm:$0xff] %v2201
    %v2204 = vld [vmem:[%s949] sm:$0xff]
    %v2205 = vld [vmem:[%s951] sm:$0xff]
    %v2206 = vld [vmem:[#allocation9] sm:$0xff]
    %v2207 = vld [vmem:[#allocation9 + $0x8] sm:$0xff]
    %v2208 = vld [vmem:[#allocation9 + $0x10] sm:$0xff]
    %v2209 = vld [vmem:[#allocation9 + $0x18] sm:$0xff]
    %v2210 = vld [vmem:[#allocation9 + $0x20] sm:$0xff]
    %v2211 = vld [vmem:[#allocation9 + $0x28] sm:$0xff]
    %v2212 = vld [vmem:[#allocation9 + $0x30] sm:$0xff]
    %v2213 = vld [vmem:[#allocation9 + $0x38] sm:$0xff]
    %v2214 = vld [vmem:[#allocation9 + $0x40] sm:$0xff]
    %v2215 = vld [vmem:[#allocation9 + $0x48] sm:$0xff]
    %v2216 = vld [vmem:[#allocation9 + $0x50] sm:$0xff]
    %v2217 = vld [vmem:[#allocation9 + $0x58] sm:$0xff]
    %v2218 = vld [vmem:[#allocation9 + $0x60] sm:$0xff]
    %v2219 = vld [vmem:[#allocation9 + $0x68] sm:$0xff]
    %v2220 = vld [vmem:[#allocation9 + $0x70] sm:$0xff]
    %v2221 = vld [vmem:[#allocation9 + $0x78] sm:$0xff]
    %v2222 = vld [vmem:[#allocation9 + $0x80] sm:$0xff]
    %v2223 = vld [vmem:[#allocation9 + $0x88] sm:$0xff]
    %v2224 = vld [vmem:[#allocation9 + $0x90] sm:$0xff]
    %v2225 = vld [vmem:[#allocation9 + $0x98] sm:$0xff]
    %v2226 = vld [vmem:[#allocation9 + $0xa0] sm:$0xff]
    %v2227 = vld [vmem:[#allocation9 + $0xa8] sm:$0xff]
    %v2228 = vld [vmem:[#allocation9 + $0xb0] sm:$0xff]
    %v2229 = vld [vmem:[#allocation9 + $0xb8] sm:$0xff]
    %v2230 = vld [vmem:[#allocation9 + $0xc0] sm:$0xff]
    %v2231 = vld [vmem:[#allocation9 + $0xc8] sm:$0xff]
    %v2232 = vld [vmem:[#allocation9 + $0xd0] sm:$0xff]
    %v2233 = vld [vmem:[#allocation9 + $0xd8] sm:$0xff]
    %v2234 = vld [vmem:[#allocation9 + $0xe0] sm:$0xff]
    %v2235 = vld [vmem:[#allocation9 + $0xe8] sm:$0xff]
    %v2236 = vld [vmem:[#allocation9 + $0xf0] sm:$0xff]
    %v2237 = vld [vmem:[#allocation9 + $0xf8] sm:$0xff]
    %v2238 = vld [vmem:[#allocation9 + $0x100] sm:$0xff]
    %v2239 = vld [vmem:[#allocation9 + $0x108] sm:$0xff]
    %v2240 = vld [vmem:[#allocation9 + $0x110] sm:$0xff]
    %v2241 = vld [vmem:[#allocation9 + $0x118] sm:$0xff]
    %v2242 = vld [vmem:[#allocation9 + $0x120] sm:$0xff]
    %v2243 = vld [vmem:[#allocation9 + $0x128] sm:$0xff]
    %v2244 = vld [vmem:[#allocation9 + $0x130] sm:$0xff]
    %v2245 = vld [vmem:[#allocation9 + $0x138] sm:$0xff]
    %v2246 = vld [vmem:[#allocation9 + $0x140] sm:$0xff]
    %v2247 = vld [vmem:[#allocation9 + $0x148] sm:$0xff]
    %v2248 = vld [vmem:[#allocation9 + $0x150] sm:$0xff]
    %v2249 = vld [vmem:[#allocation9 + $0x158] sm:$0xff]
    %v2250 = vld [vmem:[#allocation9 + $0x160] sm:$0xff]
    %v2251 = vld [vmem:[#allocation9 + $0x168] sm:$0xff]
    %v2252 = vld [vmem:[#allocation9 + $0x170] sm:$0xff]
    %v2253 = vld [vmem:[#allocation9 + $0x178] sm:$0xff]
    %v2254 = vld [vmem:[#allocation9 + $0x180] sm:$0xff]
    %v2255 = vld [vmem:[#allocation9 + $0x188] sm:$0xff]
    %v2256 = vld [vmem:[#allocation9 + $0x190] sm:$0xff]
    %v2257 = vld [vmem:[#allocation9 + $0x198] sm:$0xff]
    %v2258 = vld [vmem:[#allocation9 + $0x1a0] sm:$0xff]
    %v2259 = vld [vmem:[#allocation9 + $0x1a8] sm:$0xff]
    %v2260 = vld [vmem:[#allocation9 + $0x1b0] sm:$0xff]
    %v2261 = vld [vmem:[#allocation9 + $0x1b8] sm:$0xff]
    %v2262 = vld [vmem:[#allocation9 + $0x1c0] sm:$0xff]
    %v2263 = vld [vmem:[#allocation9 + $0x1c8] sm:$0xff]
    %v2264 = vld [vmem:[#allocation9 + $0x1d0] sm:$0xff]
    %v2265 = vld [vmem:[#allocation9 + $0x1d8] sm:$0xff]
    %v2266 = vld [vmem:[#allocation9 + $0x1e0] sm:$0xff]
    %v2267 = vld [vmem:[#allocation9 + $0x1e8] sm:$0xff]
    %v2268 = vld [vmem:[#allocation9 + $0x1f0] sm:$0xff]
    %v2269 = vld [vmem:[#allocation9 + $0x1f8] sm:$0xff]
    %v2270 = vld [vmem:[#allocation10] sm:$0xf]
    %v2272 = vperm.slane %v2270, 0
    %v2273 = vperm.slane %v2270, 1
    %v2274 = vperm.slane %v2270, 2
    %v2275 = vperm.slane %v2270, 3
    %2280 = vst [vmem:[#allocation1] ss:$9 sm:$0xff] %v2144
    %s2281 = scalar_lea.vmem [#allocation1], 1
    %2282 = vst [vmem:[%s2281] ss:$9 sm:$0xff] %v2145
    %s2283 = scalar_lea.vmem [#allocation1], 2
    %2284 = vst [vmem:[%s2283] ss:$9 sm:$0xff] %v2146
    %s2285 = scalar_lea.vmem [#allocation1], 3
    %2286 = vst [vmem:[%s2285] ss:$9 sm:$0xff] %v2147
    %s2287 = scalar_lea.vmem [#allocation1], 4
    %2288 = vst [vmem:[%s2287] ss:$9 sm:$0xff] %v2148
    %s2289 = scalar_lea.vmem [#allocation1], 5
    %2290 = vst [vmem:[%s2289] ss:$9 sm:$0xff] %v2149
    %s2291 = scalar_lea.vmem [#allocation1], 6
    %2292 = vst [vmem:[%s2291] ss:$9 sm:$0xff] %v2150
    %s2293 = scalar_lea.vmem [#allocation1], 7
    %2294 = vst [vmem:[%s2293] ss:$9 sm:$0xff] %v2151
    %v2295 = vld [vmem:[#allocation1] sm:$0xff]
    %2297 = vmatpush.msra.mxu0 %v2266
    %2298 = vmatpush.msra.mxu0 %v2262
    %2299 = vmatpush.msra.mxu0 %v2258
    %2300 = vmatpush.msra.mxu0 %v2254
    %2301 = vmatpush.msra.mxu0 %v2250
    %2302 = vmatpush.msra.mxu0 %v2246
    %2303 = vmatpush.msra.mxu0 %v2242
    %2304 = vmatpush.msra.mxu0 %v2238
    %2305 = vmatpush.msra.mxu0 %v2234
    %2306 = vmatpush.msra.mxu0 %v2230
    %2307 = vmatpush.msra.mxu0 %v2226
    %2308 = vmatpush.msra.mxu0 %v2222
    %2309 = vmatpush.msra.mxu0 %v2218
    %2310 = vmatpush.msra.mxu0 %v2214
    %2311 = vmatpush.msra.mxu0 %v2210
    %2312 = vmatpush.msra.mxu0 %v2206
    %2313 = vmatmul.f32.gmra.mxu0 %v2295
    %v2314 = vpop.f32.mrf.mxu0
    %v2315 = vadd.f32 %v2272, %v2314
    %2316 = vdwg.mxu0
    %2317 = vmatpush.msra.mxu0 %v2267
    %2318 = vmatpush.msra.mxu0 %v2263
    %2319 = vmatpush.msra.mxu0 %v2259
    %2320 = vmatpush.msra.mxu0 %v2255
    %2321 = vmatpush.msra.mxu0 %v2251
    %2322 = vmatpush.msra.mxu0 %v2247
    %2323 = vmatpush.msra.mxu0 %v2243
    %2324 = vmatpush.msra.mxu0 %v2239
    %2325 = vmatpush.msra.mxu0 %v2235
    %2326 = vmatpush.msra.mxu0 %v2231
    %2327 = vmatpush.msra.mxu0 %v2227
    %2328 = vmatpush.msra.mxu0 %v2223
    %2329 = vmatpush.msra.mxu0 %v2219
    %2330 = vmatpush.msra.mxu0 %v2215
    %2331 = vmatpush.msra.mxu0 %v2211
    %2332 = vmatpush.msra.mxu0 %v2207
    %2333 = vmatmul.f32.gmra.mxu0 %v2295
    %v2334 = vpop.f32.mrf.mxu0
    %v2335 = vadd.f32 %v2273, %v2334
    %2336 = vdwg.mxu0
    %2337 = vmatpush.msra.mxu0 %v2268
    %2338 = vmatpush.msra.mxu0 %v2264
    %2339 = vmatpush.msra.mxu0 %v2260
    %2340 = vmatpush.msra.mxu0 %v2256
    %2341 = vmatpush.msra.mxu0 %v2252
    %2342 = vmatpush.msra.mxu0 %v2248
    %2343 = vmatpush.msra.mxu0 %v2244
    %2344 = vmatpush.msra.mxu0 %v2240
    %2345 = vmatpush.msra.mxu0 %v2236
    %2346 = vmatpush.msra.mxu0 %v2232
    %2347 = vmatpush.msra.mxu0 %v2228
    %2348 = vmatpush.msra.mxu0 %v2224
    %2349 = vmatpush.msra.mxu0 %v2220
    %2350 = vmatpush.msra.mxu0 %v2216
    %2351 = vmatpush.msra.mxu0 %v2212
    %2352 = vmatpush.msra.mxu0 %v2208
    %2353 = vmatmul.f32.gmra.mxu0 %v2295
    %v2354 = vpop.f32.mrf.mxu0
    %v2355 = vadd.f32 %v2274, %v2354
    %2356 = vdwg.mxu0
    %2357 = vmatpush.msra.mxu0 %v2269
    %2358 = vmatpush.msra.mxu0 %v2265
    %2359 = vmatpush.msra.mxu0 %v2261
    %2360 = vmatpush.msra.mxu0 %v2257
    %2361 = vmatpush.msra.mxu0 %v2253
    %2362 = vmatpush.msra.mxu0 %v2249
    %2363 = vmatpush.msra.mxu0 %v2245
    %2364 = vmatpush.msra.mxu0 %v2241
    %2365 = vmatpush.msra.mxu0 %v2237
    %2366 = vmatpush.msra.mxu0 %v2233
    %2367 = vmatpush.msra.mxu0 %v2229
    %2368 = vmatpush.msra.mxu0 %v2225
    %2369 = vmatpush.msra.mxu0 %v2221
    %2370 = vmatpush.msra.mxu0 %v2217
    %2371 = vmatpush.msra.mxu0 %v2213
    %2372 = vmatpush.msra.mxu0 %v2209
    %2373 = vmatmul.f32.gmra.mxu0 %v2295
    %v2374 = vpop.f32.mrf.mxu0
    %v2375 = vadd.f32 %v2275, %v2374
    %2376 = vdwg.mxu0
    %v2377 = vld [vmem:[%s1124] sm:$0xff]
    %v2378 = vld [vmem:[%s1124 + $0x8] sm:$0xff]
    %v2379 = vld [vmem:[%s1124 + $0x10] sm:$0xff]
    %v2380 = vld [vmem:[%s1124 + $0x18] sm:$0xff]
    %v2381 = vld [vmem:[%s1124 + $0x20] sm:$0xff]
    %v2382 = vld [vmem:[%s1124 + $0x28] sm:$0xff]
    %v2383 = vld [vmem:[%s1124 + $0x30] sm:$0xff]
    %v2384 = vld [vmem:[%s1124 + $0x38] sm:$0xff]
    %v2385 = vld [vmem:[%s1124 + $0x40] sm:$0xff]
    %v2386 = vld [vmem:[%s1124 + $0x48] sm:$0xff]
    %v2387 = vld [vmem:[%s1124 + $0x50] sm:$0xff]
    %v2388 = vld [vmem:[%s1124 + $0x58] sm:$0xff]
    %v2389 = vld [vmem:[%s1124 + $0x60] sm:$0xff]
    %v2390 = vld [vmem:[%s1124 + $0x68] sm:$0xff]
    %v2391 = vld [vmem:[%s1124 + $0x70] sm:$0xff]
    %v2392 = vld [vmem:[%s1124 + $0x78] sm:$0xff]
    %v2393 = vld [vmem:[%s1124 + $0x80] sm:$0xff]
    %v2394 = vld [vmem:[%s1124 + $0x88] sm:$0xff]
    %v2395 = vld [vmem:[%s1124 + $0x90] sm:$0xff]
    %v2396 = vld [vmem:[%s1124 + $0x98] sm:$0xff]
    %v2397 = vld [vmem:[%s1124 + $0xa0] sm:$0xff]
    %v2398 = vld [vmem:[%s1124 + $0xa8] sm:$0xff]
    %v2399 = vld [vmem:[%s1124 + $0xb0] sm:$0xff]
    %v2400 = vld [vmem:[%s1124 + $0xb8] sm:$0xff]
    %v2401 = vld [vmem:[%s1124 + $0xc0] sm:$0xff]
    %v2402 = vld [vmem:[%s1124 + $0xc8] sm:$0xff]
    %v2403 = vld [vmem:[%s1124 + $0xd0] sm:$0xff]
    %v2404 = vld [vmem:[%s1124 + $0xd8] sm:$0xff]
    %v2405 = vld [vmem:[%s1124 + $0xe0] sm:$0xff]
    %v2406 = vld [vmem:[%s1124 + $0xe8] sm:$0xff]
    %v2407 = vld [vmem:[%s1124 + $0xf0] sm:$0xff]
    %v2408 = vld [vmem:[%s1124 + $0xf8] sm:$0xff]
    %v2409 = vld [vmem:[%s1124 + $0x100] sm:$0xff]
    %v2410 = vld [vmem:[%s1124 + $0x108] sm:$0xff]
    %v2411 = vld [vmem:[%s1124 + $0x110] sm:$0xff]
    %v2412 = vld [vmem:[%s1124 + $0x118] sm:$0xff]
    %v2413 = vld [vmem:[%s1124 + $0x120] sm:$0xff]
    %v2414 = vld [vmem:[%s1124 + $0x128] sm:$0xff]
    %v2415 = vld [vmem:[%s1124 + $0x130] sm:$0xff]
    %v2416 = vld [vmem:[%s1124 + $0x138] sm:$0xff]
    %v2417 = vld [vmem:[%s1124 + $0x140] sm:$0xff]
    %v2418 = vld [vmem:[%s1124 + $0x148] sm:$0xff]
    %v2419 = vld [vmem:[%s1124 + $0x150] sm:$0xff]
    %v2420 = vld [vmem:[%s1124 + $0x158] sm:$0xff]
    %v2421 = vld [vmem:[%s1124 + $0x160] sm:$0xff]
    %v2422 = vld [vmem:[%s1124 + $0x168] sm:$0xff]
    %v2423 = vld [vmem:[%s1124 + $0x170] sm:$0xff]
    %v2424 = vld [vmem:[%s1124 + $0x178] sm:$0xff]
    %v2425 = vld [vmem:[%s1124 + $0x180] sm:$0xff]
    %v2426 = vld [vmem:[%s1124 + $0x188] sm:$0xff]
    %v2427 = vld [vmem:[%s1124 + $0x190] sm:$0xff]
    %v2428 = vld [vmem:[%s1124 + $0x198] sm:$0xff]
    %v2429 = vld [vmem:[%s1124 + $0x1a0] sm:$0xff]
    %v2430 = vld [vmem:[%s1124 + $0x1a8] sm:$0xff]
    %v2431 = vld [vmem:[%s1124 + $0x1b0] sm:$0xff]
    %v2432 = vld [vmem:[%s1124 + $0x1b8] sm:$0xff]
    %v2433 = vld [vmem:[%s1124 + $0x1c0] sm:$0xff]
    %v2434 = vld [vmem:[%s1124 + $0x1c8] sm:$0xff]
    %v2435 = vld [vmem:[%s1124 + $0x1d0] sm:$0xff]
    %v2436 = vld [vmem:[%s1124 + $0x1d8] sm:$0xff]
    %v2437 = vld [vmem:[%s1124 + $0x1e0] sm:$0xff]
    %v2438 = vld [vmem:[%s1124 + $0x1e8] sm:$0xff]
    %v2439 = vld [vmem:[%s1124 + $0x1f0] sm:$0xff]
    %v2440 = vld [vmem:[%s1124 + $0x1f8] sm:$0xff]
    %2441 = vmatpush.msra.mxu0 %v2437
    %2442 = vmatpush.msra.mxu0 %v2433
    %2443 = vmatpush.msra.mxu0 %v2429
    %2444 = vmatpush.msra.mxu0 %v2425
    %2445 = vmatpush.msra.mxu0 %v2421
    %2446 = vmatpush.msra.mxu0 %v2417
    %2447 = vmatpush.msra.mxu0 %v2413
    %2448 = vmatpush.msra.mxu0 %v2409
    %2449 = vmatpush.msra.mxu0 %v2405
    %2450 = vmatpush.msra.mxu0 %v2401
    %2451 = vmatpush.msra.mxu0 %v2397
    %2452 = vmatpush.msra.mxu0 %v2393
    %2453 = vmatpush.msra.mxu0 %v2389
    %2454 = vmatpush.msra.mxu0 %v2385
    %2455 = vmatpush.msra.mxu0 %v2381
    %2456 = vmatpush.msra.mxu0 %v2377
    %2457 = vmatmul.f32.gmra.mxu0 %v2204
    %v2458 = vpop.f32.mrf.mxu0
    %v2459 = vadd.f32 0.0, %v2458
    %2460 = vdwg.mxu0
    %2461 = vmatpush.msra.mxu0 %v2438
    %2462 = vmatpush.msra.mxu0 %v2434
    %2463 = vmatpush.msra.mxu0 %v2430
    %2464 = vmatpush.msra.mxu0 %v2426
    %2465 = vmatpush.msra.mxu0 %v2422
    %2466 = vmatpush.msra.mxu0 %v2418
    %2467 = vmatpush.msra.mxu0 %v2414
    %2468 = vmatpush.msra.mxu0 %v2410
    %2469 = vmatpush.msra.mxu0 %v2406
    %2470 = vmatpush.msra.mxu0 %v2402
    %2471 = vmatpush.msra.mxu0 %v2398
    %2472 = vmatpush.msra.mxu0 %v2394
    %2473 = vmatpush.msra.mxu0 %v2390
    %2474 = vmatpush.msra.mxu0 %v2386
    %2475 = vmatpush.msra.mxu0 %v2382
    %2476 = vmatpush.msra.mxu0 %v2378
    %2477 = vmatmul.f32.gmra.mxu0 %v2204
    %v2478 = vpop.f32.mrf.mxu0
    %v2479 = vadd.f32 0.0, %v2478
    %2480 = vdwg.mxu0
    %2481 = vmatpush.msra.mxu0 %v2439
    %2482 = vmatpush.msra.mxu0 %v2435
    %2483 = vmatpush.msra.mxu0 %v2431
    %2484 = vmatpush.msra.mxu0 %v2427
    %2485 = vmatpush.msra.mxu0 %v2423
    %2486 = vmatpush.msra.mxu0 %v2419
    %2487 = vmatpush.msra.mxu0 %v2415
    %2488 = vmatpush.msra.mxu0 %v2411
    %2489 = vmatpush.msra.mxu0 %v2407
    %2490 = vmatpush.msra.mxu0 %v2403
    %2491 = vmatpush.msra.mxu0 %v2399
    %2492 = vmatpush.msra.mxu0 %v2395
    %2493 = vmatpush.msra.mxu0 %v2391
    %2494 = vmatpush.msra.mxu0 %v2387
    %2495 = vmatpush.msra.mxu0 %v2383
    %2496 = vmatpush.msra.mxu0 %v2379
    %2497 = vmatmul.f32.gmra.mxu0 %v2204
    %v2498 = vpop.f32.mrf.mxu0
    %v2499 = vadd.f32 0.0, %v2498
    %2500 = vdwg.mxu0
    %2501 = vmatpush.msra.mxu0 %v2440
    %2502 = vmatpush.msra.mxu0 %v2436
    %2503 = vmatpush.msra.mxu0 %v2432
    %2504 = vmatpush.msra.mxu0 %v2428
    %2505 = vmatpush.msra.mxu0 %v2424
    %2506 = vmatpush.msra.mxu0 %v2420
    %2507 = vmatpush.msra.mxu0 %v2416
    %2508 = vmatpush.msra.mxu0 %v2412
    %2509 = vmatpush.msra.mxu0 %v2408
    %2510 = vmatpush.msra.mxu0 %v2404
    %2511 = vmatpush.msra.mxu0 %v2400
    %2512 = vmatpush.msra.mxu0 %v2396
    %2513 = vmatpush.msra.mxu0 %v2392
    %2514 = vmatpush.msra.mxu0 %v2388
    %2515 = vmatpush.msra.mxu0 %v2384
    %2516 = vmatpush.msra.mxu0 %v2380
    %2517 = vmatmul.f32.gmra.mxu0 %v2204
    %v2518 = vpop.f32.mrf.mxu0
    %v2519 = vadd.f32 0.0, %v2518
    %2520 = vdwg.mxu0
    %v2521 = vadd.f32 %v2315, %v2459
    %v2522 = vadd.f32 %v2335, %v2479
    %v2523 = vadd.f32 %v2355, %v2499
    %v2524 = vadd.f32 %v2375, %v2519
    %v2525 = vxor.u32 %v2521, 2147483648
    %v2526 = vmul.f32 %v2525, 1.442695
    %v2527 = vpow.pop %v2526
    %v2528 = vadd.f32 %v2527, 1.0
    %v2529 = vrcp.pop %v2528
    %v2530 = vmul.f32 %v2528, %v2529
    %v2531 = vsub.f32 1.0, %v2530
    %v2532 = vmul.f32 %v2529, %v2531
    %v2533 = vadd.f32 %v2529, %v2532
    %vm2534 = vweird.f32 %v2528
    %vm2535 = vweird.f32 %v2529
    %vm2536 = vmor %vm2534, %vm2535
    %v2537 = vsel %vm2536, %v2529, %v2533
    %v2538 = vand.u32 2147483647, %v2528
    %vm2539 = vcmp.eq.f32.partialorder %v2538, 8.507059e+37
    %v2540 = vand.u32 %v2528, 2147483648
    %v2541 = vor.u32 1.1754944e-38, %v2540
    %v2542 = vsel %vm2539, %v2541, %v2537
    %v2543 = vmul.f32 1.0, %v2542
    %v2544 = vxor.u32 %v2522, 2147483648
    %v2545 = vmul.f32 %v2544, 1.442695
    %v2546 = vpow.pop %v2545
    %v2547 = vadd.f32 %v2546, 1.0
    %v2548 = vrcp.pop %v2547
    %v2549 = vmul.f32 %v2547, %v2548
    %v2550 = vsub.f32 1.0, %v2549
    %v2551 = vmul.f32 %v2548, %v2550
    %v2552 = vadd.f32 %v2548, %v2551
    %vm2553 = vweird.f32 %v2547
    %vm2554 = vweird.f32 %v2548
    %vm2555 = vmor %vm2553, %vm2554
    %v2556 = vsel %vm2555, %v2548, %v2552
    %v2557 = vand.u32 2147483647, %v2547
    %vm2558 = vcmp.eq.f32.partialorder %v2557, 8.507059e+37
    %v2559 = vand.u32 %v2547, 2147483648
    %v2560 = vor.u32 1.1754944e-38, %v2559
    %v2561 = vsel %vm2558, %v2560, %v2556
    %v2562 = vmul.f32 1.0, %v2561
    %v2563 = vtanh.pop %v2523
    %v2564 = vxor.u32 %v2524, 2147483648
    %v2565 = vmul.f32 %v2564, 1.442695
    %v2566 = vpow.pop %v2565
    %v2567 = vadd.f32 %v2566, 1.0
    %v2568 = vrcp.pop %v2567
    %v2569 = vmul.f32 %v2567, %v2568
    %v2570 = vsub.f32 1.0, %v2569
    %v2571 = vmul.f32 %v2568, %v2570
    %v2572 = vadd.f32 %v2568, %v2571
    %vm2573 = vweird.f32 %v2567
    %vm2574 = vweird.f32 %v2568
    %vm2575 = vmor %vm2573, %vm2574
    %v2576 = vsel %vm2575, %v2568, %v2572
    %v2577 = vand.u32 2147483647, %v2567
    %vm2578 = vcmp.eq.f32.partialorder %v2577, 8.507059e+37
    %v2579 = vand.u32 %v2567, 2147483648
    %v2580 = vor.u32 1.1754944e-38, %v2579
    %v2581 = vsel %vm2578, %v2580, %v2576
    %v2582 = vmul.f32 1.0, %v2581
    %v2583 = vmul.f32 %v2562, %v2205
    %v2584 = vmul.f32 %v2543, %v2563
    %v2585 = vadd.f32 %v2583, %v2584
    %v2586 = vtanh.pop %v2585
    %v2587 = vmul.f32 %v2582, %v2586
    %2588 = vst [vmem:[%s949] sm:$0xff] %v2587
    %2589 = vst [vmem:[%s951] sm:$0xff] %v2585
    %v2591 = vrot.slane %v2587, 1
    %v2592 = vrot.slane %v2587, 2
    %v2593 = vrot.slane %v2587, 3
    %v2594 = vrot.slane %v2587, 4
    %v2595 = vrot.slane %v2587, 5
    %v2596 = vrot.slane %v2587, 6
    %v2597 = vrot.slane %v2587, 7
    %2605 = vst [vmem:[#allocation12 + $0x1] sm:$0x1] %v2587
    %2606 = vst [vmem:[#allocation12 + $0x9] sm:$0x1] %v2591
    %2607 = vst [vmem:[#allocation12 + $0x11] sm:$0x1] %v2592
    %2608 = vst [vmem:[#allocation12 + $0x19] sm:$0x1] %v2593
    %2609 = vst [vmem:[#allocation12 + $0x21] sm:$0x1] %v2594
    %2610 = vst [vmem:[#allocation12 + $0x29] sm:$0x1] %v2595
    %2611 = vst [vmem:[#allocation12 + $0x31] sm:$0x1] %v2596
    %2612 = vst [vmem:[#allocation12 + $0x39] sm:$0x1] %v2597
    %s2613 = scalar_lea.vmem [#allocation4], 2
    %v2614 = vld [vmem:[%s2613] ss:$8 sm:$0xf]
    %s2615 = scalar_lea.vmem [#allocation4], 34
    %v2616 = vld [vmem:[%s2615] ss:$8 sm:$0xf]
    %s2617 = scalar_lea.vmem [#allocation4], 66
    %v2618 = vld [vmem:[%s2617] ss:$8 sm:$0xf]
    %s2619 = scalar_lea.vmem [#allocation4], 98
    %v2620 = vld [vmem:[%s2619] ss:$8 sm:$0xf]
    %s2621 = scalar_lea.vmem [#allocation4], 130
    %v2622 = vld [vmem:[%s2621] ss:$8 sm:$0xf]
    %s2623 = scalar_lea.vmem [#allocation4], 162
    %v2624 = vld [vmem:[%s2623] ss:$8 sm:$0xf]
    %s2625 = scalar_lea.vmem [#allocation4], 194
    %v2626 = vld [vmem:[%s2625] ss:$8 sm:$0xf]
    %s2627 = scalar_lea.vmem [#allocation4], 226
    %v2628 = vld [vmem:[%s2627] ss:$8 sm:$0xf]
    %v2629 = vld [vmem:[#allocation2] sm:$0xff]
    %v2630 = vld [vmem:[#allocation3] sm:$0xff]
    %v2631 = vld [vmem:[#allocation7] sm:$0xff]
    %v2632 = vld [vmem:[#allocation7 + $0x8] sm:$0xff]
    %v2633 = vld [vmem:[#allocation7 + $0x10] sm:$0xff]
    %v2634 = vld [vmem:[#allocation7 + $0x18] sm:$0xff]
    %v2635 = vld [vmem:[#allocation7 + $0x20] sm:$0xff]
    %v2636 = vld [vmem:[#allocation7 + $0x28] sm:$0xff]
    %v2637 = vld [vmem:[#allocation7 + $0x30] sm:$0xff]
    %v2638 = vld [vmem:[#allocation7 + $0x38] sm:$0xff]
    %v2639 = vld [vmem:[#allocation7 + $0x40] sm:$0xff]
    %v2640 = vld [vmem:[#allocation7 + $0x48] sm:$0xff]
    %v2641 = vld [vmem:[#allocation7 + $0x50] sm:$0xff]
    %v2642 = vld [vmem:[#allocation7 + $0x58] sm:$0xff]
    %v2643 = vld [vmem:[#allocation7 + $0x60] sm:$0xff]
    %v2644 = vld [vmem:[#allocation7 + $0x68] sm:$0xff]
    %v2645 = vld [vmem:[#allocation7 + $0x70] sm:$0xff]
    %v2646 = vld [vmem:[#allocation7 + $0x78] sm:$0xff]
    %v2647 = vld [vmem:[#allocation7 + $0x80] sm:$0xff]
    %v2648 = vld [vmem:[#allocation7 + $0x88] sm:$0xff]
    %v2649 = vld [vmem:[#allocation7 + $0x90] sm:$0xff]
    %v2650 = vld [vmem:[#allocation7 + $0x98] sm:$0xff]
    %v2651 = vld [vmem:[#allocation7 + $0xa0] sm:$0xff]
    %v2652 = vld [vmem:[#allocation7 + $0xa8] sm:$0xff]
    %v2653 = vld [vmem:[#allocation7 + $0xb0] sm:$0xff]
    %v2654 = vld [vmem:[#allocation7 + $0xb8] sm:$0xff]
    %v2655 = vld [vmem:[#allocation7 + $0xc0] sm:$0xff]
    %v2656 = vld [vmem:[#allocation7 + $0xc8] sm:$0xff]
    %v2657 = vld [vmem:[#allocation7 + $0xd0] sm:$0xff]
    %v2658 = vld [vmem:[#allocation7 + $0xd8] sm:$0xff]
    %v2659 = vld [vmem:[#allocation7 + $0xe0] sm:$0xff]
    %v2660 = vld [vmem:[#allocation7 + $0xe8] sm:$0xff]
    %v2661 = vld [vmem:[#allocation7 + $0xf0] sm:$0xff]
    %v2662 = vld [vmem:[#allocation7 + $0xf8] sm:$0xff]
    %v2663 = vld [vmem:[#allocation7 + $0x100] sm:$0xff]
    %v2664 = vld [vmem:[#allocation7 + $0x108] sm:$0xff]
    %v2665 = vld [vmem:[#allocation7 + $0x110] sm:$0xff]
    %v2666 = vld [vmem:[#allocation7 + $0x118] sm:$0xff]
    %v2667 = vld [vmem:[#allocation7 + $0x120] sm:$0xff]
    %v2668 = vld [vmem:[#allocation7 + $0x128] sm:$0xff]
    %v2669 = vld [vmem:[#allocation7 + $0x130] sm:$0xff]
    %v2670 = vld [vmem:[#allocation7 + $0x138] sm:$0xff]
    %v2671 = vld [vmem:[#allocation7 + $0x140] sm:$0xff]
    %v2672 = vld [vmem:[#allocation7 + $0x148] sm:$0xff]
    %v2673 = vld [vmem:[#allocation7 + $0x150] sm:$0xff]
    %v2674 = vld [vmem:[#allocation7 + $0x158] sm:$0xff]
    %v2675 = vld [vmem:[#allocation7 + $0x160] sm:$0xff]
    %v2676 = vld [vmem:[#allocation7 + $0x168] sm:$0xff]
    %v2677 = vld [vmem:[#allocation7 + $0x170] sm:$0xff]
    %v2678 = vld [vmem:[#allocation7 + $0x178] sm:$0xff]
    %v2679 = vld [vmem:[#allocation7 + $0x180] sm:$0xff]
    %v2680 = vld [vmem:[#allocation7 + $0x188] sm:$0xff]
    %v2681 = vld [vmem:[#allocation7 + $0x190] sm:$0xff]
    %v2682 = vld [vmem:[#allocation7 + $0x198] sm:$0xff]
    %v2683 = vld [vmem:[#allocation7 + $0x1a0] sm:$0xff]
    %v2684 = vld [vmem:[#allocation7 + $0x1a8] sm:$0xff]
    %v2685 = vld [vmem:[#allocation7 + $0x1b0] sm:$0xff]
    %v2686 = vld [vmem:[#allocation7 + $0x1b8] sm:$0xff]
    %v2687 = vld [vmem:[#allocation7 + $0x1c0] sm:$0xff]
    %v2688 = vld [vmem:[#allocation7 + $0x1c8] sm:$0xff]
    %v2689 = vld [vmem:[#allocation7 + $0x1d0] sm:$0xff]
    %v2690 = vld [vmem:[#allocation7 + $0x1d8] sm:$0xff]
    %v2691 = vld [vmem:[#allocation7 + $0x1e0] sm:$0xff]
    %v2692 = vld [vmem:[#allocation7 + $0x1e8] sm:$0xff]
    %v2693 = vld [vmem:[#allocation7 + $0x1f0] sm:$0xff]
    %v2694 = vld [vmem:[#allocation7 + $0x1f8] sm:$0xff]
    %2695 = vmatpush.msra.mxu0 %v2691
    %2696 = vmatpush.msra.mxu0 %v2687
    %2697 = vmatpush.msra.mxu0 %v2683
    %2698 = vmatpush.msra.mxu0 %v2679
    %2699 = vmatpush.msra.mxu0 %v2675
    %2700 = vmatpush.msra.mxu0 %v2671
    %2701 = vmatpush.msra.mxu0 %v2667
    %2702 = vmatpush.msra.mxu0 %v2663
    %2703 = vmatpush.msra.mxu0 %v2659
    %2704 = vmatpush.msra.mxu0 %v2655
    %2705 = vmatpush.msra.mxu0 %v2651
    %2706 = vmatpush.msra.mxu0 %v2647
    %2707 = vmatpush.msra.mxu0 %v2643
    %2708 = vmatpush.msra.mxu0 %v2639
    %2709 = vmatpush.msra.mxu0 %v2635
    %2710 = vmatpush.msra.mxu0 %v2631
    %2711 = vmatmul.f32.gmra.mxu0 %v2629
    %v2712 = vpop.f32.mrf.mxu0
    %v2713 = vadd.f32 0.0, %v2712
    %2714 = vdwg.mxu0
    %2715 = vmatpush.msra.mxu0 %v2692
    %2716 = vmatpush.msra.mxu0 %v2688
    %2717 = vmatpush.msra.mxu0 %v2684
    %2718 = vmatpush.msra.mxu0 %v2680
    %2719 = vmatpush.msra.mxu0 %v2676
    %2720 = vmatpush.msra.mxu0 %v2672
    %2721 = vmatpush.msra.mxu0 %v2668
    %2722 = vmatpush.msra.mxu0 %v2664
    %2723 = vmatpush.msra.mxu0 %v2660
    %2724 = vmatpush.msra.mxu0 %v2656
    %2725 = vmatpush.msra.mxu0 %v2652
    %2726 = vmatpush.msra.mxu0 %v2648
    %2727 = vmatpush.msra.mxu0 %v2644
    %2728 = vmatpush.msra.mxu0 %v2640
    %2729 = vmatpush.msra.mxu0 %v2636
    %2730 = vmatpush.msra.mxu0 %v2632
    %2731 = vmatmul.f32.gmra.mxu0 %v2629
    %v2732 = vpop.f32.mrf.mxu0
    %v2733 = vadd.f32 0.0, %v2732
    %2734 = vdwg.mxu0
    %2735 = vmatpush.msra.mxu0 %v2693
    %2736 = vmatpush.msra.mxu0 %v2689
    %2737 = vmatpush.msra.mxu0 %v2685
    %2738 = vmatpush.msra.mxu0 %v2681
    %2739 = vmatpush.msra.mxu0 %v2677
    %2740 = vmatpush.msra.mxu0 %v2673
    %2741 = vmatpush.msra.mxu0 %v2669
    %2742 = vmatpush.msra.mxu0 %v2665
    %2743 = vmatpush.msra.mxu0 %v2661
    %2744 = vmatpush.msra.mxu0 %v2657
    %2745 = vmatpush.msra.mxu0 %v2653
    %2746 = vmatpush.msra.mxu0 %v2649
    %2747 = vmatpush.msra.mxu0 %v2645
    %2748 = vmatpush.msra.mxu0 %v2641
    %2749 = vmatpush.msra.mxu0 %v2637
    %2750 = vmatpush.msra.mxu0 %v2633
    %2751 = vmatmul.f32.gmra.mxu0 %v2629
    %v2752 = vpop.f32.mrf.mxu0
    %v2753 = vadd.f32 0.0, %v2752
    %2754 = vdwg.mxu0
    %2755 = vmatpush.msra.mxu0 %v2694
    %2756 = vmatpush.msra.mxu0 %v2690
    %2757 = vmatpush.msra.mxu0 %v2686
    %2758 = vmatpush.msra.mxu0 %v2682
    %2759 = vmatpush.msra.mxu0 %v2678
    %2760 = vmatpush.msra.mxu0 %v2674
    %2761 = vmatpush.msra.mxu0 %v2670
    %2762 = vmatpush.msra.mxu0 %v2666
    %2763 = vmatpush.msra.mxu0 %v2662
    %2764 = vmatpush.msra.mxu0 %v2658
    %2765 = vmatpush.msra.mxu0 %v2654
    %2766 = vmatpush.msra.mxu0 %v2650
    %2767 = vmatpush.msra.mxu0 %v2646
    %2768 = vmatpush.msra.mxu0 %v2642
    %2769 = vmatpush.msra.mxu0 %v2638
    %2770 = vmatpush.msra.mxu0 %v2634
    %2771 = vmatmul.f32.gmra.mxu0 %v2629
    %v2772 = vpop.f32.mrf.mxu0
    %v2773 = vadd.f32 0.0, %v2772
    %2774 = vdwg.mxu0
    %v2779 = vrot.slane %v2733, 7
    %v2780 = vrot.slane %v2753, 6
    %v2781 = vrot.slane %v2773, 5
    %v2782 = vsel %vm259, %v2713, %v2779
    %v2783 = vsel %vm261, %v2780, %v2781
    %v2784 = vsel %vm263, %v2782, %v2783
    %v2785 = vsel %vm265, %v2713, %v2779
    %v2786 = vsel %vm267, %v2780, %v2781
    %v2787 = vsel %vm269, %v2785, %v2786
    %v2788 = vrot.slane %v2787, 1
    %v2789 = vsel %vm261, %v2713, %v2779
    %v2790 = vsel %vm273, %v2780, %v2781
    %v2791 = vsel %vm275, %v2789, %v2790
    %v2792 = vrot.slane %v2791, 2
    %v2793 = vsel %vm267, %v2713, %v2779
    %v2794 = vsel %vm279, %v2780, %v2781
    %v2795 = vsel %vm281, %v2793, %v2794
    %v2796 = vrot.slane %v2795, 3
    %v2797 = vsel %vm273, %v2713, %v2779
    %v2798 = vsel %vm285, %v2780, %v2781
    %v2799 = vsel %vm287, %v2797, %v2798
    %v2800 = vrot.slane %v2799, 4
    %v2801 = vsel %vm279, %v2713, %v2779
    %v2802 = vsel %vm291, %v2781, %v2780
    %v2803 = vsel %vm293, %v2801, %v2802
    %v2804 = vrot.slane %v2803, 5
    %v2805 = vsel %vm285, %v2713, %v2779
    %v2806 = vsel %vm259, %v2780, %v2781
    %v2807 = vsel %vm298, %v2806, %v2805
    %v2808 = vrot.slane %v2807, 6
    %v2809 = vsel %vm291, %v2779, %v2713
    %v2810 = vsel %vm265, %v2780, %v2781
    %v2811 = vsel %vm303, %v2810, %v2809
    %v2812 = vrot.slane %v2811, 7
    %v2821 = vadd.f32 %v2614, %v2784
    %v2822 = vadd.f32 %v2616, %v2788
    %v2823 = vadd.f32 %v2618, %v2792
    %v2824 = vadd.f32 %v2620, %v2796
    %v2825 = vadd.f32 %v2622, %v2800
    %v2826 = vadd.f32 %v2624, %v2804
    %v2827 = vadd.f32 %v2626, %v2808
    %v2828 = vadd.f32 %v2628, %v2812
    %v2829 = vxor.u32 %v2821, 2147483648
    %v2830 = vxor.u32 %v2822, 2147483648
    %v2831 = vxor.u32 %v2823, 2147483648
    %v2832 = vxor.u32 %v2824, 2147483648
    %v2833 = vxor.u32 %v2825, 2147483648
    %v2834 = vxor.u32 %v2826, 2147483648
    %v2835 = vxor.u32 %v2827, 2147483648
    %v2836 = vxor.u32 %v2828, 2147483648
    %v2837 = vmul.f32 %v2829, 1.442695
    %v2838 = vpow.pop %v2837
    %v2839 = vmul.f32 %v2830, 1.442695
    %v2840 = vpow.pop %v2839
    %v2841 = vmul.f32 %v2831, 1.442695
    %v2842 = vpow.pop %v2841
    %v2843 = vmul.f32 %v2832, 1.442695
    %v2844 = vpow.pop %v2843
    %v2845 = vmul.f32 %v2833, 1.442695
    %v2846 = vpow.pop %v2845
    %v2847 = vmul.f32 %v2834, 1.442695
    %v2848 = vpow.pop %v2847
    %v2849 = vmul.f32 %v2835, 1.442695
    %v2850 = vpow.pop %v2849
    %v2851 = vmul.f32 %v2836, 1.442695
    %v2852 = vpow.pop %v2851
    %v2853 = vadd.f32 %v2838, 1.0
    %v2854 = vadd.f32 %v2840, 1.0
    %v2855 = vadd.f32 %v2842, 1.0
    %v2856 = vadd.f32 %v2844, 1.0
    %v2857 = vadd.f32 %v2846, 1.0
    %v2858 = vadd.f32 %v2848, 1.0
    %v2859 = vadd.f32 %v2850, 1.0
    %v2860 = vadd.f32 %v2852, 1.0
    %v2861 = vrcp.pop %v2853
    %v2862 = vmul.f32 %v2853, %v2861
    %v2863 = vsub.f32 1.0, %v2862
    %v2864 = vmul.f32 %v2861, %v2863
    %v2865 = vadd.f32 %v2861, %v2864
    %vm2866 = vweird.f32 %v2853
    %vm2867 = vweird.f32 %v2861
    %vm2868 = vmor %vm2866, %vm2867
    %v2869 = vsel %vm2868, %v2861, %v2865
    %v2870 = vand.u32 2147483647, %v2853
    %vm2871 = vcmp.eq.f32.partialorder %v2870, 8.507059e+37
    %v2872 = vand.u32 %v2853, 2147483648
    %v2873 = vor.u32 1.1754944e-38, %v2872
    %v2874 = vsel %vm2871, %v2873, %v2869
    %v2875 = vmul.f32 1.0, %v2874
    %v2876 = vrcp.pop %v2854
    %v2877 = vmul.f32 %v2854, %v2876
    %v2878 = vsub.f32 1.0, %v2877
    %v2879 = vmul.f32 %v2876, %v2878
    %v2880 = vadd.f32 %v2876, %v2879
    %vm2881 = vweird.f32 %v2854
    %vm2882 = vweird.f32 %v2876
    %vm2883 = vmor %vm2881, %vm2882
    %v2884 = vsel %vm2883, %v2876, %v2880
    %v2885 = vand.u32 2147483647, %v2854
    %vm2886 = vcmp.eq.f32.partialorder %v2885, 8.507059e+37
    %v2887 = vand.u32 %v2854, 2147483648
    %v2888 = vor.u32 1.1754944e-38, %v2887
    %v2889 = vsel %vm2886, %v2888, %v2884
    %v2890 = vmul.f32 1.0, %v2889
    %v2891 = vrcp.pop %v2855
    %v2892 = vmul.f32 %v2855, %v2891
    %v2893 = vsub.f32 1.0, %v2892
    %v2894 = vmul.f32 %v2891, %v2893
    %v2895 = vadd.f32 %v2891, %v2894
    %vm2896 = vweird.f32 %v2855
    %vm2897 = vweird.f32 %v2891
    %vm2898 = vmor %vm2896, %vm2897
    %v2899 = vsel %vm2898, %v2891, %v2895
    %v2900 = vand.u32 2147483647, %v2855
    %vm2901 = vcmp.eq.f32.partialorder %v2900, 8.507059e+37
    %v2902 = vand.u32 %v2855, 2147483648
    %v2903 = vor.u32 1.1754944e-38, %v2902
    %v2904 = vsel %vm2901, %v2903, %v2899
    %v2905 = vmul.f32 1.0, %v2904
    %v2906 = vrcp.pop %v2856
    %v2907 = vmul.f32 %v2856, %v2906
    %v2908 = vsub.f32 1.0, %v2907
    %v2909 = vmul.f32 %v2906, %v2908
    %v2910 = vadd.f32 %v2906, %v2909
    %vm2911 = vweird.f32 %v2856
    %vm2912 = vweird.f32 %v2906
    %vm2913 = vmor %vm2911, %vm2912
    %v2914 = vsel %vm2913, %v2906, %v2910
    %v2915 = vand.u32 2147483647, %v2856
    %vm2916 = vcmp.eq.f32.partialorder %v2915, 8.507059e+37
    %v2917 = vand.u32 %v2856, 2147483648
    %v2918 = vor.u32 1.1754944e-38, %v2917
    %v2919 = vsel %vm2916, %v2918, %v2914
    %v2920 = vmul.f32 1.0, %v2919
    %v2921 = vrcp.pop %v2857
    %v2922 = vmul.f32 %v2857, %v2921
    %v2923 = vsub.f32 1.0, %v2922
    %v2924 = vmul.f32 %v2921, %v2923
    %v2925 = vadd.f32 %v2921, %v2924
    %vm2926 = vweird.f32 %v2857
    %vm2927 = vweird.f32 %v2921
    %vm2928 = vmor %vm2926, %vm2927
    %v2929 = vsel %vm2928, %v2921, %v2925
    %v2930 = vand.u32 2147483647, %v2857
    %vm2931 = vcmp.eq.f32.partialorder %v2930, 8.507059e+37
    %v2932 = vand.u32 %v2857, 2147483648
    %v2933 = vor.u32 1.1754944e-38, %v2932
    %v2934 = vsel %vm2931, %v2933, %v2929
    %v2935 = vmul.f32 1.0, %v2934
    %v2936 = vrcp.pop %v2858
    %v2937 = vmul.f32 %v2858, %v2936
    %v2938 = vsub.f32 1.0, %v2937
    %v2939 = vmul.f32 %v2936, %v2938
    %v2940 = vadd.f32 %v2936, %v2939
    %vm2941 = vweird.f32 %v2858
    %vm2942 = vweird.f32 %v2936
    %vm2943 = vmor %vm2941, %vm2942
    %v2944 = vsel %vm2943, %v2936, %v2940
    %v2945 = vand.u32 2147483647, %v2858
    %vm2946 = vcmp.eq.f32.partialorder %v2945, 8.507059e+37
    %v2947 = vand.u32 %v2858, 2147483648
    %v2948 = vor.u32 1.1754944e-38, %v2947
    %v2949 = vsel %vm2946, %v2948, %v2944
    %v2950 = vmul.f32 1.0, %v2949
    %v2951 = vrcp.pop %v2859
    %v2952 = vmul.f32 %v2859, %v2951
    %v2953 = vsub.f32 1.0, %v2952
    %v2954 = vmul.f32 %v2951, %v2953
    %v2955 = vadd.f32 %v2951, %v2954
    %vm2956 = vweird.f32 %v2859
    %vm2957 = vweird.f32 %v2951
    %vm2958 = vmor %vm2956, %vm2957
    %v2959 = vsel %vm2958, %v2951, %v2955
    %v2960 = vand.u32 2147483647, %v2859
    %vm2961 = vcmp.eq.f32.partialorder %v2960, 8.507059e+37
    %v2962 = vand.u32 %v2859, 2147483648
    %v2963 = vor.u32 1.1754944e-38, %v2962
    %v2964 = vsel %vm2961, %v2963, %v2959
    %v2965 = vmul.f32 1.0, %v2964
    %v2966 = vrcp.pop %v2860
    %v2967 = vmul.f32 %v2860, %v2966
    %v2968 = vsub.f32 1.0, %v2967
    %v2969 = vmul.f32 %v2966, %v2968
    %v2970 = vadd.f32 %v2966, %v2969
    %vm2971 = vweird.f32 %v2860
    %vm2972 = vweird.f32 %v2966
    %vm2973 = vmor %vm2971, %vm2972
    %v2974 = vsel %vm2973, %v2966, %v2970
    %v2975 = vand.u32 2147483647, %v2860
    %vm2976 = vcmp.eq.f32.partialorder %v2975, 8.507059e+37
    %v2977 = vand.u32 %v2860, 2147483648
    %v2978 = vor.u32 1.1754944e-38, %v2977
    %v2979 = vsel %vm2976, %v2978, %v2974
    %v2980 = vmul.f32 1.0, %v2979
    %v2989 = vrot.slane %v2821, 1
    %v2990 = vrot.slane %v2822, 1
    %v2991 = vrot.slane %v2823, 1
    %v2992 = vrot.slane %v2824, 1
    %v2993 = vrot.slane %v2825, 1
    %v2994 = vrot.slane %v2826, 1
    %v2995 = vrot.slane %v2827, 1
    %v2996 = vrot.slane %v2828, 1
    %v3005 = vxor.u32 %v2989, 2147483648
    %v3006 = vxor.u32 %v2990, 2147483648
    %v3007 = vxor.u32 %v2991, 2147483648
    %v3008 = vxor.u32 %v2992, 2147483648
    %v3009 = vxor.u32 %v2993, 2147483648
    %v3010 = vxor.u32 %v2994, 2147483648
    %v3011 = vxor.u32 %v2995, 2147483648
    %v3012 = vxor.u32 %v2996, 2147483648
    %v3013 = vmul.f32 %v3005, 1.442695
    %v3014 = vpow.pop %v3013
    %v3015 = vmul.f32 %v3006, 1.442695
    %v3016 = vpow.pop %v3015
    %v3017 = vmul.f32 %v3007, 1.442695
    %v3018 = vpow.pop %v3017
    %v3019 = vmul.f32 %v3008, 1.442695
    %v3020 = vpow.pop %v3019
    %v3021 = vmul.f32 %v3009, 1.442695
    %v3022 = vpow.pop %v3021
    %v3023 = vmul.f32 %v3010, 1.442695
    %v3024 = vpow.pop %v3023
    %v3025 = vmul.f32 %v3011, 1.442695
    %v3026 = vpow.pop %v3025
    %v3027 = vmul.f32 %v3012, 1.442695
    %v3028 = vpow.pop %v3027
    %v3029 = vadd.f32 %v3014, 1.0
    %v3030 = vadd.f32 %v3016, 1.0
    %v3031 = vadd.f32 %v3018, 1.0
    %v3032 = vadd.f32 %v3020, 1.0
    %v3033 = vadd.f32 %v3022, 1.0
    %v3034 = vadd.f32 %v3024, 1.0
    %v3035 = vadd.f32 %v3026, 1.0
    %v3036 = vadd.f32 %v3028, 1.0
    %v3037 = vrcp.pop %v3029
    %v3038 = vmul.f32 %v3029, %v3037
    %v3039 = vsub.f32 1.0, %v3038
    %v3040 = vmul.f32 %v3037, %v3039
    %v3041 = vadd.f32 %v3037, %v3040
    %vm3042 = vweird.f32 %v3029
    %vm3043 = vweird.f32 %v3037
    %vm3044 = vmor %vm3042, %vm3043
    %v3045 = vsel %vm3044, %v3037, %v3041
    %v3046 = vand.u32 2147483647, %v3029
    %vm3047 = vcmp.eq.f32.partialorder %v3046, 8.507059e+37
    %v3048 = vand.u32 %v3029, 2147483648
    %v3049 = vor.u32 1.1754944e-38, %v3048
    %v3050 = vsel %vm3047, %v3049, %v3045
    %v3051 = vmul.f32 1.0, %v3050
    %v3052 = vrcp.pop %v3030
    %v3053 = vmul.f32 %v3030, %v3052
    %v3054 = vsub.f32 1.0, %v3053
    %v3055 = vmul.f32 %v3052, %v3054
    %v3056 = vadd.f32 %v3052, %v3055
    %vm3057 = vweird.f32 %v3030
    %vm3058 = vweird.f32 %v3052
    %vm3059 = vmor %vm3057, %vm3058
    %v3060 = vsel %vm3059, %v3052, %v3056
    %v3061 = vand.u32 2147483647, %v3030
    %vm3062 = vcmp.eq.f32.partialorder %v3061, 8.507059e+37
    %v3063 = vand.u32 %v3030, 2147483648
    %v3064 = vor.u32 1.1754944e-38, %v3063
    %v3065 = vsel %vm3062, %v3064, %v3060
    %v3066 = vmul.f32 1.0, %v3065
    %v3067 = vrcp.pop %v3031
    %v3068 = vmul.f32 %v3031, %v3067
    %v3069 = vsub.f32 1.0, %v3068
    %v3070 = vmul.f32 %v3067, %v3069
    %v3071 = vadd.f32 %v3067, %v3070
    %vm3072 = vweird.f32 %v3031
    %vm3073 = vweird.f32 %v3067
    %vm3074 = vmor %vm3072, %vm3073
    %v3075 = vsel %vm3074, %v3067, %v3071
    %v3076 = vand.u32 2147483647, %v3031
    %vm3077 = vcmp.eq.f32.partialorder %v3076, 8.507059e+37
    %v3078 = vand.u32 %v3031, 2147483648
    %v3079 = vor.u32 1.1754944e-38, %v3078
    %v3080 = vsel %vm3077, %v3079, %v3075
    %v3081 = vmul.f32 1.0, %v3080
    %v3082 = vrcp.pop %v3032
    %v3083 = vmul.f32 %v3032, %v3082
    %v3084 = vsub.f32 1.0, %v3083
    %v3085 = vmul.f32 %v3082, %v3084
    %v3086 = vadd.f32 %v3082, %v3085
    %vm3087 = vweird.f32 %v3032
    %vm3088 = vweird.f32 %v3082
    %vm3089 = vmor %vm3087, %vm3088
    %v3090 = vsel %vm3089, %v3082, %v3086
    %v3091 = vand.u32 2147483647, %v3032
    %vm3092 = vcmp.eq.f32.partialorder %v3091, 8.507059e+37
    %v3093 = vand.u32 %v3032, 2147483648
    %v3094 = vor.u32 1.1754944e-38, %v3093
    %v3095 = vsel %vm3092, %v3094, %v3090
    %v3096 = vmul.f32 1.0, %v3095
    %v3097 = vrcp.pop %v3033
    %v3098 = vmul.f32 %v3033, %v3097
    %v3099 = vsub.f32 1.0, %v3098
    %v3100 = vmul.f32 %v3097, %v3099
    %v3101 = vadd.f32 %v3097, %v3100
    %vm3102 = vweird.f32 %v3033
    %vm3103 = vweird.f32 %v3097
    %vm3104 = vmor %vm3102, %vm3103
    %v3105 = vsel %vm3104, %v3097, %v3101
    %v3106 = vand.u32 2147483647, %v3033
    %vm3107 = vcmp.eq.f32.partialorder %v3106, 8.507059e+37
    %v3108 = vand.u32 %v3033, 2147483648
    %v3109 = vor.u32 1.1754944e-38, %v3108
    %v3110 = vsel %vm3107, %v3109, %v3105
    %v3111 = vmul.f32 1.0, %v3110
    %v3112 = vrcp.pop %v3034
    %v3113 = vmul.f32 %v3034, %v3112
    %v3114 = vsub.f32 1.0, %v3113
    %v3115 = vmul.f32 %v3112, %v3114
    %v3116 = vadd.f32 %v3112, %v3115
    %vm3117 = vweird.f32 %v3034
    %vm3118 = vweird.f32 %v3112
    %vm3119 = vmor %vm3117, %vm3118
    %v3120 = vsel %vm3119, %v3112, %v3116
    %v3121 = vand.u32 2147483647, %v3034
    %vm3122 = vcmp.eq.f32.partialorder %v3121, 8.507059e+37
    %v3123 = vand.u32 %v3034, 2147483648
    %v3124 = vor.u32 1.1754944e-38, %v3123
    %v3125 = vsel %vm3122, %v3124, %v3120
    %v3126 = vmul.f32 1.0, %v3125
    %v3127 = vrcp.pop %v3035
    %v3128 = vmul.f32 %v3035, %v3127
    %v3129 = vsub.f32 1.0, %v3128
    %v3130 = vmul.f32 %v3127, %v3129
    %v3131 = vadd.f32 %v3127, %v3130
    %vm3132 = vweird.f32 %v3035
    %vm3133 = vweird.f32 %v3127
    %vm3134 = vmor %vm3132, %vm3133
    %v3135 = vsel %vm3134, %v3127, %v3131
    %v3136 = vand.u32 2147483647, %v3035
    %vm3137 = vcmp.eq.f32.partialorder %v3136, 8.507059e+37
    %v3138 = vand.u32 %v3035, 2147483648
    %v3139 = vor.u32 1.1754944e-38, %v3138
    %v3140 = vsel %vm3137, %v3139, %v3135
    %v3141 = vmul.f32 1.0, %v3140
    %v3142 = vrcp.pop %v3036
    %v3143 = vmul.f32 %v3036, %v3142
    %v3144 = vsub.f32 1.0, %v3143
    %v3145 = vmul.f32 %v3142, %v3144
    %v3146 = vadd.f32 %v3142, %v3145
    %vm3147 = vweird.f32 %v3036
    %vm3148 = vweird.f32 %v3142
    %vm3149 = vmor %vm3147, %vm3148
    %v3150 = vsel %vm3149, %v3142, %v3146
    %v3151 = vand.u32 2147483647, %v3036
    %vm3152 = vcmp.eq.f32.partialorder %v3151, 8.507059e+37
    %v3153 = vand.u32 %v3036, 2147483648
    %v3154 = vor.u32 1.1754944e-38, %v3153
    %v3155 = vsel %vm3152, %v3154, %v3150
    %v3156 = vmul.f32 1.0, %v3155
    %v3157 = vrot.slane %v2821, 2
    %v3158 = vrot.slane %v2822, 2
    %v3159 = vrot.slane %v2823, 2
    %v3160 = vrot.slane %v2824, 2
    %v3161 = vrot.slane %v2825, 2
    %v3162 = vrot.slane %v2826, 2
    %v3163 = vrot.slane %v2827, 2
    %v3164 = vrot.slane %v2828, 2
    %v3173 = vtanh.pop %v3157
    %v3174 = vtanh.pop %v3158
    %v3175 = vtanh.pop %v3159
    %v3176 = vtanh.pop %v3160
    %v3177 = vtanh.pop %v3161
    %v3178 = vtanh.pop %v3162
    %v3179 = vtanh.pop %v3163
    %v3180 = vtanh.pop %v3164
    %v3181 = vrot.slane %v2821, 3
    %v3182 = vrot.slane %v2822, 3
    %v3183 = vrot.slane %v2823, 3
    %v3184 = vrot.slane %v2824, 3
    %v3185 = vrot.slane %v2825, 3
    %v3186 = vrot.slane %v2826, 3
    %v3187 = vrot.slane %v2827, 3
    %v3188 = vrot.slane %v2828, 3
    %v3197 = vxor.u32 %v3181, 2147483648
    %v3198 = vxor.u32 %v3182, 2147483648
    %v3199 = vxor.u32 %v3183, 2147483648
    %v3200 = vxor.u32 %v3184, 2147483648
    %v3201 = vxor.u32 %v3185, 2147483648
    %v3202 = vxor.u32 %v3186, 2147483648
    %v3203 = vxor.u32 %v3187, 2147483648
    %v3204 = vxor.u32 %v3188, 2147483648
    %v3205 = vmul.f32 %v3197, 1.442695
    %v3206 = vpow.pop %v3205
    %v3207 = vmul.f32 %v3198, 1.442695
    %v3208 = vpow.pop %v3207
    %v3209 = vmul.f32 %v3199, 1.442695
    %v3210 = vpow.pop %v3209
    %v3211 = vmul.f32 %v3200, 1.442695
    %v3212 = vpow.pop %v3211
    %v3213 = vmul.f32 %v3201, 1.442695
    %v3214 = vpow.pop %v3213
    %v3215 = vmul.f32 %v3202, 1.442695
    %v3216 = vpow.pop %v3215
    %v3217 = vmul.f32 %v3203, 1.442695
    %v3218 = vpow.pop %v3217
    %v3219 = vmul.f32 %v3204, 1.442695
    %v3220 = vpow.pop %v3219
    %v3221 = vadd.f32 %v3206, 1.0
    %v3222 = vadd.f32 %v3208, 1.0
    %v3223 = vadd.f32 %v3210, 1.0
    %v3224 = vadd.f32 %v3212, 1.0
    %v3225 = vadd.f32 %v3214, 1.0
    %v3226 = vadd.f32 %v3216, 1.0
    %v3227 = vadd.f32 %v3218, 1.0
    %v3228 = vadd.f32 %v3220, 1.0
    %v3229 = vrcp.pop %v3221
    %v3230 = vmul.f32 %v3221, %v3229
    %v3231 = vsub.f32 1.0, %v3230
    %v3232 = vmul.f32 %v3229, %v3231
    %v3233 = vadd.f32 %v3229, %v3232
    %vm3234 = vweird.f32 %v3221
    %vm3235 = vweird.f32 %v3229
    %vm3236 = vmor %vm3234, %vm3235
    %v3237 = vsel %vm3236, %v3229, %v3233
    %v3238 = vand.u32 2147483647, %v3221
    %vm3239 = vcmp.eq.f32.partialorder %v3238, 8.507059e+37
    %v3240 = vand.u32 %v3221, 2147483648
    %v3241 = vor.u32 1.1754944e-38, %v3240
    %v3242 = vsel %vm3239, %v3241, %v3237
    %v3243 = vmul.f32 1.0, %v3242
    %v3244 = vrcp.pop %v3222
    %v3245 = vmul.f32 %v3222, %v3244
    %v3246 = vsub.f32 1.0, %v3245
    %v3247 = vmul.f32 %v3244, %v3246
    %v3248 = vadd.f32 %v3244, %v3247
    %vm3249 = vweird.f32 %v3222
    %vm3250 = vweird.f32 %v3244
    %vm3251 = vmor %vm3249, %vm3250
    %v3252 = vsel %vm3251, %v3244, %v3248
    %v3253 = vand.u32 2147483647, %v3222
    %vm3254 = vcmp.eq.f32.partialorder %v3253, 8.507059e+37
    %v3255 = vand.u32 %v3222, 2147483648
    %v3256 = vor.u32 1.1754944e-38, %v3255
    %v3257 = vsel %vm3254, %v3256, %v3252
    %v3258 = vmul.f32 1.0, %v3257
    %v3259 = vrcp.pop %v3223
    %v3260 = vmul.f32 %v3223, %v3259
    %v3261 = vsub.f32 1.0, %v3260
    %v3262 = vmul.f32 %v3259, %v3261
    %v3263 = vadd.f32 %v3259, %v3262
    %vm3264 = vweird.f32 %v3223
    %vm3265 = vweird.f32 %v3259
    %vm3266 = vmor %vm3264, %vm3265
    %v3267 = vsel %vm3266, %v3259, %v3263
    %v3268 = vand.u32 2147483647, %v3223
    %vm3269 = vcmp.eq.f32.partialorder %v3268, 8.507059e+37
    %v3270 = vand.u32 %v3223, 2147483648
    %v3271 = vor.u32 1.1754944e-38, %v3270
    %v3272 = vsel %vm3269, %v3271, %v3267
    %v3273 = vmul.f32 1.0, %v3272
    %v3274 = vrcp.pop %v3224
    %v3275 = vmul.f32 %v3224, %v3274
    %v3276 = vsub.f32 1.0, %v3275
    %v3277 = vmul.f32 %v3274, %v3276
    %v3278 = vadd.f32 %v3274, %v3277
    %vm3279 = vweird.f32 %v3224
    %vm3280 = vweird.f32 %v3274
    %vm3281 = vmor %vm3279, %vm3280
    %v3282 = vsel %vm3281, %v3274, %v3278
    %v3283 = vand.u32 2147483647, %v3224
    %vm3284 = vcmp.eq.f32.partialorder %v3283, 8.507059e+37
    %v3285 = vand.u32 %v3224, 2147483648
    %v3286 = vor.u32 1.1754944e-38, %v3285
    %v3287 = vsel %vm3284, %v3286, %v3282
    %v3288 = vmul.f32 1.0, %v3287
    %v3289 = vrcp.pop %v3225
    %v3290 = vmul.f32 %v3225, %v3289
    %v3291 = vsub.f32 1.0, %v3290
    %v3292 = vmul.f32 %v3289, %v3291
    %v3293 = vadd.f32 %v3289, %v3292
    %vm3294 = vweird.f32 %v3225
    %vm3295 = vweird.f32 %v3289
    %vm3296 = vmor %vm3294, %vm3295
    %v3297 = vsel %vm3296, %v3289, %v3293
    %v3298 = vand.u32 2147483647, %v3225
    %vm3299 = vcmp.eq.f32.partialorder %v3298, 8.507059e+37
    %v3300 = vand.u32 %v3225, 2147483648
    %v3301 = vor.u32 1.1754944e-38, %v3300
    %v3302 = vsel %vm3299, %v3301, %v3297
    %v3303 = vmul.f32 1.0, %v3302
    %v3304 = vrcp.pop %v3226
    %v3305 = vmul.f32 %v3226, %v3304
    %v3306 = vsub.f32 1.0, %v3305
    %v3307 = vmul.f32 %v3304, %v3306
    %v3308 = vadd.f32 %v3304, %v3307
    %vm3309 = vweird.f32 %v3226
    %vm3310 = vweird.f32 %v3304
    %vm3311 = vmor %vm3309, %vm3310
    %v3312 = vsel %vm3311, %v3304, %v3308
    %v3313 = vand.u32 2147483647, %v3226
    %vm3314 = vcmp.eq.f32.partialorder %v3313, 8.507059e+37
    %v3315 = vand.u32 %v3226, 2147483648
    %v3316 = vor.u32 1.1754944e-38, %v3315
    %v3317 = vsel %vm3314, %v3316, %v3312
    %v3318 = vmul.f32 1.0, %v3317
    %v3319 = vrcp.pop %v3227
    %v3320 = vmul.f32 %v3227, %v3319
    %v3321 = vsub.f32 1.0, %v3320
    %v3322 = vmul.f32 %v3319, %v3321
    %v3323 = vadd.f32 %v3319, %v3322
    %vm3324 = vweird.f32 %v3227
    %vm3325 = vweird.f32 %v3319
    %vm3326 = vmor %vm3324, %vm3325
    %v3327 = vsel %vm3326, %v3319, %v3323
    %v3328 = vand.u32 2147483647, %v3227
    %vm3329 = vcmp.eq.f32.partialorder %v3328, 8.507059e+37
    %v3330 = vand.u32 %v3227, 2147483648
    %v3331 = vor.u32 1.1754944e-38, %v3330
    %v3332 = vsel %vm3329, %v3331, %v3327
    %v3333 = vmul.f32 1.0, %v3332
    %v3334 = vrcp.pop %v3228
    %v3335 = vmul.f32 %v3228, %v3334
    %v3336 = vsub.f32 1.0, %v3335
    %v3337 = vmul.f32 %v3334, %v3336
    %v3338 = vadd.f32 %v3334, %v3337
    %vm3339 = vweird.f32 %v3228
    %vm3340 = vweird.f32 %v3334
    %vm3341 = vmor %vm3339, %vm3340
    %v3342 = vsel %vm3341, %v3334, %v3338
    %v3343 = vand.u32 2147483647, %v3228
    %vm3344 = vcmp.eq.f32.partialorder %v3343, 8.507059e+37
    %v3345 = vand.u32 %v3228, 2147483648
    %v3346 = vor.u32 1.1754944e-38, %v3345
    %v3347 = vsel %vm3344, %v3346, %v3342
    %v3348 = vmul.f32 1.0, %v3347
    %v3350 = vrot.slane %v2630, 1
    %v3351 = vrot.slane %v2630, 2
    %v3352 = vrot.slane %v2630, 3
    %v3353 = vrot.slane %v2630, 4
    %v3354 = vrot.slane %v2630, 5
    %v3355 = vrot.slane %v2630, 6
    %v3356 = vrot.slane %v2630, 7
    %v3364 = vmul.f32 %v3051, %v2630
    %v3365 = vmul.f32 %v3066, %v3350
    %v3366 = vmul.f32 %v3081, %v3351
    %v3367 = vmul.f32 %v3096, %v3352
    %v3368 = vmul.f32 %v3111, %v3353
    %v3369 = vmul.f32 %v3126, %v3354
    %v3370 = vmul.f32 %v3141, %v3355
    %v3371 = vmul.f32 %v3156, %v3356
    %v3372 = vmul.f32 %v2875, %v3173
    %v3373 = vmul.f32 %v2890, %v3174
    %v3374 = vmul.f32 %v2905, %v3175
    %v3375 = vmul.f32 %v2920, %v3176
    %v3376 = vmul.f32 %v2935, %v3177
    %v3377 = vmul.f32 %v2950, %v3178
    %v3378 = vmul.f32 %v2965, %v3179
    %v3379 = vmul.f32 %v2980, %v3180
    %v3380 = vadd.f32 %v3364, %v3372
    %v3381 = vadd.f32 %v3365, %v3373
    %v3382 = vadd.f32 %v3366, %v3374
    %v3383 = vadd.f32 %v3367, %v3375
    %v3384 = vadd.f32 %v3368, %v3376
    %v3385 = vadd.f32 %v3369, %v3377
    %v3386 = vadd.f32 %v3370, %v3378
    %v3387 = vadd.f32 %v3371, %v3379
    %v3388 = vtanh.pop %v3380
    %v3389 = vtanh.pop %v3381
    %v3390 = vtanh.pop %v3382
    %v3391 = vtanh.pop %v3383
    %v3392 = vtanh.pop %v3384
    %v3393 = vtanh.pop %v3385
    %v3394 = vtanh.pop %v3386
    %v3395 = vtanh.pop %v3387
    %v3396 = vmul.f32 %v3243, %v3388
    %v3397 = vmul.f32 %v3258, %v3389
    %v3398 = vmul.f32 %v3273, %v3390
    %v3399 = vmul.f32 %v3288, %v3391
    %v3400 = vmul.f32 %v3303, %v3392
    %v3401 = vmul.f32 %v3318, %v3393
    %v3402 = vmul.f32 %v3333, %v3394
    %v3403 = vmul.f32 %v3348, %v3395
    %3412 = vst [vmem:[#allocation1] ss:$9 sm:$0xff] %v3396
    %s3413 = scalar_lea.vmem [#allocation1], 1
    %3414 = vst [vmem:[%s3413] ss:$9 sm:$0xff] %v3397
    %s3415 = scalar_lea.vmem [#allocation1], 2
    %3416 = vst [vmem:[%s3415] ss:$9 sm:$0xff] %v3398
    %s3417 = scalar_lea.vmem [#allocation1], 3
    %3418 = vst [vmem:[%s3417] ss:$9 sm:$0xff] %v3399
    %s3419 = scalar_lea.vmem [#allocation1], 4
    %3420 = vst [vmem:[%s3419] ss:$9 sm:$0xff] %v3400
    %s3421 = scalar_lea.vmem [#allocation1], 5
    %3422 = vst [vmem:[%s3421] ss:$9 sm:$0xff] %v3401
    %s3423 = scalar_lea.vmem [#allocation1], 6
    %3424 = vst [vmem:[%s3423] ss:$9 sm:$0xff] %v3402
    %s3425 = scalar_lea.vmem [#allocation1], 7
    %3426 = vst [vmem:[%s3425] ss:$9 sm:$0xff] %v3403
    %v3427 = vld [vmem:[#allocation1] sm:$0xff]
    %3429 = vst [vmem:[#allocation2] sm:$0xff] %v3427
    %3438 = vst [vmem:[#allocation1] ss:$9 sm:$0xff] %v3380
    %s3439 = scalar_lea.vmem [#allocation1], 1
    %3440 = vst [vmem:[%s3439] ss:$9 sm:$0xff] %v3381
    %s3441 = scalar_lea.vmem [#allocation1], 2
    %3442 = vst [vmem:[%s3441] ss:$9 sm:$0xff] %v3382
    %s3443 = scalar_lea.vmem [#allocation1], 3
    %3444 = vst [vmem:[%s3443] ss:$9 sm:$0xff] %v3383
    %s3445 = scalar_lea.vmem [#allocation1], 4
    %3446 = vst [vmem:[%s3445] ss:$9 sm:$0xff] %v3384
    %s3447 = scalar_lea.vmem [#allocation1], 5
    %3448 = vst [vmem:[%s3447] ss:$9 sm:$0xff] %v3385
    %s3449 = scalar_lea.vmem [#allocation1], 6
    %3450 = vst [vmem:[%s3449] ss:$9 sm:$0xff] %v3386
    %s3451 = scalar_lea.vmem [#allocation1], 7
    %3452 = vst [vmem:[%s3451] ss:$9 sm:$0xff] %v3387
    %v3453 = vld [vmem:[#allocation1] sm:$0xff]
    %3455 = vst [vmem:[#allocation3] sm:$0xff] %v3453
    %v3456 = vld [vmem:[%s949] sm:$0xff]
    %v3457 = vld [vmem:[%s951] sm:$0xff]
    %v3458 = vld [vmem:[#allocation9] sm:$0xff]
    %v3459 = vld [vmem:[#allocation9 + $0x8] sm:$0xff]
    %v3460 = vld [vmem:[#allocation9 + $0x10] sm:$0xff]
    %v3461 = vld [vmem:[#allocation9 + $0x18] sm:$0xff]
    %v3462 = vld [vmem:[#allocation9 + $0x20] sm:$0xff]
    %v3463 = vld [vmem:[#allocation9 + $0x28] sm:$0xff]
    %v3464 = vld [vmem:[#allocation9 + $0x30] sm:$0xff]
    %v3465 = vld [vmem:[#allocation9 + $0x38] sm:$0xff]
    %v3466 = vld [vmem:[#allocation9 + $0x40] sm:$0xff]
    %v3467 = vld [vmem:[#allocation9 + $0x48] sm:$0xff]
    %v3468 = vld [vmem:[#allocation9 + $0x50] sm:$0xff]
    %v3469 = vld [vmem:[#allocation9 + $0x58] sm:$0xff]
    %v3470 = vld [vmem:[#allocation9 + $0x60] sm:$0xff]
    %v3471 = vld [vmem:[#allocation9 + $0x68] sm:$0xff]
    %v3472 = vld [vmem:[#allocation9 + $0x70] sm:$0xff]
    %v3473 = vld [vmem:[#allocation9 + $0x78] sm:$0xff]
    %v3474 = vld [vmem:[#allocation9 + $0x80] sm:$0xff]
    %v3475 = vld [vmem:[#allocation9 + $0x88] sm:$0xff]
    %v3476 = vld [vmem:[#allocation9 + $0x90] sm:$0xff]
    %v3477 = vld [vmem:[#allocation9 + $0x98] sm:$0xff]
    %v3478 = vld [vmem:[#allocation9 + $0xa0] sm:$0xff]
    %v3479 = vld [vmem:[#allocation9 + $0xa8] sm:$0xff]
    %v3480 = vld [vmem:[#allocation9 + $0xb0] sm:$0xff]
    %v3481 = vld [vmem:[#allocation9 + $0xb8] sm:$0xff]
    %v3482 = vld [vmem:[#allocation9 + $0xc0] sm:$0xff]
    %v3483 = vld [vmem:[#allocation9 + $0xc8] sm:$0xff]
    %v3484 = vld [vmem:[#allocation9 + $0xd0] sm:$0xff]
    %v3485 = vld [vmem:[#allocation9 + $0xd8] sm:$0xff]
    %v3486 = vld [vmem:[#allocation9 + $0xe0] sm:$0xff]
    %v3487 = vld [vmem:[#allocation9 + $0xe8] sm:$0xff]
    %v3488 = vld [vmem:[#allocation9 + $0xf0] sm:$0xff]
    %v3489 = vld [vmem:[#allocation9 + $0xf8] sm:$0xff]
    %v3490 = vld [vmem:[#allocation9 + $0x100] sm:$0xff]
    %v3491 = vld [vmem:[#allocation9 + $0x108] sm:$0xff]
    %v3492 = vld [vmem:[#allocation9 + $0x110] sm:$0xff]
    %v3493 = vld [vmem:[#allocation9 + $0x118] sm:$0xff]
    %v3494 = vld [vmem:[#allocation9 + $0x120] sm:$0xff]
    %v3495 = vld [vmem:[#allocation9 + $0x128] sm:$0xff]
    %v3496 = vld [vmem:[#allocation9 + $0x130] sm:$0xff]
    %v3497 = vld [vmem:[#allocation9 + $0x138] sm:$0xff]
    %v3498 = vld [vmem:[#allocation9 + $0x140] sm:$0xff]
    %v3499 = vld [vmem:[#allocation9 + $0x148] sm:$0xff]
    %v3500 = vld [vmem:[#allocation9 + $0x150] sm:$0xff]
    %v3501 = vld [vmem:[#allocation9 + $0x158] sm:$0xff]
    %v3502 = vld [vmem:[#allocation9 + $0x160] sm:$0xff]
    %v3503 = vld [vmem:[#allocation9 + $0x168] sm:$0xff]
    %v3504 = vld [vmem:[#allocation9 + $0x170] sm:$0xff]
    %v3505 = vld [vmem:[#allocation9 + $0x178] sm:$0xff]
    %v3506 = vld [vmem:[#allocation9 + $0x180] sm:$0xff]
    %v3507 = vld [vmem:[#allocation9 + $0x188] sm:$0xff]
    %v3508 = vld [vmem:[#allocation9 + $0x190] sm:$0xff]
    %v3509 = vld [vmem:[#allocation9 + $0x198] sm:$0xff]
    %v3510 = vld [vmem:[#allocation9 + $0x1a0] sm:$0xff]
    %v3511 = vld [vmem:[#allocation9 + $0x1a8] sm:$0xff]
    %v3512 = vld [vmem:[#allocation9 + $0x1b0] sm:$0xff]
    %v3513 = vld [vmem:[#allocation9 + $0x1b8] sm:$0xff]
    %v3514 = vld [vmem:[#allocation9 + $0x1c0] sm:$0xff]
    %v3515 = vld [vmem:[#allocation9 + $0x1c8] sm:$0xff]
    %v3516 = vld [vmem:[#allocation9 + $0x1d0] sm:$0xff]
    %v3517 = vld [vmem:[#allocation9 + $0x1d8] sm:$0xff]
    %v3518 = vld [vmem:[#allocation9 + $0x1e0] sm:$0xff]
    %v3519 = vld [vmem:[#allocation9 + $0x1e8] sm:$0xff]
    %v3520 = vld [vmem:[#allocation9 + $0x1f0] sm:$0xff]
    %v3521 = vld [vmem:[#allocation9 + $0x1f8] sm:$0xff]
    %v3522 = vld [vmem:[#allocation10] sm:$0xf]
    %v3524 = vperm.slane %v3522, 0
    %v3525 = vperm.slane %v3522, 1
    %v3526 = vperm.slane %v3522, 2
    %v3527 = vperm.slane %v3522, 3
    %3532 = vst [vmem:[#allocation1] ss:$9 sm:$0xff] %v3396
    %s3533 = scalar_lea.vmem [#allocation1], 1
    %3534 = vst [vmem:[%s3533] ss:$9 sm:$0xff] %v3397
    %s3535 = scalar_lea.vmem [#allocation1], 2
    %3536 = vst [vmem:[%s3535] ss:$9 sm:$0xff] %v3398
    %s3537 = scalar_lea.vmem [#allocation1], 3
    %3538 = vst [vmem:[%s3537] ss:$9 sm:$0xff] %v3399
    %s3539 = scalar_lea.vmem [#allocation1], 4
    %3540 = vst [vmem:[%s3539] ss:$9 sm:$0xff] %v3400
    %s3541 = scalar_lea.vmem [#allocation1], 5
    %3542 = vst [vmem:[%s3541] ss:$9 sm:$0xff] %v3401
    %s3543 = scalar_lea.vmem [#allocation1], 6
    %3544 = vst [vmem:[%s3543] ss:$9 sm:$0xff] %v3402
    %s3545 = scalar_lea.vmem [#allocation1], 7
    %3546 = vst [vmem:[%s3545] ss:$9 sm:$0xff] %v3403
    %v3547 = vld [vmem:[#allocation1] sm:$0xff]
    %3549 = vmatpush.msra.mxu0 %v3518
    %3550 = vmatpush.msra.mxu0 %v3514
    %3551 = vmatpush.msra.mxu0 %v3510
    %3552 = vmatpush.msra.mxu0 %v3506
    %3553 = vmatpush.msra.mxu0 %v3502
    %3554 = vmatpush.msra.mxu0 %v3498
    %3555 = vmatpush.msra.mxu0 %v3494
    %3556 = vmatpush.msra.mxu0 %v3490
    %3557 = vmatpush.msra.mxu0 %v3486
    %3558 = vmatpush.msra.mxu0 %v3482
    %3559 = vmatpush.msra.mxu0 %v3478
    %3560 = vmatpush.msra.mxu0 %v3474
    %3561 = vmatpush.msra.mxu0 %v3470
    %3562 = vmatpush.msra.mxu0 %v3466
    %3563 = vmatpush.msra.mxu0 %v3462
    %3564 = vmatpush.msra.mxu0 %v3458
    %3565 = vmatmul.f32.gmra.mxu0 %v3547
    %v3566 = vpop.f32.mrf.mxu0
    %v3567 = vadd.f32 %v3524, %v3566
    %3568 = vdwg.mxu0
    %3569 = vmatpush.msra.mxu0 %v3519
    %3570 = vmatpush.msra.mxu0 %v3515
    %3571 = vmatpush.msra.mxu0 %v3511
    %3572 = vmatpush.msra.mxu0 %v3507
    %3573 = vmatpush.msra.mxu0 %v3503
    %3574 = vmatpush.msra.mxu0 %v3499
    %3575 = vmatpush.msra.mxu0 %v3495
    %3576 = vmatpush.msra.mxu0 %v3491
    %3577 = vmatpush.msra.mxu0 %v3487
    %3578 = vmatpush.msra.mxu0 %v3483
    %3579 = vmatpush.msra.mxu0 %v3479
    %3580 = vmatpush.msra.mxu0 %v3475
    %3581 = vmatpush.msra.mxu0 %v3471
    %3582 = vmatpush.msra.mxu0 %v3467
    %3583 = vmatpush.msra.mxu0 %v3463
    %3584 = vmatpush.msra.mxu0 %v3459
    %3585 = vmatmul.f32.gmra.mxu0 %v3547
    %v3586 = vpop.f32.mrf.mxu0
    %v3587 = vadd.f32 %v3525, %v3586
    %3588 = vdwg.mxu0
    %3589 = vmatpush.msra.mxu0 %v3520
    %3590 = vmatpush.msra.mxu0 %v3516
    %3591 = vmatpush.msra.mxu0 %v3512
    %3592 = vmatpush.msra.mxu0 %v3508
    %3593 = vmatpush.msra.mxu0 %v3504
    %3594 = vmatpush.msra.mxu0 %v3500
    %3595 = vmatpush.msra.mxu0 %v3496
    %3596 = vmatpush.msra.mxu0 %v3492
    %3597 = vmatpush.msra.mxu0 %v3488
    %3598 = vmatpush.msra.mxu0 %v3484
    %3599 = vmatpush.msra.mxu0 %v3480
    %3600 = vmatpush.msra.mxu0 %v3476
    %3601 = vmatpush.msra.mxu0 %v3472
    %3602 = vmatpush.msra.mxu0 %v3468
    %3603 = vmatpush.msra.mxu0 %v3464
    %3604 = vmatpush.msra.mxu0 %v3460
    %3605 = vmatmul.f32.gmra.mxu0 %v3547
    %v3606 = vpop.f32.mrf.mxu0
    %v3607 = vadd.f32 %v3526, %v3606
    %3608 = vdwg.mxu0
    %3609 = vmatpush.msra.mxu0 %v3521
    %3610 = vmatpush.msra.mxu0 %v3517
    %3611 = vmatpush.msra.mxu0 %v3513
    %3612 = vmatpush.msra.mxu0 %v3509
    %3613 = vmatpush.msra.mxu0 %v3505
    %3614 = vmatpush.msra.mxu0 %v3501
    %3615 = vmatpush.msra.mxu0 %v3497
    %3616 = vmatpush.msra.mxu0 %v3493
    %3617 = vmatpush.msra.mxu0 %v3489
    %3618 = vmatpush.msra.mxu0 %v3485
    %3619 = vmatpush.msra.mxu0 %v3481
    %3620 = vmatpush.msra.mxu0 %v3477
    %3621 = vmatpush.msra.mxu0 %v3473
    %3622 = vmatpush.msra.mxu0 %v3469
    %3623 = vmatpush.msra.mxu0 %v3465
    %3624 = vmatpush.msra.mxu0 %v3461
    %3625 = vmatmul.f32.gmra.mxu0 %v3547
    %v3626 = vpop.f32.mrf.mxu0
    %v3627 = vadd.f32 %v3527, %v3626
    %3628 = vdwg.mxu0
    %v3629 = vld [vmem:[%s1124] sm:$0xff]
    %v3630 = vld [vmem:[%s1124 + $0x8] sm:$0xff]
    %v3631 = vld [vmem:[%s1124 + $0x10] sm:$0xff]
    %v3632 = vld [vmem:[%s1124 + $0x18] sm:$0xff]
    %v3633 = vld [vmem:[%s1124 + $0x20] sm:$0xff]
    %v3634 = vld [vmem:[%s1124 + $0x28] sm:$0xff]
    %v3635 = vld [vmem:[%s1124 + $0x30] sm:$0xff]
    %v3636 = vld [vmem:[%s1124 + $0x38] sm:$0xff]
    %v3637 = vld [vmem:[%s1124 + $0x40] sm:$0xff]
    %v3638 = vld [vmem:[%s1124 + $0x48] sm:$0xff]
    %v3639 = vld [vmem:[%s1124 + $0x50] sm:$0xff]
    %v3640 = vld [vmem:[%s1124 + $0x58] sm:$0xff]
    %v3641 = vld [vmem:[%s1124 + $0x60] sm:$0xff]
    %v3642 = vld [vmem:[%s1124 + $0x68] sm:$0xff]
    %v3643 = vld [vmem:[%s1124 + $0x70] sm:$0xff]
    %v3644 = vld [vmem:[%s1124 + $0x78] sm:$0xff]
    %v3645 = vld [vmem:[%s1124 + $0x80] sm:$0xff]
    %v3646 = vld [vmem:[%s1124 + $0x88] sm:$0xff]
    %v3647 = vld [vmem:[%s1124 + $0x90] sm:$0xff]
    %v3648 = vld [vmem:[%s1124 + $0x98] sm:$0xff]
    %v3649 = vld [vmem:[%s1124 + $0xa0] sm:$0xff]
    %v3650 = vld [vmem:[%s1124 + $0xa8] sm:$0xff]
    %v3651 = vld [vmem:[%s1124 + $0xb0] sm:$0xff]
    %v3652 = vld [vmem:[%s1124 + $0xb8] sm:$0xff]
    %v3653 = vld [vmem:[%s1124 + $0xc0] sm:$0xff]
    %v3654 = vld [vmem:[%s1124 + $0xc8] sm:$0xff]
    %v3655 = vld [vmem:[%s1124 + $0xd0] sm:$0xff]
    %v3656 = vld [vmem:[%s1124 + $0xd8] sm:$0xff]
    %v3657 = vld [vmem:[%s1124 + $0xe0] sm:$0xff]
    %v3658 = vld [vmem:[%s1124 + $0xe8] sm:$0xff]
    %v3659 = vld [vmem:[%s1124 + $0xf0] sm:$0xff]
    %v3660 = vld [vmem:[%s1124 + $0xf8] sm:$0xff]
    %v3661 = vld [vmem:[%s1124 + $0x100] sm:$0xff]
    %v3662 = vld [vmem:[%s1124 + $0x108] sm:$0xff]
    %v3663 = vld [vmem:[%s1124 + $0x110] sm:$0xff]
    %v3664 = vld [vmem:[%s1124 + $0x118] sm:$0xff]
    %v3665 = vld [vmem:[%s1124 + $0x120] sm:$0xff]
    %v3666 = vld [vmem:[%s1124 + $0x128] sm:$0xff]
    %v3667 = vld [vmem:[%s1124 + $0x130] sm:$0xff]
    %v3668 = vld [vmem:[%s1124 + $0x138] sm:$0xff]
    %v3669 = vld [vmem:[%s1124 + $0x140] sm:$0xff]
    %v3670 = vld [vmem:[%s1124 + $0x148] sm:$0xff]
    %v3671 = vld [vmem:[%s1124 + $0x150] sm:$0xff]
    %v3672 = vld [vmem:[%s1124 + $0x158] sm:$0xff]
    %v3673 = vld [vmem:[%s1124 + $0x160] sm:$0xff]
    %v3674 = vld [vmem:[%s1124 + $0x168] sm:$0xff]
    %v3675 = vld [vmem:[%s1124 + $0x170] sm:$0xff]
    %v3676 = vld [vmem:[%s1124 + $0x178] sm:$0xff]
    %v3677 = vld [vmem:[%s1124 + $0x180] sm:$0xff]
    %v3678 = vld [vmem:[%s1124 + $0x188] sm:$0xff]
    %v3679 = vld [vmem:[%s1124 + $0x190] sm:$0xff]
    %v3680 = vld [vmem:[%s1124 + $0x198] sm:$0xff]
    %v3681 = vld [vmem:[%s1124 + $0x1a0] sm:$0xff]
    %v3682 = vld [vmem:[%s1124 + $0x1a8] sm:$0xff]
    %v3683 = vld [vmem:[%s1124 + $0x1b0] sm:$0xff]
    %v3684 = vld [vmem:[%s1124 + $0x1b8] sm:$0xff]
    %v3685 = vld [vmem:[%s1124 + $0x1c0] sm:$0xff]
    %v3686 = vld [vmem:[%s1124 + $0x1c8] sm:$0xff]
    %v3687 = vld [vmem:[%s1124 + $0x1d0] sm:$0xff]
    %v3688 = vld [vmem:[%s1124 + $0x1d8] sm:$0xff]
    %v3689 = vld [vmem:[%s1124 + $0x1e0] sm:$0xff]
    %v3690 = vld [vmem:[%s1124 + $0x1e8] sm:$0xff]
    %v3691 = vld [vmem:[%s1124 + $0x1f0] sm:$0xff]
    %v3692 = vld [vmem:[%s1124 + $0x1f8] sm:$0xff]
    %3693 = vmatpush.msra.mxu0 %v3689
    %3694 = vmatpush.msra.mxu0 %v3685
    %3695 = vmatpush.msra.mxu0 %v3681
    %3696 = vmatpush.msra.mxu0 %v3677
    %3697 = vmatpush.msra.mxu0 %v3673
    %3698 = vmatpush.msra.mxu0 %v3669
    %3699 = vmatpush.msra.mxu0 %v3665
    %3700 = vmatpush.msra.mxu0 %v3661
    %3701 = vmatpush.msra.mxu0 %v3657
    %3702 = vmatpush.msra.mxu0 %v3653
    %3703 = vmatpush.msra.mxu0 %v3649
    %3704 = vmatpush.msra.mxu0 %v3645
    %3705 = vmatpush.msra.mxu0 %v3641
    %3706 = vmatpush.msra.mxu0 %v3637
    %3707 = vmatpush.msra.mxu0 %v3633
    %3708 = vmatpush.msra.mxu0 %v3629
    %3709 = vmatmul.f32.gmra.mxu0 %v3456
    %v3710 = vpop.f32.mrf.mxu0
    %v3711 = vadd.f32 0.0, %v3710
    %3712 = vdwg.mxu0
    %3713 = vmatpush.msra.mxu0 %v3690
    %3714 = vmatpush.msra.mxu0 %v3686
    %3715 = vmatpush.msra.mxu0 %v3682
    %3716 = vmatpush.msra.mxu0 %v3678
    %3717 = vmatpush.msra.mxu0 %v3674
    %3718 = vmatpush.msra.mxu0 %v3670
    %3719 = vmatpush.msra.mxu0 %v3666
    %3720 = vmatpush.msra.mxu0 %v3662
    %3721 = vmatpush.msra.mxu0 %v3658
    %3722 = vmatpush.msra.mxu0 %v3654
    %3723 = vmatpush.msra.mxu0 %v3650
    %3724 = vmatpush.msra.mxu0 %v3646
    %3725 = vmatpush.msra.mxu0 %v3642
    %3726 = vmatpush.msra.mxu0 %v3638
    %3727 = vmatpush.msra.mxu0 %v3634
    %3728 = vmatpush.msra.mxu0 %v3630
    %3729 = vmatmul.f32.gmra.mxu0 %v3456
    %v3730 = vpop.f32.mrf.mxu0
    %v3731 = vadd.f32 0.0, %v3730
    %3732 = vdwg.mxu0
    %3733 = vmatpush.msra.mxu0 %v3691
    %3734 = vmatpush.msra.mxu0 %v3687
    %3735 = vmatpush.msra.mxu0 %v3683
    %3736 = vmatpush.msra.mxu0 %v3679
    %3737 = vmatpush.msra.mxu0 %v3675
    %3738 = vmatpush.msra.mxu0 %v3671
    %3739 = vmatpush.msra.mxu0 %v3667
    %3740 = vmatpush.msra.mxu0 %v3663
    %3741 = vmatpush.msra.mxu0 %v3659
    %3742 = vmatpush.msra.mxu0 %v3655
    %3743 = vmatpush.msra.mxu0 %v3651
    %3744 = vmatpush.msra.mxu0 %v3647
    %3745 = vmatpush.msra.mxu0 %v3643
    %3746 = vmatpush.msra.mxu0 %v3639
    %3747 = vmatpush.msra.mxu0 %v3635
    %3748 = vmatpush.msra.mxu0 %v3631
    %3749 = vmatmul.f32.gmra.mxu0 %v3456
    %v3750 = vpop.f32.mrf.mxu0
    %v3751 = vadd.f32 0.0, %v3750
    %3752 = vdwg.mxu0
    %3753 = vmatpush.msra.mxu0 %v3692
    %3754 = vmatpush.msra.mxu0 %v3688
    %3755 = vmatpush.msra.mxu0 %v3684
    %3756 = vmatpush.msra.mxu0 %v3680
    %3757 = vmatpush.msra.mxu0 %v3676
    %3758 = vmatpush.msra.mxu0 %v3672
    %3759 = vmatpush.msra.mxu0 %v3668
    %3760 = vmatpush.msra.mxu0 %v3664
    %3761 = vmatpush.msra.mxu0 %v3660
    %3762 = vmatpush.msra.mxu0 %v3656
    %3763 = vmatpush.msra.mxu0 %v3652
    %3764 = vmatpush.msra.mxu0 %v3648
    %3765 = vmatpush.msra.mxu0 %v3644
    %3766 = vmatpush.msra.mxu0 %v3640
    %3767 = vmatpush.msra.mxu0 %v3636
    %3768 = vmatpush.msra.mxu0 %v3632
    %3769 = vmatmul.f32.gmra.mxu0 %v3456
    %v3770 = vpop.f32.mrf.mxu0
    %v3771 = vadd.f32 0.0, %v3770
    %3772 = vdwg.mxu0
    %v3773 = vadd.f32 %v3567, %v3711
    %v3774 = vadd.f32 %v3587, %v3731
    %v3775 = vadd.f32 %v3607, %v3751
    %v3776 = vadd.f32 %v3627, %v3771
    %v3777 = vxor.u32 %v3773, 2147483648
    %v3778 = vmul.f32 %v3777, 1.442695
    %v3779 = vpow.pop %v3778
    %v3780 = vadd.f32 %v3779, 1.0
    %v3781 = vrcp.pop %v3780
    %v3782 = vmul.f32 %v3780, %v3781
    %v3783 = vsub.f32 1.0, %v3782
    %v3784 = vmul.f32 %v3781, %v3783
    %v3785 = vadd.f32 %v3781, %v3784
    %vm3786 = vweird.f32 %v3780
    %vm3787 = vweird.f32 %v3781
    %vm3788 = vmor %vm3786, %vm3787
    %v3789 = vsel %vm3788, %v3781, %v3785
    %v3790 = vand.u32 2147483647, %v3780
    %vm3791 = vcmp.eq.f32.partialorder %v3790, 8.507059e+37
    %v3792 = vand.u32 %v3780, 2147483648
    %v3793 = vor.u32 1.1754944e-38, %v3792
    %v3794 = vsel %vm3791, %v3793, %v3789
    %v3795 = vmul.f32 1.0, %v3794
    %v3796 = vxor.u32 %v3774, 2147483648
    %v3797 = vmul.f32 %v3796, 1.442695
    %v3798 = vpow.pop %v3797
    %v3799 = vadd.f32 %v3798, 1.0
    %v3800 = vrcp.pop %v3799
    %v3801 = vmul.f32 %v3799, %v3800
    %v3802 = vsub.f32 1.0, %v3801
    %v3803 = vmul.f32 %v3800, %v3802
    %v3804 = vadd.f32 %v3800, %v3803
    %vm3805 = vweird.f32 %v3799
    %vm3806 = vweird.f32 %v3800
    %vm3807 = vmor %vm3805, %vm3806
    %v3808 = vsel %vm3807, %v3800, %v3804
    %v3809 = vand.u32 2147483647, %v3799
    %vm3810 = vcmp.eq.f32.partialorder %v3809, 8.507059e+37
    %v3811 = vand.u32 %v3799, 2147483648
    %v3812 = vor.u32 1.1754944e-38, %v3811
    %v3813 = vsel %vm3810, %v3812, %v3808
    %v3814 = vmul.f32 1.0, %v3813
    %v3815 = vtanh.pop %v3775
    %v3816 = vxor.u32 %v3776, 2147483648
    %v3817 = vmul.f32 %v3816, 1.442695
    %v3818 = vpow.pop %v3817
    %v3819 = vadd.f32 %v3818, 1.0
    %v3820 = vrcp.pop %v3819
    %v3821 = vmul.f32 %v3819, %v3820
    %v3822 = vsub.f32 1.0, %v3821
    %v3823 = vmul.f32 %v3820, %v3822
    %v3824 = vadd.f32 %v3820, %v3823
    %vm3825 = vweird.f32 %v3819
    %vm3826 = vweird.f32 %v3820
    %vm3827 = vmor %vm3825, %vm3826
    %v3828 = vsel %vm3827, %v3820, %v3824
    %v3829 = vand.u32 2147483647, %v3819
    %vm3830 = vcmp.eq.f32.partialorder %v3829, 8.507059e+37
    %v3831 = vand.u32 %v3819, 2147483648
    %v3832 = vor.u32 1.1754944e-38, %v3831
    %v3833 = vsel %vm3830, %v3832, %v3828
    %v3834 = vmul.f32 1.0, %v3833
    %v3835 = vmul.f32 %v3814, %v3457
    %v3836 = vmul.f32 %v3795, %v3815
    %v3837 = vadd.f32 %v3835, %v3836
    %v3838 = vtanh.pop %v3837
    %v3839 = vmul.f32 %v3834, %v3838
    %3840 = vst [vmem:[%s949] sm:$0xff] %v3839
    %3841 = vst [vmem:[%s951] sm:$0xff] %v3837
    %v3843 = vrot.slane %v3839, 1
    %v3844 = vrot.slane %v3839, 2
    %v3845 = vrot.slane %v3839, 3
    %v3846 = vrot.slane %v3839, 4
    %v3847 = vrot.slane %v3839, 5
    %v3848 = vrot.slane %v3839, 6
    %v3849 = vrot.slane %v3839, 7
    %3857 = vst [vmem:[#allocation12 + $0x2] sm:$0x1] %v3839
    %3858 = vst [vmem:[#allocation12 + $0xa] sm:$0x1] %v3843
    %3859 = vst [vmem:[#allocation12 + $0x12] sm:$0x1] %v3844
    %3860 = vst [vmem:[#allocation12 + $0x1a] sm:$0x1] %v3845
    %3861 = vst [vmem:[#allocation12 + $0x22] sm:$0x1] %v3846
    %3862 = vst [vmem:[#allocation12 + $0x2a] sm:$0x1] %v3847
    %3863 = vst [vmem:[#allocation12 + $0x32] sm:$0x1] %v3848
    %3864 = vst [vmem:[#allocation12 + $0x3a] sm:$0x1] %v3849
    %s3865 = scalar_lea.vmem [#allocation4], 3
    %v3866 = vld [vmem:[%s3865] ss:$8 sm:$0xf]
    %s3867 = scalar_lea.vmem [#allocation4], 35
    %v3868 = vld [vmem:[%s3867] ss:$8 sm:$0xf]
    %s3869 = scalar_lea.vmem [#allocation4], 67
    %v3870 = vld [vmem:[%s3869] ss:$8 sm:$0xf]
    %s3871 = scalar_lea.vmem [#allocation4], 99
    %v3872 = vld [vmem:[%s3871] ss:$8 sm:$0xf]
    %s3873 = scalar_lea.vmem [#allocation4], 131
    %v3874 = vld [vmem:[%s3873] ss:$8 sm:$0xf]
    %s3875 = scalar_lea.vmem [#allocation4], 163
    %v3876 = vld [vmem:[%s3875] ss:$8 sm:$0xf]
    %s3877 = scalar_lea.vmem [#allocation4], 195
    %v3878 = vld [vmem:[%s3877] ss:$8 sm:$0xf]
    %s3879 = scalar_lea.vmem [#allocation4], 227
    %v3880 = vld [vmem:[%s3879] ss:$8 sm:$0xf]
    %v3881 = vld [vmem:[#allocation2] sm:$0xff]
    %v3882 = vld [vmem:[#allocation3] sm:$0xff]
    %v3883 = vld [vmem:[#allocation7] sm:$0xff]
    %v3884 = vld [vmem:[#allocation7 + $0x8] sm:$0xff]
    %v3885 = vld [vmem:[#allocation7 + $0x10] sm:$0xff]
    %v3886 = vld [vmem:[#allocation7 + $0x18] sm:$0xff]
    %v3887 = vld [vmem:[#allocation7 + $0x20] sm:$0xff]
    %v3888 = vld [vmem:[#allocation7 + $0x28] sm:$0xff]
    %v3889 = vld [vmem:[#allocation7 + $0x30] sm:$0xff]
    %v3890 = vld [vmem:[#allocation7 + $0x38] sm:$0xff]
    %v3891 = vld [vmem:[#allocation7 + $0x40] sm:$0xff]
    %v3892 = vld [vmem:[#allocation7 + $0x48] sm:$0xff]
    %v3893 = vld [vmem:[#allocation7 + $0x50] sm:$0xff]
    %v3894 = vld [vmem:[#allocation7 + $0x58] sm:$0xff]
    %v3895 = vld [vmem:[#allocation7 + $0x60] sm:$0xff]
    %v3896 = vld [vmem:[#allocation7 + $0x68] sm:$0xff]
    %v3897 = vld [vmem:[#allocation7 + $0x70] sm:$0xff]
    %v3898 = vld [vmem:[#allocation7 + $0x78] sm:$0xff]
    %v3899 = vld [vmem:[#allocation7 + $0x80] sm:$0xff]
    %v3900 = vld [vmem:[#allocation7 + $0x88] sm:$0xff]
    %v3901 = vld [vmem:[#allocation7 + $0x90] sm:$0xff]
    %v3902 = vld [vmem:[#allocation7 + $0x98] sm:$0xff]
    %v3903 = vld [vmem:[#allocation7 + $0xa0] sm:$0xff]
    %v3904 = vld [vmem:[#allocation7 + $0xa8] sm:$0xff]
    %v3905 = vld [vmem:[#allocation7 + $0xb0] sm:$0xff]
    %v3906 = vld [vmem:[#allocation7 + $0xb8] sm:$0xff]
    %v3907 = vld [vmem:[#allocation7 + $0xc0] sm:$0xff]
    %v3908 = vld [vmem:[#allocation7 + $0xc8] sm:$0xff]
    %v3909 = vld [vmem:[#allocation7 + $0xd0] sm:$0xff]
    %v3910 = vld [vmem:[#allocation7 + $0xd8] sm:$0xff]
    %v3911 = vld [vmem:[#allocation7 + $0xe0] sm:$0xff]
    %v3912 = vld [vmem:[#allocation7 + $0xe8] sm:$0xff]
    %v3913 = vld [vmem:[#allocation7 + $0xf0] sm:$0xff]
    %v3914 = vld [vmem:[#allocation7 + $0xf8] sm:$0xff]
    %v3915 = vld [vmem:[#allocation7 + $0x100] sm:$0xff]
    %v3916 = vld [vmem:[#allocation7 + $0x108] sm:$0xff]
    %v3917 = vld [vmem:[#allocation7 + $0x110] sm:$0xff]
    %v3918 = vld [vmem:[#allocation7 + $0x118] sm:$0xff]
    %v3919 = vld [vmem:[#allocation7 + $0x120] sm:$0xff]
    %v3920 = vld [vmem:[#allocation7 + $0x128] sm:$0xff]
    %v3921 = vld [vmem:[#allocation7 + $0x130] sm:$0xff]
    %v3922 = vld [vmem:[#allocation7 + $0x138] sm:$0xff]
    %v3923 = vld [vmem:[#allocation7 + $0x140] sm:$0xff]
    %v3924 = vld [vmem:[#allocation7 + $0x148] sm:$0xff]
    %v3925 = vld [vmem:[#allocation7 + $0x150] sm:$0xff]
    %v3926 = vld [vmem:[#allocation7 + $0x158] sm:$0xff]
    %v3927 = vld [vmem:[#allocation7 + $0x160] sm:$0xff]
    %v3928 = vld [vmem:[#allocation7 + $0x168] sm:$0xff]
    %v3929 = vld [vmem:[#allocation7 + $0x170] sm:$0xff]
    %v3930 = vld [vmem:[#allocation7 + $0x178] sm:$0xff]
    %v3931 = vld [vmem:[#allocation7 + $0x180] sm:$0xff]
    %v3932 = vld [vmem:[#allocation7 + $0x188] sm:$0xff]
    %v3933 = vld [vmem:[#allocation7 + $0x190] sm:$0xff]
    %v3934 = vld [vmem:[#allocation7 + $0x198] sm:$0xff]
    %v3935 = vld [vmem:[#allocation7 + $0x1a0] sm:$0xff]
    %v3936 = vld [vmem:[#allocation7 + $0x1a8] sm:$0xff]
    %v3937 = vld [vmem:[#allocation7 + $0x1b0] sm:$0xff]
    %v3938 = vld [vmem:[#allocation7 + $0x1b8] sm:$0xff]
    %v3939 = vld [vmem:[#allocation7 + $0x1c0] sm:$0xff]
    %v3940 = vld [vmem:[#allocation7 + $0x1c8] sm:$0xff]
    %v3941 = vld [vmem:[#allocation7 + $0x1d0] sm:$0xff]
    %v3942 = vld [vmem:[#allocation7 + $0x1d8] sm:$0xff]
    %v3943 = vld [vmem:[#allocation7 + $0x1e0] sm:$0xff]
    %v3944 = vld [vmem:[#allocation7 + $0x1e8] sm:$0xff]
    %v3945 = vld [vmem:[#allocation7 + $0x1f0] sm:$0xff]
    %v3946 = vld [vmem:[#allocation7 + $0x1f8] sm:$0xff]
    %3947 = vmatpush.msra.mxu0 %v3943
    %3948 = vmatpush.msra.mxu0 %v3939
    %3949 = vmatpush.msra.mxu0 %v3935
    %3950 = vmatpush.msra.mxu0 %v3931
    %3951 = vmatpush.msra.mxu0 %v3927
    %3952 = vmatpush.msra.mxu0 %v3923
    %3953 = vmatpush.msra.mxu0 %v3919
    %3954 = vmatpush.msra.mxu0 %v3915
    %3955 = vmatpush.msra.mxu0 %v3911
    %3956 = vmatpush.msra.mxu0 %v3907
    %3957 = vmatpush.msra.mxu0 %v3903
    %3958 = vmatpush.msra.mxu0 %v3899
    %3959 = vmatpush.msra.mxu0 %v3895
    %3960 = vmatpush.msra.mxu0 %v3891
    %3961 = vmatpush.msra.mxu0 %v3887
    %3962 = vmatpush.msra.mxu0 %v3883
    %3963 = vmatmul.f32.gmra.mxu0 %v3881
    %v3964 = vpop.f32.mrf.mxu0
    %v3965 = vadd.f32 0.0, %v3964
    %3966 = vdwg.mxu0
    %3967 = vmatpush.msra.mxu0 %v3944
    %3968 = vmatpush.msra.mxu0 %v3940
    %3969 = vmatpush.msra.mxu0 %v3936
    %3970 = vmatpush.msra.mxu0 %v3932
    %3971 = vmatpush.msra.mxu0 %v3928
    %3972 = vmatpush.msra.mxu0 %v3924
    %3973 = vmatpush.msra.mxu0 %v3920
    %3974 = vmatpush.msra.mxu0 %v3916
    %3975 = vmatpush.msra.mxu0 %v3912
    %3976 = vmatpush.msra.mxu0 %v3908
    %3977 = vmatpush.msra.mxu0 %v3904
    %3978 = vmatpush.msra.mxu0 %v3900
    %3979 = vmatpush.msra.mxu0 %v3896
    %3980 = vmatpush.msra.mxu0 %v3892
    %3981 = vmatpush.msra.mxu0 %v3888
    %3982 = vmatpush.msra.mxu0 %v3884
    %3983 = vmatmul.f32.gmra.mxu0 %v3881
    %v3984 = vpop.f32.mrf.mxu0
    %v3985 = vadd.f32 0.0, %v3984
    %3986 = vdwg.mxu0
    %3987 = vmatpush.msra.mxu0 %v3945
    %3988 = vmatpush.msra.mxu0 %v3941
    %3989 = vmatpush.msra.mxu0 %v3937
    %3990 = vmatpush.msra.mxu0 %v3933
    %3991 = vmatpush.msra.mxu0 %v3929
    %3992 = vmatpush.msra.mxu0 %v3925
    %3993 = vmatpush.msra.mxu0 %v3921
    %3994 = vmatpush.msra.mxu0 %v3917
    %3995 = vmatpush.msra.mxu0 %v3913
    %3996 = vmatpush.msra.mxu0 %v3909
    %3997 = vmatpush.msra.mxu0 %v3905
    %3998 = vmatpush.msra.mxu0 %v3901
    %3999 = vmatpush.msra.mxu0 %v3897
    %4000 = vmatpush.msra.mxu0 %v3893
    %4001 = vmatpush.msra.mxu0 %v3889
    %4002 = vmatpush.msra.mxu0 %v3885
    %4003 = vmatmul.f32.gmra.mxu0 %v3881
    %v4004 = vpop.f32.mrf.mxu0
    %v4005 = vadd.f32 0.0, %v4004
    %4006 = vdwg.mxu0
    %4007 = vmatpush.msra.mxu0 %v3946
    %4008 = vmatpush.msra.mxu0 %v3942
    %4009 = vmatpush.msra.mxu0 %v3938
    %4010 = vmatpush.msra.mxu0 %v3934
    %4011 = vmatpush.msra.mxu0 %v3930
    %4012 = vmatpush.msra.mxu0 %v3926
    %4013 = vmatpush.msra.mxu0 %v3922
    %4014 = vmatpush.msra.mxu0 %v3918
    %4015 = vmatpush.msra.mxu0 %v3914
    %4016 = vmatpush.msra.mxu0 %v3910
    %4017 = vmatpush.msra.mxu0 %v3906
    %4018 = vmatpush.msra.mxu0 %v3902
    %4019 = vmatpush.msra.mxu0 %v3898
    %4020 = vmatpush.msra.mxu0 %v3894
    %4021 = vmatpush.msra.mxu0 %v3890
    %4022 = vmatpush.msra.mxu0 %v3886
    %4023 = vmatmul.f32.gmra.mxu0 %v3881
    %v4024 = vpop.f32.mrf.mxu0
    %v4025 = vadd.f32 0.0, %v4024
    %4026 = vdwg.mxu0
    %v4031 = vrot.slane %v3985, 7
    %v4032 = vrot.slane %v4005, 6
    %v4033 = vrot.slane %v4025, 5
    %v4034 = vsel %vm259, %v3965, %v4031
    %v4035 = vsel %vm261, %v4032, %v4033
    %v4036 = vsel %vm263, %v4034, %v4035
    %v4037 = vsel %vm265, %v3965, %v4031
    %v4038 = vsel %vm267, %v4032, %v4033
    %v4039 = vsel %vm269, %v4037, %v4038
    %v4040 = vrot.slane %v4039, 1
    %v4041 = vsel %vm261, %v3965, %v4031
    %v4042 = vsel %vm273, %v4032, %v4033
    %v4043 = vsel %vm275, %v4041, %v4042
    %v4044 = vrot.slane %v4043, 2
    %v4045 = vsel %vm267, %v3965, %v4031
    %v4046 = vsel %vm279, %v4032, %v4033
    %v4047 = vsel %vm281, %v4045, %v4046
    %v4048 = vrot.slane %v4047, 3
    %v4049 = vsel %vm273, %v3965, %v4031
    %v4050 = vsel %vm285, %v4032, %v4033
    %v4051 = vsel %vm287, %v4049, %v4050
    %v4052 = vrot.slane %v4051, 4
    %v4053 = vsel %vm279, %v3965, %v4031
    %v4054 = vsel %vm291, %v4033, %v4032
    %v4055 = vsel %vm293, %v4053, %v4054
    %v4056 = vrot.slane %v4055, 5
    %v4057 = vsel %vm285, %v3965, %v4031
    %v4058 = vsel %vm259, %v4032, %v4033
    %v4059 = vsel %vm298, %v4058, %v4057
    %v4060 = vrot.slane %v4059, 6
    %v4061 = vsel %vm291, %v4031, %v3965
    %v4062 = vsel %vm265, %v4032, %v4033
    %v4063 = vsel %vm303, %v4062, %v4061
    %v4064 = vrot.slane %v4063, 7
    %v4073 = vadd.f32 %v3866, %v4036
    %v4074 = vadd.f32 %v3868, %v4040
    %v4075 = vadd.f32 %v3870, %v4044
    %v4076 = vadd.f32 %v3872, %v4048
    %v4077 = vadd.f32 %v3874, %v4052
    %v4078 = vadd.f32 %v3876, %v4056
    %v4079 = vadd.f32 %v3878, %v4060
    %v4080 = vadd.f32 %v3880, %v4064
    %v4081 = vxor.u32 %v4073, 2147483648
    %v4082 = vxor.u32 %v4074, 2147483648
    %v4083 = vxor.u32 %v4075, 2147483648
    %v4084 = vxor.u32 %v4076, 2147483648
    %v4085 = vxor.u32 %v4077, 2147483648
    %v4086 = vxor.u32 %v4078, 2147483648
    %v4087 = vxor.u32 %v4079, 2147483648
    %v4088 = vxor.u32 %v4080, 2147483648
    %v4089 = vmul.f32 %v4081, 1.442695
    %v4090 = vpow.pop %v4089
    %v4091 = vmul.f32 %v4082, 1.442695
    %v4092 = vpow.pop %v4091
    %v4093 = vmul.f32 %v4083, 1.442695
    %v4094 = vpow.pop %v4093
    %v4095 = vmul.f32 %v4084, 1.442695
    %v4096 = vpow.pop %v4095
    %v4097 = vmul.f32 %v4085, 1.442695
    %v4098 = vpow.pop %v4097
    %v4099 = vmul.f32 %v4086, 1.442695
    %v4100 = vpow.pop %v4099
    %v4101 = vmul.f32 %v4087, 1.442695
    %v4102 = vpow.pop %v4101
    %v4103 = vmul.f32 %v4088, 1.442695
    %v4104 = vpow.pop %v4103
    %v4105 = vadd.f32 %v4090, 1.0
    %v4106 = vadd.f32 %v4092, 1.0
    %v4107 = vadd.f32 %v4094, 1.0
    %v4108 = vadd.f32 %v4096, 1.0
    %v4109 = vadd.f32 %v4098, 1.0
    %v4110 = vadd.f32 %v4100, 1.0
    %v4111 = vadd.f32 %v4102, 1.0
    %v4112 = vadd.f32 %v4104, 1.0
    %v4113 = vrcp.pop %v4105
    %v4114 = vmul.f32 %v4105, %v4113
    %v4115 = vsub.f32 1.0, %v4114
    %v4116 = vmul.f32 %v4113, %v4115
    %v4117 = vadd.f32 %v4113, %v4116
    %vm4118 = vweird.f32 %v4105
    %vm4119 = vweird.f32 %v4113
    %vm4120 = vmor %vm4118, %vm4119
    %v4121 = vsel %vm4120, %v4113, %v4117
    %v4122 = vand.u32 2147483647, %v4105
    %vm4123 = vcmp.eq.f32.partialorder %v4122, 8.507059e+37
    %v4124 = vand.u32 %v4105, 2147483648
    %v4125 = vor.u32 1.1754944e-38, %v4124
    %v4126 = vsel %vm4123, %v4125, %v4121
    %v4127 = vmul.f32 1.0, %v4126
    %v4128 = vrcp.pop %v4106
    %v4129 = vmul.f32 %v4106, %v4128
    %v4130 = vsub.f32 1.0, %v4129
    %v4131 = vmul.f32 %v4128, %v4130
    %v4132 = vadd.f32 %v4128, %v4131
    %vm4133 = vweird.f32 %v4106
    %vm4134 = vweird.f32 %v4128
    %vm4135 = vmor %vm4133, %vm4134
    %v4136 = vsel %vm4135, %v4128, %v4132
    %v4137 = vand.u32 2147483647, %v4106
    %vm4138 = vcmp.eq.f32.partialorder %v4137, 8.507059e+37
    %v4139 = vand.u32 %v4106, 2147483648
    %v4140 = vor.u32 1.1754944e-38, %v4139
    %v4141 = vsel %vm4138, %v4140, %v4136
    %v4142 = vmul.f32 1.0, %v4141
    %v4143 = vrcp.pop %v4107
    %v4144 = vmul.f32 %v4107, %v4143
    %v4145 = vsub.f32 1.0, %v4144
    %v4146 = vmul.f32 %v4143, %v4145
    %v4147 = vadd.f32 %v4143, %v4146
    %vm4148 = vweird.f32 %v4107
    %vm4149 = vweird.f32 %v4143
    %vm4150 = vmor %vm4148, %vm4149
    %v4151 = vsel %vm4150, %v4143, %v4147
    %v4152 = vand.u32 2147483647, %v4107
    %vm4153 = vcmp.eq.f32.partialorder %v4152, 8.507059e+37
    %v4154 = vand.u32 %v4107, 2147483648
    %v4155 = vor.u32 1.1754944e-38, %v4154
    %v4156 = vsel %vm4153, %v4155, %v4151
    %v4157 = vmul.f32 1.0, %v4156
    %v4158 = vrcp.pop %v4108
    %v4159 = vmul.f32 %v4108, %v4158
    %v4160 = vsub.f32 1.0, %v4159
    %v4161 = vmul.f32 %v4158, %v4160
    %v4162 = vadd.f32 %v4158, %v4161
    %vm4163 = vweird.f32 %v4108
    %vm4164 = vweird.f32 %v4158
    %vm4165 = vmor %vm4163, %vm4164
    %v4166 = vsel %vm4165, %v4158, %v4162
    %v4167 = vand.u32 2147483647, %v4108
    %vm4168 = vcmp.eq.f32.partialorder %v4167, 8.507059e+37
    %v4169 = vand.u32 %v4108, 2147483648
    %v4170 = vor.u32 1.1754944e-38, %v4169
    %v4171 = vsel %vm4168, %v4170, %v4166
    %v4172 = vmul.f32 1.0, %v4171
    %v4173 = vrcp.pop %v4109
    %v4174 = vmul.f32 %v4109, %v4173
    %v4175 = vsub.f32 1.0, %v4174
    %v4176 = vmul.f32 %v4173, %v4175
    %v4177 = vadd.f32 %v4173, %v4176
    %vm4178 = vweird.f32 %v4109
    %vm4179 = vweird.f32 %v4173
    %vm4180 = vmor %vm4178, %vm4179
    %v4181 = vsel %vm4180, %v4173, %v4177
    %v4182 = vand.u32 2147483647, %v4109
    %vm4183 = vcmp.eq.f32.partialorder %v4182, 8.507059e+37
    %v4184 = vand.u32 %v4109, 2147483648
    %v4185 = vor.u32 1.1754944e-38, %v4184
    %v4186 = vsel %vm4183, %v4185, %v4181
    %v4187 = vmul.f32 1.0, %v4186
    %v4188 = vrcp.pop %v4110
    %v4189 = vmul.f32 %v4110, %v4188
    %v4190 = vsub.f32 1.0, %v4189
    %v4191 = vmul.f32 %v4188, %v4190
    %v4192 = vadd.f32 %v4188, %v4191
    %vm4193 = vweird.f32 %v4110
    %vm4194 = vweird.f32 %v4188
    %vm4195 = vmor %vm4193, %vm4194
    %v4196 = vsel %vm4195, %v4188, %v4192
    %v4197 = vand.u32 2147483647, %v4110
    %vm4198 = vcmp.eq.f32.partialorder %v4197, 8.507059e+37
    %v4199 = vand.u32 %v4110, 2147483648
    %v4200 = vor.u32 1.1754944e-38, %v4199
    %v4201 = vsel %vm4198, %v4200, %v4196
    %v4202 = vmul.f32 1.0, %v4201
    %v4203 = vrcp.pop %v4111
    %v4204 = vmul.f32 %v4111, %v4203
    %v4205 = vsub.f32 1.0, %v4204
    %v4206 = vmul.f32 %v4203, %v4205
    %v4207 = vadd.f32 %v4203, %v4206
    %vm4208 = vweird.f32 %v4111
    %vm4209 = vweird.f32 %v4203
    %vm4210 = vmor %vm4208, %vm4209
    %v4211 = vsel %vm4210, %v4203, %v4207
    %v4212 = vand.u32 2147483647, %v4111
    %vm4213 = vcmp.eq.f32.partialorder %v4212, 8.507059e+37
    %v4214 = vand.u32 %v4111, 2147483648
    %v4215 = vor.u32 1.1754944e-38, %v4214
    %v4216 = vsel %vm4213, %v4215, %v4211
    %v4217 = vmul.f32 1.0, %v4216
    %v4218 = vrcp.pop %v4112
    %v4219 = vmul.f32 %v4112, %v4218
    %v4220 = vsub.f32 1.0, %v4219
    %v4221 = vmul.f32 %v4218, %v4220
    %v4222 = vadd.f32 %v4218, %v4221
    %vm4223 = vweird.f32 %v4112
    %vm4224 = vweird.f32 %v4218
    %vm4225 = vmor %vm4223, %vm4224
    %v4226 = vsel %vm4225, %v4218, %v4222
    %v4227 = vand.u32 2147483647, %v4112
    %vm4228 = vcmp.eq.f32.partialorder %v4227, 8.507059e+37
    %v4229 = vand.u32 %v4112, 2147483648
    %v4230 = vor.u32 1.1754944e-38, %v4229
    %v4231 = vsel %vm4228, %v4230, %v4226
    %v4232 = vmul.f32 1.0, %v4231
    %v4241 = vrot.slane %v4073, 1
    %v4242 = vrot.slane %v4074, 1
    %v4243 = vrot.slane %v4075, 1
    %v4244 = vrot.slane %v4076, 1
    %v4245 = vrot.slane %v4077, 1
    %v4246 = vrot.slane %v4078, 1
    %v4247 = vrot.slane %v4079, 1
    %v4248 = vrot.slane %v4080, 1
    %v4257 = vxor.u32 %v4241, 2147483648
    %v4258 = vxor.u32 %v4242, 2147483648
    %v4259 = vxor.u32 %v4243, 2147483648
    %v4260 = vxor.u32 %v4244, 2147483648
    %v4261 = vxor.u32 %v4245, 2147483648
    %v4262 = vxor.u32 %v4246, 2147483648
    %v4263 = vxor.u32 %v4247, 2147483648
    %v4264 = vxor.u32 %v4248, 2147483648
    %v4265 = vmul.f32 %v4257, 1.442695
    %v4266 = vpow.pop %v4265
    %v4267 = vmul.f32 %v4258, 1.442695
    %v4268 = vpow.pop %v4267
    %v4269 = vmul.f32 %v4259, 1.442695
    %v4270 = vpow.pop %v4269
    %v4271 = vmul.f32 %v4260, 1.442695
    %v4272 = vpow.pop %v4271
    %v4273 = vmul.f32 %v4261, 1.442695
    %v4274 = vpow.pop %v4273
    %v4275 = vmul.f32 %v4262, 1.442695
    %v4276 = vpow.pop %v4275
    %v4277 = vmul.f32 %v4263, 1.442695
    %v4278 = vpow.pop %v4277
    %v4279 = vmul.f32 %v4264, 1.442695
    %v4280 = vpow.pop %v4279
    %v4281 = vadd.f32 %v4266, 1.0
    %v4282 = vadd.f32 %v4268, 1.0
    %v4283 = vadd.f32 %v4270, 1.0
    %v4284 = vadd.f32 %v4272, 1.0
    %v4285 = vadd.f32 %v4274, 1.0
    %v4286 = vadd.f32 %v4276, 1.0
    %v4287 = vadd.f32 %v4278, 1.0
    %v4288 = vadd.f32 %v4280, 1.0
    %v4289 = vrcp.pop %v4281
    %v4290 = vmul.f32 %v4281, %v4289
    %v4291 = vsub.f32 1.0, %v4290
    %v4292 = vmul.f32 %v4289, %v4291
    %v4293 = vadd.f32 %v4289, %v4292
    %vm4294 = vweird.f32 %v4281
    %vm4295 = vweird.f32 %v4289
    %vm4296 = vmor %vm4294, %vm4295
    %v4297 = vsel %vm4296, %v4289, %v4293
    %v4298 = vand.u32 2147483647, %v4281
    %vm4299 = vcmp.eq.f32.partialorder %v4298, 8.507059e+37
    %v4300 = vand.u32 %v4281, 2147483648
    %v4301 = vor.u32 1.1754944e-38, %v4300
    %v4302 = vsel %vm4299, %v4301, %v4297
    %v4303 = vmul.f32 1.0, %v4302
    %v4304 = vrcp.pop %v4282
    %v4305 = vmul.f32 %v4282, %v4304
    %v4306 = vsub.f32 1.0, %v4305
    %v4307 = vmul.f32 %v4304, %v4306
    %v4308 = vadd.f32 %v4304, %v4307
    %vm4309 = vweird.f32 %v4282
    %vm4310 = vweird.f32 %v4304
    %vm4311 = vmor %vm4309, %vm4310
    %v4312 = vsel %vm4311, %v4304, %v4308
    %v4313 = vand.u32 2147483647, %v4282
    %vm4314 = vcmp.eq.f32.partialorder %v4313, 8.507059e+37
    %v4315 = vand.u32 %v4282, 2147483648
    %v4316 = vor.u32 1.1754944e-38, %v4315
    %v4317 = vsel %vm4314, %v4316, %v4312
    %v4318 = vmul.f32 1.0, %v4317
    %v4319 = vrcp.pop %v4283
    %v4320 = vmul.f32 %v4283, %v4319
    %v4321 = vsub.f32 1.0, %v4320
    %v4322 = vmul.f32 %v4319, %v4321
    %v4323 = vadd.f32 %v4319, %v4322
    %vm4324 = vweird.f32 %v4283
    %vm4325 = vweird.f32 %v4319
    %vm4326 = vmor %vm4324, %vm4325
    %v4327 = vsel %vm4326, %v4319, %v4323
    %v4328 = vand.u32 2147483647, %v4283
    %vm4329 = vcmp.eq.f32.partialorder %v4328, 8.507059e+37
    %v4330 = vand.u32 %v4283, 2147483648
    %v4331 = vor.u32 1.1754944e-38, %v4330
    %v4332 = vsel %vm4329, %v4331, %v4327
    %v4333 = vmul.f32 1.0, %v4332
    %v4334 = vrcp.pop %v4284
    %v4335 = vmul.f32 %v4284, %v4334
    %v4336 = vsub.f32 1.0, %v4335
    %v4337 = vmul.f32 %v4334, %v4336
    %v4338 = vadd.f32 %v4334, %v4337
    %vm4339 = vweird.f32 %v4284
    %vm4340 = vweird.f32 %v4334
    %vm4341 = vmor %vm4339, %vm4340
    %v4342 = vsel %vm4341, %v4334, %v4338
    %v4343 = vand.u32 2147483647, %v4284
    %vm4344 = vcmp.eq.f32.partialorder %v4343, 8.507059e+37
    %v4345 = vand.u32 %v4284, 2147483648
    %v4346 = vor.u32 1.1754944e-38, %v4345
    %v4347 = vsel %vm4344, %v4346, %v4342
    %v4348 = vmul.f32 1.0, %v4347
    %v4349 = vrcp.pop %v4285
    %v4350 = vmul.f32 %v4285, %v4349
    %v4351 = vsub.f32 1.0, %v4350
    %v4352 = vmul.f32 %v4349, %v4351
    %v4353 = vadd.f32 %v4349, %v4352
    %vm4354 = vweird.f32 %v4285
    %vm4355 = vweird.f32 %v4349
    %vm4356 = vmor %vm4354, %vm4355
    %v4357 = vsel %vm4356, %v4349, %v4353
    %v4358 = vand.u32 2147483647, %v4285
    %vm4359 = vcmp.eq.f32.partialorder %v4358, 8.507059e+37
    %v4360 = vand.u32 %v4285, 2147483648
    %v4361 = vor.u32 1.1754944e-38, %v4360
    %v4362 = vsel %vm4359, %v4361, %v4357
    %v4363 = vmul.f32 1.0, %v4362
    %v4364 = vrcp.pop %v4286
    %v4365 = vmul.f32 %v4286, %v4364
    %v4366 = vsub.f32 1.0, %v4365
    %v4367 = vmul.f32 %v4364, %v4366
    %v4368 = vadd.f32 %v4364, %v4367
    %vm4369 = vweird.f32 %v4286
    %vm4370 = vweird.f32 %v4364
    %vm4371 = vmor %vm4369, %vm4370
    %v4372 = vsel %vm4371, %v4364, %v4368
    %v4373 = vand.u32 2147483647, %v4286
    %vm4374 = vcmp.eq.f32.partialorder %v4373, 8.507059e+37
    %v4375 = vand.u32 %v4286, 2147483648
    %v4376 = vor.u32 1.1754944e-38, %v4375
    %v4377 = vsel %vm4374, %v4376, %v4372
    %v4378 = vmul.f32 1.0, %v4377
    %v4379 = vrcp.pop %v4287
    %v4380 = vmul.f32 %v4287, %v4379
    %v4381 = vsub.f32 1.0, %v4380
    %v4382 = vmul.f32 %v4379, %v4381
    %v4383 = vadd.f32 %v4379, %v4382
    %vm4384 = vweird.f32 %v4287
    %vm4385 = vweird.f32 %v4379
    %vm4386 = vmor %vm4384, %vm4385
    %v4387 = vsel %vm4386, %v4379, %v4383
    %v4388 = vand.u32 2147483647, %v4287
    %vm4389 = vcmp.eq.f32.partialorder %v4388, 8.507059e+37
    %v4390 = vand.u32 %v4287, 2147483648
    %v4391 = vor.u32 1.1754944e-38, %v4390
    %v4392 = vsel %vm4389, %v4391, %v4387
    %v4393 = vmul.f32 1.0, %v4392
    %v4394 = vrcp.pop %v4288
    %v4395 = vmul.f32 %v4288, %v4394
    %v4396 = vsub.f32 1.0, %v4395
    %v4397 = vmul.f32 %v4394, %v4396
    %v4398 = vadd.f32 %v4394, %v4397
    %vm4399 = vweird.f32 %v4288
    %vm4400 = vweird.f32 %v4394
    %vm4401 = vmor %vm4399, %vm4400
    %v4402 = vsel %vm4401, %v4394, %v4398
    %v4403 = vand.u32 2147483647, %v4288
    %vm4404 = vcmp.eq.f32.partialorder %v4403, 8.507059e+37
    %v4405 = vand.u32 %v4288, 2147483648
    %v4406 = vor.u32 1.1754944e-38, %v4405
    %v4407 = vsel %vm4404, %v4406, %v4402
    %v4408 = vmul.f32 1.0, %v4407
    %v4409 = vrot.slane %v4073, 2
    %v4410 = vrot.slane %v4074, 2
    %v4411 = vrot.slane %v4075, 2
    %v4412 = vrot.slane %v4076, 2
    %v4413 = vrot.slane %v4077, 2
    %v4414 = vrot.slane %v4078, 2
    %v4415 = vrot.slane %v4079, 2
    %v4416 = vrot.slane %v4080, 2
    %v4425 = vtanh.pop %v4409
    %v4426 = vtanh.pop %v4410
    %v4427 = vtanh.pop %v4411
    %v4428 = vtanh.pop %v4412
    %v4429 = vtanh.pop %v4413
    %v4430 = vtanh.pop %v4414
    %v4431 = vtanh.pop %v4415
    %v4432 = vtanh.pop %v4416
    %v4433 = vrot.slane %v4073, 3
    %v4434 = vrot.slane %v4074, 3
    %v4435 = vrot.slane %v4075, 3
    %v4436 = vrot.slane %v4076, 3
    %v4437 = vrot.slane %v4077, 3
    %v4438 = vrot.slane %v4078, 3
    %v4439 = vrot.slane %v4079, 3
    %v4440 = vrot.slane %v4080, 3
    %v4449 = vxor.u32 %v4433, 2147483648
    %v4450 = vxor.u32 %v4434, 2147483648
    %v4451 = vxor.u32 %v4435, 2147483648
    %v4452 = vxor.u32 %v4436, 2147483648
    %v4453 = vxor.u32 %v4437, 2147483648
    %v4454 = vxor.u32 %v4438, 2147483648
    %v4455 = vxor.u32 %v4439, 2147483648
    %v4456 = vxor.u32 %v4440, 2147483648
    %v4457 = vmul.f32 %v4449, 1.442695
    %v4458 = vpow.pop %v4457
    %v4459 = vmul.f32 %v4450, 1.442695
    %v4460 = vpow.pop %v4459
    %v4461 = vmul.f32 %v4451, 1.442695
    %v4462 = vpow.pop %v4461
    %v4463 = vmul.f32 %v4452, 1.442695
    %v4464 = vpow.pop %v4463
    %v4465 = vmul.f32 %v4453, 1.442695
    %v4466 = vpow.pop %v4465
    %v4467 = vmul.f32 %v4454, 1.442695
    %v4468 = vpow.pop %v4467
    %v4469 = vmul.f32 %v4455, 1.442695
    %v4470 = vpow.pop %v4469
    %v4471 = vmul.f32 %v4456, 1.442695
    %v4472 = vpow.pop %v4471
    %v4473 = vadd.f32 %v4458, 1.0
    %v4474 = vadd.f32 %v4460, 1.0
    %v4475 = vadd.f32 %v4462, 1.0
    %v4476 = vadd.f32 %v4464, 1.0
    %v4477 = vadd.f32 %v4466, 1.0
    %v4478 = vadd.f32 %v4468, 1.0
    %v4479 = vadd.f32 %v4470, 1.0
    %v4480 = vadd.f32 %v4472, 1.0
    %v4481 = vrcp.pop %v4473
    %v4482 = vmul.f32 %v4473, %v4481
    %v4483 = vsub.f32 1.0, %v4482
    %v4484 = vmul.f32 %v4481, %v4483
    %v4485 = vadd.f32 %v4481, %v4484
    %vm4486 = vweird.f32 %v4473
    %vm4487 = vweird.f32 %v4481
    %vm4488 = vmor %vm4486, %vm4487
    %v4489 = vsel %vm4488, %v4481, %v4485
    %v4490 = vand.u32 2147483647, %v4473
    %vm4491 = vcmp.eq.f32.partialorder %v4490, 8.507059e+37
    %v4492 = vand.u32 %v4473, 2147483648
    %v4493 = vor.u32 1.1754944e-38, %v4492
    %v4494 = vsel %vm4491, %v4493, %v4489
    %v4495 = vmul.f32 1.0, %v4494
    %v4496 = vrcp.pop %v4474
    %v4497 = vmul.f32 %v4474, %v4496
    %v4498 = vsub.f32 1.0, %v4497
    %v4499 = vmul.f32 %v4496, %v4498
    %v4500 = vadd.f32 %v4496, %v4499
    %vm4501 = vweird.f32 %v4474
    %vm4502 = vweird.f32 %v4496
    %vm4503 = vmor %vm4501, %vm4502
    %v4504 = vsel %vm4503, %v4496, %v4500
    %v4505 = vand.u32 2147483647, %v4474
    %vm4506 = vcmp.eq.f32.partialorder %v4505, 8.507059e+37
    %v4507 = vand.u32 %v4474, 2147483648
    %v4508 = vor.u32 1.1754944e-38, %v4507
    %v4509 = vsel %vm4506, %v4508, %v4504
    %v4510 = vmul.f32 1.0, %v4509
    %v4511 = vrcp.pop %v4475
    %v4512 = vmul.f32 %v4475, %v4511
    %v4513 = vsub.f32 1.0, %v4512
    %v4514 = vmul.f32 %v4511, %v4513
    %v4515 = vadd.f32 %v4511, %v4514
    %vm4516 = vweird.f32 %v4475
    %vm4517 = vweird.f32 %v4511
    %vm4518 = vmor %vm4516, %vm4517
    %v4519 = vsel %vm4518, %v4511, %v4515
    %v4520 = vand.u32 2147483647, %v4475
    %vm4521 = vcmp.eq.f32.partialorder %v4520, 8.507059e+37
    %v4522 = vand.u32 %v4475, 2147483648
    %v4523 = vor.u32 1.1754944e-38, %v4522
    %v4524 = vsel %vm4521, %v4523, %v4519
    %v4525 = vmul.f32 1.0, %v4524
    %v4526 = vrcp.pop %v4476
    %v4527 = vmul.f32 %v4476, %v4526
    %v4528 = vsub.f32 1.0, %v4527
    %v4529 = vmul.f32 %v4526, %v4528
    %v4530 = vadd.f32 %v4526, %v4529
    %vm4531 = vweird.f32 %v4476
    %vm4532 = vweird.f32 %v4526
    %vm4533 = vmor %vm4531, %vm4532
    %v4534 = vsel %vm4533, %v4526, %v4530
    %v4535 = vand.u32 2147483647, %v4476
    %vm4536 = vcmp.eq.f32.partialorder %v4535, 8.507059e+37
    %v4537 = vand.u32 %v4476, 2147483648
    %v4538 = vor.u32 1.1754944e-38, %v4537
    %v4539 = vsel %vm4536, %v4538, %v4534
    %v4540 = vmul.f32 1.0, %v4539
    %v4541 = vrcp.pop %v4477
    %v4542 = vmul.f32 %v4477, %v4541
    %v4543 = vsub.f32 1.0, %v4542
    %v4544 = vmul.f32 %v4541, %v4543
    %v4545 = vadd.f32 %v4541, %v4544
    %vm4546 = vweird.f32 %v4477
    %vm4547 = vweird.f32 %v4541
    %vm4548 = vmor %vm4546, %vm4547
    %v4549 = vsel %vm4548, %v4541, %v4545
    %v4550 = vand.u32 2147483647, %v4477
    %vm4551 = vcmp.eq.f32.partialorder %v4550, 8.507059e+37
    %v4552 = vand.u32 %v4477, 2147483648
    %v4553 = vor.u32 1.1754944e-38, %v4552
    %v4554 = vsel %vm4551, %v4553, %v4549
    %v4555 = vmul.f32 1.0, %v4554
    %v4556 = vrcp.pop %v4478
    %v4557 = vmul.f32 %v4478, %v4556
    %v4558 = vsub.f32 1.0, %v4557
    %v4559 = vmul.f32 %v4556, %v4558
    %v4560 = vadd.f32 %v4556, %v4559
    %vm4561 = vweird.f32 %v4478
    %vm4562 = vweird.f32 %v4556
    %vm4563 = vmor %vm4561, %vm4562
    %v4564 = vsel %vm4563, %v4556, %v4560
    %v4565 = vand.u32 2147483647, %v4478
    %vm4566 = vcmp.eq.f32.partialorder %v4565, 8.507059e+37
    %v4567 = vand.u32 %v4478, 2147483648
    %v4568 = vor.u32 1.1754944e-38, %v4567
    %v4569 = vsel %vm4566, %v4568, %v4564
    %v4570 = vmul.f32 1.0, %v4569
    %v4571 = vrcp.pop %v4479
    %v4572 = vmul.f32 %v4479, %v4571
    %v4573 = vsub.f32 1.0, %v4572
    %v4574 = vmul.f32 %v4571, %v4573
    %v4575 = vadd.f32 %v4571, %v4574
    %vm4576 = vweird.f32 %v4479
    %vm4577 = vweird.f32 %v4571
    %vm4578 = vmor %vm4576, %vm4577
    %v4579 = vsel %vm4578, %v4571, %v4575
    %v4580 = vand.u32 2147483647, %v4479
    %vm4581 = vcmp.eq.f32.partialorder %v4580, 8.507059e+37
    %v4582 = vand.u32 %v4479, 2147483648
    %v4583 = vor.u32 1.1754944e-38, %v4582
    %v4584 = vsel %vm4581, %v4583, %v4579
    %v4585 = vmul.f32 1.0, %v4584
    %v4586 = vrcp.pop %v4480
    %v4587 = vmul.f32 %v4480, %v4586
    %v4588 = vsub.f32 1.0, %v4587
    %v4589 = vmul.f32 %v4586, %v4588
    %v4590 = vadd.f32 %v4586, %v4589
    %vm4591 = vweird.f32 %v4480
    %vm4592 = vweird.f32 %v4586
    %vm4593 = vmor %vm4591, %vm4592
    %v4594 = vsel %vm4593, %v4586, %v4590
    %v4595 = vand.u32 2147483647, %v4480
    %vm4596 = vcmp.eq.f32.partialorder %v4595, 8.507059e+37
    %v4597 = vand.u32 %v4480, 2147483648
    %v4598 = vor.u32 1.1754944e-38, %v4597
    %v4599 = vsel %vm4596, %v4598, %v4594
    %v4600 = vmul.f32 1.0, %v4599
    %v4602 = vrot.slane %v3882, 1
    %v4603 = vrot.slane %v3882, 2
    %v4604 = vrot.slane %v3882, 3
    %v4605 = vrot.slane %v3882, 4
    %v4606 = vrot.slane %v3882, 5
    %v4607 = vrot.slane %v3882, 6
    %v4608 = vrot.slane %v3882, 7
    %v4616 = vmul.f32 %v4303, %v3882
    %v4617 = vmul.f32 %v4318, %v4602
    %v4618 = vmul.f32 %v4333, %v4603
    %v4619 = vmul.f32 %v4348, %v4604
    %v4620 = vmul.f32 %v4363, %v4605
    %v4621 = vmul.f32 %v4378, %v4606
    %v4622 = vmul.f32 %v4393, %v4607
    %v4623 = vmul.f32 %v4408, %v4608
    %v4624 = vmul.f32 %v4127, %v4425
    %v4625 = vmul.f32 %v4142, %v4426
    %v4626 = vmul.f32 %v4157, %v4427
    %v4627 = vmul.f32 %v4172, %v4428
    %v4628 = vmul.f32 %v4187, %v4429
    %v4629 = vmul.f32 %v4202, %v4430
    %v4630 = vmul.f32 %v4217, %v4431
    %v4631 = vmul.f32 %v4232, %v4432
    %v4632 = vadd.f32 %v4616, %v4624
    %v4633 = vadd.f32 %v4617, %v4625
    %v4634 = vadd.f32 %v4618, %v4626
    %v4635 = vadd.f32 %v4619, %v4627
    %v4636 = vadd.f32 %v4620, %v4628
    %v4637 = vadd.f32 %v4621, %v4629
    %v4638 = vadd.f32 %v4622, %v4630
    %v4639 = vadd.f32 %v4623, %v4631
    %v4640 = vtanh.pop %v4632
    %v4641 = vtanh.pop %v4633
    %v4642 = vtanh.pop %v4634
    %v4643 = vtanh.pop %v4635
    %v4644 = vtanh.pop %v4636
    %v4645 = vtanh.pop %v4637
    %v4646 = vtanh.pop %v4638
    %v4647 = vtanh.pop %v4639
    %v4648 = vmul.f32 %v4495, %v4640
    %v4649 = vmul.f32 %v4510, %v4641
    %v4650 = vmul.f32 %v4525, %v4642
    %v4651 = vmul.f32 %v4540, %v4643
    %v4652 = vmul.f32 %v4555, %v4644
    %v4653 = vmul.f32 %v4570, %v4645
    %v4654 = vmul.f32 %v4585, %v4646
    %v4655 = vmul.f32 %v4600, %v4647
    %4664 = vst [vmem:[#allocation1] ss:$9 sm:$0xff] %v4648
    %s4665 = scalar_lea.vmem [#allocation1], 1
    %4666 = vst [vmem:[%s4665] ss:$9 sm:$0xff] %v4649
    %s4667 = scalar_lea.vmem [#allocation1], 2
    %4668 = vst [vmem:[%s4667] ss:$9 sm:$0xff] %v4650
    %s4669 = scalar_lea.vmem [#allocation1], 3
    %4670 = vst [vmem:[%s4669] ss:$9 sm:$0xff] %v4651
    %s4671 = scalar_lea.vmem [#allocation1], 4
    %4672 = vst [vmem:[%s4671] ss:$9 sm:$0xff] %v4652
    %s4673 = scalar_lea.vmem [#allocation1], 5
    %4674 = vst [vmem:[%s4673] ss:$9 sm:$0xff] %v4653
    %s4675 = scalar_lea.vmem [#allocation1], 6
    %4676 = vst [vmem:[%s4675] ss:$9 sm:$0xff] %v4654
    %s4677 = scalar_lea.vmem [#allocation1], 7
    %4678 = vst [vmem:[%s4677] ss:$9 sm:$0xff] %v4655
    %v4679 = vld [vmem:[#allocation1] sm:$0xff]
    %4681 = vst [vmem:[#allocation2] sm:$0xff] %v4679
    %4690 = vst [vmem:[#allocation1] ss:$9 sm:$0xff] %v4632
    %s4691 = scalar_lea.vmem [#allocation1], 1
    %4692 = vst [vmem:[%s4691] ss:$9 sm:$0xff] %v4633
    %s4693 = scalar_lea.vmem [#allocation1], 2
    %4694 = vst [vmem:[%s4693] ss:$9 sm:$0xff] %v4634
    %s4695 = scalar_lea.vmem [#allocation1], 3
    %4696 = vst [vmem:[%s4695] ss:$9 sm:$0xff] %v4635
    %s4697 = scalar_lea.vmem [#allocation1], 4
    %4698 = vst [vmem:[%s4697] ss:$9 sm:$0xff] %v4636
    %s4699 = scalar_lea.vmem [#allocation1], 5
    %4700 = vst [vmem:[%s4699] ss:$9 sm:$0xff] %v4637
    %s4701 = scalar_lea.vmem [#allocation1], 6
    %4702 = vst [vmem:[%s4701] ss:$9 sm:$0xff] %v4638
    %s4703 = scalar_lea.vmem [#allocation1], 7
    %4704 = vst [vmem:[%s4703] ss:$9 sm:$0xff] %v4639
    %v4705 = vld [vmem:[#allocation1] sm:$0xff]
    %4707 = vst [vmem:[#allocation3] sm:$0xff] %v4705
    %v4708 = vld [vmem:[%s949] sm:$0xff]
    %v4709 = vld [vmem:[%s951] sm:$0xff]
    %v4710 = vld [vmem:[#allocation9] sm:$0xff]
    %v4711 = vld [vmem:[#allocation9 + $0x8] sm:$0xff]
    %v4712 = vld [vmem:[#allocation9 + $0x10] sm:$0xff]
    %v4713 = vld [vmem:[#allocation9 + $0x18] sm:$0xff]
    %v4714 = vld [vmem:[#allocation9 + $0x20] sm:$0xff]
    %v4715 = vld [vmem:[#allocation9 + $0x28] sm:$0xff]
    %v4716 = vld [vmem:[#allocation9 + $0x30] sm:$0xff]
    %v4717 = vld [vmem:[#allocation9 + $0x38] sm:$0xff]
    %v4718 = vld [vmem:[#allocation9 + $0x40] sm:$0xff]
    %v4719 = vld [vmem:[#allocation9 + $0x48] sm:$0xff]
    %v4720 = vld [vmem:[#allocation9 + $0x50] sm:$0xff]
    %v4721 = vld [vmem:[#allocation9 + $0x58] sm:$0xff]
    %v4722 = vld [vmem:[#allocation9 + $0x60] sm:$0xff]
    %v4723 = vld [vmem:[#allocation9 + $0x68] sm:$0xff]
    %v4724 = vld [vmem:[#allocation9 + $0x70] sm:$0xff]
    %v4725 = vld [vmem:[#allocation9 + $0x78] sm:$0xff]
    %v4726 = vld [vmem:[#allocation9 + $0x80] sm:$0xff]
    %v4727 = vld [vmem:[#allocation9 + $0x88] sm:$0xff]
    %v4728 = vld [vmem:[#allocation9 + $0x90] sm:$0xff]
    %v4729 = vld [vmem:[#allocation9 + $0x98] sm:$0xff]
    %v4730 = vld [vmem:[#allocation9 + $0xa0] sm:$0xff]
    %v4731 = vld [vmem:[#allocation9 + $0xa8] sm:$0xff]
    %v4732 = vld [vmem:[#allocation9 + $0xb0] sm:$0xff]
    %v4733 = vld [vmem:[#allocation9 + $0xb8] sm:$0xff]
    %v4734 = vld [vmem:[#allocation9 + $0xc0] sm:$0xff]
    %v4735 = vld [vmem:[#allocation9 + $0xc8] sm:$0xff]
    %v4736 = vld [vmem:[#allocation9 + $0xd0] sm:$0xff]
    %v4737 = vld [vmem:[#allocation9 + $0xd8] sm:$0xff]
    %v4738 = vld [vmem:[#allocation9 + $0xe0] sm:$0xff]
    %v4739 = vld [vmem:[#allocation9 + $0xe8] sm:$0xff]
    %v4740 = vld [vmem:[#allocation9 + $0xf0] sm:$0xff]
    %v4741 = vld [vmem:[#allocation9 + $0xf8] sm:$0xff]
    %v4742 = vld [vmem:[#allocation9 + $0x100] sm:$0xff]
    %v4743 = vld [vmem:[#allocation9 + $0x108] sm:$0xff]
    %v4744 = vld [vmem:[#allocation9 + $0x110] sm:$0xff]
    %v4745 = vld [vmem:[#allocation9 + $0x118] sm:$0xff]
    %v4746 = vld [vmem:[#allocation9 + $0x120] sm:$0xff]
    %v4747 = vld [vmem:[#allocation9 + $0x128] sm:$0xff]
    %v4748 = vld [vmem:[#allocation9 + $0x130] sm:$0xff]
    %v4749 = vld [vmem:[#allocation9 + $0x138] sm:$0xff]
    %v4750 = vld [vmem:[#allocation9 + $0x140] sm:$0xff]
    %v4751 = vld [vmem:[#allocation9 + $0x148] sm:$0xff]
    %v4752 = vld [vmem:[#allocation9 + $0x150] sm:$0xff]
    %v4753 = vld [vmem:[#allocation9 + $0x158] sm:$0xff]
    %v4754 = vld [vmem:[#allocation9 + $0x160] sm:$0xff]
    %v4755 = vld [vmem:[#allocation9 + $0x168] sm:$0xff]
    %v4756 = vld [vmem:[#allocation9 + $0x170] sm:$0xff]
    %v4757 = vld [vmem:[#allocation9 + $0x178] sm:$0xff]
    %v4758 = vld [vmem:[#allocation9 + $0x180] sm:$0xff]
    %v4759 = vld [vmem:[#allocation9 + $0x188] sm:$0xff]
    %v4760 = vld [vmem:[#allocation9 + $0x190] sm:$0xff]
    %v4761 = vld [vmem:[#allocation9 + $0x198] sm:$0xff]
    %v4762 = vld [vmem:[#allocation9 + $0x1a0] sm:$0xff]
    %v4763 = vld [vmem:[#allocation9 + $0x1a8] sm:$0xff]
    %v4764 = vld [vmem:[#allocation9 + $0x1b0] sm:$0xff]
    %v4765 = vld [vmem:[#allocation9 + $0x1b8] sm:$0xff]
    %v4766 = vld [vmem:[#allocation9 + $0x1c0] sm:$0xff]
    %v4767 = vld [vmem:[#allocation9 + $0x1c8] sm:$0xff]
    %v4768 = vld [vmem:[#allocation9 + $0x1d0] sm:$0xff]
    %v4769 = vld [vmem:[#allocation9 + $0x1d8] sm:$0xff]
    %v4770 = vld [vmem:[#allocation9 + $0x1e0] sm:$0xff]
    %v4771 = vld [vmem:[#allocation9 + $0x1e8] sm:$0xff]
    %v4772 = vld [vmem:[#allocation9 + $0x1f0] sm:$0xff]
    %v4773 = vld [vmem:[#allocation9 + $0x1f8] sm:$0xff]
    %v4774 = vld [vmem:[#allocation10] sm:$0xf]
    %v4776 = vperm.slane %v4774, 0
    %v4777 = vperm.slane %v4774, 1
    %v4778 = vperm.slane %v4774, 2
    %v4779 = vperm.slane %v4774, 3
    %4784 = vst [vmem:[#allocation1] ss:$9 sm:$0xff] %v4648
    %s4785 = scalar_lea.vmem [#allocation1], 1
    %4786 = vst [vmem:[%s4785] ss:$9 sm:$0xff] %v4649
    %s4787 = scalar_lea.vmem [#allocation1], 2
    %4788 = vst [vmem:[%s4787] ss:$9 sm:$0xff] %v4650
    %s4789 = scalar_lea.vmem [#allocation1], 3
    %4790 = vst [vmem:[%s4789] ss:$9 sm:$0xff] %v4651
    %s4791 = scalar_lea.vmem [#allocation1], 4
    %4792 = vst [vmem:[%s4791] ss:$9 sm:$0xff] %v4652
    %s4793 = scalar_lea.vmem [#allocation1], 5
    %4794 = vst [vmem:[%s4793] ss:$9 sm:$0xff] %v4653
    %s4795 = scalar_lea.vmem [#allocation1], 6
    %4796 = vst [vmem:[%s4795] ss:$9 sm:$0xff] %v4654
    %s4797 = scalar_lea.vmem [#allocation1], 7
    %4798 = vst [vmem:[%s4797] ss:$9 sm:$0xff] %v4655
    %v4799 = vld [vmem:[#allocation1] sm:$0xff]
    %4801 = vmatpush.msra.mxu0 %v4770
    %4802 = vmatpush.msra.mxu0 %v4766
    %4803 = vmatpush.msra.mxu0 %v4762
    %4804 = vmatpush.msra.mxu0 %v4758
    %4805 = vmatpush.msra.mxu0 %v4754
    %4806 = vmatpush.msra.mxu0 %v4750
    %4807 = vmatpush.msra.mxu0 %v4746
    %4808 = vmatpush.msra.mxu0 %v4742
    %4809 = vmatpush.msra.mxu0 %v4738
    %4810 = vmatpush.msra.mxu0 %v4734
    %4811 = vmatpush.msra.mxu0 %v4730
    %4812 = vmatpush.msra.mxu0 %v4726
    %4813 = vmatpush.msra.mxu0 %v4722
    %4814 = vmatpush.msra.mxu0 %v4718
    %4815 = vmatpush.msra.mxu0 %v4714
    %4816 = vmatpush.msra.mxu0 %v4710
    %4817 = vmatmul.f32.gmra.mxu0 %v4799
    %v4818 = vpop.f32.mrf.mxu0
    %v4819 = vadd.f32 %v4776, %v4818
    %4820 = vdwg.mxu0
    %4821 = vmatpush.msra.mxu0 %v4771
    %4822 = vmatpush.msra.mxu0 %v4767
    %4823 = vmatpush.msra.mxu0 %v4763
    %4824 = vmatpush.msra.mxu0 %v4759
    %4825 = vmatpush.msra.mxu0 %v4755
    %4826 = vmatpush.msra.mxu0 %v4751
    %4827 = vmatpush.msra.mxu0 %v4747
    %4828 = vmatpush.msra.mxu0 %v4743
    %4829 = vmatpush.msra.mxu0 %v4739
    %4830 = vmatpush.msra.mxu0 %v4735
    %4831 = vmatpush.msra.mxu0 %v4731
    %4832 = vmatpush.msra.mxu0 %v4727
    %4833 = vmatpush.msra.mxu0 %v4723
    %4834 = vmatpush.msra.mxu0 %v4719
    %4835 = vmatpush.msra.mxu0 %v4715
    %4836 = vmatpush.msra.mxu0 %v4711
    %4837 = vmatmul.f32.gmra.mxu0 %v4799
    %v4838 = vpop.f32.mrf.mxu0
    %v4839 = vadd.f32 %v4777, %v4838
    %4840 = vdwg.mxu0
    %4841 = vmatpush.msra.mxu0 %v4772
    %4842 = vmatpush.msra.mxu0 %v4768
    %4843 = vmatpush.msra.mxu0 %v4764
    %4844 = vmatpush.msra.mxu0 %v4760
    %4845 = vmatpush.msra.mxu0 %v4756
    %4846 = vmatpush.msra.mxu0 %v4752
    %4847 = vmatpush.msra.mxu0 %v4748
    %4848 = vmatpush.msra.mxu0 %v4744
    %4849 = vmatpush.msra.mxu0 %v4740
    %4850 = vmatpush.msra.mxu0 %v4736
    %4851 = vmatpush.msra.mxu0 %v4732
    %4852 = vmatpush.msra.mxu0 %v4728
    %4853 = vmatpush.msra.mxu0 %v4724
    %4854 = vmatpush.msra.mxu0 %v4720
    %4855 = vmatpush.msra.mxu0 %v4716
    %4856 = vmatpush.msra.mxu0 %v4712
    %4857 = vmatmul.f32.gmra.mxu0 %v4799
    %v4858 = vpop.f32.mrf.mxu0
    %v4859 = vadd.f32 %v4778, %v4858
    %4860 = vdwg.mxu0
    %4861 = vmatpush.msra.mxu0 %v4773
    %4862 = vmatpush.msra.mxu0 %v4769
    %4863 = vmatpush.msra.mxu0 %v4765
    %4864 = vmatpush.msra.mxu0 %v4761
    %4865 = vmatpush.msra.mxu0 %v4757
    %4866 = vmatpush.msra.mxu0 %v4753
    %4867 = vmatpush.msra.mxu0 %v4749
    %4868 = vmatpush.msra.mxu0 %v4745
    %4869 = vmatpush.msra.mxu0 %v4741
    %4870 = vmatpush.msra.mxu0 %v4737
    %4871 = vmatpush.msra.mxu0 %v4733
    %4872 = vmatpush.msra.mxu0 %v4729
    %4873 = vmatpush.msra.mxu0 %v4725
    %4874 = vmatpush.msra.mxu0 %v4721
    %4875 = vmatpush.msra.mxu0 %v4717
    %4876 = vmatpush.msra.mxu0 %v4713
    %4877 = vmatmul.f32.gmra.mxu0 %v4799
    %v4878 = vpop.f32.mrf.mxu0
    %v4879 = vadd.f32 %v4779, %v4878
    %4880 = vdwg.mxu0
    %v4881 = vld [vmem:[%s1124] sm:$0xff]
    %v4882 = vld [vmem:[%s1124 + $0x8] sm:$0xff]
    %v4883 = vld [vmem:[%s1124 + $0x10] sm:$0xff]
    %v4884 = vld [vmem:[%s1124 + $0x18] sm:$0xff]
    %v4885 = vld [vmem:[%s1124 + $0x20] sm:$0xff]
    %v4886 = vld [vmem:[%s1124 + $0x28] sm:$0xff]
    %v4887 = vld [vmem:[%s1124 + $0x30] sm:$0xff]
    %v4888 = vld [vmem:[%s1124 + $0x38] sm:$0xff]
    %v4889 = vld [vmem:[%s1124 + $0x40] sm:$0xff]
    %v4890 = vld [vmem:[%s1124 + $0x48] sm:$0xff]
    %v4891 = vld [vmem:[%s1124 + $0x50] sm:$0xff]
    %v4892 = vld [vmem:[%s1124 + $0x58] sm:$0xff]
    %v4893 = vld [vmem:[%s1124 + $0x60] sm:$0xff]
    %v4894 = vld [vmem:[%s1124 + $0x68] sm:$0xff]
    %v4895 = vld [vmem:[%s1124 + $0x70] sm:$0xff]
    %v4896 = vld [vmem:[%s1124 + $0x78] sm:$0xff]
    %v4897 = vld [vmem:[%s1124 + $0x80] sm:$0xff]
    %v4898 = vld [vmem:[%s1124 + $0x88] sm:$0xff]
    %v4899 = vld [vmem:[%s1124 + $0x90] sm:$0xff]
    %v4900 = vld [vmem:[%s1124 + $0x98] sm:$0xff]
    %v4901 = vld [vmem:[%s1124 + $0xa0] sm:$0xff]
    %v4902 = vld [vmem:[%s1124 + $0xa8] sm:$0xff]
    %v4903 = vld [vmem:[%s1124 + $0xb0] sm:$0xff]
    %v4904 = vld [vmem:[%s1124 + $0xb8] sm:$0xff]
    %v4905 = vld [vmem:[%s1124 + $0xc0] sm:$0xff]
    %v4906 = vld [vmem:[%s1124 + $0xc8] sm:$0xff]
    %v4907 = vld [vmem:[%s1124 + $0xd0] sm:$0xff]
    %v4908 = vld [vmem:[%s1124 + $0xd8] sm:$0xff]
    %v4909 = vld [vmem:[%s1124 + $0xe0] sm:$0xff]
    %v4910 = vld [vmem:[%s1124 + $0xe8] sm:$0xff]
    %v4911 = vld [vmem:[%s1124 + $0xf0] sm:$0xff]
    %v4912 = vld [vmem:[%s1124 + $0xf8] sm:$0xff]
    %v4913 = vld [vmem:[%s1124 + $0x100] sm:$0xff]
    %v4914 = vld [vmem:[%s1124 + $0x108] sm:$0xff]
    %v4915 = vld [vmem:[%s1124 + $0x110] sm:$0xff]
    %v4916 = vld [vmem:[%s1124 + $0x118] sm:$0xff]
    %v4917 = vld [vmem:[%s1124 + $0x120] sm:$0xff]
    %v4918 = vld [vmem:[%s1124 + $0x128] sm:$0xff]
    %v4919 = vld [vmem:[%s1124 + $0x130] sm:$0xff]
    %v4920 = vld [vmem:[%s1124 + $0x138] sm:$0xff]
    %v4921 = vld [vmem:[%s1124 + $0x140] sm:$0xff]
    %v4922 = vld [vmem:[%s1124 + $0x148] sm:$0xff]
    %v4923 = vld [vmem:[%s1124 + $0x150] sm:$0xff]
    %v4924 = vld [vmem:[%s1124 + $0x158] sm:$0xff]
    %v4925 = vld [vmem:[%s1124 + $0x160] sm:$0xff]
    %v4926 = vld [vmem:[%s1124 + $0x168] sm:$0xff]
    %v4927 = vld [vmem:[%s1124 + $0x170] sm:$0xff]
    %v4928 = vld [vmem:[%s1124 + $0x178] sm:$0xff]
    %v4929 = vld [vmem:[%s1124 + $0x180] sm:$0xff]
    %v4930 = vld [vmem:[%s1124 + $0x188] sm:$0xff]
    %v4931 = vld [vmem:[%s1124 + $0x190] sm:$0xff]
    %v4932 = vld [vmem:[%s1124 + $0x198] sm:$0xff]
    %v4933 = vld [vmem:[%s1124 + $0x1a0] sm:$0xff]
    %v4934 = vld [vmem:[%s1124 + $0x1a8] sm:$0xff]
    %v4935 = vld [vmem:[%s1124 + $0x1b0] sm:$0xff]
    %v4936 = vld [vmem:[%s1124 + $0x1b8] sm:$0xff]
    %v4937 = vld [vmem:[%s1124 + $0x1c0] sm:$0xff]
    %v4938 = vld [vmem:[%s1124 + $0x1c8] sm:$0xff]
    %v4939 = vld [vmem:[%s1124 + $0x1d0] sm:$0xff]
    %v4940 = vld [vmem:[%s1124 + $0x1d8] sm:$0xff]
    %v4941 = vld [vmem:[%s1124 + $0x1e0] sm:$0xff]
    %v4942 = vld [vmem:[%s1124 + $0x1e8] sm:$0xff]
    %v4943 = vld [vmem:[%s1124 + $0x1f0] sm:$0xff]
    %v4944 = vld [vmem:[%s1124 + $0x1f8] sm:$0xff]
    %4945 = vmatpush.msra.mxu0 %v4941
    %4946 = vmatpush.msra.mxu0 %v4937
    %4947 = vmatpush.msra.mxu0 %v4933
    %4948 = vmatpush.msra.mxu0 %v4929
    %4949 = vmatpush.msra.mxu0 %v4925
    %4950 = vmatpush.msra.mxu0 %v4921
    %4951 = vmatpush.msra.mxu0 %v4917
    %4952 = vmatpush.msra.mxu0 %v4913
    %4953 = vmatpush.msra.mxu0 %v4909
    %4954 = vmatpush.msra.mxu0 %v4905
    %4955 = vmatpush.msra.mxu0 %v4901
    %4956 = vmatpush.msra.mxu0 %v4897
    %4957 = vmatpush.msra.mxu0 %v4893
    %4958 = vmatpush.msra.mxu0 %v4889
    %4959 = vmatpush.msra.mxu0 %v4885
    %4960 = vmatpush.msra.mxu0 %v4881
    %4961 = vmatmul.f32.gmra.mxu0 %v4708
    %v4962 = vpop.f32.mrf.mxu0
    %v4963 = vadd.f32 0.0, %v4962
    %4964 = vdwg.mxu0
    %4965 = vmatpush.msra.mxu0 %v4942
    %4966 = vmatpush.msra.mxu0 %v4938
    %4967 = vmatpush.msra.mxu0 %v4934
    %4968 = vmatpush.msra.mxu0 %v4930
    %4969 = vmatpush.msra.mxu0 %v4926
    %4970 = vmatpush.msra.mxu0 %v4922
    %4971 = vmatpush.msra.mxu0 %v4918
    %4972 = vmatpush.msra.mxu0 %v4914
    %4973 = vmatpush.msra.mxu0 %v4910
    %4974 = vmatpush.msra.mxu0 %v4906
    %4975 = vmatpush.msra.mxu0 %v4902
    %4976 = vmatpush.msra.mxu0 %v4898
    %4977 = vmatpush.msra.mxu0 %v4894
    %4978 = vmatpush.msra.mxu0 %v4890
    %4979 = vmatpush.msra.mxu0 %v4886
    %4980 = vmatpush.msra.mxu0 %v4882
    %4981 = vmatmul.f32.gmra.mxu0 %v4708
    %v4982 = vpop.f32.mrf.mxu0
    %v4983 = vadd.f32 0.0, %v4982
    %4984 = vdwg.mxu0
    %4985 = vmatpush.msra.mxu0 %v4943
    %4986 = vmatpush.msra.mxu0 %v4939
    %4987 = vmatpush.msra.mxu0 %v4935
    %4988 = vmatpush.msra.mxu0 %v4931
    %4989 = vmatpush.msra.mxu0 %v4927
    %4990 = vmatpush.msra.mxu0 %v4923
    %4991 = vmatpush.msra.mxu0 %v4919
    %4992 = vmatpush.msra.mxu0 %v4915
    %4993 = vmatpush.msra.mxu0 %v4911
    %4994 = vmatpush.msra.mxu0 %v4907
    %4995 = vmatpush.msra.mxu0 %v4903
    %4996 = vmatpush.msra.mxu0 %v4899
    %4997 = vmatpush.msra.mxu0 %v4895
    %4998 = vmatpush.msra.mxu0 %v4891
    %4999 = vmatpush.msra.mxu0 %v4887
    %5000 = vmatpush.msra.mxu0 %v4883
    %5001 = vmatmul.f32.gmra.mxu0 %v4708
    %v5002 = vpop.f32.mrf.mxu0
    %v5003 = vadd.f32 0.0, %v5002
    %5004 = vdwg.mxu0
    %5005 = vmatpush.msra.mxu0 %v4944
    %5006 = vmatpush.msra.mxu0 %v4940
    %5007 = vmatpush.msra.mxu0 %v4936
    %5008 = vmatpush.msra.mxu0 %v4932
    %5009 = vmatpush.msra.mxu0 %v4928
    %5010 = vmatpush.msra.mxu0 %v4924
    %5011 = vmatpush.msra.mxu0 %v4920
    %5012 = vmatpush.msra.mxu0 %v4916
    %5013 = vmatpush.msra.mxu0 %v4912
    %5014 = vmatpush.msra.mxu0 %v4908
    %5015 = vmatpush.msra.mxu0 %v4904
    %5016 = vmatpush.msra.mxu0 %v4900
    %5017 = vmatpush.msra.mxu0 %v4896
    %5018 = vmatpush.msra.mxu0 %v4892
    %5019 = vmatpush.msra.mxu0 %v4888
    %5020 = vmatpush.msra.mxu0 %v4884
    %5021 = vmatmul.f32.gmra.mxu0 %v4708
    %v5022 = vpop.f32.mrf.mxu0
    %v5023 = vadd.f32 0.0, %v5022
    %5024 = vdwg.mxu0
    %v5025 = vadd.f32 %v4819, %v4963
    %v5026 = vadd.f32 %v4839, %v4983
    %v5027 = vadd.f32 %v4859, %v5003
    %v5028 = vadd.f32 %v4879, %v5023
    %v5029 = vxor.u32 %v5025, 2147483648
    %v5030 = vmul.f32 %v5029, 1.442695
    %v5031 = vpow.pop %v5030
    %v5032 = vadd.f32 %v5031, 1.0
    %v5033 = vrcp.pop %v5032
    %v5034 = vmul.f32 %v5032, %v5033
    %v5035 = vsub.f32 1.0, %v5034
    %v5036 = vmul.f32 %v5033, %v5035
    %v5037 = vadd.f32 %v5033, %v5036
    %vm5038 = vweird.f32 %v5032
    %vm5039 = vweird.f32 %v5033
    %vm5040 = vmor %vm5038, %vm5039
    %v5041 = vsel %vm5040, %v5033, %v5037
    %v5042 = vand.u32 2147483647, %v5032
    %vm5043 = vcmp.eq.f32.partialorder %v5042, 8.507059e+37
    %v5044 = vand.u32 %v5032, 2147483648
    %v5045 = vor.u32 1.1754944e-38, %v5044
    %v5046 = vsel %vm5043, %v5045, %v5041
    %v5047 = vmul.f32 1.0, %v5046
    %v5048 = vxor.u32 %v5026, 2147483648
    %v5049 = vmul.f32 %v5048, 1.442695
    %v5050 = vpow.pop %v5049
    %v5051 = vadd.f32 %v5050, 1.0
    %v5052 = vrcp.pop %v5051
    %v5053 = vmul.f32 %v5051, %v5052
    %v5054 = vsub.f32 1.0, %v5053
    %v5055 = vmul.f32 %v5052, %v5054
    %v5056 = vadd.f32 %v5052, %v5055
    %vm5057 = vweird.f32 %v5051
    %vm5058 = vweird.f32 %v5052
    %vm5059 = vmor %vm5057, %vm5058
    %v5060 = vsel %vm5059, %v5052, %v5056
    %v5061 = vand.u32 2147483647, %v5051
    %vm5062 = vcmp.eq.f32.partialorder %v5061, 8.507059e+37
    %v5063 = vand.u32 %v5051, 2147483648
    %v5064 = vor.u32 1.1754944e-38, %v5063
    %v5065 = vsel %vm5062, %v5064, %v5060
    %v5066 = vmul.f32 1.0, %v5065
    %v5067 = vtanh.pop %v5027
    %v5068 = vxor.u32 %v5028, 2147483648
    %v5069 = vmul.f32 %v5068, 1.442695
    %v5070 = vpow.pop %v5069
    %v5071 = vadd.f32 %v5070, 1.0
    %v5072 = vrcp.pop %v5071
    %v5073 = vmul.f32 %v5071, %v5072
    %v5074 = vsub.f32 1.0, %v5073
    %v5075 = vmul.f32 %v5072, %v5074
    %v5076 = vadd.f32 %v5072, %v5075
    %vm5077 = vweird.f32 %v5071
    %vm5078 = vweird.f32 %v5072
    %vm5079 = vmor %vm5077, %vm5078
    %v5080 = vsel %vm5079, %v5072, %v5076
    %v5081 = vand.u32 2147483647, %v5071
    %vm5082 = vcmp.eq.f32.partialorder %v5081, 8.507059e+37
    %v5083 = vand.u32 %v5071, 2147483648
    %v5084 = vor.u32 1.1754944e-38, %v5083
    %v5085 = vsel %vm5082, %v5084, %v5080
    %v5086 = vmul.f32 1.0, %v5085
    %v5087 = vmul.f32 %v5066, %v4709
    %v5088 = vmul.f32 %v5047, %v5067
    %v5089 = vadd.f32 %v5087, %v5088
    %v5090 = vtanh.pop %v5089
    %v5091 = vmul.f32 %v5086, %v5090
    %5092 = vst [vmem:[%s949] sm:$0xff] %v5091
    %5093 = vst [vmem:[%s951] sm:$0xff] %v5089
    %v5095 = vrot.slane %v5091, 1
    %v5096 = vrot.slane %v5091, 2
    %v5097 = vrot.slane %v5091, 3
    %v5098 = vrot.slane %v5091, 4
    %v5099 = vrot.slane %v5091, 5
    %v5100 = vrot.slane %v5091, 6
    %v5101 = vrot.slane %v5091, 7
    %5109 = vst [vmem:[#allocation12 + $0x3] sm:$0x1] %v5091
    %5110 = vst [vmem:[#allocation12 + $0xb] sm:$0x1] %v5095
    %5111 = vst [vmem:[#allocation12 + $0x13] sm:$0x1] %v5096
    %5112 = vst [vmem:[#allocation12 + $0x1b] sm:$0x1] %v5097
    %5113 = vst [vmem:[#allocation12 + $0x23] sm:$0x1] %v5098
    %5114 = vst [vmem:[#allocation12 + $0x2b] sm:$0x1] %v5099
    %5115 = vst [vmem:[#allocation12 + $0x33] sm:$0x1] %v5100
    %5116 = vst [vmem:[#allocation12 + $0x3b] sm:$0x1] %v5101
    %s5117 = scalar_lea.vmem [#allocation4], 4
    %v5118 = vld [vmem:[%s5117] ss:$8 sm:$0xf]
    %s5119 = scalar_lea.vmem [#allocation4], 36
    %v5120 = vld [vmem:[%s5119] ss:$8 sm:$0xf]
    %s5121 = scalar_lea.vmem [#allocation4], 68
    %v5122 = vld [vmem:[%s5121] ss:$8 sm:$0xf]
    %s5123 = scalar_lea.vmem [#allocation4], 100
    %v5124 = vld [vmem:[%s5123] ss:$8 sm:$0xf]
    %s5125 = scalar_lea.vmem [#allocation4], 132
    %v5126 = vld [vmem:[%s5125] ss:$8 sm:$0xf]
    %s5127 = scalar_lea.vmem [#allocation4], 164
    %v5128 = vld [vmem:[%s5127] ss:$8 sm:$0xf]
    %s5129 = scalar_lea.vmem [#allocation4], 196
    %v5130 = vld [vmem:[%s5129] ss:$8 sm:$0xf]
    %s5131 = scalar_lea.vmem [#allocation4], 228
    %v5132 = vld [vmem:[%s5131] ss:$8 sm:$0xf]
    %v5133 = vld [vmem:[#allocation2] sm:$0xff]
    %v5134 = vld [vmem:[#allocation3] sm:$0xff]
    %v5135 = vld [vmem:[#allocation7] sm:$0xff]
    %v5136 = vld [vmem:[#allocation7 + $0x8] sm:$0xff]
    %v5137 = vld [vmem:[#allocation7 + $0x10] sm:$0xff]
    %v5138 = vld [vmem:[#allocation7 + $0x18] sm:$0xff]
    %v5139 = vld [vmem:[#allocation7 + $0x20] sm:$0xff]
    %v5140 = vld [vmem:[#allocation7 + $0x28] sm:$0xff]
    %v5141 = vld [vmem:[#allocation7 + $0x30] sm:$0xff]
    %v5142 = vld [vmem:[#allocation7 + $0x38] sm:$0xff]
    %v5143 = vld [vmem:[#allocation7 + $0x40] sm:$0xff]
    %v5144 = vld [vmem:[#allocation7 + $0x48] sm:$0xff]
    %v5145 = vld [vmem:[#allocation7 + $0x50] sm:$0xff]
    %v5146 = vld [vmem:[#allocation7 + $0x58] sm:$0xff]
    %v5147 = vld [vmem:[#allocation7 + $0x60] sm:$0xff]
    %v5148 = vld [vmem:[#allocation7 + $0x68] sm:$0xff]
    %v5149 = vld [vmem:[#allocation7 + $0x70] sm:$0xff]
    %v5150 = vld [vmem:[#allocation7 + $0x78] sm:$0xff]
    %v5151 = vld [vmem:[#allocation7 + $0x80] sm:$0xff]
    %v5152 = vld [vmem:[#allocation7 + $0x88] sm:$0xff]
    %v5153 = vld [vmem:[#allocation7 + $0x90] sm:$0xff]
    %v5154 = vld [vmem:[#allocation7 + $0x98] sm:$0xff]
    %v5155 = vld [vmem:[#allocation7 + $0xa0] sm:$0xff]
    %v5156 = vld [vmem:[#allocation7 + $0xa8] sm:$0xff]
    %v5157 = vld [vmem:[#allocation7 + $0xb0] sm:$0xff]
    %v5158 = vld [vmem:[#allocation7 + $0xb8] sm:$0xff]
    %v5159 = vld [vmem:[#allocation7 + $0xc0] sm:$0xff]
    %v5160 = vld [vmem:[#allocation7 + $0xc8] sm:$0xff]
    %v5161 = vld [vmem:[#allocation7 + $0xd0] sm:$0xff]
    %v5162 = vld [vmem:[#allocation7 + $0xd8] sm:$0xff]
    %v5163 = vld [vmem:[#allocation7 + $0xe0] sm:$0xff]
    %v5164 = vld [vmem:[#allocation7 + $0xe8] sm:$0xff]
    %v5165 = vld [vmem:[#allocation7 + $0xf0] sm:$0xff]
    %v5166 = vld [vmem:[#allocation7 + $0xf8] sm:$0xff]
    %v5167 = vld [vmem:[#allocation7 + $0x100] sm:$0xff]
    %v5168 = vld [vmem:[#allocation7 + $0x108] sm:$0xff]
    %v5169 = vld [vmem:[#allocation7 + $0x110] sm:$0xff]
    %v5170 = vld [vmem:[#allocation7 + $0x118] sm:$0xff]
    %v5171 = vld [vmem:[#allocation7 + $0x120] sm:$0xff]
    %v5172 = vld [vmem:[#allocation7 + $0x128] sm:$0xff]
    %v5173 = vld [vmem:[#allocation7 + $0x130] sm:$0xff]
    %v5174 = vld [vmem:[#allocation7 + $0x138] sm:$0xff]
    %v5175 = vld [vmem:[#allocation7 + $0x140] sm:$0xff]
    %v5176 = vld [vmem:[#allocation7 + $0x148] sm:$0xff]
    %v5177 = vld [vmem:[#allocation7 + $0x150] sm:$0xff]
    %v5178 = vld [vmem:[#allocation7 + $0x158] sm:$0xff]
    %v5179 = vld [vmem:[#allocation7 + $0x160] sm:$0xff]
    %v5180 = vld [vmem:[#allocation7 + $0x168] sm:$0xff]
    %v5181 = vld [vmem:[#allocation7 + $0x170] sm:$0xff]
    %v5182 = vld [vmem:[#allocation7 + $0x178] sm:$0xff]
    %v5183 = vld [vmem:[#allocation7 + $0x180] sm:$0xff]
    %v5184 = vld [vmem:[#allocation7 + $0x188] sm:$0xff]
    %v5185 = vld [vmem:[#allocation7 + $0x190] sm:$0xff]
    %v5186 = vld [vmem:[#allocation7 + $0x198] sm:$0xff]
    %v5187 = vld [vmem:[#allocation7 + $0x1a0] sm:$0xff]
    %v5188 = vld [vmem:[#allocation7 + $0x1a8] sm:$0xff]
    %v5189 = vld [vmem:[#allocation7 + $0x1b0] sm:$0xff]
    %v5190 = vld [vmem:[#allocation7 + $0x1b8] sm:$0xff]
    %v5191 = vld [vmem:[#allocation7 + $0x1c0] sm:$0xff]
    %v5192 = vld [vmem:[#allocation7 + $0x1c8] sm:$0xff]
    %v5193 = vld [vmem:[#allocation7 + $0x1d0] sm:$0xff]
    %v5194 = vld [vmem:[#allocation7 + $0x1d8] sm:$0xff]
    %v5195 = vld [vmem:[#allocation7 + $0x1e0] sm:$0xff]
    %v5196 = vld [vmem:[#allocation7 + $0x1e8] sm:$0xff]
    %v5197 = vld [vmem:[#allocation7 + $0x1f0] sm:$0xff]
    %v5198 = vld [vmem:[#allocation7 + $0x1f8] sm:$0xff]
    %5199 = vmatpush.msra.mxu0 %v5195
    %5200 = vmatpush.msra.mxu0 %v5191
    %5201 = vmatpush.msra.mxu0 %v5187
    %5202 = vmatpush.msra.mxu0 %v5183
    %5203 = vmatpush.msra.mxu0 %v5179
    %5204 = vmatpush.msra.mxu0 %v5175
    %5205 = vmatpush.msra.mxu0 %v5171
    %5206 = vmatpush.msra.mxu0 %v5167
    %5207 = vmatpush.msra.mxu0 %v5163
    %5208 = vmatpush.msra.mxu0 %v5159
    %5209 = vmatpush.msra.mxu0 %v5155
    %5210 = vmatpush.msra.mxu0 %v5151
    %5211 = vmatpush.msra.mxu0 %v5147
    %5212 = vmatpush.msra.mxu0 %v5143
    %5213 = vmatpush.msra.mxu0 %v5139
    %5214 = vmatpush.msra.mxu0 %v5135
    %5215 = vmatmul.f32.gmra.mxu0 %v5133
    %v5216 = vpop.f32.mrf.mxu0
    %v5217 = vadd.f32 0.0, %v5216
    %5218 = vdwg.mxu0
    %5219 = vmatpush.msra.mxu0 %v5196
    %5220 = vmatpush.msra.mxu0 %v5192
    %5221 = vmatpush.msra.mxu0 %v5188
    %5222 = vmatpush.msra.mxu0 %v5184
    %5223 = vmatpush.msra.mxu0 %v5180
    %5224 = vmatpush.msra.mxu0 %v5176
    %5225 = vmatpush.msra.mxu0 %v5172
    %5226 = vmatpush.msra.mxu0 %v5168
    %5227 = vmatpush.msra.mxu0 %v5164
    %5228 = vmatpush.msra.mxu0 %v5160
    %5229 = vmatpush.msra.mxu0 %v5156
    %5230 = vmatpush.msra.mxu0 %v5152
    %5231 = vmatpush.msra.mxu0 %v5148
    %5232 = vmatpush.msra.mxu0 %v5144
    %5233 = vmatpush.msra.mxu0 %v5140
    %5234 = vmatpush.msra.mxu0 %v5136
    %5235 = vmatmul.f32.gmra.mxu0 %v5133
    %v5236 = vpop.f32.mrf.mxu0
    %v5237 = vadd.f32 0.0, %v5236
    %5238 = vdwg.mxu0
    %5239 = vmatpush.msra.mxu0 %v5197
    %5240 = vmatpush.msra.mxu0 %v5193
    %5241 = vmatpush.msra.mxu0 %v5189
    %5242 = vmatpush.msra.mxu0 %v5185
    %5243 = vmatpush.msra.mxu0 %v5181
    %5244 = vmatpush.msra.mxu0 %v5177
    %5245 = vmatpush.msra.mxu0 %v5173
    %5246 = vmatpush.msra.mxu0 %v5169
    %5247 = vmatpush.msra.mxu0 %v5165
    %5248 = vmatpush.msra.mxu0 %v5161
    %5249 = vmatpush.msra.mxu0 %v5157
    %5250 = vmatpush.msra.mxu0 %v5153
    %5251 = vmatpush.msra.mxu0 %v5149
    %5252 = vmatpush.msra.mxu0 %v5145
    %5253 = vmatpush.msra.mxu0 %v5141
    %5254 = vmatpush.msra.mxu0 %v5137
    %5255 = vmatmul.f32.gmra.mxu0 %v5133
    %v5256 = vpop.f32.mrf.mxu0
    %v5257 = vadd.f32 0.0, %v5256
    %5258 = vdwg.mxu0
    %5259 = vmatpush.msra.mxu0 %v5198
    %5260 = vmatpush.msra.mxu0 %v5194
    %5261 = vmatpush.msra.mxu0 %v5190
    %5262 = vmatpush.msra.mxu0 %v5186
    %5263 = vmatpush.msra.mxu0 %v5182
    %5264 = vmatpush.msra.mxu0 %v5178
    %5265 = vmatpush.msra.mxu0 %v5174
    %5266 = vmatpush.msra.mxu0 %v5170
    %5267 = vmatpush.msra.mxu0 %v5166
    %5268 = vmatpush.msra.mxu0 %v5162
    %5269 = vmatpush.msra.mxu0 %v5158
    %5270 = vmatpush.msra.mxu0 %v5154
    %5271 = vmatpush.msra.mxu0 %v5150
    %5272 = vmatpush.msra.mxu0 %v5146
    %5273 = vmatpush.msra.mxu0 %v5142
    %5274 = vmatpush.msra.mxu0 %v5138
    %5275 = vmatmul.f32.gmra.mxu0 %v5133
    %v5276 = vpop.f32.mrf.mxu0
    %v5277 = vadd.f32 0.0, %v5276
    %5278 = vdwg.mxu0
    %v5283 = vrot.slane %v5237, 7
    %v5284 = vrot.slane %v5257, 6
    %v5285 = vrot.slane %v5277, 5
    %v5286 = vsel %vm259, %v5217, %v5283
    %v5287 = vsel %vm261, %v5284, %v5285
    %v5288 = vsel %vm263, %v5286, %v5287
    %v5289 = vsel %vm265, %v5217, %v5283
    %v5290 = vsel %vm267, %v5284, %v5285
    %v5291 = vsel %vm269, %v5289, %v5290
    %v5292 = vrot.slane %v5291, 1
    %v5293 = vsel %vm261, %v5217, %v5283
    %v5294 = vsel %vm273, %v5284, %v5285
    %v5295 = vsel %vm275, %v5293, %v5294
    %v5296 = vrot.slane %v5295, 2
    %v5297 = vsel %vm267, %v5217, %v5283
    %v5298 = vsel %vm279, %v5284, %v5285
    %v5299 = vsel %vm281, %v5297, %v5298
    %v5300 = vrot.slane %v5299, 3
    %v5301 = vsel %vm273, %v5217, %v5283
    %v5302 = vsel %vm285, %v5284, %v5285
    %v5303 = vsel %vm287, %v5301, %v5302
    %v5304 = vrot.slane %v5303, 4
    %v5305 = vsel %vm279, %v5217, %v5283
    %v5306 = vsel %vm291, %v5285, %v5284
    %v5307 = vsel %vm293, %v5305, %v5306
    %v5308 = vrot.slane %v5307, 5
    %v5309 = vsel %vm285, %v5217, %v5283
    %v5310 = vsel %vm259, %v5284, %v5285
    %v5311 = vsel %vm298, %v5310, %v5309
    %v5312 = vrot.slane %v5311, 6
    %v5313 = vsel %vm291, %v5283, %v5217
    %v5314 = vsel %vm265, %v5284, %v5285
    %v5315 = vsel %vm303, %v5314, %v5313
    %v5316 = vrot.slane %v5315, 7
    %v5325 = vadd.f32 %v5118, %v5288
    %v5326 = vadd.f32 %v5120, %v5292
    %v5327 = vadd.f32 %v5122, %v5296
    %v5328 = vadd.f32 %v5124, %v5300
    %v5329 = vadd.f32 %v5126, %v5304
    %v5330 = vadd.f32 %v5128, %v5308
    %v5331 = vadd.f32 %v5130, %v5312
    %v5332 = vadd.f32 %v5132, %v5316
    %v5333 = vxor.u32 %v5325, 2147483648
    %v5334 = vxor.u32 %v5326, 2147483648
    %v5335 = vxor.u32 %v5327, 2147483648
    %v5336 = vxor.u32 %v5328, 2147483648
    %v5337 = vxor.u32 %v5329, 2147483648
    %v5338 = vxor.u32 %v5330, 2147483648
    %v5339 = vxor.u32 %v5331, 2147483648
    %v5340 = vxor.u32 %v5332, 2147483648
    %v5341 = vmul.f32 %v5333, 1.442695
    %v5342 = vpow.pop %v5341
    %v5343 = vmul.f32 %v5334, 1.442695
    %v5344 = vpow.pop %v5343
    %v5345 = vmul.f32 %v5335, 1.442695
    %v5346 = vpow.pop %v5345
    %v5347 = vmul.f32 %v5336, 1.442695
    %v5348 = vpow.pop %v5347
    %v5349 = vmul.f32 %v5337, 1.442695
    %v5350 = vpow.pop %v5349
    %v5351 = vmul.f32 %v5338, 1.442695
    %v5352 = vpow.pop %v5351
    %v5353 = vmul.f32 %v5339, 1.442695
    %v5354 = vpow.pop %v5353
    %v5355 = vmul.f32 %v5340, 1.442695
    %v5356 = vpow.pop %v5355
    %v5357 = vadd.f32 %v5342, 1.0
    %v5358 = vadd.f32 %v5344, 1.0
    %v5359 = vadd.f32 %v5346, 1.0
    %v5360 = vadd.f32 %v5348, 1.0
    %v5361 = vadd.f32 %v5350, 1.0
    %v5362 = vadd.f32 %v5352, 1.0
    %v5363 = vadd.f32 %v5354, 1.0
    %v5364 = vadd.f32 %v5356, 1.0
    %v5365 = vrcp.pop %v5357
    %v5366 = vmul.f32 %v5357, %v5365
    %v5367 = vsub.f32 1.0, %v5366
    %v5368 = vmul.f32 %v5365, %v5367
    %v5369 = vadd.f32 %v5365, %v5368
    %vm5370 = vweird.f32 %v5357
    %vm5371 = vweird.f32 %v5365
    %vm5372 = vmor %vm5370, %vm5371
    %v5373 = vsel %vm5372, %v5365, %v5369
    %v5374 = vand.u32 2147483647, %v5357
    %vm5375 = vcmp.eq.f32.partialorder %v5374, 8.507059e+37
    %v5376 = vand.u32 %v5357, 2147483648
    %v5377 = vor.u32 1.1754944e-38, %v5376
    %v5378 = vsel %vm5375, %v5377, %v5373
    %v5379 = vmul.f32 1.0, %v5378
    %v5380 = vrcp.pop %v5358
    %v5381 = vmul.f32 %v5358, %v5380
    %v5382 = vsub.f32 1.0, %v5381
    %v5383 = vmul.f32 %v5380, %v5382
    %v5384 = vadd.f32 %v5380, %v5383
    %vm5385 = vweird.f32 %v5358
    %vm5386 = vweird.f32 %v5380
    %vm5387 = vmor %vm5385, %vm5386
    %v5388 = vsel %vm5387, %v5380, %v5384
    %v5389 = vand.u32 2147483647, %v5358
    %vm5390 = vcmp.eq.f32.partialorder %v5389, 8.507059e+37
    %v5391 = vand.u32 %v5358, 2147483648
    %v5392 = vor.u32 1.1754944e-38, %v5391
    %v5393 = vsel %vm5390, %v5392, %v5388
    %v5394 = vmul.f32 1.0, %v5393
    %v5395 = vrcp.pop %v5359
    %v5396 = vmul.f32 %v5359, %v5395
    %v5397 = vsub.f32 1.0, %v5396
    %v5398 = vmul.f32 %v5395, %v5397
    %v5399 = vadd.f32 %v5395, %v5398
    %vm5400 = vweird.f32 %v5359
    %vm5401 = vweird.f32 %v5395
    %vm5402 = vmor %vm5400, %vm5401
    %v5403 = vsel %vm5402, %v5395, %v5399
    %v5404 = vand.u32 2147483647, %v5359
    %vm5405 = vcmp.eq.f32.partialorder %v5404, 8.507059e+37
    %v5406 = vand.u32 %v5359, 2147483648
    %v5407 = vor.u32 1.1754944e-38, %v5406
    %v5408 = vsel %vm5405, %v5407, %v5403
    %v5409 = vmul.f32 1.0, %v5408
    %v5410 = vrcp.pop %v5360
    %v5411 = vmul.f32 %v5360, %v5410
    %v5412 = vsub.f32 1.0, %v5411
    %v5413 = vmul.f32 %v5410, %v5412
    %v5414 = vadd.f32 %v5410, %v5413
    %vm5415 = vweird.f32 %v5360
    %vm5416 = vweird.f32 %v5410
    %vm5417 = vmor %vm5415, %vm5416
    %v5418 = vsel %vm5417, %v5410, %v5414
    %v5419 = vand.u32 2147483647, %v5360
    %vm5420 = vcmp.eq.f32.partialorder %v5419, 8.507059e+37
    %v5421 = vand.u32 %v5360, 2147483648
    %v5422 = vor.u32 1.1754944e-38, %v5421
    %v5423 = vsel %vm5420, %v5422, %v5418
    %v5424 = vmul.f32 1.0, %v5423
    %v5425 = vrcp.pop %v5361
    %v5426 = vmul.f32 %v5361, %v5425
    %v5427 = vsub.f32 1.0, %v5426
    %v5428 = vmul.f32 %v5425, %v5427
    %v5429 = vadd.f32 %v5425, %v5428
    %vm5430 = vweird.f32 %v5361
    %vm5431 = vweird.f32 %v5425
    %vm5432 = vmor %vm5430, %vm5431
    %v5433 = vsel %vm5432, %v5425, %v5429
    %v5434 = vand.u32 2147483647, %v5361
    %vm5435 = vcmp.eq.f32.partialorder %v5434, 8.507059e+37
    %v5436 = vand.u32 %v5361, 2147483648
    %v5437 = vor.u32 1.1754944e-38, %v5436
    %v5438 = vsel %vm5435, %v5437, %v5433
    %v5439 = vmul.f32 1.0, %v5438
    %v5440 = vrcp.pop %v5362
    %v5441 = vmul.f32 %v5362, %v5440
    %v5442 = vsub.f32 1.0, %v5441
    %v5443 = vmul.f32 %v5440, %v5442
    %v5444 = vadd.f32 %v5440, %v5443
    %vm5445 = vweird.f32 %v5362
    %vm5446 = vweird.f32 %v5440
    %vm5447 = vmor %vm5445, %vm5446
    %v5448 = vsel %vm5447, %v5440, %v5444
    %v5449 = vand.u32 2147483647, %v5362
    %vm5450 = vcmp.eq.f32.partialorder %v5449, 8.507059e+37
    %v5451 = vand.u32 %v5362, 2147483648
    %v5452 = vor.u32 1.1754944e-38, %v5451
    %v5453 = vsel %vm5450, %v5452, %v5448
    %v5454 = vmul.f32 1.0, %v5453
    %v5455 = vrcp.pop %v5363
    %v5456 = vmul.f32 %v5363, %v5455
    %v5457 = vsub.f32 1.0, %v5456
    %v5458 = vmul.f32 %v5455, %v5457
    %v5459 = vadd.f32 %v5455, %v5458
    %vm5460 = vweird.f32 %v5363
    %vm5461 = vweird.f32 %v5455
    %vm5462 = vmor %vm5460, %vm5461
    %v5463 = vsel %vm5462, %v5455, %v5459
    %v5464 = vand.u32 2147483647, %v5363
    %vm5465 = vcmp.eq.f32.partialorder %v5464, 8.507059e+37
    %v5466 = vand.u32 %v5363, 2147483648
    %v5467 = vor.u32 1.1754944e-38, %v5466
    %v5468 = vsel %vm5465, %v5467, %v5463
    %v5469 = vmul.f32 1.0, %v5468
    %v5470 = vrcp.pop %v5364
    %v5471 = vmul.f32 %v5364, %v5470
    %v5472 = vsub.f32 1.0, %v5471
    %v5473 = vmul.f32 %v5470, %v5472
    %v5474 = vadd.f32 %v5470, %v5473
    %vm5475 = vweird.f32 %v5364
    %vm5476 = vweird.f32 %v5470
    %vm5477 = vmor %vm5475, %vm5476
    %v5478 = vsel %vm5477, %v5470, %v5474
    %v5479 = vand.u32 2147483647, %v5364
    %vm5480 = vcmp.eq.f32.partialorder %v5479, 8.507059e+37
    %v5481 = vand.u32 %v5364, 2147483648
    %v5482 = vor.u32 1.1754944e-38, %v5481
    %v5483 = vsel %vm5480, %v5482, %v5478
    %v5484 = vmul.f32 1.0, %v5483
    %v5493 = vrot.slane %v5325, 1
    %v5494 = vrot.slane %v5326, 1
    %v5495 = vrot.slane %v5327, 1
    %v5496 = vrot.slane %v5328, 1
    %v5497 = vrot.slane %v5329, 1
    %v5498 = vrot.slane %v5330, 1
    %v5499 = vrot.slane %v5331, 1
    %v5500 = vrot.slane %v5332, 1
    %v5509 = vxor.u32 %v5493, 2147483648
    %v5510 = vxor.u32 %v5494, 2147483648
    %v5511 = vxor.u32 %v5495, 2147483648
    %v5512 = vxor.u32 %v5496, 2147483648
    %v5513 = vxor.u32 %v5497, 2147483648
    %v5514 = vxor.u32 %v5498, 2147483648
    %v5515 = vxor.u32 %v5499, 2147483648
    %v5516 = vxor.u32 %v5500, 2147483648
    %v5517 = vmul.f32 %v5509, 1.442695
    %v5518 = vpow.pop %v5517
    %v5519 = vmul.f32 %v5510, 1.442695
    %v5520 = vpow.pop %v5519
    %v5521 = vmul.f32 %v5511, 1.442695
    %v5522 = vpow.pop %v5521
    %v5523 = vmul.f32 %v5512, 1.442695
    %v5524 = vpow.pop %v5523
    %v5525 = vmul.f32 %v5513, 1.442695
    %v5526 = vpow.pop %v5525
    %v5527 = vmul.f32 %v5514, 1.442695
    %v5528 = vpow.pop %v5527
    %v5529 = vmul.f32 %v5515, 1.442695
    %v5530 = vpow.pop %v5529
    %v5531 = vmul.f32 %v5516, 1.442695
    %v5532 = vpow.pop %v5531
    %v5533 = vadd.f32 %v5518, 1.0
    %v5534 = vadd.f32 %v5520, 1.0
    %v5535 = vadd.f32 %v5522, 1.0
    %v5536 = vadd.f32 %v5524, 1.0
    %v5537 = vadd.f32 %v5526, 1.0
    %v5538 = vadd.f32 %v5528, 1.0
    %v5539 = vadd.f32 %v5530, 1.0
    %v5540 = vadd.f32 %v5532, 1.0
    %v5541 = vrcp.pop %v5533
    %v5542 = vmul.f32 %v5533, %v5541
    %v5543 = vsub.f32 1.0, %v5542
    %v5544 = vmul.f32 %v5541, %v5543
    %v5545 = vadd.f32 %v5541, %v5544
    %vm5546 = vweird.f32 %v5533
    %vm5547 = vweird.f32 %v5541
    %vm5548 = vmor %vm5546, %vm5547
    %v5549 = vsel %vm5548, %v5541, %v5545
    %v5550 = vand.u32 2147483647, %v5533
    %vm5551 = vcmp.eq.f32.partialorder %v5550, 8.507059e+37
    %v5552 = vand.u32 %v5533, 2147483648
    %v5553 = vor.u32 1.1754944e-38, %v5552
    %v5554 = vsel %vm5551, %v5553, %v5549
    %v5555 = vmul.f32 1.0, %v5554
    %v5556 = vrcp.pop %v5534
    %v5557 = vmul.f32 %v5534, %v5556
    %v5558 = vsub.f32 1.0, %v5557
    %v5559 = vmul.f32 %v5556, %v5558
    %v5560 = vadd.f32 %v5556, %v5559
    %vm5561 = vweird.f32 %v5534
    %vm5562 = vweird.f32 %v5556
    %vm5563 = vmor %vm5561, %vm5562
    %v5564 = vsel %vm5563, %v5556, %v5560
    %v5565 = vand.u32 2147483647, %v5534
    %vm5566 = vcmp.eq.f32.partialorder %v5565, 8.507059e+37
    %v5567 = vand.u32 %v5534, 2147483648
    %v5568 = vor.u32 1.1754944e-38, %v5567
    %v5569 = vsel %vm5566, %v5568, %v5564
    %v5570 = vmul.f32 1.0, %v5569
    %v5571 = vrcp.pop %v5535
    %v5572 = vmul.f32 %v5535, %v5571
    %v5573 = vsub.f32 1.0, %v5572
    %v5574 = vmul.f32 %v5571, %v5573
    %v5575 = vadd.f32 %v5571, %v5574
    %vm5576 = vweird.f32 %v5535
    %vm5577 = vweird.f32 %v5571
    %vm5578 = vmor %vm5576, %vm5577
    %v5579 = vsel %vm5578, %v5571, %v5575
    %v5580 = vand.u32 2147483647, %v5535
    %vm5581 = vcmp.eq.f32.partialorder %v5580, 8.507059e+37
    %v5582 = vand.u32 %v5535, 2147483648
    %v5583 = vor.u32 1.1754944e-38, %v5582
    %v5584 = vsel %vm5581, %v5583, %v5579
    %v5585 = vmul.f32 1.0, %v5584
    %v5586 = vrcp.pop %v5536
    %v5587 = vmul.f32 %v5536, %v5586
    %v5588 = vsub.f32 1.0, %v5587
    %v5589 = vmul.f32 %v5586, %v5588
    %v5590 = vadd.f32 %v5586, %v5589
    %vm5591 = vweird.f32 %v5536
    %vm5592 = vweird.f32 %v5586
    %vm5593 = vmor %vm5591, %vm5592
    %v5594 = vsel %vm5593, %v5586, %v5590
    %v5595 = vand.u32 2147483647, %v5536
    %vm5596 = vcmp.eq.f32.partialorder %v5595, 8.507059e+37
    %v5597 = vand.u32 %v5536, 2147483648
    %v5598 = vor.u32 1.1754944e-38, %v5597
    %v5599 = vsel %vm5596, %v5598, %v5594
    %v5600 = vmul.f32 1.0, %v5599
    %v5601 = vrcp.pop %v5537
    %v5602 = vmul.f32 %v5537, %v5601
    %v5603 = vsub.f32 1.0, %v5602
    %v5604 = vmul.f32 %v5601, %v5603
    %v5605 = vadd.f32 %v5601, %v5604
    %vm5606 = vweird.f32 %v5537
    %vm5607 = vweird.f32 %v5601
    %vm5608 = vmor %vm5606, %vm5607
    %v5609 = vsel %vm5608, %v5601, %v5605
    %v5610 = vand.u32 2147483647, %v5537
    %vm5611 = vcmp.eq.f32.partialorder %v5610, 8.507059e+37
    %v5612 = vand.u32 %v5537, 2147483648
    %v5613 = vor.u32 1.1754944e-38, %v5612
    %v5614 = vsel %vm5611, %v5613, %v5609
    %v5615 = vmul.f32 1.0, %v5614
    %v5616 = vrcp.pop %v5538
    %v5617 = vmul.f32 %v5538, %v5616
    %v5618 = vsub.f32 1.0, %v5617
    %v5619 = vmul.f32 %v5616, %v5618
    %v5620 = vadd.f32 %v5616, %v5619
    %vm5621 = vweird.f32 %v5538
    %vm5622 = vweird.f32 %v5616
    %vm5623 = vmor %vm5621, %vm5622
    %v5624 = vsel %vm5623, %v5616, %v5620
    %v5625 = vand.u32 2147483647, %v5538
    %vm5626 = vcmp.eq.f32.partialorder %v5625, 8.507059e+37
    %v5627 = vand.u32 %v5538, 2147483648
    %v5628 = vor.u32 1.1754944e-38, %v5627
    %v5629 = vsel %vm5626, %v5628, %v5624
    %v5630 = vmul.f32 1.0, %v5629
    %v5631 = vrcp.pop %v5539
    %v5632 = vmul.f32 %v5539, %v5631
    %v5633 = vsub.f32 1.0, %v5632
    %v5634 = vmul.f32 %v5631, %v5633
    %v5635 = vadd.f32 %v5631, %v5634
    %vm5636 = vweird.f32 %v5539
    %vm5637 = vweird.f32 %v5631
    %vm5638 = vmor %vm5636, %vm5637
    %v5639 = vsel %vm5638, %v5631, %v5635
    %v5640 = vand.u32 2147483647, %v5539
    %vm5641 = vcmp.eq.f32.partialorder %v5640, 8.507059e+37
    %v5642 = vand.u32 %v5539, 2147483648
    %v5643 = vor.u32 1.1754944e-38, %v5642
    %v5644 = vsel %vm5641, %v5643, %v5639
    %v5645 = vmul.f32 1.0, %v5644
    %v5646 = vrcp.pop %v5540
    %v5647 = vmul.f32 %v5540, %v5646
    %v5648 = vsub.f32 1.0, %v5647
    %v5649 = vmul.f32 %v5646, %v5648
    %v5650 = vadd.f32 %v5646, %v5649
    %vm5651 = vweird.f32 %v5540
    %vm5652 = vweird.f32 %v5646
    %vm5653 = vmor %vm5651, %vm5652
    %v5654 = vsel %vm5653, %v5646, %v5650
    %v5655 = vand.u32 2147483647, %v5540
    %vm5656 = vcmp.eq.f32.partialorder %v5655, 8.507059e+37
    %v5657 = vand.u32 %v5540, 2147483648
    %v5658 = vor.u32 1.1754944e-38, %v5657
    %v5659 = vsel %vm5656, %v5658, %v5654
    %v5660 = vmul.f32 1.0, %v5659
    %v5661 = vrot.slane %v5325, 2
    %v5662 = vrot.slane %v5326, 2
    %v5663 = vrot.slane %v5327, 2
    %v5664 = vrot.slane %v5328, 2
    %v5665 = vrot.slane %v5329, 2
    %v5666 = vrot.slane %v5330, 2
    %v5667 = vrot.slane %v5331, 2
    %v5668 = vrot.slane %v5332, 2
    %v5677 = vtanh.pop %v5661
    %v5678 = vtanh.pop %v5662
    %v5679 = vtanh.pop %v5663
    %v5680 = vtanh.pop %v5664
    %v5681 = vtanh.pop %v5665
    %v5682 = vtanh.pop %v5666
    %v5683 = vtanh.pop %v5667
    %v5684 = vtanh.pop %v5668
    %v5685 = vrot.slane %v5325, 3
    %v5686 = vrot.slane %v5326, 3
    %v5687 = vrot.slane %v5327, 3
    %v5688 = vrot.slane %v5328, 3
    %v5689 = vrot.slane %v5329, 3
    %v5690 = vrot.slane %v5330, 3
    %v5691 = vrot.slane %v5331, 3
    %v5692 = vrot.slane %v5332, 3
    %v5701 = vxor.u32 %v5685, 2147483648
    %v5702 = vxor.u32 %v5686, 2147483648
    %v5703 = vxor.u32 %v5687, 2147483648
    %v5704 = vxor.u32 %v5688, 2147483648
    %v5705 = vxor.u32 %v5689, 2147483648
    %v5706 = vxor.u32 %v5690, 2147483648
    %v5707 = vxor.u32 %v5691, 2147483648
    %v5708 = vxor.u32 %v5692, 2147483648
    %v5709 = vmul.f32 %v5701, 1.442695
    %v5710 = vpow.pop %v5709
    %v5711 = vmul.f32 %v5702, 1.442695
    %v5712 = vpow.pop %v5711
    %v5713 = vmul.f32 %v5703, 1.442695
    %v5714 = vpow.pop %v5713
    %v5715 = vmul.f32 %v5704, 1.442695
    %v5716 = vpow.pop %v5715
    %v5717 = vmul.f32 %v5705, 1.442695
    %v5718 = vpow.pop %v5717
    %v5719 = vmul.f32 %v5706, 1.442695
    %v5720 = vpow.pop %v5719
    %v5721 = vmul.f32 %v5707, 1.442695
    %v5722 = vpow.pop %v5721
    %v5723 = vmul.f32 %v5708, 1.442695
    %v5724 = vpow.pop %v5723
    %v5725 = vadd.f32 %v5710, 1.0
    %v5726 = vadd.f32 %v5712, 1.0
    %v5727 = vadd.f32 %v5714, 1.0
    %v5728 = vadd.f32 %v5716, 1.0
    %v5729 = vadd.f32 %v5718, 1.0
    %v5730 = vadd.f32 %v5720, 1.0
    %v5731 = vadd.f32 %v5722, 1.0
    %v5732 = vadd.f32 %v5724, 1.0
    %v5733 = vrcp.pop %v5725
    %v5734 = vmul.f32 %v5725, %v5733
    %v5735 = vsub.f32 1.0, %v5734
    %v5736 = vmul.f32 %v5733, %v5735
    %v5737 = vadd.f32 %v5733, %v5736
    %vm5738 = vweird.f32 %v5725
    %vm5739 = vweird.f32 %v5733
    %vm5740 = vmor %vm5738, %vm5739
    %v5741 = vsel %vm5740, %v5733, %v5737
    %v5742 = vand.u32 2147483647, %v5725
    %vm5743 = vcmp.eq.f32.partialorder %v5742, 8.507059e+37
    %v5744 = vand.u32 %v5725, 2147483648
    %v5745 = vor.u32 1.1754944e-38, %v5744
    %v5746 = vsel %vm5743, %v5745, %v5741
    %v5747 = vmul.f32 1.0, %v5746
    %v5748 = vrcp.pop %v5726
    %v5749 = vmul.f32 %v5726, %v5748
    %v5750 = vsub.f32 1.0, %v5749
    %v5751 = vmul.f32 %v5748, %v5750
    %v5752 = vadd.f32 %v5748, %v5751
    %vm5753 = vweird.f32 %v5726
    %vm5754 = vweird.f32 %v5748
    %vm5755 = vmor %vm5753, %vm5754
    %v5756 = vsel %vm5755, %v5748, %v5752
    %v5757 = vand.u32 2147483647, %v5726
    %vm5758 = vcmp.eq.f32.partialorder %v5757, 8.507059e+37
    %v5759 = vand.u32 %v5726, 2147483648
    %v5760 = vor.u32 1.1754944e-38, %v5759
    %v5761 = vsel %vm5758, %v5760, %v5756
    %v5762 = vmul.f32 1.0, %v5761
    %v5763 = vrcp.pop %v5727
    %v5764 = vmul.f32 %v5727, %v5763
    %v5765 = vsub.f32 1.0, %v5764
    %v5766 = vmul.f32 %v5763, %v5765
    %v5767 = vadd.f32 %v5763, %v5766
    %vm5768 = vweird.f32 %v5727
    %vm5769 = vweird.f32 %v5763
    %vm5770 = vmor %vm5768, %vm5769
    %v5771 = vsel %vm5770, %v5763, %v5767
    %v5772 = vand.u32 2147483647, %v5727
    %vm5773 = vcmp.eq.f32.partialorder %v5772, 8.507059e+37
    %v5774 = vand.u32 %v5727, 2147483648
    %v5775 = vor.u32 1.1754944e-38, %v5774
    %v5776 = vsel %vm5773, %v5775, %v5771
    %v5777 = vmul.f32 1.0, %v5776
    %v5778 = vrcp.pop %v5728
    %v5779 = vmul.f32 %v5728, %v5778
    %v5780 = vsub.f32 1.0, %v5779
    %v5781 = vmul.f32 %v5778, %v5780
    %v5782 = vadd.f32 %v5778, %v5781
    %vm5783 = vweird.f32 %v5728
    %vm5784 = vweird.f32 %v5778
    %vm5785 = vmor %vm5783, %vm5784
    %v5786 = vsel %vm5785, %v5778, %v5782
    %v5787 = vand.u32 2147483647, %v5728
    %vm5788 = vcmp.eq.f32.partialorder %v5787, 8.507059e+37
    %v5789 = vand.u32 %v5728, 2147483648
    %v5790 = vor.u32 1.1754944e-38, %v5789
    %v5791 = vsel %vm5788, %v5790, %v5786
    %v5792 = vmul.f32 1.0, %v5791
    %v5793 = vrcp.pop %v5729
    %v5794 = vmul.f32 %v5729, %v5793
    %v5795 = vsub.f32 1.0, %v5794
    %v5796 = vmul.f32 %v5793, %v5795
    %v5797 = vadd.f32 %v5793, %v5796
    %vm5798 = vweird.f32 %v5729
    %vm5799 = vweird.f32 %v5793
    %vm5800 = vmor %vm5798, %vm5799
    %v5801 = vsel %vm5800, %v5793, %v5797
    %v5802 = vand.u32 2147483647, %v5729
    %vm5803 = vcmp.eq.f32.partialorder %v5802, 8.507059e+37
    %v5804 = vand.u32 %v5729, 2147483648
    %v5805 = vor.u32 1.1754944e-38, %v5804
    %v5806 = vsel %vm5803, %v5805, %v5801
    %v5807 = vmul.f32 1.0, %v5806
    %v5808 = vrcp.pop %v5730
    %v5809 = vmul.f32 %v5730, %v5808
    %v5810 = vsub.f32 1.0, %v5809
    %v5811 = vmul.f32 %v5808, %v5810
    %v5812 = vadd.f32 %v5808, %v5811
    %vm5813 = vweird.f32 %v5730
    %vm5814 = vweird.f32 %v5808
    %vm5815 = vmor %vm5813, %vm5814
    %v5816 = vsel %vm5815, %v5808, %v5812
    %v5817 = vand.u32 2147483647, %v5730
    %vm5818 = vcmp.eq.f32.partialorder %v5817, 8.507059e+37
    %v5819 = vand.u32 %v5730, 2147483648
    %v5820 = vor.u32 1.1754944e-38, %v5819
    %v5821 = vsel %vm5818, %v5820, %v5816
    %v5822 = vmul.f32 1.0, %v5821
    %v5823 = vrcp.pop %v5731
    %v5824 = vmul.f32 %v5731, %v5823
    %v5825 = vsub.f32 1.0, %v5824
    %v5826 = vmul.f32 %v5823, %v5825
    %v5827 = vadd.f32 %v5823, %v5826
    %vm5828 = vweird.f32 %v5731
    %vm5829 = vweird.f32 %v5823
    %vm5830 = vmor %vm5828, %vm5829
    %v5831 = vsel %vm5830, %v5823, %v5827
    %v5832 = vand.u32 2147483647, %v5731
    %vm5833 = vcmp.eq.f32.partialorder %v5832, 8.507059e+37
    %v5834 = vand.u32 %v5731, 2147483648
    %v5835 = vor.u32 1.1754944e-38, %v5834
    %v5836 = vsel %vm5833, %v5835, %v5831
    %v5837 = vmul.f32 1.0, %v5836
    %v5838 = vrcp.pop %v5732
    %v5839 = vmul.f32 %v5732, %v5838
    %v5840 = vsub.f32 1.0, %v5839
    %v5841 = vmul.f32 %v5838, %v5840
    %v5842 = vadd.f32 %v5838, %v5841
    %vm5843 = vweird.f32 %v5732
    %vm5844 = vweird.f32 %v5838
    %vm5845 = vmor %vm5843, %vm5844
    %v5846 = vsel %vm5845, %v5838, %v5842
    %v5847 = vand.u32 2147483647, %v5732
    %vm5848 = vcmp.eq.f32.partialorder %v5847, 8.507059e+37
    %v5849 = vand.u32 %v5732, 2147483648
    %v5850 = vor.u32 1.1754944e-38, %v5849
    %v5851 = vsel %vm5848, %v5850, %v5846
    %v5852 = vmul.f32 1.0, %v5851
    %v5854 = vrot.slane %v5134, 1
    %v5855 = vrot.slane %v5134, 2
    %v5856 = vrot.slane %v5134, 3
    %v5857 = vrot.slane %v5134, 4
    %v5858 = vrot.slane %v5134, 5
    %v5859 = vrot.slane %v5134, 6
    %v5860 = vrot.slane %v5134, 7
    %v5868 = vmul.f32 %v5555, %v5134
    %v5869 = vmul.f32 %v5570, %v5854
    %v5870 = vmul.f32 %v5585, %v5855
    %v5871 = vmul.f32 %v5600, %v5856
    %v5872 = vmul.f32 %v5615, %v5857
    %v5873 = vmul.f32 %v5630, %v5858
    %v5874 = vmul.f32 %v5645, %v5859
    %v5875 = vmul.f32 %v5660, %v5860
    %v5876 = vmul.f32 %v5379, %v5677
    %v5877 = vmul.f32 %v5394, %v5678
    %v5878 = vmul.f32 %v5409, %v5679
    %v5879 = vmul.f32 %v5424, %v5680
    %v5880 = vmul.f32 %v5439, %v5681
    %v5881 = vmul.f32 %v5454, %v5682
    %v5882 = vmul.f32 %v5469, %v5683
    %v5883 = vmul.f32 %v5484, %v5684
    %v5884 = vadd.f32 %v5868, %v5876
    %v5885 = vadd.f32 %v5869, %v5877
    %v5886 = vadd.f32 %v5870, %v5878
    %v5887 = vadd.f32 %v5871, %v5879
    %v5888 = vadd.f32 %v5872, %v5880
    %v5889 = vadd.f32 %v5873, %v5881
    %v5890 = vadd.f32 %v5874, %v5882
    %v5891 = vadd.f32 %v5875, %v5883
    %v5892 = vtanh.pop %v5884
    %v5893 = vtanh.pop %v5885
    %v5894 = vtanh.pop %v5886
    %v5895 = vtanh.pop %v5887
    %v5896 = vtanh.pop %v5888
    %v5897 = vtanh.pop %v5889
    %v5898 = vtanh.pop %v5890
    %v5899 = vtanh.pop %v5891
    %v5900 = vmul.f32 %v5747, %v5892
    %v5901 = vmul.f32 %v5762, %v5893
    %v5902 = vmul.f32 %v5777, %v5894
    %v5903 = vmul.f32 %v5792, %v5895
    %v5904 = vmul.f32 %v5807, %v5896
    %v5905 = vmul.f32 %v5822, %v5897
    %v5906 = vmul.f32 %v5837, %v5898
    %v5907 = vmul.f32 %v5852, %v5899
    %5916 = vst [vmem:[#allocation1] ss:$9 sm:$0xff] %v5900
    %s5917 = scalar_lea.vmem [#allocation1], 1
    %5918 = vst [vmem:[%s5917] ss:$9 sm:$0xff] %v5901
    %s5919 = scalar_lea.vmem [#allocation1], 2
    %5920 = vst [vmem:[%s5919] ss:$9 sm:$0xff] %v5902
    %s5921 = scalar_lea.vmem [#allocation1], 3
    %5922 = vst [vmem:[%s5921] ss:$9 sm:$0xff] %v5903
    %s5923 = scalar_lea.vmem [#allocation1], 4
    %5924 = vst [vmem:[%s5923] ss:$9 sm:$0xff] %v5904
    %s5925 = scalar_lea.vmem [#allocation1], 5
    %5926 = vst [vmem:[%s5925] ss:$9 sm:$0xff] %v5905
    %s5927 = scalar_lea.vmem [#allocation1], 6
    %5928 = vst [vmem:[%s5927] ss:$9 sm:$0xff] %v5906
    %s5929 = scalar_lea.vmem [#allocation1], 7
    %5930 = vst [vmem:[%s5929] ss:$9 sm:$0xff] %v5907
    %v5931 = vld [vmem:[#allocation1] sm:$0xff]
    %5933 = vst [vmem:[#allocation2] sm:$0xff] %v5931
    %5942 = vst [vmem:[#allocation1] ss:$9 sm:$0xff] %v5884
    %s5943 = scalar_lea.vmem [#allocation1], 1
    %5944 = vst [vmem:[%s5943] ss:$9 sm:$0xff] %v5885
    %s5945 = scalar_lea.vmem [#allocation1], 2
    %5946 = vst [vmem:[%s5945] ss:$9 sm:$0xff] %v5886
    %s5947 = scalar_lea.vmem [#allocation1], 3
    %5948 = vst [vmem:[%s5947] ss:$9 sm:$0xff] %v5887
    %s5949 = scalar_lea.vmem [#allocation1], 4
    %5950 = vst [vmem:[%s5949] ss:$9 sm:$0xff] %v5888
    %s5951 = scalar_lea.vmem [#allocation1], 5
    %5952 = vst [vmem:[%s5951] ss:$9 sm:$0xff] %v5889
    %s5953 = scalar_lea.vmem [#allocation1], 6
    %5954 = vst [vmem:[%s5953] ss:$9 sm:$0xff] %v5890
    %s5955 = scalar_lea.vmem [#allocation1], 7
    %5956 = vst [vmem:[%s5955] ss:$9 sm:$0xff] %v5891
    %v5957 = vld [vmem:[#allocation1] sm:$0xff]
    %5959 = vst [vmem:[#allocation3] sm:$0xff] %v5957
    %v5960 = vld [vmem:[%s949] sm:$0xff]
    %v5961 = vld [vmem:[%s951] sm:$0xff]
    %v5962 = vld [vmem:[#allocation9] sm:$0xff]
    %v5963 = vld [vmem:[#allocation9 + $0x8] sm:$0xff]
    %v5964 = vld [vmem:[#allocation9 + $0x10] sm:$0xff]
    %v5965 = vld [vmem:[#allocation9 + $0x18] sm:$0xff]
    %v5966 = vld [vmem:[#allocation9 + $0x20] sm:$0xff]
    %v5967 = vld [vmem:[#allocation9 + $0x28] sm:$0xff]
    %v5968 = vld [vmem:[#allocation9 + $0x30] sm:$0xff]
    %v5969 = vld [vmem:[#allocation9 + $0x38] sm:$0xff]
    %v5970 = vld [vmem:[#allocation9 + $0x40] sm:$0xff]
    %v5971 = vld [vmem:[#allocation9 + $0x48] sm:$0xff]
    %v5972 = vld [vmem:[#allocation9 + $0x50] sm:$0xff]
    %v5973 = vld [vmem:[#allocation9 + $0x58] sm:$0xff]
    %v5974 = vld [vmem:[#allocation9 + $0x60] sm:$0xff]
    %v5975 = vld [vmem:[#allocation9 + $0x68] sm:$0xff]
    %v5976 = vld [vmem:[#allocation9 + $0x70] sm:$0xff]
    %v5977 = vld [vmem:[#allocation9 + $0x78] sm:$0xff]
    %v5978 = vld [vmem:[#allocation9 + $0x80] sm:$0xff]
    %v5979 = vld [vmem:[#allocation9 + $0x88] sm:$0xff]
    %v5980 = vld [vmem:[#allocation9 + $0x90] sm:$0xff]
    %v5981 = vld [vmem:[#allocation9 + $0x98] sm:$0xff]
    %v5982 = vld [vmem:[#allocation9 + $0xa0] sm:$0xff]
    %v5983 = vld [vmem:[#allocation9 + $0xa8] sm:$0xff]
    %v5984 = vld [vmem:[#allocation9 + $0xb0] sm:$0xff]
    %v5985 = vld [vmem:[#allocation9 + $0xb8] sm:$0xff]
    %v5986 = vld [vmem:[#allocation9 + $0xc0] sm:$0xff]
    %v5987 = vld [vmem:[#allocation9 + $0xc8] sm:$0xff]
    %v5988 = vld [vmem:[#allocation9 + $0xd0] sm:$0xff]
    %v5989 = vld [vmem:[#allocation9 + $0xd8] sm:$0xff]
    %v5990 = vld [vmem:[#allocation9 + $0xe0] sm:$0xff]
    %v5991 = vld [vmem:[#allocation9 + $0xe8] sm:$0xff]
    %v5992 = vld [vmem:[#allocation9 + $0xf0] sm:$0xff]
    %v5993 = vld [vmem:[#allocation9 + $0xf8] sm:$0xff]
    %v5994 = vld [vmem:[#allocation9 + $0x100] sm:$0xff]
    %v5995 = vld [vmem:[#allocation9 + $0x108] sm:$0xff]
    %v5996 = vld [vmem:[#allocation9 + $0x110] sm:$0xff]
    %v5997 = vld [vmem:[#allocation9 + $0x118] sm:$0xff]
    %v5998 = vld [vmem:[#allocation9 + $0x120] sm:$0xff]
    %v5999 = vld [vmem:[#allocation9 + $0x128] sm:$0xff]
    %v6000 = vld [vmem:[#allocation9 + $0x130] sm:$0xff]
    %v6001 = vld [vmem:[#allocation9 + $0x138] sm:$0xff]
    %v6002 = vld [vmem:[#allocation9 + $0x140] sm:$0xff]
    %v6003 = vld [vmem:[#allocation9 + $0x148] sm:$0xff]
    %v6004 = vld [vmem:[#allocation9 + $0x150] sm:$0xff]
    %v6005 = vld [vmem:[#allocation9 + $0x158] sm:$0xff]
    %v6006 = vld [vmem:[#allocation9 + $0x160] sm:$0xff]
    %v6007 = vld [vmem:[#allocation9 + $0x168] sm:$0xff]
    %v6008 = vld [vmem:[#allocation9 + $0x170] sm:$0xff]
    %v6009 = vld [vmem:[#allocation9 + $0x178] sm:$0xff]
    %v6010 = vld [vmem:[#allocation9 + $0x180] sm:$0xff]
    %v6011 = vld [vmem:[#allocation9 + $0x188] sm:$0xff]
    %v6012 = vld [vmem:[#allocation9 + $0x190] sm:$0xff]
    %v6013 = vld [vmem:[#allocation9 + $0x198] sm:$0xff]
    %v6014 = vld [vmem:[#allocation9 + $0x1a0] sm:$0xff]
    %v6015 = vld [vmem:[#allocation9 + $0x1a8] sm:$0xff]
    %v6016 = vld [vmem:[#allocation9 + $0x1b0] sm:$0xff]
    %v6017 = vld [vmem:[#allocation9 + $0x1b8] sm:$0xff]
    %v6018 = vld [vmem:[#allocation9 + $0x1c0] sm:$0xff]
    %v6019 = vld [vmem:[#allocation9 + $0x1c8] sm:$0xff]
    %v6020 = vld [vmem:[#allocation9 + $0x1d0] sm:$0xff]
    %v6021 = vld [vmem:[#allocation9 + $0x1d8] sm:$0xff]
    %v6022 = vld [vmem:[#allocation9 + $0x1e0] sm:$0xff]
    %v6023 = vld [vmem:[#allocation9 + $0x1e8] sm:$0xff]
    %v6024 = vld [vmem:[#allocation9 + $0x1f0] sm:$0xff]
    %v6025 = vld [vmem:[#allocation9 + $0x1f8] sm:$0xff]
    %v6026 = vld [vmem:[#allocation10] sm:$0xf]
    %v6028 = vperm.slane %v6026, 0
    %v6029 = vperm.slane %v6026, 1
    %v6030 = vperm.slane %v6026, 2
    %v6031 = vperm.slane %v6026, 3
    %6036 = vst [vmem:[#allocation1] ss:$9 sm:$0xff] %v5900
    %s6037 = scalar_lea.vmem [#allocation1], 1
    %6038 = vst [vmem:[%s6037] ss:$9 sm:$0xff] %v5901
    %s6039 = scalar_lea.vmem [#allocation1], 2
    %6040 = vst [vmem:[%s6039] ss:$9 sm:$0xff] %v5902
    %s6041 = scalar_lea.vmem [#allocation1], 3
    %6042 = vst [vmem:[%s6041] ss:$9 sm:$0xff] %v5903
    %s6043 = scalar_lea.vmem [#allocation1], 4
    %6044 = vst [vmem:[%s6043] ss:$9 sm:$0xff] %v5904
    %s6045 = scalar_lea.vmem [#allocation1], 5
    %6046 = vst [vmem:[%s6045] ss:$9 sm:$0xff] %v5905
    %s6047 = scalar_lea.vmem [#allocation1], 6
    %6048 = vst [vmem:[%s6047] ss:$9 sm:$0xff] %v5906
    %s6049 = scalar_lea.vmem [#allocation1], 7
    %6050 = vst [vmem:[%s6049] ss:$9 sm:$0xff] %v5907
    %v6051 = vld [vmem:[#allocation1] sm:$0xff]
    %6053 = vmatpush.msra.mxu0 %v6022
    %6054 = vmatpush.msra.mxu0 %v6018
    %6055 = vmatpush.msra.mxu0 %v6014
    %6056 = vmatpush.msra.mxu0 %v6010
    %6057 = vmatpush.msra.mxu0 %v6006
    %6058 = vmatpush.msra.mxu0 %v6002
    %6059 = vmatpush.msra.mxu0 %v5998
    %6060 = vmatpush.msra.mxu0 %v5994
    %6061 = vmatpush.msra.mxu0 %v5990
    %6062 = vmatpush.msra.mxu0 %v5986
    %6063 = vmatpush.msra.mxu0 %v5982
    %6064 = vmatpush.msra.mxu0 %v5978
    %6065 = vmatpush.msra.mxu0 %v5974
    %6066 = vmatpush.msra.mxu0 %v5970
    %6067 = vmatpush.msra.mxu0 %v5966
    %6068 = vmatpush.msra.mxu0 %v5962
    %6069 = vmatmul.f32.gmra.mxu0 %v6051
    %v6070 = vpop.f32.mrf.mxu0
    %v6071 = vadd.f32 %v6028, %v6070
    %6072 = vdwg.mxu0
    %6073 = vmatpush.msra.mxu0 %v6023
    %6074 = vmatpush.msra.mxu0 %v6019
    %6075 = vmatpush.msra.mxu0 %v6015
    %6076 = vmatpush.msra.mxu0 %v6011
    %6077 = vmatpush.msra.mxu0 %v6007
    %6078 = vmatpush.msra.mxu0 %v6003
    %6079 = vmatpush.msra.mxu0 %v5999
    %6080 = vmatpush.msra.mxu0 %v5995
    %6081 = vmatpush.msra.mxu0 %v5991
    %6082 = vmatpush.msra.mxu0 %v5987
    %6083 = vmatpush.msra.mxu0 %v5983
    %6084 = vmatpush.msra.mxu0 %v5979
    %6085 = vmatpush.msra.mxu0 %v5975
    %6086 = vmatpush.msra.mxu0 %v5971
    %6087 = vmatpush.msra.mxu0 %v5967
    %6088 = vmatpush.msra.mxu0 %v5963
    %6089 = vmatmul.f32.gmra.mxu0 %v6051
    %v6090 = vpop.f32.mrf.mxu0
    %v6091 = vadd.f32 %v6029, %v6090
    %6092 = vdwg.mxu0
    %6093 = vmatpush.msra.mxu0 %v6024
    %6094 = vmatpush.msra.mxu0 %v6020
    %6095 = vmatpush.msra.mxu0 %v6016
    %6096 = vmatpush.msra.mxu0 %v6012
    %6097 = vmatpush.msra.mxu0 %v6008
    %6098 = vmatpush.msra.mxu0 %v6004
    %6099 = vmatpush.msra.mxu0 %v6000
    %6100 = vmatpush.msra.mxu0 %v5996
    %6101 = vmatpush.msra.mxu0 %v5992
    %6102 = vmatpush.msra.mxu0 %v5988
    %6103 = vmatpush.msra.mxu0 %v5984
    %6104 = vmatpush.msra.mxu0 %v5980
    %6105 = vmatpush.msra.mxu0 %v5976
    %6106 = vmatpush.msra.mxu0 %v5972
    %6107 = vmatpush.msra.mxu0 %v5968
    %6108 = vmatpush.msra.mxu0 %v5964
    %6109 = vmatmul.f32.gmra.mxu0 %v6051
    %v6110 = vpop.f32.mrf.mxu0
    %v6111 = vadd.f32 %v6030, %v6110
    %6112 = vdwg.mxu0
    %6113 = vmatpush.msra.mxu0 %v6025
    %6114 = vmatpush.msra.mxu0 %v6021
    %6115 = vmatpush.msra.mxu0 %v6017
    %6116 = vmatpush.msra.mxu0 %v6013
    %6117 = vmatpush.msra.mxu0 %v6009
    %6118 = vmatpush.msra.mxu0 %v6005
    %6119 = vmatpush.msra.mxu0 %v6001
    %6120 = vmatpush.msra.mxu0 %v5997
    %6121 = vmatpush.msra.mxu0 %v5993
    %6122 = vmatpush.msra.mxu0 %v5989
    %6123 = vmatpush.msra.mxu0 %v5985
    %6124 = vmatpush.msra.mxu0 %v5981
    %6125 = vmatpush.msra.mxu0 %v5977
    %6126 = vmatpush.msra.mxu0 %v5973
    %6127 = vmatpush.msra.mxu0 %v5969
    %6128 = vmatpush.msra.mxu0 %v5965
    %6129 = vmatmul.f32.gmra.mxu0 %v6051
    %v6130 = vpop.f32.mrf.mxu0
    %v6131 = vadd.f32 %v6031, %v6130
    %6132 = vdwg.mxu0
    %v6133 = vld [vmem:[%s1124] sm:$0xff]
    %v6134 = vld [vmem:[%s1124 + $0x8] sm:$0xff]
    %v6135 = vld [vmem:[%s1124 + $0x10] sm:$0xff]
    %v6136 = vld [vmem:[%s1124 + $0x18] sm:$0xff]
    %v6137 = vld [vmem:[%s1124 + $0x20] sm:$0xff]
    %v6138 = vld [vmem:[%s1124 + $0x28] sm:$0xff]
    %v6139 = vld [vmem:[%s1124 + $0x30] sm:$0xff]
    %v6140 = vld [vmem:[%s1124 + $0x38] sm:$0xff]
    %v6141 = vld [vmem:[%s1124 + $0x40] sm:$0xff]
    %v6142 = vld [vmem:[%s1124 + $0x48] sm:$0xff]
    %v6143 = vld [vmem:[%s1124 + $0x50] sm:$0xff]
    %v6144 = vld [vmem:[%s1124 + $0x58] sm:$0xff]
    %v6145 = vld [vmem:[%s1124 + $0x60] sm:$0xff]
    %v6146 = vld [vmem:[%s1124 + $0x68] sm:$0xff]
    %v6147 = vld [vmem:[%s1124 + $0x70] sm:$0xff]
    %v6148 = vld [vmem:[%s1124 + $0x78] sm:$0xff]
    %v6149 = vld [vmem:[%s1124 + $0x80] sm:$0xff]
    %v6150 = vld [vmem:[%s1124 + $0x88] sm:$0xff]
    %v6151 = vld [vmem:[%s1124 + $0x90] sm:$0xff]
    %v6152 = vld [vmem:[%s1124 + $0x98] sm:$0xff]
    %v6153 = vld [vmem:[%s1124 + $0xa0] sm:$0xff]
    %v6154 = vld [vmem:[%s1124 + $0xa8] sm:$0xff]
    %v6155 = vld [vmem:[%s1124 + $0xb0] sm:$0xff]
    %v6156 = vld [vmem:[%s1124 + $0xb8] sm:$0xff]
    %v6157 = vld [vmem:[%s1124 + $0xc0] sm:$0xff]
    %v6158 = vld [vmem:[%s1124 + $0xc8] sm:$0xff]
    %v6159 = vld [vmem:[%s1124 + $0xd0] sm:$0xff]
    %v6160 = vld [vmem:[%s1124 + $0xd8] sm:$0xff]
    %v6161 = vld [vmem:[%s1124 + $0xe0] sm:$0xff]
    %v6162 = vld [vmem:[%s1124 + $0xe8] sm:$0xff]
    %v6163 = vld [vmem:[%s1124 + $0xf0] sm:$0xff]
    %v6164 = vld [vmem:[%s1124 + $0xf8] sm:$0xff]
    %v6165 = vld [vmem:[%s1124 + $0x100] sm:$0xff]
    %v6166 = vld [vmem:[%s1124 + $0x108] sm:$0xff]
    %v6167 = vld [vmem:[%s1124 + $0x110] sm:$0xff]
    %v6168 = vld [vmem:[%s1124 + $0x118] sm:$0xff]
    %v6169 = vld [vmem:[%s1124 + $0x120] sm:$0xff]
    %v6170 = vld [vmem:[%s1124 + $0x128] sm:$0xff]
    %v6171 = vld [vmem:[%s1124 + $0x130] sm:$0xff]
    %v6172 = vld [vmem:[%s1124 + $0x138] sm:$0xff]
    %v6173 = vld [vmem:[%s1124 + $0x140] sm:$0xff]
    %v6174 = vld [vmem:[%s1124 + $0x148] sm:$0xff]
    %v6175 = vld [vmem:[%s1124 + $0x150] sm:$0xff]
    %v6176 = vld [vmem:[%s1124 + $0x158] sm:$0xff]
    %v6177 = vld [vmem:[%s1124 + $0x160] sm:$0xff]
    %v6178 = vld [vmem:[%s1124 + $0x168] sm:$0xff]
    %v6179 = vld [vmem:[%s1124 + $0x170] sm:$0xff]
    %v6180 = vld [vmem:[%s1124 + $0x178] sm:$0xff]
    %v6181 = vld [vmem:[%s1124 + $0x180] sm:$0xff]
    %v6182 = vld [vmem:[%s1124 + $0x188] sm:$0xff]
    %v6183 = vld [vmem:[%s1124 + $0x190] sm:$0xff]
    %v6184 = vld [vmem:[%s1124 + $0x198] sm:$0xff]
    %v6185 = vld [vmem:[%s1124 + $0x1a0] sm:$0xff]
    %v6186 = vld [vmem:[%s1124 + $0x1a8] sm:$0xff]
    %v6187 = vld [vmem:[%s1124 + $0x1b0] sm:$0xff]
    %v6188 = vld [vmem:[%s1124 + $0x1b8] sm:$0xff]
    %v6189 = vld [vmem:[%s1124 + $0x1c0] sm:$0xff]
    %v6190 = vld [vmem:[%s1124 + $0x1c8] sm:$0xff]
    %v6191 = vld [vmem:[%s1124 + $0x1d0] sm:$0xff]
    %v6192 = vld [vmem:[%s1124 + $0x1d8] sm:$0xff]
    %v6193 = vld [vmem:[%s1124 + $0x1e0] sm:$0xff]
    %v6194 = vld [vmem:[%s1124 + $0x1e8] sm:$0xff]
    %v6195 = vld [vmem:[%s1124 + $0x1f0] sm:$0xff]
    %v6196 = vld [vmem:[%s1124 + $0x1f8] sm:$0xff]
    %6197 = vmatpush.msra.mxu0 %v6193
    %6198 = vmatpush.msra.mxu0 %v6189
    %6199 = vmatpush.msra.mxu0 %v6185
    %6200 = vmatpush.msra.mxu0 %v6181
    %6201 = vmatpush.msra.mxu0 %v6177
    %6202 = vmatpush.msra.mxu0 %v6173
    %6203 = vmatpush.msra.mxu0 %v6169
    %6204 = vmatpush.msra.mxu0 %v6165
    %6205 = vmatpush.msra.mxu0 %v6161
    %6206 = vmatpush.msra.mxu0 %v6157
    %6207 = vmatpush.msra.mxu0 %v6153
    %6208 = vmatpush.msra.mxu0 %v6149
    %6209 = vmatpush.msra.mxu0 %v6145
    %6210 = vmatpush.msra.mxu0 %v6141
    %6211 = vmatpush.msra.mxu0 %v6137
    %6212 = vmatpush.msra.mxu0 %v6133
    %6213 = vmatmul.f32.gmra.mxu0 %v5960
    %v6214 = vpop.f32.mrf.mxu0
    %v6215 = vadd.f32 0.0, %v6214
    %6216 = vdwg.mxu0
    %6217 = vmatpush.msra.mxu0 %v6194
    %6218 = vmatpush.msra.mxu0 %v6190
    %6219 = vmatpush.msra.mxu0 %v6186
    %6220 = vmatpush.msra.mxu0 %v6182
    %6221 = vmatpush.msra.mxu0 %v6178
    %6222 = vmatpush.msra.mxu0 %v6174
    %6223 = vmatpush.msra.mxu0 %v6170
    %6224 = vmatpush.msra.mxu0 %v6166
    %6225 = vmatpush.msra.mxu0 %v6162
    %6226 = vmatpush.msra.mxu0 %v6158
    %6227 = vmatpush.msra.mxu0 %v6154
    %6228 = vmatpush.msra.mxu0 %v6150
    %6229 = vmatpush.msra.mxu0 %v6146
    %6230 = vmatpush.msra.mxu0 %v6142
    %6231 = vmatpush.msra.mxu0 %v6138
    %6232 = vmatpush.msra.mxu0 %v6134
    %6233 = vmatmul.f32.gmra.mxu0 %v5960
    %v6234 = vpop.f32.mrf.mxu0
    %v6235 = vadd.f32 0.0, %v6234
    %6236 = vdwg.mxu0
    %6237 = vmatpush.msra.mxu0 %v6195
    %6238 = vmatpush.msra.mxu0 %v6191
    %6239 = vmatpush.msra.mxu0 %v6187
    %6240 = vmatpush.msra.mxu0 %v6183
    %6241 = vmatpush.msra.mxu0 %v6179
    %6242 = vmatpush.msra.mxu0 %v6175
    %6243 = vmatpush.msra.mxu0 %v6171
    %6244 = vmatpush.msra.mxu0 %v6167
    %6245 = vmatpush.msra.mxu0 %v6163
    %6246 = vmatpush.msra.mxu0 %v6159
    %6247 = vmatpush.msra.mxu0 %v6155
    %6248 = vmatpush.msra.mxu0 %v6151
    %6249 = vmatpush.msra.mxu0 %v6147
    %6250 = vmatpush.msra.mxu0 %v6143
    %6251 = vmatpush.msra.mxu0 %v6139
    %6252 = vmatpush.msra.mxu0 %v6135
    %6253 = vmatmul.f32.gmra.mxu0 %v5960
    %v6254 = vpop.f32.mrf.mxu0
    %v6255 = vadd.f32 0.0, %v6254
    %6256 = vdwg.mxu0
    %6257 = vmatpush.msra.mxu0 %v6196
    %6258 = vmatpush.msra.mxu0 %v6192
    %6259 = vmatpush.msra.mxu0 %v6188
    %6260 = vmatpush.msra.mxu0 %v6184
    %6261 = vmatpush.msra.mxu0 %v6180
    %6262 = vmatpush.msra.mxu0 %v6176
    %6263 = vmatpush.msra.mxu0 %v6172
    %6264 = vmatpush.msra.mxu0 %v6168
    %6265 = vmatpush.msra.mxu0 %v6164
    %6266 = vmatpush.msra.mxu0 %v6160
    %6267 = vmatpush.msra.mxu0 %v6156
    %6268 = vmatpush.msra.mxu0 %v6152
    %6269 = vmatpush.msra.mxu0 %v6148
    %6270 = vmatpush.msra.mxu0 %v6144
    %6271 = vmatpush.msra.mxu0 %v6140
    %6272 = vmatpush.msra.mxu0 %v6136
    %6273 = vmatmul.f32.gmra.mxu0 %v5960
    %v6274 = vpop.f32.mrf.mxu0
    %v6275 = vadd.f32 0.0, %v6274
    %6276 = vdwg.mxu0
    %v6277 = vadd.f32 %v6071, %v6215
    %v6278 = vadd.f32 %v6091, %v6235
    %v6279 = vadd.f32 %v6111, %v6255
    %v6280 = vadd.f32 %v6131, %v6275
    %v6281 = vxor.u32 %v6277, 2147483648
    %v6282 = vmul.f32 %v6281, 1.442695
    %v6283 = vpow.pop %v6282
    %v6284 = vadd.f32 %v6283, 1.0
    %v6285 = vrcp.pop %v6284
    %v6286 = vmul.f32 %v6284, %v6285
    %v6287 = vsub.f32 1.0, %v6286
    %v6288 = vmul.f32 %v6285, %v6287
    %v6289 = vadd.f32 %v6285, %v6288
    %vm6290 = vweird.f32 %v6284
    %vm6291 = vweird.f32 %v6285
    %vm6292 = vmor %vm6290, %vm6291
    %v6293 = vsel %vm6292, %v6285, %v6289
    %v6294 = vand.u32 2147483647, %v6284
    %vm6295 = vcmp.eq.f32.partialorder %v6294, 8.507059e+37
    %v6296 = vand.u32 %v6284, 2147483648
    %v6297 = vor.u32 1.1754944e-38, %v6296
    %v6298 = vsel %vm6295, %v6297, %v6293
    %v6299 = vmul.f32 1.0, %v6298
    %v6300 = vxor.u32 %v6278, 2147483648
    %v6301 = vmul.f32 %v6300, 1.442695
    %v6302 = vpow.pop %v6301
    %v6303 = vadd.f32 %v6302, 1.0
    %v6304 = vrcp.pop %v6303
    %v6305 = vmul.f32 %v6303, %v6304
    %v6306 = vsub.f32 1.0, %v6305
    %v6307 = vmul.f32 %v6304, %v6306
    %v6308 = vadd.f32 %v6304, %v6307
    %vm6309 = vweird.f32 %v6303
    %vm6310 = vweird.f32 %v6304
    %vm6311 = vmor %vm6309, %vm6310
    %v6312 = vsel %vm6311, %v6304, %v6308
    %v6313 = vand.u32 2147483647, %v6303
    %vm6314 = vcmp.eq.f32.partialorder %v6313, 8.507059e+37
    %v6315 = vand.u32 %v6303, 2147483648
    %v6316 = vor.u32 1.1754944e-38, %v6315
    %v6317 = vsel %vm6314, %v6316, %v6312
    %v6318 = vmul.f32 1.0, %v6317
    %v6319 = vtanh.pop %v6279
    %v6320 = vxor.u32 %v6280, 2147483648
    %v6321 = vmul.f32 %v6320, 1.442695
    %v6322 = vpow.pop %v6321
    %v6323 = vadd.f32 %v6322, 1.0
    %v6324 = vrcp.pop %v6323
    %v6325 = vmul.f32 %v6323, %v6324
    %v6326 = vsub.f32 1.0, %v6325
    %v6327 = vmul.f32 %v6324, %v6326
    %v6328 = vadd.f32 %v6324, %v6327
    %vm6329 = vweird.f32 %v6323
    %vm6330 = vweird.f32 %v6324
    %vm6331 = vmor %vm6329, %vm6330
    %v6332 = vsel %vm6331, %v6324, %v6328
    %v6333 = vand.u32 2147483647, %v6323
    %vm6334 = vcmp.eq.f32.partialorder %v6333, 8.507059e+37
    %v6335 = vand.u32 %v6323, 2147483648
    %v6336 = vor.u32 1.1754944e-38, %v6335
    %v6337 = vsel %vm6334, %v6336, %v6332
    %v6338 = vmul.f32 1.0, %v6337
    %v6339 = vmul.f32 %v6318, %v5961
    %v6340 = vmul.f32 %v6299, %v6319
    %v6341 = vadd.f32 %v6339, %v6340
    %v6342 = vtanh.pop %v6341
    %v6343 = vmul.f32 %v6338, %v6342
    %6344 = vst [vmem:[%s949] sm:$0xff] %v6343
    %6345 = vst [vmem:[%s951] sm:$0xff] %v6341
    %v6347 = vrot.slane %v6343, 1
    %v6348 = vrot.slane %v6343, 2
    %v6349 = vrot.slane %v6343, 3
    %v6350 = vrot.slane %v6343, 4
    %v6351 = vrot.slane %v6343, 5
    %v6352 = vrot.slane %v6343, 6
    %v6353 = vrot.slane %v6343, 7
    %6361 = vst [vmem:[#allocation12 + $0x4] sm:$0x1] %v6343
    %6362 = vst [vmem:[#allocation12 + $0xc] sm:$0x1] %v6347
    %6363 = vst [vmem:[#allocation12 + $0x14] sm:$0x1] %v6348
    %6364 = vst [vmem:[#allocation12 + $0x1c] sm:$0x1] %v6349
    %6365 = vst [vmem:[#allocation12 + $0x24] sm:$0x1] %v6350
    %6366 = vst [vmem:[#allocation12 + $0x2c] sm:$0x1] %v6351
    %6367 = vst [vmem:[#allocation12 + $0x34] sm:$0x1] %v6352
    %6368 = vst [vmem:[#allocation12 + $0x3c] sm:$0x1] %v6353
    %s6369 = scalar_lea.vmem [#allocation4], 5
    %v6370 = vld [vmem:[%s6369] ss:$8 sm:$0xf]
    %s6371 = scalar_lea.vmem [#allocation4], 37
    %v6372 = vld [vmem:[%s6371] ss:$8 sm:$0xf]
    %s6373 = scalar_lea.vmem [#allocation4], 69
    %v6374 = vld [vmem:[%s6373] ss:$8 sm:$0xf]
    %s6375 = scalar_lea.vmem [#allocation4], 101
    %v6376 = vld [vmem:[%s6375] ss:$8 sm:$0xf]
    %s6377 = scalar_lea.vmem [#allocation4], 133
    %v6378 = vld [vmem:[%s6377] ss:$8 sm:$0xf]
    %s6379 = scalar_lea.vmem [#allocation4], 165
    %v6380 = vld [vmem:[%s6379] ss:$8 sm:$0xf]
    %s6381 = scalar_lea.vmem [#allocation4], 197
    %v6382 = vld [vmem:[%s6381] ss:$8 sm:$0xf]
    %s6383 = scalar_lea.vmem [#allocation4], 229
    %v6384 = vld [vmem:[%s6383] ss:$8 sm:$0xf]
    %v6385 = vld [vmem:[#allocation2] sm:$0xff]
    %v6386 = vld [vmem:[#allocation3] sm:$0xff]
    %v6387 = vld [vmem:[#allocation7] sm:$0xff]
    %v6388 = vld [vmem:[#allocation7 + $0x8] sm:$0xff]
    %v6389 = vld [vmem:[#allocation7 + $0x10] sm:$0xff]
    %v6390 = vld [vmem:[#allocation7 + $0x18] sm:$0xff]
    %v6391 = vld [vmem:[#allocation7 + $0x20] sm:$0xff]
    %v6392 = vld [vmem:[#allocation7 + $0x28] sm:$0xff]
    %v6393 = vld [vmem:[#allocation7 + $0x30] sm:$0xff]
    %v6394 = vld [vmem:[#allocation7 + $0x38] sm:$0xff]
    %v6395 = vld [vmem:[#allocation7 + $0x40] sm:$0xff]
    %v6396 = vld [vmem:[#allocation7 + $0x48] sm:$0xff]
    %v6397 = vld [vmem:[#allocation7 + $0x50] sm:$0xff]
    %v6398 = vld [vmem:[#allocation7 + $0x58] sm:$0xff]
    %v6399 = vld [vmem:[#allocation7 + $0x60] sm:$0xff]
    %v6400 = vld [vmem:[#allocation7 + $0x68] sm:$0xff]
    %v6401 = vld [vmem:[#allocation7 + $0x70] sm:$0xff]
    %v6402 = vld [vmem:[#allocation7 + $0x78] sm:$0xff]
    %v6403 = vld [vmem:[#allocation7 + $0x80] sm:$0xff]
    %v6404 = vld [vmem:[#allocation7 + $0x88] sm:$0xff]
    %v6405 = vld [vmem:[#allocation7 + $0x90] sm:$0xff]
    %v6406 = vld [vmem:[#allocation7 + $0x98] sm:$0xff]
    %v6407 = vld [vmem:[#allocation7 + $0xa0] sm:$0xff]
    %v6408 = vld [vmem:[#allocation7 + $0xa8] sm:$0xff]
    %v6409 = vld [vmem:[#allocation7 + $0xb0] sm:$0xff]
    %v6410 = vld [vmem:[#allocation7 + $0xb8] sm:$0xff]
    %v6411 = vld [vmem:[#allocation7 + $0xc0] sm:$0xff]
    %v6412 = vld [vmem:[#allocation7 + $0xc8] sm:$0xff]
    %v6413 = vld [vmem:[#allocation7 + $0xd0] sm:$0xff]
    %v6414 = vld [vmem:[#allocation7 + $0xd8] sm:$0xff]
    %v6415 = vld [vmem:[#allocation7 + $0xe0] sm:$0xff]
    %v6416 = vld [vmem:[#allocation7 + $0xe8] sm:$0xff]
    %v6417 = vld [vmem:[#allocation7 + $0xf0] sm:$0xff]
    %v6418 = vld [vmem:[#allocation7 + $0xf8] sm:$0xff]
    %v6419 = vld [vmem:[#allocation7 + $0x100] sm:$0xff]
    %v6420 = vld [vmem:[#allocation7 + $0x108] sm:$0xff]
    %v6421 = vld [vmem:[#allocation7 + $0x110] sm:$0xff]
    %v6422 = vld [vmem:[#allocation7 + $0x118] sm:$0xff]
    %v6423 = vld [vmem:[#allocation7 + $0x120] sm:$0xff]
    %v6424 = vld [vmem:[#allocation7 + $0x128] sm:$0xff]
    %v6425 = vld [vmem:[#allocation7 + $0x130] sm:$0xff]
    %v6426 = vld [vmem:[#allocation7 + $0x138] sm:$0xff]
    %v6427 = vld [vmem:[#allocation7 + $0x140] sm:$0xff]
    %v6428 = vld [vmem:[#allocation7 + $0x148] sm:$0xff]
    %v6429 = vld [vmem:[#allocation7 + $0x150] sm:$0xff]
    %v6430 = vld [vmem:[#allocation7 + $0x158] sm:$0xff]
    %v6431 = vld [vmem:[#allocation7 + $0x160] sm:$0xff]
    %v6432 = vld [vmem:[#allocation7 + $0x168] sm:$0xff]
    %v6433 = vld [vmem:[#allocation7 + $0x170] sm:$0xff]
    %v6434 = vld [vmem:[#allocation7 + $0x178] sm:$0xff]
    %v6435 = vld [vmem:[#allocation7 + $0x180] sm:$0xff]
    %v6436 = vld [vmem:[#allocation7 + $0x188] sm:$0xff]
    %v6437 = vld [vmem:[#allocation7 + $0x190] sm:$0xff]
    %v6438 = vld [vmem:[#allocation7 + $0x198] sm:$0xff]
    %v6439 = vld [vmem:[#allocation7 + $0x1a0] sm:$0xff]
    %v6440 = vld [vmem:[#allocation7 + $0x1a8] sm:$0xff]
    %v6441 = vld [vmem:[#allocation7 + $0x1b0] sm:$0xff]
    %v6442 = vld [vmem:[#allocation7 + $0x1b8] sm:$0xff]
    %v6443 = vld [vmem:[#allocation7 + $0x1c0] sm:$0xff]
    %v6444 = vld [vmem:[#allocation7 + $0x1c8] sm:$0xff]
    %v6445 = vld [vmem:[#allocation7 + $0x1d0] sm:$0xff]
    %v6446 = vld [vmem:[#allocation7 + $0x1d8] sm:$0xff]
    %v6447 = vld [vmem:[#allocation7 + $0x1e0] sm:$0xff]
    %v6448 = vld [vmem:[#allocation7 + $0x1e8] sm:$0xff]
    %v6449 = vld [vmem:[#allocation7 + $0x1f0] sm:$0xff]
    %v6450 = vld [vmem:[#allocation7 + $0x1f8] sm:$0xff]
    %6451 = vmatpush.msra.mxu0 %v6447
    %6452 = vmatpush.msra.mxu0 %v6443
    %6453 = vmatpush.msra.mxu0 %v6439
    %6454 = vmatpush.msra.mxu0 %v6435
    %6455 = vmatpush.msra.mxu0 %v6431
    %6456 = vmatpush.msra.mxu0 %v6427
    %6457 = vmatpush.msra.mxu0 %v6423
    %6458 = vmatpush.msra.mxu0 %v6419
    %6459 = vmatpush.msra.mxu0 %v6415
    %6460 = vmatpush.msra.mxu0 %v6411
    %6461 = vmatpush.msra.mxu0 %v6407
    %6462 = vmatpush.msra.mxu0 %v6403
    %6463 = vmatpush.msra.mxu0 %v6399
    %6464 = vmatpush.msra.mxu0 %v6395
    %6465 = vmatpush.msra.mxu0 %v6391
    %6466 = vmatpush.msra.mxu0 %v6387
    %6467 = vmatmul.f32.gmra.mxu0 %v6385
    %v6468 = vpop.f32.mrf.mxu0
    %v6469 = vadd.f32 0.0, %v6468
    %6470 = vdwg.mxu0
    %6471 = vmatpush.msra.mxu0 %v6448
    %6472 = vmatpush.msra.mxu0 %v6444
    %6473 = vmatpush.msra.mxu0 %v6440
    %6474 = vmatpush.msra.mxu0 %v6436
    %6475 = vmatpush.msra.mxu0 %v6432
    %6476 = vmatpush.msra.mxu0 %v6428
    %6477 = vmatpush.msra.mxu0 %v6424
    %6478 = vmatpush.msra.mxu0 %v6420
    %6479 = vmatpush.msra.mxu0 %v6416
    %6480 = vmatpush.msra.mxu0 %v6412
    %6481 = vmatpush.msra.mxu0 %v6408
    %6482 = vmatpush.msra.mxu0 %v6404
    %6483 = vmatpush.msra.mxu0 %v6400
    %6484 = vmatpush.msra.mxu0 %v6396
    %6485 = vmatpush.msra.mxu0 %v6392
    %6486 = vmatpush.msra.mxu0 %v6388
    %6487 = vmatmul.f32.gmra.mxu0 %v6385
    %v6488 = vpop.f32.mrf.mxu0
    %v6489 = vadd.f32 0.0, %v6488
    %6490 = vdwg.mxu0
    %6491 = vmatpush.msra.mxu0 %v6449
    %6492 = vmatpush.msra.mxu0 %v6445
    %6493 = vmatpush.msra.mxu0 %v6441
    %6494 = vmatpush.msra.mxu0 %v6437
    %6495 = vmatpush.msra.mxu0 %v6433
    %6496 = vmatpush.msra.mxu0 %v6429
    %6497 = vmatpush.msra.mxu0 %v6425
    %6498 = vmatpush.msra.mxu0 %v6421
    %6499 = vmatpush.msra.mxu0 %v6417
    %6500 = vmatpush.msra.mxu0 %v6413
    %6501 = vmatpush.msra.mxu0 %v6409
    %6502 = vmatpush.msra.mxu0 %v6405
    %6503 = vmatpush.msra.mxu0 %v6401
    %6504 = vmatpush.msra.mxu0 %v6397
    %6505 = vmatpush.msra.mxu0 %v6393
    %6506 = vmatpush.msra.mxu0 %v6389
    %6507 = vmatmul.f32.gmra.mxu0 %v6385
    %v6508 = vpop.f32.mrf.mxu0
    %v6509 = vadd.f32 0.0, %v6508
    %6510 = vdwg.mxu0
    %6511 = vmatpush.msra.mxu0 %v6450
    %6512 = vmatpush.msra.mxu0 %v6446
    %6513 = vmatpush.msra.mxu0 %v6442
    %6514 = vmatpush.msra.mxu0 %v6438
    %6515 = vmatpush.msra.mxu0 %v6434
    %6516 = vmatpush.msra.mxu0 %v6430
    %6517 = vmatpush.msra.mxu0 %v6426
    %6518 = vmatpush.msra.mxu0 %v6422
    %6519 = vmatpush.msra.mxu0 %v6418
    %6520 = vmatpush.msra.mxu0 %v6414
    %6521 = vmatpush.msra.mxu0 %v6410
    %6522 = vmatpush.msra.mxu0 %v6406
    %6523 = vmatpush.msra.mxu0 %v6402
    %6524 = vmatpush.msra.mxu0 %v6398
    %6525 = vmatpush.msra.mxu0 %v6394
    %6526 = vmatpush.msra.mxu0 %v6390
    %6527 = vmatmul.f32.gmra.mxu0 %v6385
    %v6528 = vpop.f32.mrf.mxu0
    %v6529 = vadd.f32 0.0, %v6528
    %6530 = vdwg.mxu0
    %v6535 = vrot.slane %v6489, 7
    %v6536 = vrot.slane %v6509, 6
    %v6537 = vrot.slane %v6529, 5
    %v6538 = vsel %vm259, %v6469, %v6535
    %v6539 = vsel %vm261, %v6536, %v6537
    %v6540 = vsel %vm263, %v6538, %v6539
    %v6541 = vsel %vm265, %v6469, %v6535
    %v6542 = vsel %vm267, %v6536, %v6537
    %v6543 = vsel %vm269, %v6541, %v6542
    %v6544 = vrot.slane %v6543, 1
    %v6545 = vsel %vm261, %v6469, %v6535
    %v6546 = vsel %vm273, %v6536, %v6537
    %v6547 = vsel %vm275, %v6545, %v6546
    %v6548 = vrot.slane %v6547, 2
    %v6549 = vsel %vm267, %v6469, %v6535
    %v6550 = vsel %vm279, %v6536, %v6537
    %v6551 = vsel %vm281, %v6549, %v6550
    %v6552 = vrot.slane %v6551, 3
    %v6553 = vsel %vm273, %v6469, %v6535
    %v6554 = vsel %vm285, %v6536, %v6537
    %v6555 = vsel %vm287, %v6553, %v6554
    %v6556 = vrot.slane %v6555, 4
    %v6557 = vsel %vm279, %v6469, %v6535
    %v6558 = vsel %vm291, %v6537, %v6536
    %v6559 = vsel %vm293, %v6557, %v6558
    %v6560 = vrot.slane %v6559, 5
    %v6561 = vsel %vm285, %v6469, %v6535
    %v6562 = vsel %vm259, %v6536, %v6537
    %v6563 = vsel %vm298, %v6562, %v6561
    %v6564 = vrot.slane %v6563, 6
    %v6565 = vsel %vm291, %v6535, %v6469
    %v6566 = vsel %vm265, %v6536, %v6537
    %v6567 = vsel %vm303, %v6566, %v6565
    %v6568 = vrot.slane %v6567, 7
    %v6577 = vadd.f32 %v6370, %v6540
    %v6578 = vadd.f32 %v6372, %v6544
    %v6579 = vadd.f32 %v6374, %v6548
    %v6580 = vadd.f32 %v6376, %v6552
    %v6581 = vadd.f32 %v6378, %v6556
    %v6582 = vadd.f32 %v6380, %v6560
    %v6583 = vadd.f32 %v6382, %v6564
    %v6584 = vadd.f32 %v6384, %v6568
    %v6585 = vxor.u32 %v6577, 2147483648
    %v6586 = vxor.u32 %v6578, 2147483648
    %v6587 = vxor.u32 %v6579, 2147483648
    %v6588 = vxor.u32 %v6580, 2147483648
    %v6589 = vxor.u32 %v6581, 2147483648
    %v6590 = vxor.u32 %v6582, 2147483648
    %v6591 = vxor.u32 %v6583, 2147483648
    %v6592 = vxor.u32 %v6584, 2147483648
    %v6593 = vmul.f32 %v6585, 1.442695
    %v6594 = vpow.pop %v6593
    %v6595 = vmul.f32 %v6586, 1.442695
    %v6596 = vpow.pop %v6595
    %v6597 = vmul.f32 %v6587, 1.442695
    %v6598 = vpow.pop %v6597
    %v6599 = vmul.f32 %v6588, 1.442695
    %v6600 = vpow.pop %v6599
    %v6601 = vmul.f32 %v6589, 1.442695
    %v6602 = vpow.pop %v6601
    %v6603 = vmul.f32 %v6590, 1.442695
    %v6604 = vpow.pop %v6603
    %v6605 = vmul.f32 %v6591, 1.442695
    %v6606 = vpow.pop %v6605
    %v6607 = vmul.f32 %v6592, 1.442695
    %v6608 = vpow.pop %v6607
    %v6609 = vadd.f32 %v6594, 1.0
    %v6610 = vadd.f32 %v6596, 1.0
    %v6611 = vadd.f32 %v6598, 1.0
    %v6612 = vadd.f32 %v6600, 1.0
    %v6613 = vadd.f32 %v6602, 1.0
    %v6614 = vadd.f32 %v6604, 1.0
    %v6615 = vadd.f32 %v6606, 1.0
    %v6616 = vadd.f32 %v6608, 1.0
    %v6617 = vrcp.pop %v6609
    %v6618 = vmul.f32 %v6609, %v6617
    %v6619 = vsub.f32 1.0, %v6618
    %v6620 = vmul.f32 %v6617, %v6619
    %v6621 = vadd.f32 %v6617, %v6620
    %vm6622 = vweird.f32 %v6609
    %vm6623 = vweird.f32 %v6617
    %vm6624 = vmor %vm6622, %vm6623
    %v6625 = vsel %vm6624, %v6617, %v6621
    %v6626 = vand.u32 2147483647, %v6609
    %vm6627 = vcmp.eq.f32.partialorder %v6626, 8.507059e+37
    %v6628 = vand.u32 %v6609, 2147483648
    %v6629 = vor.u32 1.1754944e-38, %v6628
    %v6630 = vsel %vm6627, %v6629, %v6625
    %v6631 = vmul.f32 1.0, %v6630
    %v6632 = vrcp.pop %v6610
    %v6633 = vmul.f32 %v6610, %v6632
    %v6634 = vsub.f32 1.0, %v6633
    %v6635 = vmul.f32 %v6632, %v6634
    %v6636 = vadd.f32 %v6632, %v6635
    %vm6637 = vweird.f32 %v6610
    %vm6638 = vweird.f32 %v6632
    %vm6639 = vmor %vm6637, %vm6638
    %v6640 = vsel %vm6639, %v6632, %v6636
    %v6641 = vand.u32 2147483647, %v6610
    %vm6642 = vcmp.eq.f32.partialorder %v6641, 8.507059e+37
    %v6643 = vand.u32 %v6610, 2147483648
    %v6644 = vor.u32 1.1754944e-38, %v6643
    %v6645 = vsel %vm6642, %v6644, %v6640
    %v6646 = vmul.f32 1.0, %v6645
    %v6647 = vrcp.pop %v6611
    %v6648 = vmul.f32 %v6611, %v6647
    %v6649 = vsub.f32 1.0, %v6648
    %v6650 = vmul.f32 %v6647, %v6649
    %v6651 = vadd.f32 %v6647, %v6650
    %vm6652 = vweird.f32 %v6611
    %vm6653 = vweird.f32 %v6647
    %vm6654 = vmor %vm6652, %vm6653
    %v6655 = vsel %vm6654, %v6647, %v6651
    %v6656 = vand.u32 2147483647, %v6611
    %vm6657 = vcmp.eq.f32.partialorder %v6656, 8.507059e+37
    %v6658 = vand.u32 %v6611, 2147483648
    %v6659 = vor.u32 1.1754944e-38, %v6658
    %v6660 = vsel %vm6657, %v6659, %v6655
    %v6661 = vmul.f32 1.0, %v6660
    %v6662 = vrcp.pop %v6612
    %v6663 = vmul.f32 %v6612, %v6662
    %v6664 = vsub.f32 1.0, %v6663
    %v6665 = vmul.f32 %v6662, %v6664
    %v6666 = vadd.f32 %v6662, %v6665
    %vm6667 = vweird.f32 %v6612
    %vm6668 = vweird.f32 %v6662
    %vm6669 = vmor %vm6667, %vm6668
    %v6670 = vsel %vm6669, %v6662, %v6666
    %v6671 = vand.u32 2147483647, %v6612
    %vm6672 = vcmp.eq.f32.partialorder %v6671, 8.507059e+37
    %v6673 = vand.u32 %v6612, 2147483648
    %v6674 = vor.u32 1.1754944e-38, %v6673
    %v6675 = vsel %vm6672, %v6674, %v6670
    %v6676 = vmul.f32 1.0, %v6675
    %v6677 = vrcp.pop %v6613
    %v6678 = vmul.f32 %v6613, %v6677
    %v6679 = vsub.f32 1.0, %v6678
    %v6680 = vmul.f32 %v6677, %v6679
    %v6681 = vadd.f32 %v6677, %v6680
    %vm6682 = vweird.f32 %v6613
    %vm6683 = vweird.f32 %v6677
    %vm6684 = vmor %vm6682, %vm6683
    %v6685 = vsel %vm6684, %v6677, %v6681
    %v6686 = vand.u32 2147483647, %v6613
    %vm6687 = vcmp.eq.f32.partialorder %v6686, 8.507059e+37
    %v6688 = vand.u32 %v6613, 2147483648
    %v6689 = vor.u32 1.1754944e-38, %v6688
    %v6690 = vsel %vm6687, %v6689, %v6685
    %v6691 = vmul.f32 1.0, %v6690
    %v6692 = vrcp.pop %v6614
    %v6693 = vmul.f32 %v6614, %v6692
    %v6694 = vsub.f32 1.0, %v6693
    %v6695 = vmul.f32 %v6692, %v6694
    %v6696 = vadd.f32 %v6692, %v6695
    %vm6697 = vweird.f32 %v6614
    %vm6698 = vweird.f32 %v6692
    %vm6699 = vmor %vm6697, %vm6698
    %v6700 = vsel %vm6699, %v6692, %v6696
    %v6701 = vand.u32 2147483647, %v6614
    %vm6702 = vcmp.eq.f32.partialorder %v6701, 8.507059e+37
    %v6703 = vand.u32 %v6614, 2147483648
    %v6704 = vor.u32 1.1754944e-38, %v6703
    %v6705 = vsel %vm6702, %v6704, %v6700
    %v6706 = vmul.f32 1.0, %v6705
    %v6707 = vrcp.pop %v6615
    %v6708 = vmul.f32 %v6615, %v6707
    %v6709 = vsub.f32 1.0, %v6708
    %v6710 = vmul.f32 %v6707, %v6709
    %v6711 = vadd.f32 %v6707, %v6710
    %vm6712 = vweird.f32 %v6615
    %vm6713 = vweird.f32 %v6707
    %vm6714 = vmor %vm6712, %vm6713
    %v6715 = vsel %vm6714, %v6707, %v6711
    %v6716 = vand.u32 2147483647, %v6615
    %vm6717 = vcmp.eq.f32.partialorder %v6716, 8.507059e+37
    %v6718 = vand.u32 %v6615, 2147483648
    %v6719 = vor.u32 1.1754944e-38, %v6718
    %v6720 = vsel %vm6717, %v6719, %v6715
    %v6721 = vmul.f32 1.0, %v6720
    %v6722 = vrcp.pop %v6616
    %v6723 = vmul.f32 %v6616, %v6722
    %v6724 = vsub.f32 1.0, %v6723
    %v6725 = vmul.f32 %v6722, %v6724
    %v6726 = vadd.f32 %v6722, %v6725
    %vm6727 = vweird.f32 %v6616
    %vm6728 = vweird.f32 %v6722
    %vm6729 = vmor %vm6727, %vm6728
    %v6730 = vsel %vm6729, %v6722, %v6726
    %v6731 = vand.u32 2147483647, %v6616
    %vm6732 = vcmp.eq.f32.partialorder %v6731, 8.507059e+37
    %v6733 = vand.u32 %v6616, 2147483648
    %v6734 = vor.u32 1.1754944e-38, %v6733
    %v6735 = vsel %vm6732, %v6734, %v6730
    %v6736 = vmul.f32 1.0, %v6735
    %v6745 = vrot.slane %v6577, 1
    %v6746 = vrot.slane %v6578, 1
    %v6747 = vrot.slane %v6579, 1
    %v6748 = vrot.slane %v6580, 1
    %v6749 = vrot.slane %v6581, 1
    %v6750 = vrot.slane %v6582, 1
    %v6751 = vrot.slane %v6583, 1
    %v6752 = vrot.slane %v6584, 1
    %v6761 = vxor.u32 %v6745, 2147483648
    %v6762 = vxor.u32 %v6746, 2147483648
    %v6763 = vxor.u32 %v6747, 2147483648
    %v6764 = vxor.u32 %v6748, 2147483648
    %v6765 = vxor.u32 %v6749, 2147483648
    %v6766 = vxor.u32 %v6750, 2147483648
    %v6767 = vxor.u32 %v6751, 2147483648
    %v6768 = vxor.u32 %v6752, 2147483648
    %v6769 = vmul.f32 %v6761, 1.442695
    %v6770 = vpow.pop %v6769
    %v6771 = vmul.f32 %v6762, 1.442695
    %v6772 = vpow.pop %v6771
    %v6773 = vmul.f32 %v6763, 1.442695
    %v6774 = vpow.pop %v6773
    %v6775 = vmul.f32 %v6764, 1.442695
    %v6776 = vpow.pop %v6775
    %v6777 = vmul.f32 %v6765, 1.442695
    %v6778 = vpow.pop %v6777
    %v6779 = vmul.f32 %v6766, 1.442695
    %v6780 = vpow.pop %v6779
    %v6781 = vmul.f32 %v6767, 1.442695
    %v6782 = vpow.pop %v6781
    %v6783 = vmul.f32 %v6768, 1.442695
    %v6784 = vpow.pop %v6783
    %v6785 = vadd.f32 %v6770, 1.0
    %v6786 = vadd.f32 %v6772, 1.0
    %v6787 = vadd.f32 %v6774, 1.0
    %v6788 = vadd.f32 %v6776, 1.0
    %v6789 = vadd.f32 %v6778, 1.0
    %v6790 = vadd.f32 %v6780, 1.0
    %v6791 = vadd.f32 %v6782, 1.0
    %v6792 = vadd.f32 %v6784, 1.0
    %v6793 = vrcp.pop %v6785
    %v6794 = vmul.f32 %v6785, %v6793
    %v6795 = vsub.f32 1.0, %v6794
    %v6796 = vmul.f32 %v6793, %v6795
    %v6797 = vadd.f32 %v6793, %v6796
    %vm6798 = vweird.f32 %v6785
    %vm6799 = vweird.f32 %v6793
    %vm6800 = vmor %vm6798, %vm6799
    %v6801 = vsel %vm6800, %v6793, %v6797
    %v6802 = vand.u32 2147483647, %v6785
    %vm6803 = vcmp.eq.f32.partialorder %v6802, 8.507059e+37
    %v6804 = vand.u32 %v6785, 2147483648
    %v6805 = vor.u32 1.1754944e-38, %v6804
    %v6806 = vsel %vm6803, %v6805, %v6801
    %v6807 = vmul.f32 1.0, %v6806
    %v6808 = vrcp.pop %v6786
    %v6809 = vmul.f32 %v6786, %v6808
    %v6810 = vsub.f32 1.0, %v6809
    %v6811 = vmul.f32 %v6808, %v6810
    %v6812 = vadd.f32 %v6808, %v6811
    %vm6813 = vweird.f32 %v6786
    %vm6814 = vweird.f32 %v6808
    %vm6815 = vmor %vm6813, %vm6814
    %v6816 = vsel %vm6815, %v6808, %v6812
    %v6817 = vand.u32 2147483647, %v6786
    %vm6818 = vcmp.eq.f32.partialorder %v6817, 8.507059e+37
    %v6819 = vand.u32 %v6786, 2147483648
    %v6820 = vor.u32 1.1754944e-38, %v6819
    %v6821 = vsel %vm6818, %v6820, %v6816
    %v6822 = vmul.f32 1.0, %v6821
    %v6823 = vrcp.pop %v6787
    %v6824 = vmul.f32 %v6787, %v6823
    %v6825 = vsub.f32 1.0, %v6824
    %v6826 = vmul.f32 %v6823, %v6825
    %v6827 = vadd.f32 %v6823, %v6826
    %vm6828 = vweird.f32 %v6787
    %vm6829 = vweird.f32 %v6823
    %vm6830 = vmor %vm6828, %vm6829
    %v6831 = vsel %vm6830, %v6823, %v6827
    %v6832 = vand.u32 2147483647, %v6787
    %vm6833 = vcmp.eq.f32.partialorder %v6832, 8.507059e+37
    %v6834 = vand.u32 %v6787, 2147483648
    %v6835 = vor.u32 1.1754944e-38, %v6834
    %v6836 = vsel %vm6833, %v6835, %v6831
    %v6837 = vmul.f32 1.0, %v6836
    %v6838 = vrcp.pop %v6788
    %v6839 = vmul.f32 %v6788, %v6838
    %v6840 = vsub.f32 1.0, %v6839
    %v6841 = vmul.f32 %v6838, %v6840
    %v6842 = vadd.f32 %v6838, %v6841
    %vm6843 = vweird.f32 %v6788
    %vm6844 = vweird.f32 %v6838
    %vm6845 = vmor %vm6843, %vm6844
    %v6846 = vsel %vm6845, %v6838, %v6842
    %v6847 = vand.u32 2147483647, %v6788
    %vm6848 = vcmp.eq.f32.partialorder %v6847, 8.507059e+37
    %v6849 = vand.u32 %v6788, 2147483648
    %v6850 = vor.u32 1.1754944e-38, %v6849
    %v6851 = vsel %vm6848, %v6850, %v6846
    %v6852 = vmul.f32 1.0, %v6851
    %v6853 = vrcp.pop %v6789
    %v6854 = vmul.f32 %v6789, %v6853
    %v6855 = vsub.f32 1.0, %v6854
    %v6856 = vmul.f32 %v6853, %v6855
    %v6857 = vadd.f32 %v6853, %v6856
    %vm6858 = vweird.f32 %v6789
    %vm6859 = vweird.f32 %v6853
    %vm6860 = vmor %vm6858, %vm6859
    %v6861 = vsel %vm6860, %v6853, %v6857
    %v6862 = vand.u32 2147483647, %v6789
    %vm6863 = vcmp.eq.f32.partialorder %v6862, 8.507059e+37
    %v6864 = vand.u32 %v6789, 2147483648
    %v6865 = vor.u32 1.1754944e-38, %v6864
    %v6866 = vsel %vm6863, %v6865, %v6861
    %v6867 = vmul.f32 1.0, %v6866
    %v6868 = vrcp.pop %v6790
    %v6869 = vmul.f32 %v6790, %v6868
    %v6870 = vsub.f32 1.0, %v6869
    %v6871 = vmul.f32 %v6868, %v6870
    %v6872 = vadd.f32 %v6868, %v6871
    %vm6873 = vweird.f32 %v6790
    %vm6874 = vweird.f32 %v6868
    %vm6875 = vmor %vm6873, %vm6874
    %v6876 = vsel %vm6875, %v6868, %v6872
    %v6877 = vand.u32 2147483647, %v6790
    %vm6878 = vcmp.eq.f32.partialorder %v6877, 8.507059e+37
    %v6879 = vand.u32 %v6790, 2147483648
    %v6880 = vor.u32 1.1754944e-38, %v6879
    %v6881 = vsel %vm6878, %v6880, %v6876
    %v6882 = vmul.f32 1.0, %v6881
    %v6883 = vrcp.pop %v6791
    %v6884 = vmul.f32 %v6791, %v6883
    %v6885 = vsub.f32 1.0, %v6884
    %v6886 = vmul.f32 %v6883, %v6885
    %v6887 = vadd.f32 %v6883, %v6886
    %vm6888 = vweird.f32 %v6791
    %vm6889 = vweird.f32 %v6883
    %vm6890 = vmor %vm6888, %vm6889
    %v6891 = vsel %vm6890, %v6883, %v6887
    %v6892 = vand.u32 2147483647, %v6791
    %vm6893 = vcmp.eq.f32.partialorder %v6892, 8.507059e+37
    %v6894 = vand.u32 %v6791, 2147483648
    %v6895 = vor.u32 1.1754944e-38, %v6894
    %v6896 = vsel %vm6893, %v6895, %v6891
    %v6897 = vmul.f32 1.0, %v6896
    %v6898 = vrcp.pop %v6792
    %v6899 = vmul.f32 %v6792, %v6898
    %v6900 = vsub.f32 1.0, %v6899
    %v6901 = vmul.f32 %v6898, %v6900
    %v6902 = vadd.f32 %v6898, %v6901
    %vm6903 = vweird.f32 %v6792
    %vm6904 = vweird.f32 %v6898
    %vm6905 = vmor %vm6903, %vm6904
    %v6906 = vsel %vm6905, %v6898, %v6902
    %v6907 = vand.u32 2147483647, %v6792
    %vm6908 = vcmp.eq.f32.partialorder %v6907, 8.507059e+37
    %v6909 = vand.u32 %v6792, 2147483648
    %v6910 = vor.u32 1.1754944e-38, %v6909
    %v6911 = vsel %vm6908, %v6910, %v6906
    %v6912 = vmul.f32 1.0, %v6911
    %v6913 = vrot.slane %v6577, 2
    %v6914 = vrot.slane %v6578, 2
    %v6915 = vrot.slane %v6579, 2
    %v6916 = vrot.slane %v6580, 2
    %v6917 = vrot.slane %v6581, 2
    %v6918 = vrot.slane %v6582, 2
    %v6919 = vrot.slane %v6583, 2
    %v6920 = vrot.slane %v6584, 2
    %v6929 = vtanh.pop %v6913
    %v6930 = vtanh.pop %v6914
    %v6931 = vtanh.pop %v6915
    %v6932 = vtanh.pop %v6916
    %v6933 = vtanh.pop %v6917
    %v6934 = vtanh.pop %v6918
    %v6935 = vtanh.pop %v6919
    %v6936 = vtanh.pop %v6920
    %v6937 = vrot.slane %v6577, 3
    %v6938 = vrot.slane %v6578, 3
    %v6939 = vrot.slane %v6579, 3
    %v6940 = vrot.slane %v6580, 3
    %v6941 = vrot.slane %v6581, 3
    %v6942 = vrot.slane %v6582, 3
    %v6943 = vrot.slane %v6583, 3
    %v6944 = vrot.slane %v6584, 3
    %v6953 = vxor.u32 %v6937, 2147483648
    %v6954 = vxor.u32 %v6938, 2147483648
    %v6955 = vxor.u32 %v6939, 2147483648
    %v6956 = vxor.u32 %v6940, 2147483648
    %v6957 = vxor.u32 %v6941, 2147483648
    %v6958 = vxor.u32 %v6942, 2147483648
    %v6959 = vxor.u32 %v6943, 2147483648
    %v6960 = vxor.u32 %v6944, 2147483648
    %v6961 = vmul.f32 %v6953, 1.442695
    %v6962 = vpow.pop %v6961
    %v6963 = vmul.f32 %v6954, 1.442695
    %v6964 = vpow.pop %v6963
    %v6965 = vmul.f32 %v6955, 1.442695
    %v6966 = vpow.pop %v6965
    %v6967 = vmul.f32 %v6956, 1.442695
    %v6968 = vpow.pop %v6967
    %v6969 = vmul.f32 %v6957, 1.442695
    %v6970 = vpow.pop %v6969
    %v6971 = vmul.f32 %v6958, 1.442695
    %v6972 = vpow.pop %v6971
    %v6973 = vmul.f32 %v6959, 1.442695
    %v6974 = vpow.pop %v6973
    %v6975 = vmul.f32 %v6960, 1.442695
    %v6976 = vpow.pop %v6975
    %v6977 = vadd.f32 %v6962, 1.0
    %v6978 = vadd.f32 %v6964, 1.0
    %v6979 = vadd.f32 %v6966, 1.0
    %v6980 = vadd.f32 %v6968, 1.0
    %v6981 = vadd.f32 %v6970, 1.0
    %v6982 = vadd.f32 %v6972, 1.0
    %v6983 = vadd.f32 %v6974, 1.0
    %v6984 = vadd.f32 %v6976, 1.0
    %v6985 = vrcp.pop %v6977
    %v6986 = vmul.f32 %v6977, %v6985
    %v6987 = vsub.f32 1.0, %v6986
    %v6988 = vmul.f32 %v6985, %v6987
    %v6989 = vadd.f32 %v6985, %v6988
    %vm6990 = vweird.f32 %v6977
    %vm6991 = vweird.f32 %v6985
    %vm6992 = vmor %vm6990, %vm6991
    %v6993 = vsel %vm6992, %v6985, %v6989
    %v6994 = vand.u32 2147483647, %v6977
    %vm6995 = vcmp.eq.f32.partialorder %v6994, 8.507059e+37
    %v6996 = vand.u32 %v6977, 2147483648
    %v6997 = vor.u32 1.1754944e-38, %v6996
    %v6998 = vsel %vm6995, %v6997, %v6993
    %v6999 = vmul.f32 1.0, %v6998
    %v7000 = vrcp.pop %v6978
    %v7001 = vmul.f32 %v6978, %v7000
    %v7002 = vsub.f32 1.0, %v7001
    %v7003 = vmul.f32 %v7000, %v7002
    %v7004 = vadd.f32 %v7000, %v7003
    %vm7005 = vweird.f32 %v6978
    %vm7006 = vweird.f32 %v7000
    %vm7007 = vmor %vm7005, %vm7006
    %v7008 = vsel %vm7007, %v7000, %v7004
    %v7009 = vand.u32 2147483647, %v6978
    %vm7010 = vcmp.eq.f32.partialorder %v7009, 8.507059e+37
    %v7011 = vand.u32 %v6978, 2147483648
    %v7012 = vor.u32 1.1754944e-38, %v7011
    %v7013 = vsel %vm7010, %v7012, %v7008
    %v7014 = vmul.f32 1.0, %v7013
    %v7015 = vrcp.pop %v6979
    %v7016 = vmul.f32 %v6979, %v7015
    %v7017 = vsub.f32 1.0, %v7016
    %v7018 = vmul.f32 %v7015, %v7017
    %v7019 = vadd.f32 %v7015, %v7018
    %vm7020 = vweird.f32 %v6979
    %vm7021 = vweird.f32 %v7015
    %vm7022 = vmor %vm7020, %vm7021
    %v7023 = vsel %vm7022, %v7015, %v7019
    %v7024 = vand.u32 2147483647, %v6979
    %vm7025 = vcmp.eq.f32.partialorder %v7024, 8.507059e+37
    %v7026 = vand.u32 %v6979, 2147483648
    %v7027 = vor.u32 1.1754944e-38, %v7026
    %v7028 = vsel %vm7025, %v7027, %v7023
    %v7029 = vmul.f32 1.0, %v7028
    %v7030 = vrcp.pop %v6980
    %v7031 = vmul.f32 %v6980, %v7030
    %v7032 = vsub.f32 1.0, %v7031
    %v7033 = vmul.f32 %v7030, %v7032
    %v7034 = vadd.f32 %v7030, %v7033
    %vm7035 = vweird.f32 %v6980
    %vm7036 = vweird.f32 %v7030
    %vm7037 = vmor %vm7035, %vm7036
    %v7038 = vsel %vm7037, %v7030, %v7034
    %v7039 = vand.u32 2147483647, %v6980
    %vm7040 = vcmp.eq.f32.partialorder %v7039, 8.507059e+37
    %v7041 = vand.u32 %v6980, 2147483648
    %v7042 = vor.u32 1.1754944e-38, %v7041
    %v7043 = vsel %vm7040, %v7042, %v7038
    %v7044 = vmul.f32 1.0, %v7043
    %v7045 = vrcp.pop %v6981
    %v7046 = vmul.f32 %v6981, %v7045
    %v7047 = vsub.f32 1.0, %v7046
    %v7048 = vmul.f32 %v7045, %v7047
    %v7049 = vadd.f32 %v7045, %v7048
    %vm7050 = vweird.f32 %v6981
    %vm7051 = vweird.f32 %v7045
    %vm7052 = vmor %vm7050, %vm7051
    %v7053 = vsel %vm7052, %v7045, %v7049
    %v7054 = vand.u32 2147483647, %v6981
    %vm7055 = vcmp.eq.f32.partialorder %v7054, 8.507059e+37
    %v7056 = vand.u32 %v6981, 2147483648
    %v7057 = vor.u32 1.1754944e-38, %v7056
    %v7058 = vsel %vm7055, %v7057, %v7053
    %v7059 = vmul.f32 1.0, %v7058
    %v7060 = vrcp.pop %v6982
    %v7061 = vmul.f32 %v6982, %v7060
    %v7062 = vsub.f32 1.0, %v7061
    %v7063 = vmul.f32 %v7060, %v7062
    %v7064 = vadd.f32 %v7060, %v7063
    %vm7065 = vweird.f32 %v6982
    %vm7066 = vweird.f32 %v7060
    %vm7067 = vmor %vm7065, %vm7066
    %v7068 = vsel %vm7067, %v7060, %v7064
    %v7069 = vand.u32 2147483647, %v6982
    %vm7070 = vcmp.eq.f32.partialorder %v7069, 8.507059e+37
    %v7071 = vand.u32 %v6982, 2147483648
    %v7072 = vor.u32 1.1754944e-38, %v7071
    %v7073 = vsel %vm7070, %v7072, %v7068
    %v7074 = vmul.f32 1.0, %v7073
    %v7075 = vrcp.pop %v6983
    %v7076 = vmul.f32 %v6983, %v7075
    %v7077 = vsub.f32 1.0, %v7076
    %v7078 = vmul.f32 %v7075, %v7077
    %v7079 = vadd.f32 %v7075, %v7078
    %vm7080 = vweird.f32 %v6983
    %vm7081 = vweird.f32 %v7075
    %vm7082 = vmor %vm7080, %vm7081
    %v7083 = vsel %vm7082, %v7075, %v7079
    %v7084 = vand.u32 2147483647, %v6983
    %vm7085 = vcmp.eq.f32.partialorder %v7084, 8.507059e+37
    %v7086 = vand.u32 %v6983, 2147483648
    %v7087 = vor.u32 1.1754944e-38, %v7086
    %v7088 = vsel %vm7085, %v7087, %v7083
    %v7089 = vmul.f32 1.0, %v7088
    %v7090 = vrcp.pop %v6984
    %v7091 = vmul.f32 %v6984, %v7090
    %v7092 = vsub.f32 1.0, %v7091
    %v7093 = vmul.f32 %v7090, %v7092
    %v7094 = vadd.f32 %v7090, %v7093
    %vm7095 = vweird.f32 %v6984
    %vm7096 = vweird.f32 %v7090
    %vm7097 = vmor %vm7095, %vm7096
    %v7098 = vsel %vm7097, %v7090, %v7094
    %v7099 = vand.u32 2147483647, %v6984
    %vm7100 = vcmp.eq.f32.partialorder %v7099, 8.507059e+37
    %v7101 = vand.u32 %v6984, 2147483648
    %v7102 = vor.u32 1.1754944e-38, %v7101
    %v7103 = vsel %vm7100, %v7102, %v7098
    %v7104 = vmul.f32 1.0, %v7103
    %v7106 = vrot.slane %v6386, 1
    %v7107 = vrot.slane %v6386, 2
    %v7108 = vrot.slane %v6386, 3
    %v7109 = vrot.slane %v6386, 4
    %v7110 = vrot.slane %v6386, 5
    %v7111 = vrot.slane %v6386, 6
    %v7112 = vrot.slane %v6386, 7
    %v7120 = vmul.f32 %v6807, %v6386
    %v7121 = vmul.f32 %v6822, %v7106
    %v7122 = vmul.f32 %v6837, %v7107
    %v7123 = vmul.f32 %v6852, %v7108
    %v7124 = vmul.f32 %v6867, %v7109
    %v7125 = vmul.f32 %v6882, %v7110
    %v7126 = vmul.f32 %v6897, %v7111
    %v7127 = vmul.f32 %v6912, %v7112
    %v7128 = vmul.f32 %v6631, %v6929
    %v7129 = vmul.f32 %v6646, %v6930
    %v7130 = vmul.f32 %v6661, %v6931
    %v7131 = vmul.f32 %v6676, %v6932
    %v7132 = vmul.f32 %v6691, %v6933
    %v7133 = vmul.f32 %v6706, %v6934
    %v7134 = vmul.f32 %v6721, %v6935
    %v7135 = vmul.f32 %v6736, %v6936
    %v7136 = vadd.f32 %v7120, %v7128
    %v7137 = vadd.f32 %v7121, %v7129
    %v7138 = vadd.f32 %v7122, %v7130
    %v7139 = vadd.f32 %v7123, %v7131
    %v7140 = vadd.f32 %v7124, %v7132
    %v7141 = vadd.f32 %v7125, %v7133
    %v7142 = vadd.f32 %v7126, %v7134
    %v7143 = vadd.f32 %v7127, %v7135
    %v7144 = vtanh.pop %v7136
    %v7145 = vtanh.pop %v7137
    %v7146 = vtanh.pop %v7138
    %v7147 = vtanh.pop %v7139
    %v7148 = vtanh.pop %v7140
    %v7149 = vtanh.pop %v7141
    %v7150 = vtanh.pop %v7142
    %v7151 = vtanh.pop %v7143
    %v7152 = vmul.f32 %v6999, %v7144
    %v7153 = vmul.f32 %v7014, %v7145
    %v7154 = vmul.f32 %v7029, %v7146
    %v7155 = vmul.f32 %v7044, %v7147
    %v7156 = vmul.f32 %v7059, %v7148
    %v7157 = vmul.f32 %v7074, %v7149
    %v7158 = vmul.f32 %v7089, %v7150
    %v7159 = vmul.f32 %v7104, %v7151
    %7168 = vst [vmem:[#allocation1] ss:$9 sm:$0xff] %v7152
    %s7169 = scalar_lea.vmem [#allocation1], 1
    %7170 = vst [vmem:[%s7169] ss:$9 sm:$0xff] %v7153
    %s7171 = scalar_lea.vmem [#allocation1], 2
    %7172 = vst [vmem:[%s7171] ss:$9 sm:$0xff] %v7154
    %s7173 = scalar_lea.vmem [#allocation1], 3
    %7174 = vst [vmem:[%s7173] ss:$9 sm:$0xff] %v7155
    %s7175 = scalar_lea.vmem [#allocation1], 4
    %7176 = vst [vmem:[%s7175] ss:$9 sm:$0xff] %v7156
    %s7177 = scalar_lea.vmem [#allocation1], 5
    %7178 = vst [vmem:[%s7177] ss:$9 sm:$0xff] %v7157
    %s7179 = scalar_lea.vmem [#allocation1], 6
    %7180 = vst [vmem:[%s7179] ss:$9 sm:$0xff] %v7158
    %s7181 = scalar_lea.vmem [#allocation1], 7
    %7182 = vst [vmem:[%s7181] ss:$9 sm:$0xff] %v7159
    %v7183 = vld [vmem:[#allocation1] sm:$0xff]
    %7185 = vst [vmem:[#allocation2] sm:$0xff] %v7183
    %7194 = vst [vmem:[#allocation1] ss:$9 sm:$0xff] %v7136
    %s7195 = scalar_lea.vmem [#allocation1], 1
    %7196 = vst [vmem:[%s7195] ss:$9 sm:$0xff] %v7137
    %s7197 = scalar_lea.vmem [#allocation1], 2
    %7198 = vst [vmem:[%s7197] ss:$9 sm:$0xff] %v7138
    %s7199 = scalar_lea.vmem [#allocation1], 3
    %7200 = vst [vmem:[%s7199] ss:$9 sm:$0xff] %v7139
    %s7201 = scalar_lea.vmem [#allocation1], 4
    %7202 = vst [vmem:[%s7201] ss:$9 sm:$0xff] %v7140
    %s7203 = scalar_lea.vmem [#allocation1], 5
    %7204 = vst [vmem:[%s7203] ss:$9 sm:$0xff] %v7141
    %s7205 = scalar_lea.vmem [#allocation1], 6
    %7206 = vst [vmem:[%s7205] ss:$9 sm:$0xff] %v7142
    %s7207 = scalar_lea.vmem [#allocation1], 7
    %7208 = vst [vmem:[%s7207] ss:$9 sm:$0xff] %v7143
    %v7209 = vld [vmem:[#allocation1] sm:$0xff]
    %7211 = vst [vmem:[#allocation3] sm:$0xff] %v7209
    %v7212 = vld [vmem:[%s949] sm:$0xff]
    %v7213 = vld [vmem:[%s951] sm:$0xff]
    %v7214 = vld [vmem:[#allocation9] sm:$0xff]
    %v7215 = vld [vmem:[#allocation9 + $0x8] sm:$0xff]
    %v7216 = vld [vmem:[#allocation9 + $0x10] sm:$0xff]
    %v7217 = vld [vmem:[#allocation9 + $0x18] sm:$0xff]
    %v7218 = vld [vmem:[#allocation9 + $0x20] sm:$0xff]
    %v7219 = vld [vmem:[#allocation9 + $0x28] sm:$0xff]
    %v7220 = vld [vmem:[#allocation9 + $0x30] sm:$0xff]
    %v7221 = vld [vmem:[#allocation9 + $0x38] sm:$0xff]
    %v7222 = vld [vmem:[#allocation9 + $0x40] sm:$0xff]
    %v7223 = vld [vmem:[#allocation9 + $0x48] sm:$0xff]
    %v7224 = vld [vmem:[#allocation9 + $0x50] sm:$0xff]
    %v7225 = vld [vmem:[#allocation9 + $0x58] sm:$0xff]
    %v7226 = vld [vmem:[#allocation9 + $0x60] sm:$0xff]
    %v7227 = vld [vmem:[#allocation9 + $0x68] sm:$0xff]
    %v7228 = vld [vmem:[#allocation9 + $0x70] sm:$0xff]
    %v7229 = vld [vmem:[#allocation9 + $0x78] sm:$0xff]
    %v7230 = vld [vmem:[#allocation9 + $0x80] sm:$0xff]
    %v7231 = vld [vmem:[#allocation9 + $0x88] sm:$0xff]
    %v7232 = vld [vmem:[#allocation9 + $0x90] sm:$0xff]
    %v7233 = vld [vmem:[#allocation9 + $0x98] sm:$0xff]
    %v7234 = vld [vmem:[#allocation9 + $0xa0] sm:$0xff]
    %v7235 = vld [vmem:[#allocation9 + $0xa8] sm:$0xff]
    %v7236 = vld [vmem:[#allocation9 + $0xb0] sm:$0xff]
    %v7237 = vld [vmem:[#allocation9 + $0xb8] sm:$0xff]
    %v7238 = vld [vmem:[#allocation9 + $0xc0] sm:$0xff]
    %v7239 = vld [vmem:[#allocation9 + $0xc8] sm:$0xff]
    %v7240 = vld [vmem:[#allocation9 + $0xd0] sm:$0xff]
    %v7241 = vld [vmem:[#allocation9 + $0xd8] sm:$0xff]
    %v7242 = vld [vmem:[#allocation9 + $0xe0] sm:$0xff]
    %v7243 = vld [vmem:[#allocation9 + $0xe8] sm:$0xff]
    %v7244 = vld [vmem:[#allocation9 + $0xf0] sm:$0xff]
    %v7245 = vld [vmem:[#allocation9 + $0xf8] sm:$0xff]
    %v7246 = vld [vmem:[#allocation9 + $0x100] sm:$0xff]
    %v7247 = vld [vmem:[#allocation9 + $0x108] sm:$0xff]
    %v7248 = vld [vmem:[#allocation9 + $0x110] sm:$0xff]
    %v7249 = vld [vmem:[#allocation9 + $0x118] sm:$0xff]
    %v7250 = vld [vmem:[#allocation9 + $0x120] sm:$0xff]
    %v7251 = vld [vmem:[#allocation9 + $0x128] sm:$0xff]
    %v7252 = vld [vmem:[#allocation9 + $0x130] sm:$0xff]
    %v7253 = vld [vmem:[#allocation9 + $0x138] sm:$0xff]
    %v7254 = vld [vmem:[#allocation9 + $0x140] sm:$0xff]
    %v7255 = vld [vmem:[#allocation9 + $0x148] sm:$0xff]
    %v7256 = vld [vmem:[#allocation9 + $0x150] sm:$0xff]
    %v7257 = vld [vmem:[#allocation9 + $0x158] sm:$0xff]
    %v7258 = vld [vmem:[#allocation9 + $0x160] sm:$0xff]
    %v7259 = vld [vmem:[#allocation9 + $0x168] sm:$0xff]
    %v7260 = vld [vmem:[#allocation9 + $0x170] sm:$0xff]
    %v7261 = vld [vmem:[#allocation9 + $0x178] sm:$0xff]
    %v7262 = vld [vmem:[#allocation9 + $0x180] sm:$0xff]
    %v7263 = vld [vmem:[#allocation9 + $0x188] sm:$0xff]
    %v7264 = vld [vmem:[#allocation9 + $0x190] sm:$0xff]
    %v7265 = vld [vmem:[#allocation9 + $0x198] sm:$0xff]
    %v7266 = vld [vmem:[#allocation9 + $0x1a0] sm:$0xff]
    %v7267 = vld [vmem:[#allocation9 + $0x1a8] sm:$0xff]
    %v7268 = vld [vmem:[#allocation9 + $0x1b0] sm:$0xff]
    %v7269 = vld [vmem:[#allocation9 + $0x1b8] sm:$0xff]
    %v7270 = vld [vmem:[#allocation9 + $0x1c0] sm:$0xff]
    %v7271 = vld [vmem:[#allocation9 + $0x1c8] sm:$0xff]
    %v7272 = vld [vmem:[#allocation9 + $0x1d0] sm:$0xff]
    %v7273 = vld [vmem:[#allocation9 + $0x1d8] sm:$0xff]
    %v7274 = vld [vmem:[#allocation9 + $0x1e0] sm:$0xff]
    %v7275 = vld [vmem:[#allocation9 + $0x1e8] sm:$0xff]
    %v7276 = vld [vmem:[#allocation9 + $0x1f0] sm:$0xff]
    %v7277 = vld [vmem:[#allocation9 + $0x1f8] sm:$0xff]
    %v7278 = vld [vmem:[#allocation10] sm:$0xf]
    %v7280 = vperm.slane %v7278, 0
    %v7281 = vperm.slane %v7278, 1
    %v7282 = vperm.slane %v7278, 2
    %v7283 = vperm.slane %v7278, 3
    %7288 = vst [vmem:[#allocation1] ss:$9 sm:$0xff] %v7152
    %s7289 = scalar_lea.vmem [#allocation1], 1
    %7290 = vst [vmem:[%s7289] ss:$9 sm:$0xff] %v7153
    %s7291 = scalar_lea.vmem [#allocation1], 2
    %7292 = vst [vmem:[%s7291] ss:$9 sm:$0xff] %v7154
    %s7293 = scalar_lea.vmem [#allocation1], 3
    %7294 = vst [vmem:[%s7293] ss:$9 sm:$0xff] %v7155
    %s7295 = scalar_lea.vmem [#allocation1], 4
    %7296 = vst [vmem:[%s7295] ss:$9 sm:$0xff] %v7156
    %s7297 = scalar_lea.vmem [#allocation1], 5
    %7298 = vst [vmem:[%s7297] ss:$9 sm:$0xff] %v7157
    %s7299 = scalar_lea.vmem [#allocation1], 6
    %7300 = vst [vmem:[%s7299] ss:$9 sm:$0xff] %v7158
    %s7301 = scalar_lea.vmem [#allocation1], 7
    %7302 = vst [vmem:[%s7301] ss:$9 sm:$0xff] %v7159
    %v7303 = vld [vmem:[#allocation1] sm:$0xff]
    %7305 = vmatpush.msra.mxu0 %v7274
    %7306 = vmatpush.msra.mxu0 %v7270
    %7307 = vmatpush.msra.mxu0 %v7266
    %7308 = vmatpush.msra.mxu0 %v7262
    %7309 = vmatpush.msra.mxu0 %v7258
    %7310 = vmatpush.msra.mxu0 %v7254
    %7311 = vmatpush.msra.mxu0 %v7250
    %7312 = vmatpush.msra.mxu0 %v7246
    %7313 = vmatpush.msra.mxu0 %v7242
    %7314 = vmatpush.msra.mxu0 %v7238
    %7315 = vmatpush.msra.mxu0 %v7234
    %7316 = vmatpush.msra.mxu0 %v7230
    %7317 = vmatpush.msra.mxu0 %v7226
    %7318 = vmatpush.msra.mxu0 %v7222
    %7319 = vmatpush.msra.mxu0 %v7218
    %7320 = vmatpush.msra.mxu0 %v7214
    %7321 = vmatmul.f32.gmra.mxu0 %v7303
    %v7322 = vpop.f32.mrf.mxu0
    %v7323 = vadd.f32 %v7280, %v7322
    %7324 = vdwg.mxu0
    %7325 = vmatpush.msra.mxu0 %v7275
    %7326 = vmatpush.msra.mxu0 %v7271
    %7327 = vmatpush.msra.mxu0 %v7267
    %7328 = vmatpush.msra.mxu0 %v7263
    %7329 = vmatpush.msra.mxu0 %v7259
    %7330 = vmatpush.msra.mxu0 %v7255
    %7331 = vmatpush.msra.mxu0 %v7251
    %7332 = vmatpush.msra.mxu0 %v7247
    %7333 = vmatpush.msra.mxu0 %v7243
    %7334 = vmatpush.msra.mxu0 %v7239
    %7335 = vmatpush.msra.mxu0 %v7235
    %7336 = vmatpush.msra.mxu0 %v7231
    %7337 = vmatpush.msra.mxu0 %v7227
    %7338 = vmatpush.msra.mxu0 %v7223
    %7339 = vmatpush.msra.mxu0 %v7219
    %7340 = vmatpush.msra.mxu0 %v7215
    %7341 = vmatmul.f32.gmra.mxu0 %v7303
    %v7342 = vpop.f32.mrf.mxu0
    %v7343 = vadd.f32 %v7281, %v7342
    %7344 = vdwg.mxu0
    %7345 = vmatpush.msra.mxu0 %v7276
    %7346 = vmatpush.msra.mxu0 %v7272
    %7347 = vmatpush.msra.mxu0 %v7268
    %7348 = vmatpush.msra.mxu0 %v7264
    %7349 = vmatpush.msra.mxu0 %v7260
    %7350 = vmatpush.msra.mxu0 %v7256
    %7351 = vmatpush.msra.mxu0 %v7252
    %7352 = vmatpush.msra.mxu0 %v7248
    %7353 = vmatpush.msra.mxu0 %v7244
    %7354 = vmatpush.msra.mxu0 %v7240
    %7355 = vmatpush.msra.mxu0 %v7236
    %7356 = vmatpush.msra.mxu0 %v7232
    %7357 = vmatpush.msra.mxu0 %v7228
    %7358 = vmatpush.msra.mxu0 %v7224
    %7359 = vmatpush.msra.mxu0 %v7220
    %7360 = vmatpush.msra.mxu0 %v7216
    %7361 = vmatmul.f32.gmra.mxu0 %v7303
    %v7362 = vpop.f32.mrf.mxu0
    %v7363 = vadd.f32 %v7282, %v7362
    %7364 = vdwg.mxu0
    %7365 = vmatpush.msra.mxu0 %v7277
    %7366 = vmatpush.msra.mxu0 %v7273
    %7367 = vmatpush.msra.mxu0 %v7269
    %7368 = vmatpush.msra.mxu0 %v7265
    %7369 = vmatpush.msra.mxu0 %v7261
    %7370 = vmatpush.msra.mxu0 %v7257
    %7371 = vmatpush.msra.mxu0 %v7253
    %7372 = vmatpush.msra.mxu0 %v7249
    %7373 = vmatpush.msra.mxu0 %v7245
    %7374 = vmatpush.msra.mxu0 %v7241
    %7375 = vmatpush.msra.mxu0 %v7237
    %7376 = vmatpush.msra.mxu0 %v7233
    %7377 = vmatpush.msra.mxu0 %v7229
    %7378 = vmatpush.msra.mxu0 %v7225
    %7379 = vmatpush.msra.mxu0 %v7221
    %7380 = vmatpush.msra.mxu0 %v7217
    %7381 = vmatmul.f32.gmra.mxu0 %v7303
    %v7382 = vpop.f32.mrf.mxu0
    %v7383 = vadd.f32 %v7283, %v7382
    %7384 = vdwg.mxu0
    %v7385 = vld [vmem:[%s1124] sm:$0xff]
    %v7386 = vld [vmem:[%s1124 + $0x8] sm:$0xff]
    %v7387 = vld [vmem:[%s1124 + $0x10] sm:$0xff]
    %v7388 = vld [vmem:[%s1124 + $0x18] sm:$0xff]
    %v7389 = vld [vmem:[%s1124 + $0x20] sm:$0xff]
    %v7390 = vld [vmem:[%s1124 + $0x28] sm:$0xff]
    %v7391 = vld [vmem:[%s1124 + $0x30] sm:$0xff]
    %v7392 = vld [vmem:[%s1124 + $0x38] sm:$0xff]
    %v7393 = vld [vmem:[%s1124 + $0x40] sm:$0xff]
    %v7394 = vld [vmem:[%s1124 + $0x48] sm:$0xff]
    %v7395 = vld [vmem:[%s1124 + $0x50] sm:$0xff]
    %v7396 = vld [vmem:[%s1124 + $0x58] sm:$0xff]
    %v7397 = vld [vmem:[%s1124 + $0x60] sm:$0xff]
    %v7398 = vld [vmem:[%s1124 + $0x68] sm:$0xff]
    %v7399 = vld [vmem:[%s1124 + $0x70] sm:$0xff]
    %v7400 = vld [vmem:[%s1124 + $0x78] sm:$0xff]
    %v7401 = vld [vmem:[%s1124 + $0x80] sm:$0xff]
    %v7402 = vld [vmem:[%s1124 + $0x88] sm:$0xff]
    %v7403 = vld [vmem:[%s1124 + $0x90] sm:$0xff]
    %v7404 = vld [vmem:[%s1124 + $0x98] sm:$0xff]
    %v7405 = vld [vmem:[%s1124 + $0xa0] sm:$0xff]
    %v7406 = vld [vmem:[%s1124 + $0xa8] sm:$0xff]
    %v7407 = vld [vmem:[%s1124 + $0xb0] sm:$0xff]
    %v7408 = vld [vmem:[%s1124 + $0xb8] sm:$0xff]
    %v7409 = vld [vmem:[%s1124 + $0xc0] sm:$0xff]
    %v7410 = vld [vmem:[%s1124 + $0xc8] sm:$0xff]
    %v7411 = vld [vmem:[%s1124 + $0xd0] sm:$0xff]
    %v7412 = vld [vmem:[%s1124 + $0xd8] sm:$0xff]
    %v7413 = vld [vmem:[%s1124 + $0xe0] sm:$0xff]
    %v7414 = vld [vmem:[%s1124 + $0xe8] sm:$0xff]
    %v7415 = vld [vmem:[%s1124 + $0xf0] sm:$0xff]
    %v7416 = vld [vmem:[%s1124 + $0xf8] sm:$0xff]
    %v7417 = vld [vmem:[%s1124 + $0x100] sm:$0xff]
    %v7418 = vld [vmem:[%s1124 + $0x108] sm:$0xff]
    %v7419 = vld [vmem:[%s1124 + $0x110] sm:$0xff]
    %v7420 = vld [vmem:[%s1124 + $0x118] sm:$0xff]
    %v7421 = vld [vmem:[%s1124 + $0x120] sm:$0xff]
    %v7422 = vld [vmem:[%s1124 + $0x128] sm:$0xff]
    %v7423 = vld [vmem:[%s1124 + $0x130] sm:$0xff]
    %v7424 = vld [vmem:[%s1124 + $0x138] sm:$0xff]
    %v7425 = vld [vmem:[%s1124 + $0x140] sm:$0xff]
    %v7426 = vld [vmem:[%s1124 + $0x148] sm:$0xff]
    %v7427 = vld [vmem:[%s1124 + $0x150] sm:$0xff]
    %v7428 = vld [vmem:[%s1124 + $0x158] sm:$0xff]
    %v7429 = vld [vmem:[%s1124 + $0x160] sm:$0xff]
    %v7430 = vld [vmem:[%s1124 + $0x168] sm:$0xff]
    %v7431 = vld [vmem:[%s1124 + $0x170] sm:$0xff]
    %v7432 = vld [vmem:[%s1124 + $0x178] sm:$0xff]
    %v7433 = vld [vmem:[%s1124 + $0x180] sm:$0xff]
    %v7434 = vld [vmem:[%s1124 + $0x188] sm:$0xff]
    %v7435 = vld [vmem:[%s1124 + $0x190] sm:$0xff]
    %v7436 = vld [vmem:[%s1124 + $0x198] sm:$0xff]
    %v7437 = vld [vmem:[%s1124 + $0x1a0] sm:$0xff]
    %v7438 = vld [vmem:[%s1124 + $0x1a8] sm:$0xff]
    %v7439 = vld [vmem:[%s1124 + $0x1b0] sm:$0xff]
    %v7440 = vld [vmem:[%s1124 + $0x1b8] sm:$0xff]
    %v7441 = vld [vmem:[%s1124 + $0x1c0] sm:$0xff]
    %v7442 = vld [vmem:[%s1124 + $0x1c8] sm:$0xff]
    %v7443 = vld [vmem:[%s1124 + $0x1d0] sm:$0xff]
    %v7444 = vld [vmem:[%s1124 + $0x1d8] sm:$0xff]
    %v7445 = vld [vmem:[%s1124 + $0x1e0] sm:$0xff]
    %v7446 = vld [vmem:[%s1124 + $0x1e8] sm:$0xff]
    %v7447 = vld [vmem:[%s1124 + $0x1f0] sm:$0xff]
    %v7448 = vld [vmem:[%s1124 + $0x1f8] sm:$0xff]
    %7449 = vmatpush.msra.mxu0 %v7445
    %7450 = vmatpush.msra.mxu0 %v7441
    %7451 = vmatpush.msra.mxu0 %v7437
    %7452 = vmatpush.msra.mxu0 %v7433
    %7453 = vmatpush.msra.mxu0 %v7429
    %7454 = vmatpush.msra.mxu0 %v7425
    %7455 = vmatpush.msra.mxu0 %v7421
    %7456 = vmatpush.msra.mxu0 %v7417
    %7457 = vmatpush.msra.mxu0 %v7413
    %7458 = vmatpush.msra.mxu0 %v7409
    %7459 = vmatpush.msra.mxu0 %v7405
    %7460 = vmatpush.msra.mxu0 %v7401
    %7461 = vmatpush.msra.mxu0 %v7397
    %7462 = vmatpush.msra.mxu0 %v7393
    %7463 = vmatpush.msra.mxu0 %v7389
    %7464 = vmatpush.msra.mxu0 %v7385
    %7465 = vmatmul.f32.gmra.mxu0 %v7212
    %v7466 = vpop.f32.mrf.mxu0
    %v7467 = vadd.f32 0.0, %v7466
    %7468 = vdwg.mxu0
    %7469 = vmatpush.msra.mxu0 %v7446
    %7470 = vmatpush.msra.mxu0 %v7442
    %7471 = vmatpush.msra.mxu0 %v7438
    %7472 = vmatpush.msra.mxu0 %v7434
    %7473 = vmatpush.msra.mxu0 %v7430
    %7474 = vmatpush.msra.mxu0 %v7426
    %7475 = vmatpush.msra.mxu0 %v7422
    %7476 = vmatpush.msra.mxu0 %v7418
    %7477 = vmatpush.msra.mxu0 %v7414
    %7478 = vmatpush.msra.mxu0 %v7410
    %7479 = vmatpush.msra.mxu0 %v7406
    %7480 = vmatpush.msra.mxu0 %v7402
    %7481 = vmatpush.msra.mxu0 %v7398
    %7482 = vmatpush.msra.mxu0 %v7394
    %7483 = vmatpush.msra.mxu0 %v7390
    %7484 = vmatpush.msra.mxu0 %v7386
    %7485 = vmatmul.f32.gmra.mxu0 %v7212
    %v7486 = vpop.f32.mrf.mxu0
    %v7487 = vadd.f32 0.0, %v7486
    %7488 = vdwg.mxu0
    %7489 = vmatpush.msra.mxu0 %v7447
    %7490 = vmatpush.msra.mxu0 %v7443
    %7491 = vmatpush.msra.mxu0 %v7439
    %7492 = vmatpush.msra.mxu0 %v7435
    %7493 = vmatpush.msra.mxu0 %v7431
    %7494 = vmatpush.msra.mxu0 %v7427
    %7495 = vmatpush.msra.mxu0 %v7423
    %7496 = vmatpush.msra.mxu0 %v7419
    %7497 = vmatpush.msra.mxu0 %v7415
    %7498 = vmatpush.msra.mxu0 %v7411
    %7499 = vmatpush.msra.mxu0 %v7407
    %7500 = vmatpush.msra.mxu0 %v7403
    %7501 = vmatpush.msra.mxu0 %v7399
    %7502 = vmatpush.msra.mxu0 %v7395
    %7503 = vmatpush.msra.mxu0 %v7391
    %7504 = vmatpush.msra.mxu0 %v7387
    %7505 = vmatmul.f32.gmra.mxu0 %v7212
    %v7506 = vpop.f32.mrf.mxu0
    %v7507 = vadd.f32 0.0, %v7506
    %7508 = vdwg.mxu0
    %7509 = vmatpush.msra.mxu0 %v7448
    %7510 = vmatpush.msra.mxu0 %v7444
    %7511 = vmatpush.msra.mxu0 %v7440
    %7512 = vmatpush.msra.mxu0 %v7436
    %7513 = vmatpush.msra.mxu0 %v7432
    %7514 = vmatpush.msra.mxu0 %v7428
    %7515 = vmatpush.msra.mxu0 %v7424
    %7516 = vmatpush.msra.mxu0 %v7420
    %7517 = vmatpush.msra.mxu0 %v7416
    %7518 = vmatpush.msra.mxu0 %v7412
    %7519 = vmatpush.msra.mxu0 %v7408
    %7520 = vmatpush.msra.mxu0 %v7404
    %7521 = vmatpush.msra.mxu0 %v7400
    %7522 = vmatpush.msra.mxu0 %v7396
    %7523 = vmatpush.msra.mxu0 %v7392
    %7524 = vmatpush.msra.mxu0 %v7388
    %7525 = vmatmul.f32.gmra.mxu0 %v7212
    %v7526 = vpop.f32.mrf.mxu0
    %v7527 = vadd.f32 0.0, %v7526
    %7528 = vdwg.mxu0
    %v7529 = vadd.f32 %v7323, %v7467
    %v7530 = vadd.f32 %v7343, %v7487
    %v7531 = vadd.f32 %v7363, %v7507
    %v7532 = vadd.f32 %v7383, %v7527
    %v7533 = vxor.u32 %v7529, 2147483648
    %v7534 = vmul.f32 %v7533, 1.442695
    %v7535 = vpow.pop %v7534
    %v7536 = vadd.f32 %v7535, 1.0
    %v7537 = vrcp.pop %v7536
    %v7538 = vmul.f32 %v7536, %v7537
    %v7539 = vsub.f32 1.0, %v7538
    %v7540 = vmul.f32 %v7537, %v7539
    %v7541 = vadd.f32 %v7537, %v7540
    %vm7542 = vweird.f32 %v7536
    %vm7543 = vweird.f32 %v7537
    %vm7544 = vmor %vm7542, %vm7543
    %v7545 = vsel %vm7544, %v7537, %v7541
    %v7546 = vand.u32 2147483647, %v7536
    %vm7547 = vcmp.eq.f32.partialorder %v7546, 8.507059e+37
    %v7548 = vand.u32 %v7536, 2147483648
    %v7549 = vor.u32 1.1754944e-38, %v7548
    %v7550 = vsel %vm7547, %v7549, %v7545
    %v7551 = vmul.f32 1.0, %v7550
    %v7552 = vxor.u32 %v7530, 2147483648
    %v7553 = vmul.f32 %v7552, 1.442695
    %v7554 = vpow.pop %v7553
    %v7555 = vadd.f32 %v7554, 1.0
    %v7556 = vrcp.pop %v7555
    %v7557 = vmul.f32 %v7555, %v7556
    %v7558 = vsub.f32 1.0, %v7557
    %v7559 = vmul.f32 %v7556, %v7558
    %v7560 = vadd.f32 %v7556, %v7559
    %vm7561 = vweird.f32 %v7555
    %vm7562 = vweird.f32 %v7556
    %vm7563 = vmor %vm7561, %vm7562
    %v7564 = vsel %vm7563, %v7556, %v7560
    %v7565 = vand.u32 2147483647, %v7555
    %vm7566 = vcmp.eq.f32.partialorder %v7565, 8.507059e+37
    %v7567 = vand.u32 %v7555, 2147483648
    %v7568 = vor.u32 1.1754944e-38, %v7567
    %v7569 = vsel %vm7566, %v7568, %v7564
    %v7570 = vmul.f32 1.0, %v7569
    %v7571 = vtanh.pop %v7531
    %v7572 = vxor.u32 %v7532, 2147483648
    %v7573 = vmul.f32 %v7572, 1.442695
    %v7574 = vpow.pop %v7573
    %v7575 = vadd.f32 %v7574, 1.0
    %v7576 = vrcp.pop %v7575
    %v7577 = vmul.f32 %v7575, %v7576
    %v7578 = vsub.f32 1.0, %v7577
    %v7579 = vmul.f32 %v7576, %v7578
    %v7580 = vadd.f32 %v7576, %v7579
    %vm7581 = vweird.f32 %v7575
    %vm7582 = vweird.f32 %v7576
    %vm7583 = vmor %vm7581, %vm7582
    %v7584 = vsel %vm7583, %v7576, %v7580
    %v7585 = vand.u32 2147483647, %v7575
    %vm7586 = vcmp.eq.f32.partialorder %v7585, 8.507059e+37
    %v7587 = vand.u32 %v7575, 2147483648
    %v7588 = vor.u32 1.1754944e-38, %v7587
    %v7589 = vsel %vm7586, %v7588, %v7584
    %v7590 = vmul.f32 1.0, %v7589
    %v7591 = vmul.f32 %v7570, %v7213
    %v7592 = vmul.f32 %v7551, %v7571
    %v7593 = vadd.f32 %v7591, %v7592
    %v7594 = vtanh.pop %v7593
    %v7595 = vmul.f32 %v7590, %v7594
    %7596 = vst [vmem:[%s949] sm:$0xff] %v7595
    %7597 = vst [vmem:[%s951] sm:$0xff] %v7593
    %v7599 = vrot.slane %v7595, 1
    %v7600 = vrot.slane %v7595, 2
    %v7601 = vrot.slane %v7595, 3
    %v7602 = vrot.slane %v7595, 4
    %v7603 = vrot.slane %v7595, 5
    %v7604 = vrot.slane %v7595, 6
    %v7605 = vrot.slane %v7595, 7
    %7613 = vst [vmem:[#allocation12 + $0x5] sm:$0x1] %v7595
    %7614 = vst [vmem:[#allocation12 + $0xd] sm:$0x1] %v7599
    %7615 = vst [vmem:[#allocation12 + $0x15] sm:$0x1] %v7600
    %7616 = vst [vmem:[#allocation12 + $0x1d] sm:$0x1] %v7601
    %7617 = vst [vmem:[#allocation12 + $0x25] sm:$0x1] %v7602
    %7618 = vst [vmem:[#allocation12 + $0x2d] sm:$0x1] %v7603
    %7619 = vst [vmem:[#allocation12 + $0x35] sm:$0x1] %v7604
    %7620 = vst [vmem:[#allocation12 + $0x3d] sm:$0x1] %v7605
    %s7621 = scalar_lea.vmem [#allocation4], 6
    %v7622 = vld [vmem:[%s7621] ss:$8 sm:$0xf]
    %s7623 = scalar_lea.vmem [#allocation4], 38
    %v7624 = vld [vmem:[%s7623] ss:$8 sm:$0xf]
    %s7625 = scalar_lea.vmem [#allocation4], 70
    %v7626 = vld [vmem:[%s7625] ss:$8 sm:$0xf]
    %s7627 = scalar_lea.vmem [#allocation4], 102
    %v7628 = vld [vmem:[%s7627] ss:$8 sm:$0xf]
    %s7629 = scalar_lea.vmem [#allocation4], 134
    %v7630 = vld [vmem:[%s7629] ss:$8 sm:$0xf]
    %s7631 = scalar_lea.vmem [#allocation4], 166
    %v7632 = vld [vmem:[%s7631] ss:$8 sm:$0xf]
    %s7633 = scalar_lea.vmem [#allocation4], 198
    %v7634 = vld [vmem:[%s7633] ss:$8 sm:$0xf]
    %s7635 = scalar_lea.vmem [#allocation4], 230
    %v7636 = vld [vmem:[%s7635] ss:$8 sm:$0xf]
    %v7637 = vld [vmem:[#allocation2] sm:$0xff]
    %v7638 = vld [vmem:[#allocation3] sm:$0xff]
    %v7639 = vld [vmem:[#allocation7] sm:$0xff]
    %v7640 = vld [vmem:[#allocation7 + $0x8] sm:$0xff]
    %v7641 = vld [vmem:[#allocation7 + $0x10] sm:$0xff]
    %v7642 = vld [vmem:[#allocation7 + $0x18] sm:$0xff]
    %v7643 = vld [vmem:[#allocation7 + $0x20] sm:$0xff]
    %v7644 = vld [vmem:[#allocation7 + $0x28] sm:$0xff]
    %v7645 = vld [vmem:[#allocation7 + $0x30] sm:$0xff]
    %v7646 = vld [vmem:[#allocation7 + $0x38] sm:$0xff]
    %v7647 = vld [vmem:[#allocation7 + $0x40] sm:$0xff]
    %v7648 = vld [vmem:[#allocation7 + $0x48] sm:$0xff]
    %v7649 = vld [vmem:[#allocation7 + $0x50] sm:$0xff]
    %v7650 = vld [vmem:[#allocation7 + $0x58] sm:$0xff]
    %v7651 = vld [vmem:[#allocation7 + $0x60] sm:$0xff]
    %v7652 = vld [vmem:[#allocation7 + $0x68] sm:$0xff]
    %v7653 = vld [vmem:[#allocation7 + $0x70] sm:$0xff]
    %v7654 = vld [vmem:[#allocation7 + $0x78] sm:$0xff]
    %v7655 = vld [vmem:[#allocation7 + $0x80] sm:$0xff]
    %v7656 = vld [vmem:[#allocation7 + $0x88] sm:$0xff]
    %v7657 = vld [vmem:[#allocation7 + $0x90] sm:$0xff]
    %v7658 = vld [vmem:[#allocation7 + $0x98] sm:$0xff]
    %v7659 = vld [vmem:[#allocation7 + $0xa0] sm:$0xff]
    %v7660 = vld [vmem:[#allocation7 + $0xa8] sm:$0xff]
    %v7661 = vld [vmem:[#allocation7 + $0xb0] sm:$0xff]
    %v7662 = vld [vmem:[#allocation7 + $0xb8] sm:$0xff]
    %v7663 = vld [vmem:[#allocation7 + $0xc0] sm:$0xff]
    %v7664 = vld [vmem:[#allocation7 + $0xc8] sm:$0xff]
    %v7665 = vld [vmem:[#allocation7 + $0xd0] sm:$0xff]
    %v7666 = vld [vmem:[#allocation7 + $0xd8] sm:$0xff]
    %v7667 = vld [vmem:[#allocation7 + $0xe0] sm:$0xff]
    %v7668 = vld [vmem:[#allocation7 + $0xe8] sm:$0xff]
    %v7669 = vld [vmem:[#allocation7 + $0xf0] sm:$0xff]
    %v7670 = vld [vmem:[#allocation7 + $0xf8] sm:$0xff]
    %v7671 = vld [vmem:[#allocation7 + $0x100] sm:$0xff]
    %v7672 = vld [vmem:[#allocation7 + $0x108] sm:$0xff]
    %v7673 = vld [vmem:[#allocation7 + $0x110] sm:$0xff]
    %v7674 = vld [vmem:[#allocation7 + $0x118] sm:$0xff]
    %v7675 = vld [vmem:[#allocation7 + $0x120] sm:$0xff]
    %v7676 = vld [vmem:[#allocation7 + $0x128] sm:$0xff]
    %v7677 = vld [vmem:[#allocation7 + $0x130] sm:$0xff]
    %v7678 = vld [vmem:[#allocation7 + $0x138] sm:$0xff]
    %v7679 = vld [vmem:[#allocation7 + $0x140] sm:$0xff]
    %v7680 = vld [vmem:[#allocation7 + $0x148] sm:$0xff]
    %v7681 = vld [vmem:[#allocation7 + $0x150] sm:$0xff]
    %v7682 = vld [vmem:[#allocation7 + $0x158] sm:$0xff]
    %v7683 = vld [vmem:[#allocation7 + $0x160] sm:$0xff]
    %v7684 = vld [vmem:[#allocation7 + $0x168] sm:$0xff]
    %v7685 = vld [vmem:[#allocation7 + $0x170] sm:$0xff]
    %v7686 = vld [vmem:[#allocation7 + $0x178] sm:$0xff]
    %v7687 = vld [vmem:[#allocation7 + $0x180] sm:$0xff]
    %v7688 = vld [vmem:[#allocation7 + $0x188] sm:$0xff]
    %v7689 = vld [vmem:[#allocation7 + $0x190] sm:$0xff]
    %v7690 = vld [vmem:[#allocation7 + $0x198] sm:$0xff]
    %v7691 = vld [vmem:[#allocation7 + $0x1a0] sm:$0xff]
    %v7692 = vld [vmem:[#allocation7 + $0x1a8] sm:$0xff]
    %v7693 = vld [vmem:[#allocation7 + $0x1b0] sm:$0xff]
    %v7694 = vld [vmem:[#allocation7 + $0x1b8] sm:$0xff]
    %v7695 = vld [vmem:[#allocation7 + $0x1c0] sm:$0xff]
    %v7696 = vld [vmem:[#allocation7 + $0x1c8] sm:$0xff]
    %v7697 = vld [vmem:[#allocation7 + $0x1d0] sm:$0xff]
    %v7698 = vld [vmem:[#allocation7 + $0x1d8] sm:$0xff]
    %v7699 = vld [vmem:[#allocation7 + $0x1e0] sm:$0xff]
    %v7700 = vld [vmem:[#allocation7 + $0x1e8] sm:$0xff]
    %v7701 = vld [vmem:[#allocation7 + $0x1f0] sm:$0xff]
    %v7702 = vld [vmem:[#allocation7 + $0x1f8] sm:$0xff]
    %7703 = vmatpush.msra.mxu0 %v7699
    %7704 = vmatpush.msra.mxu0 %v7695
    %7705 = vmatpush.msra.mxu0 %v7691
    %7706 = vmatpush.msra.mxu0 %v7687
    %7707 = vmatpush.msra.mxu0 %v7683
    %7708 = vmatpush.msra.mxu0 %v7679
    %7709 = vmatpush.msra.mxu0 %v7675
    %7710 = vmatpush.msra.mxu0 %v7671
    %7711 = vmatpush.msra.mxu0 %v7667
    %7712 = vmatpush.msra.mxu0 %v7663
    %7713 = vmatpush.msra.mxu0 %v7659
    %7714 = vmatpush.msra.mxu0 %v7655
    %7715 = vmatpush.msra.mxu0 %v7651
    %7716 = vmatpush.msra.mxu0 %v7647
    %7717 = vmatpush.msra.mxu0 %v7643
    %7718 = vmatpush.msra.mxu0 %v7639
    %7719 = vmatmul.f32.gmra.mxu0 %v7637
    %v7720 = vpop.f32.mrf.mxu0
    %v7721 = vadd.f32 0.0, %v7720
    %7722 = vdwg.mxu0
    %7723 = vmatpush.msra.mxu0 %v7700
    %7724 = vmatpush.msra.mxu0 %v7696
    %7725 = vmatpush.msra.mxu0 %v7692
    %7726 = vmatpush.msra.mxu0 %v7688
    %7727 = vmatpush.msra.mxu0 %v7684
    %7728 = vmatpush.msra.mxu0 %v7680
    %7729 = vmatpush.msra.mxu0 %v7676
    %7730 = vmatpush.msra.mxu0 %v7672
    %7731 = vmatpush.msra.mxu0 %v7668
    %7732 = vmatpush.msra.mxu0 %v7664
    %7733 = vmatpush.msra.mxu0 %v7660
    %7734 = vmatpush.msra.mxu0 %v7656
    %7735 = vmatpush.msra.mxu0 %v7652
    %7736 = vmatpush.msra.mxu0 %v7648
    %7737 = vmatpush.msra.mxu0 %v7644
    %7738 = vmatpush.msra.mxu0 %v7640
    %7739 = vmatmul.f32.gmra.mxu0 %v7637
    %v7740 = vpop.f32.mrf.mxu0
    %v7741 = vadd.f32 0.0, %v7740
    %7742 = vdwg.mxu0
    %7743 = vmatpush.msra.mxu0 %v7701
    %7744 = vmatpush.msra.mxu0 %v7697
    %7745 = vmatpush.msra.mxu0 %v7693
    %7746 = vmatpush.msra.mxu0 %v7689
    %7747 = vmatpush.msra.mxu0 %v7685
    %7748 = vmatpush.msra.mxu0 %v7681
    %7749 = vmatpush.msra.mxu0 %v7677
    %7750 = vmatpush.msra.mxu0 %v7673
    %7751 = vmatpush.msra.mxu0 %v7669
    %7752 = vmatpush.msra.mxu0 %v7665
    %7753 = vmatpush.msra.mxu0 %v7661
    %7754 = vmatpush.msra.mxu0 %v7657
    %7755 = vmatpush.msra.mxu0 %v7653
    %7756 = vmatpush.msra.mxu0 %v7649
    %7757 = vmatpush.msra.mxu0 %v7645
    %7758 = vmatpush.msra.mxu0 %v7641
    %7759 = vmatmul.f32.gmra.mxu0 %v7637
    %v7760 = vpop.f32.mrf.mxu0
    %v7761 = vadd.f32 0.0, %v7760
    %7762 = vdwg.mxu0
    %7763 = vmatpush.msra.mxu0 %v7702
    %7764 = vmatpush.msra.mxu0 %v7698
    %7765 = vmatpush.msra.mxu0 %v7694
    %7766 = vmatpush.msra.mxu0 %v7690
    %7767 = vmatpush.msra.mxu0 %v7686
    %7768 = vmatpush.msra.mxu0 %v7682
    %7769 = vmatpush.msra.mxu0 %v7678
    %7770 = vmatpush.msra.mxu0 %v7674
    %7771 = vmatpush.msra.mxu0 %v7670
    %7772 = vmatpush.msra.mxu0 %v7666
    %7773 = vmatpush.msra.mxu0 %v7662
    %7774 = vmatpush.msra.mxu0 %v7658
    %7775 = vmatpush.msra.mxu0 %v7654
    %7776 = vmatpush.msra.mxu0 %v7650
    %7777 = vmatpush.msra.mxu0 %v7646
    %7778 = vmatpush.msra.mxu0 %v7642
    %7779 = vmatmul.f32.gmra.mxu0 %v7637
    %v7780 = vpop.f32.mrf.mxu0
    %v7781 = vadd.f32 0.0, %v7780
    %7782 = vdwg.mxu0
    %v7787 = vrot.slane %v7741, 7
    %v7788 = vrot.slane %v7761, 6
    %v7789 = vrot.slane %v7781, 5
    %v7790 = vsel %vm259, %v7721, %v7787
    %v7791 = vsel %vm261, %v7788, %v7789
    %v7792 = vsel %vm263, %v7790, %v7791
    %v7793 = vsel %vm265, %v7721, %v7787
    %v7794 = vsel %vm267, %v7788, %v7789
    %v7795 = vsel %vm269, %v7793, %v7794
    %v7796 = vrot.slane %v7795, 1
    %v7797 = vsel %vm261, %v7721, %v7787
    %v7798 = vsel %vm273, %v7788, %v7789
    %v7799 = vsel %vm275, %v7797, %v7798
    %v7800 = vrot.slane %v7799, 2
    %v7801 = vsel %vm267, %v7721, %v7787
    %v7802 = vsel %vm279, %v7788, %v7789
    %v7803 = vsel %vm281, %v7801, %v7802
    %v7804 = vrot.slane %v7803, 3
    %v7805 = vsel %vm273, %v7721, %v7787
    %v7806 = vsel %vm285, %v7788, %v7789
    %v7807 = vsel %vm287, %v7805, %v7806
    %v7808 = vrot.slane %v7807, 4
    %v7809 = vsel %vm279, %v7721, %v7787
    %v7810 = vsel %vm291, %v7789, %v7788
    %v7811 = vsel %vm293, %v7809, %v7810
    %v7812 = vrot.slane %v7811, 5
    %v7813 = vsel %vm285, %v7721, %v7787
    %v7814 = vsel %vm259, %v7788, %v7789
    %v7815 = vsel %vm298, %v7814, %v7813
    %v7816 = vrot.slane %v7815, 6
    %v7817 = vsel %vm291, %v7787, %v7721
    %v7818 = vsel %vm265, %v7788, %v7789
    %v7819 = vsel %vm303, %v7818, %v7817
    %v7820 = vrot.slane %v7819, 7
    %v7829 = vadd.f32 %v7622, %v7792
    %v7830 = vadd.f32 %v7624, %v7796
    %v7831 = vadd.f32 %v7626, %v7800
    %v7832 = vadd.f32 %v7628, %v7804
    %v7833 = vadd.f32 %v7630, %v7808
    %v7834 = vadd.f32 %v7632, %v7812
    %v7835 = vadd.f32 %v7634, %v7816
    %v7836 = vadd.f32 %v7636, %v7820
    %v7837 = vxor.u32 %v7829, 2147483648
    %v7838 = vxor.u32 %v7830, 2147483648
    %v7839 = vxor.u32 %v7831, 2147483648
    %v7840 = vxor.u32 %v7832, 2147483648
    %v7841 = vxor.u32 %v7833, 2147483648
    %v7842 = vxor.u32 %v7834, 2147483648
    %v7843 = vxor.u32 %v7835, 2147483648
    %v7844 = vxor.u32 %v7836, 2147483648
    %v7845 = vmul.f32 %v7837, 1.442695
    %v7846 = vpow.pop %v7845
    %v7847 = vmul.f32 %v7838, 1.442695
    %v7848 = vpow.pop %v7847
    %v7849 = vmul.f32 %v7839, 1.442695
    %v7850 = vpow.pop %v7849
    %v7851 = vmul.f32 %v7840, 1.442695
    %v7852 = vpow.pop %v7851
    %v7853 = vmul.f32 %v7841, 1.442695
    %v7854 = vpow.pop %v7853
    %v7855 = vmul.f32 %v7842, 1.442695
    %v7856 = vpow.pop %v7855
    %v7857 = vmul.f32 %v7843, 1.442695
    %v7858 = vpow.pop %v7857
    %v7859 = vmul.f32 %v7844, 1.442695
    %v7860 = vpow.pop %v7859
    %v7861 = vadd.f32 %v7846, 1.0
    %v7862 = vadd.f32 %v7848, 1.0
    %v7863 = vadd.f32 %v7850, 1.0
    %v7864 = vadd.f32 %v7852, 1.0
    %v7865 = vadd.f32 %v7854, 1.0
    %v7866 = vadd.f32 %v7856, 1.0
    %v7867 = vadd.f32 %v7858, 1.0
    %v7868 = vadd.f32 %v7860, 1.0
    %v7869 = vrcp.pop %v7861
    %v7870 = vmul.f32 %v7861, %v7869
    %v7871 = vsub.f32 1.0, %v7870
    %v7872 = vmul.f32 %v7869, %v7871
    %v7873 = vadd.f32 %v7869, %v7872
    %vm7874 = vweird.f32 %v7861
    %vm7875 = vweird.f32 %v7869
    %vm7876 = vmor %vm7874, %vm7875
    %v7877 = vsel %vm7876, %v7869, %v7873
    %v7878 = vand.u32 2147483647, %v7861
    %vm7879 = vcmp.eq.f32.partialorder %v7878, 8.507059e+37
    %v7880 = vand.u32 %v7861, 2147483648
    %v7881 = vor.u32 1.1754944e-38, %v7880
    %v7882 = vsel %vm7879, %v7881, %v7877
    %v7883 = vmul.f32 1.0, %v7882
    %v7884 = vrcp.pop %v7862
    %v7885 = vmul.f32 %v7862, %v7884
    %v7886 = vsub.f32 1.0, %v7885
    %v7887 = vmul.f32 %v7884, %v7886
    %v7888 = vadd.f32 %v7884, %v7887
    %vm7889 = vweird.f32 %v7862
    %vm7890 = vweird.f32 %v7884
    %vm7891 = vmor %vm7889, %vm7890
    %v7892 = vsel %vm7891, %v7884, %v7888
    %v7893 = vand.u32 2147483647, %v7862
    %vm7894 = vcmp.eq.f32.partialorder %v7893, 8.507059e+37
    %v7895 = vand.u32 %v7862, 2147483648
    %v7896 = vor.u32 1.1754944e-38, %v7895
    %v7897 = vsel %vm7894, %v7896, %v7892
    %v7898 = vmul.f32 1.0, %v7897
    %v7899 = vrcp.pop %v7863
    %v7900 = vmul.f32 %v7863, %v7899
    %v7901 = vsub.f32 1.0, %v7900
    %v7902 = vmul.f32 %v7899, %v7901
    %v7903 = vadd.f32 %v7899, %v7902
    %vm7904 = vweird.f32 %v7863
    %vm7905 = vweird.f32 %v7899
    %vm7906 = vmor %vm7904, %vm7905
    %v7907 = vsel %vm7906, %v7899, %v7903
    %v7908 = vand.u32 2147483647, %v7863
    %vm7909 = vcmp.eq.f32.partialorder %v7908, 8.507059e+37
    %v7910 = vand.u32 %v7863, 2147483648
    %v7911 = vor.u32 1.1754944e-38, %v7910
    %v7912 = vsel %vm7909, %v7911, %v7907
    %v7913 = vmul.f32 1.0, %v7912
    %v7914 = vrcp.pop %v7864
    %v7915 = vmul.f32 %v7864, %v7914
    %v7916 = vsub.f32 1.0, %v7915
    %v7917 = vmul.f32 %v7914, %v7916
    %v7918 = vadd.f32 %v7914, %v7917
    %vm7919 = vweird.f32 %v7864
    %vm7920 = vweird.f32 %v7914
    %vm7921 = vmor %vm7919, %vm7920
    %v7922 = vsel %vm7921, %v7914, %v7918
    %v7923 = vand.u32 2147483647, %v7864
    %vm7924 = vcmp.eq.f32.partialorder %v7923, 8.507059e+37
    %v7925 = vand.u32 %v7864, 2147483648
    %v7926 = vor.u32 1.1754944e-38, %v7925
    %v7927 = vsel %vm7924, %v7926, %v7922
    %v7928 = vmul.f32 1.0, %v7927
    %v7929 = vrcp.pop %v7865
    %v7930 = vmul.f32 %v7865, %v7929
    %v7931 = vsub.f32 1.0, %v7930
    %v7932 = vmul.f32 %v7929, %v7931
    %v7933 = vadd.f32 %v7929, %v7932
    %vm7934 = vweird.f32 %v7865
    %vm7935 = vweird.f32 %v7929
    %vm7936 = vmor %vm7934, %vm7935
    %v7937 = vsel %vm7936, %v7929, %v7933
    %v7938 = vand.u32 2147483647, %v7865
    %vm7939 = vcmp.eq.f32.partialorder %v7938, 8.507059e+37
    %v7940 = vand.u32 %v7865, 2147483648
    %v7941 = vor.u32 1.1754944e-38, %v7940
    %v7942 = vsel %vm7939, %v7941, %v7937
    %v7943 = vmul.f32 1.0, %v7942
    %v7944 = vrcp.pop %v7866
    %v7945 = vmul.f32 %v7866, %v7944
    %v7946 = vsub.f32 1.0, %v7945
    %v7947 = vmul.f32 %v7944, %v7946
    %v7948 = vadd.f32 %v7944, %v7947
    %vm7949 = vweird.f32 %v7866
    %vm7950 = vweird.f32 %v7944
    %vm7951 = vmor %vm7949, %vm7950
    %v7952 = vsel %vm7951, %v7944, %v7948
    %v7953 = vand.u32 2147483647, %v7866
    %vm7954 = vcmp.eq.f32.partialorder %v7953, 8.507059e+37
    %v7955 = vand.u32 %v7866, 2147483648
    %v7956 = vor.u32 1.1754944e-38, %v7955
    %v7957 = vsel %vm7954, %v7956, %v7952
    %v7958 = vmul.f32 1.0, %v7957
    %v7959 = vrcp.pop %v7867
    %v7960 = vmul.f32 %v7867, %v7959
    %v7961 = vsub.f32 1.0, %v7960
    %v7962 = vmul.f32 %v7959, %v7961
    %v7963 = vadd.f32 %v7959, %v7962
    %vm7964 = vweird.f32 %v7867
    %vm7965 = vweird.f32 %v7959
    %vm7966 = vmor %vm7964, %vm7965
    %v7967 = vsel %vm7966, %v7959, %v7963
    %v7968 = vand.u32 2147483647, %v7867
    %vm7969 = vcmp.eq.f32.partialorder %v7968, 8.507059e+37
    %v7970 = vand.u32 %v7867, 2147483648
    %v7971 = vor.u32 1.1754944e-38, %v7970
    %v7972 = vsel %vm7969, %v7971, %v7967
    %v7973 = vmul.f32 1.0, %v7972
    %v7974 = vrcp.pop %v7868
    %v7975 = vmul.f32 %v7868, %v7974
    %v7976 = vsub.f32 1.0, %v7975
    %v7977 = vmul.f32 %v7974, %v7976
    %v7978 = vadd.f32 %v7974, %v7977
    %vm7979 = vweird.f32 %v7868
    %vm7980 = vweird.f32 %v7974
    %vm7981 = vmor %vm7979, %vm7980
    %v7982 = vsel %vm7981, %v7974, %v7978
    %v7983 = vand.u32 2147483647, %v7868
    %vm7984 = vcmp.eq.f32.partialorder %v7983, 8.507059e+37
    %v7985 = vand.u32 %v7868, 2147483648
    %v7986 = vor.u32 1.1754944e-38, %v7985
    %v7987 = vsel %vm7984, %v7986, %v7982
    %v7988 = vmul.f32 1.0, %v7987
    %v7997 = vrot.slane %v7829, 1
    %v7998 = vrot.slane %v7830, 1
    %v7999 = vrot.slane %v7831, 1
    %v8000 = vrot.slane %v7832, 1
    %v8001 = vrot.slane %v7833, 1
    %v8002 = vrot.slane %v7834, 1
    %v8003 = vrot.slane %v7835, 1
    %v8004 = vrot.slane %v7836, 1
    %v8013 = vxor.u32 %v7997, 2147483648
    %v8014 = vxor.u32 %v7998, 2147483648
    %v8015 = vxor.u32 %v7999, 2147483648
    %v8016 = vxor.u32 %v8000, 2147483648
    %v8017 = vxor.u32 %v8001, 2147483648
    %v8018 = vxor.u32 %v8002, 2147483648
    %v8019 = vxor.u32 %v8003, 2147483648
    %v8020 = vxor.u32 %v8004, 2147483648
    %v8021 = vmul.f32 %v8013, 1.442695
    %v8022 = vpow.pop %v8021
    %v8023 = vmul.f32 %v8014, 1.442695
    %v8024 = vpow.pop %v8023
    %v8025 = vmul.f32 %v8015, 1.442695
    %v8026 = vpow.pop %v8025
    %v8027 = vmul.f32 %v8016, 1.442695
    %v8028 = vpow.pop %v8027
    %v8029 = vmul.f32 %v8017, 1.442695
    %v8030 = vpow.pop %v8029
    %v8031 = vmul.f32 %v8018, 1.442695
    %v8032 = vpow.pop %v8031
    %v8033 = vmul.f32 %v8019, 1.442695
    %v8034 = vpow.pop %v8033
    %v8035 = vmul.f32 %v8020, 1.442695
    %v8036 = vpow.pop %v8035
    %v8037 = vadd.f32 %v8022, 1.0
    %v8038 = vadd.f32 %v8024, 1.0
    %v8039 = vadd.f32 %v8026, 1.0
    %v8040 = vadd.f32 %v8028, 1.0
    %v8041 = vadd.f32 %v8030, 1.0
    %v8042 = vadd.f32 %v8032, 1.0
    %v8043 = vadd.f32 %v8034, 1.0
    %v8044 = vadd.f32 %v8036, 1.0
    %v8045 = vrcp.pop %v8037
    %v8046 = vmul.f32 %v8037, %v8045
    %v8047 = vsub.f32 1.0, %v8046
    %v8048 = vmul.f32 %v8045, %v8047
    %v8049 = vadd.f32 %v8045, %v8048
    %vm8050 = vweird.f32 %v8037
    %vm8051 = vweird.f32 %v8045
    %vm8052 = vmor %vm8050, %vm8051
    %v8053 = vsel %vm8052, %v8045, %v8049
    %v8054 = vand.u32 2147483647, %v8037
    %vm8055 = vcmp.eq.f32.partialorder %v8054, 8.507059e+37
    %v8056 = vand.u32 %v8037, 2147483648
    %v8057 = vor.u32 1.1754944e-38, %v8056
    %v8058 = vsel %vm8055, %v8057, %v8053
    %v8059 = vmul.f32 1.0, %v8058
    %v8060 = vrcp.pop %v8038
    %v8061 = vmul.f32 %v8038, %v8060
    %v8062 = vsub.f32 1.0, %v8061
    %v8063 = vmul.f32 %v8060, %v8062
    %v8064 = vadd.f32 %v8060, %v8063
    %vm8065 = vweird.f32 %v8038
    %vm8066 = vweird.f32 %v8060
    %vm8067 = vmor %vm8065, %vm8066
    %v8068 = vsel %vm8067, %v8060, %v8064
    %v8069 = vand.u32 2147483647, %v8038
    %vm8070 = vcmp.eq.f32.partialorder %v8069, 8.507059e+37
    %v8071 = vand.u32 %v8038, 2147483648
    %v8072 = vor.u32 1.1754944e-38, %v8071
    %v8073 = vsel %vm8070, %v8072, %v8068
    %v8074 = vmul.f32 1.0, %v8073
    %v8075 = vrcp.pop %v8039
    %v8076 = vmul.f32 %v8039, %v8075
    %v8077 = vsub.f32 1.0, %v8076
    %v8078 = vmul.f32 %v8075, %v8077
    %v8079 = vadd.f32 %v8075, %v8078
    %vm8080 = vweird.f32 %v8039
    %vm8081 = vweird.f32 %v8075
    %vm8082 = vmor %vm8080, %vm8081
    %v8083 = vsel %vm8082, %v8075, %v8079
    %v8084 = vand.u32 2147483647, %v8039
    %vm8085 = vcmp.eq.f32.partialorder %v8084, 8.507059e+37
    %v8086 = vand.u32 %v8039, 2147483648
    %v8087 = vor.u32 1.1754944e-38, %v8086
    %v8088 = vsel %vm8085, %v8087, %v8083
    %v8089 = vmul.f32 1.0, %v8088
    %v8090 = vrcp.pop %v8040
    %v8091 = vmul.f32 %v8040, %v8090
    %v8092 = vsub.f32 1.0, %v8091
    %v8093 = vmul.f32 %v8090, %v8092
    %v8094 = vadd.f32 %v8090, %v8093
    %vm8095 = vweird.f32 %v8040
    %vm8096 = vweird.f32 %v8090
    %vm8097 = vmor %vm8095, %vm8096
    %v8098 = vsel %vm8097, %v8090, %v8094
    %v8099 = vand.u32 2147483647, %v8040
    %vm8100 = vcmp.eq.f32.partialorder %v8099, 8.507059e+37
    %v8101 = vand.u32 %v8040, 2147483648
    %v8102 = vor.u32 1.1754944e-38, %v8101
    %v8103 = vsel %vm8100, %v8102, %v8098
    %v8104 = vmul.f32 1.0, %v8103
    %v8105 = vrcp.pop %v8041
    %v8106 = vmul.f32 %v8041, %v8105
    %v8107 = vsub.f32 1.0, %v8106
    %v8108 = vmul.f32 %v8105, %v8107
    %v8109 = vadd.f32 %v8105, %v8108
    %vm8110 = vweird.f32 %v8041
    %vm8111 = vweird.f32 %v8105
    %vm8112 = vmor %vm8110, %vm8111
    %v8113 = vsel %vm8112, %v8105, %v8109
    %v8114 = vand.u32 2147483647, %v8041
    %vm8115 = vcmp.eq.f32.partialorder %v8114, 8.507059e+37
    %v8116 = vand.u32 %v8041, 2147483648
    %v8117 = vor.u32 1.1754944e-38, %v8116
    %v8118 = vsel %vm8115, %v8117, %v8113
    %v8119 = vmul.f32 1.0, %v8118
    %v8120 = vrcp.pop %v8042
    %v8121 = vmul.f32 %v8042, %v8120
    %v8122 = vsub.f32 1.0, %v8121
    %v8123 = vmul.f32 %v8120, %v8122
    %v8124 = vadd.f32 %v8120, %v8123
    %vm8125 = vweird.f32 %v8042
    %vm8126 = vweird.f32 %v8120
    %vm8127 = vmor %vm8125, %vm8126
    %v8128 = vsel %vm8127, %v8120, %v8124
    %v8129 = vand.u32 2147483647, %v8042
    %vm8130 = vcmp.eq.f32.partialorder %v8129, 8.507059e+37
    %v8131 = vand.u32 %v8042, 2147483648
    %v8132 = vor.u32 1.1754944e-38, %v8131
    %v8133 = vsel %vm8130, %v8132, %v8128
    %v8134 = vmul.f32 1.0, %v8133
    %v8135 = vrcp.pop %v8043
    %v8136 = vmul.f32 %v8043, %v8135
    %v8137 = vsub.f32 1.0, %v8136
    %v8138 = vmul.f32 %v8135, %v8137
    %v8139 = vadd.f32 %v8135, %v8138
    %vm8140 = vweird.f32 %v8043
    %vm8141 = vweird.f32 %v8135
    %vm8142 = vmor %vm8140, %vm8141
    %v8143 = vsel %vm8142, %v8135, %v8139
    %v8144 = vand.u32 2147483647, %v8043
    %vm8145 = vcmp.eq.f32.partialorder %v8144, 8.507059e+37
    %v8146 = vand.u32 %v8043, 2147483648
    %v8147 = vor.u32 1.1754944e-38, %v8146
    %v8148 = vsel %vm8145, %v8147, %v8143
    %v8149 = vmul.f32 1.0, %v8148
    %v8150 = vrcp.pop %v8044
    %v8151 = vmul.f32 %v8044, %v8150
    %v8152 = vsub.f32 1.0, %v8151
    %v8153 = vmul.f32 %v8150, %v8152
    %v8154 = vadd.f32 %v8150, %v8153
    %vm8155 = vweird.f32 %v8044
    %vm8156 = vweird.f32 %v8150
    %vm8157 = vmor %vm8155, %vm8156
    %v8158 = vsel %vm8157, %v8150, %v8154
    %v8159 = vand.u32 2147483647, %v8044
    %vm8160 = vcmp.eq.f32.partialorder %v8159, 8.507059e+37
    %v8161 = vand.u32 %v8044, 2147483648
    %v8162 = vor.u32 1.1754944e-38, %v8161
    %v8163 = vsel %vm8160, %v8162, %v8158
    %v8164 = vmul.f32 1.0, %v8163
    %v8165 = vrot.slane %v7829, 2
    %v8166 = vrot.slane %v7830, 2
    %v8167 = vrot.slane %v7831, 2
    %v8168 = vrot.slane %v7832, 2
    %v8169 = vrot.slane %v7833, 2
    %v8170 = vrot.slane %v7834, 2
    %v8171 = vrot.slane %v7835, 2
    %v8172 = vrot.slane %v7836, 2
    %v8181 = vtanh.pop %v8165
    %v8182 = vtanh.pop %v8166
    %v8183 = vtanh.pop %v8167
    %v8184 = vtanh.pop %v8168
    %v8185 = vtanh.pop %v8169
    %v8186 = vtanh.pop %v8170
    %v8187 = vtanh.pop %v8171
    %v8188 = vtanh.pop %v8172
    %v8189 = vrot.slane %v7829, 3
    %v8190 = vrot.slane %v7830, 3
    %v8191 = vrot.slane %v7831, 3
    %v8192 = vrot.slane %v7832, 3
    %v8193 = vrot.slane %v7833, 3
    %v8194 = vrot.slane %v7834, 3
    %v8195 = vrot.slane %v7835, 3
    %v8196 = vrot.slane %v7836, 3
    %v8205 = vxor.u32 %v8189, 2147483648
    %v8206 = vxor.u32 %v8190, 2147483648
    %v8207 = vxor.u32 %v8191, 2147483648
    %v8208 = vxor.u32 %v8192, 2147483648
    %v8209 = vxor.u32 %v8193, 2147483648
    %v8210 = vxor.u32 %v8194, 2147483648
    %v8211 = vxor.u32 %v8195, 2147483648
    %v8212 = vxor.u32 %v8196, 2147483648
    %v8213 = vmul.f32 %v8205, 1.442695
    %v8214 = vpow.pop %v8213
    %v8215 = vmul.f32 %v8206, 1.442695
    %v8216 = vpow.pop %v8215
    %v8217 = vmul.f32 %v8207, 1.442695
    %v8218 = vpow.pop %v8217
    %v8219 = vmul.f32 %v8208, 1.442695
    %v8220 = vpow.pop %v8219
    %v8221 = vmul.f32 %v8209, 1.442695
    %v8222 = vpow.pop %v8221
    %v8223 = vmul.f32 %v8210, 1.442695
    %v8224 = vpow.pop %v8223
    %v8225 = vmul.f32 %v8211, 1.442695
    %v8226 = vpow.pop %v8225
    %v8227 = vmul.f32 %v8212, 1.442695
    %v8228 = vpow.pop %v8227
    %v8229 = vadd.f32 %v8214, 1.0
    %v8230 = vadd.f32 %v8216, 1.0
    %v8231 = vadd.f32 %v8218, 1.0
    %v8232 = vadd.f32 %v8220, 1.0
    %v8233 = vadd.f32 %v8222, 1.0
    %v8234 = vadd.f32 %v8224, 1.0
    %v8235 = vadd.f32 %v8226, 1.0
    %v8236 = vadd.f32 %v8228, 1.0
    %v8237 = vrcp.pop %v8229
    %v8238 = vmul.f32 %v8229, %v8237
    %v8239 = vsub.f32 1.0, %v8238
    %v8240 = vmul.f32 %v8237, %v8239
    %v8241 = vadd.f32 %v8237, %v8240
    %vm8242 = vweird.f32 %v8229
    %vm8243 = vweird.f32 %v8237
    %vm8244 = vmor %vm8242, %vm8243
    %v8245 = vsel %vm8244, %v8237, %v8241
    %v8246 = vand.u32 2147483647, %v8229
    %vm8247 = vcmp.eq.f32.partialorder %v8246, 8.507059e+37
    %v8248 = vand.u32 %v8229, 2147483648
    %v8249 = vor.u32 1.1754944e-38, %v8248
    %v8250 = vsel %vm8247, %v8249, %v8245
    %v8251 = vmul.f32 1.0, %v8250
    %v8252 = vrcp.pop %v8230
    %v8253 = vmul.f32 %v8230, %v8252
    %v8254 = vsub.f32 1.0, %v8253
    %v8255 = vmul.f32 %v8252, %v8254
    %v8256 = vadd.f32 %v8252, %v8255
    %vm8257 = vweird.f32 %v8230
    %vm8258 = vweird.f32 %v8252
    %vm8259 = vmor %vm8257, %vm8258
    %v8260 = vsel %vm8259, %v8252, %v8256
    %v8261 = vand.u32 2147483647, %v8230
    %vm8262 = vcmp.eq.f32.partialorder %v8261, 8.507059e+37
    %v8263 = vand.u32 %v8230, 2147483648
    %v8264 = vor.u32 1.1754944e-38, %v8263
    %v8265 = vsel %vm8262, %v8264, %v8260
    %v8266 = vmul.f32 1.0, %v8265
    %v8267 = vrcp.pop %v8231
    %v8268 = vmul.f32 %v8231, %v8267
    %v8269 = vsub.f32 1.0, %v8268
    %v8270 = vmul.f32 %v8267, %v8269
    %v8271 = vadd.f32 %v8267, %v8270
    %vm8272 = vweird.f32 %v8231
    %vm8273 = vweird.f32 %v8267
    %vm8274 = vmor %vm8272, %vm8273
    %v8275 = vsel %vm8274, %v8267, %v8271
    %v8276 = vand.u32 2147483647, %v8231
    %vm8277 = vcmp.eq.f32.partialorder %v8276, 8.507059e+37
    %v8278 = vand.u32 %v8231, 2147483648
    %v8279 = vor.u32 1.1754944e-38, %v8278
    %v8280 = vsel %vm8277, %v8279, %v8275
    %v8281 = vmul.f32 1.0, %v8280
    %v8282 = vrcp.pop %v8232
    %v8283 = vmul.f32 %v8232, %v8282
    %v8284 = vsub.f32 1.0, %v8283
    %v8285 = vmul.f32 %v8282, %v8284
    %v8286 = vadd.f32 %v8282, %v8285
    %vm8287 = vweird.f32 %v8232
    %vm8288 = vweird.f32 %v8282
    %vm8289 = vmor %vm8287, %vm8288
    %v8290 = vsel %vm8289, %v8282, %v8286
    %v8291 = vand.u32 2147483647, %v8232
    %vm8292 = vcmp.eq.f32.partialorder %v8291, 8.507059e+37
    %v8293 = vand.u32 %v8232, 2147483648
    %v8294 = vor.u32 1.1754944e-38, %v8293
    %v8295 = vsel %vm8292, %v8294, %v8290
    %v8296 = vmul.f32 1.0, %v8295
    %v8297 = vrcp.pop %v8233
    %v8298 = vmul.f32 %v8233, %v8297
    %v8299 = vsub.f32 1.0, %v8298
    %v8300 = vmul.f32 %v8297, %v8299
    %v8301 = vadd.f32 %v8297, %v8300
    %vm8302 = vweird.f32 %v8233
    %vm8303 = vweird.f32 %v8297
    %vm8304 = vmor %vm8302, %vm8303
    %v8305 = vsel %vm8304, %v8297, %v8301
    %v8306 = vand.u32 2147483647, %v8233
    %vm8307 = vcmp.eq.f32.partialorder %v8306, 8.507059e+37
    %v8308 = vand.u32 %v8233, 2147483648
    %v8309 = vor.u32 1.1754944e-38, %v8308
    %v8310 = vsel %vm8307, %v8309, %v8305
    %v8311 = vmul.f32 1.0, %v8310
    %v8312 = vrcp.pop %v8234
    %v8313 = vmul.f32 %v8234, %v8312
    %v8314 = vsub.f32 1.0, %v8313
    %v8315 = vmul.f32 %v8312, %v8314
    %v8316 = vadd.f32 %v8312, %v8315
    %vm8317 = vweird.f32 %v8234
    %vm8318 = vweird.f32 %v8312
    %vm8319 = vmor %vm8317, %vm8318
    %v8320 = vsel %vm8319, %v8312, %v8316
    %v8321 = vand.u32 2147483647, %v8234
    %vm8322 = vcmp.eq.f32.partialorder %v8321, 8.507059e+37
    %v8323 = vand.u32 %v8234, 2147483648
    %v8324 = vor.u32 1.1754944e-38, %v8323
    %v8325 = vsel %vm8322, %v8324, %v8320
    %v8326 = vmul.f32 1.0, %v8325
    %v8327 = vrcp.pop %v8235
    %v8328 = vmul.f32 %v8235, %v8327
    %v8329 = vsub.f32 1.0, %v8328
    %v8330 = vmul.f32 %v8327, %v8329
    %v8331 = vadd.f32 %v8327, %v8330
    %vm8332 = vweird.f32 %v8235
    %vm8333 = vweird.f32 %v8327
    %vm8334 = vmor %vm8332, %vm8333
    %v8335 = vsel %vm8334, %v8327, %v8331
    %v8336 = vand.u32 2147483647, %v8235
    %vm8337 = vcmp.eq.f32.partialorder %v8336, 8.507059e+37
    %v8338 = vand.u32 %v8235, 2147483648
    %v8339 = vor.u32 1.1754944e-38, %v8338
    %v8340 = vsel %vm8337, %v8339, %v8335
    %v8341 = vmul.f32 1.0, %v8340
    %v8342 = vrcp.pop %v8236
    %v8343 = vmul.f32 %v8236, %v8342
    %v8344 = vsub.f32 1.0, %v8343
    %v8345 = vmul.f32 %v8342, %v8344
    %v8346 = vadd.f32 %v8342, %v8345
    %vm8347 = vweird.f32 %v8236
    %vm8348 = vweird.f32 %v8342
    %vm8349 = vmor %vm8347, %vm8348
    %v8350 = vsel %vm8349, %v8342, %v8346
    %v8351 = vand.u32 2147483647, %v8236
    %vm8352 = vcmp.eq.f32.partialorder %v8351, 8.507059e+37
    %v8353 = vand.u32 %v8236, 2147483648
    %v8354 = vor.u32 1.1754944e-38, %v8353
    %v8355 = vsel %vm8352, %v8354, %v8350
    %v8356 = vmul.f32 1.0, %v8355
    %v8358 = vrot.slane %v7638, 1
    %v8359 = vrot.slane %v7638, 2
    %v8360 = vrot.slane %v7638, 3
    %v8361 = vrot.slane %v7638, 4
    %v8362 = vrot.slane %v7638, 5
    %v8363 = vrot.slane %v7638, 6
    %v8364 = vrot.slane %v7638, 7
    %v8372 = vmul.f32 %v8059, %v7638
    %v8373 = vmul.f32 %v8074, %v8358
    %v8374 = vmul.f32 %v8089, %v8359
    %v8375 = vmul.f32 %v8104, %v8360
    %v8376 = vmul.f32 %v8119, %v8361
    %v8377 = vmul.f32 %v8134, %v8362
    %v8378 = vmul.f32 %v8149, %v8363
    %v8379 = vmul.f32 %v8164, %v8364
    %v8380 = vmul.f32 %v7883, %v8181
    %v8381 = vmul.f32 %v7898, %v8182
    %v8382 = vmul.f32 %v7913, %v8183
    %v8383 = vmul.f32 %v7928, %v8184
    %v8384 = vmul.f32 %v7943, %v8185
    %v8385 = vmul.f32 %v7958, %v8186
    %v8386 = vmul.f32 %v7973, %v8187
    %v8387 = vmul.f32 %v7988, %v8188
    %v8388 = vadd.f32 %v8372, %v8380
    %v8389 = vadd.f32 %v8373, %v8381
    %v8390 = vadd.f32 %v8374, %v8382
    %v8391 = vadd.f32 %v8375, %v8383
    %v8392 = vadd.f32 %v8376, %v8384
    %v8393 = vadd.f32 %v8377, %v8385
    %v8394 = vadd.f32 %v8378, %v8386
    %v8395 = vadd.f32 %v8379, %v8387
    %v8396 = vtanh.pop %v8388
    %v8397 = vtanh.pop %v8389
    %v8398 = vtanh.pop %v8390
    %v8399 = vtanh.pop %v8391
    %v8400 = vtanh.pop %v8392
    %v8401 = vtanh.pop %v8393
    %v8402 = vtanh.pop %v8394
    %v8403 = vtanh.pop %v8395
    %v8404 = vmul.f32 %v8251, %v8396
    %v8405 = vmul.f32 %v8266, %v8397
    %v8406 = vmul.f32 %v8281, %v8398
    %v8407 = vmul.f32 %v8296, %v8399
    %v8408 = vmul.f32 %v8311, %v8400
    %v8409 = vmul.f32 %v8326, %v8401
    %v8410 = vmul.f32 %v8341, %v8402
    %v8411 = vmul.f32 %v8356, %v8403
    %8420 = vst [vmem:[#allocation1] ss:$9 sm:$0xff] %v8404
    %s8421 = scalar_lea.vmem [#allocation1], 1
    %8422 = vst [vmem:[%s8421] ss:$9 sm:$0xff] %v8405
    %s8423 = scalar_lea.vmem [#allocation1], 2
    %8424 = vst [vmem:[%s8423] ss:$9 sm:$0xff] %v8406
    %s8425 = scalar_lea.vmem [#allocation1], 3
    %8426 = vst [vmem:[%s8425] ss:$9 sm:$0xff] %v8407
    %s8427 = scalar_lea.vmem [#allocation1], 4
    %8428 = vst [vmem:[%s8427] ss:$9 sm:$0xff] %v8408
    %s8429 = scalar_lea.vmem [#allocation1], 5
    %8430 = vst [vmem:[%s8429] ss:$9 sm:$0xff] %v8409
    %s8431 = scalar_lea.vmem [#allocation1], 6
    %8432 = vst [vmem:[%s8431] ss:$9 sm:$0xff] %v8410
    %s8433 = scalar_lea.vmem [#allocation1], 7
    %8434 = vst [vmem:[%s8433] ss:$9 sm:$0xff] %v8411
    %v8435 = vld [vmem:[#allocation1] sm:$0xff]
    %8437 = vst [vmem:[#allocation2] sm:$0xff] %v8435
    %8446 = vst [vmem:[#allocation1] ss:$9 sm:$0xff] %v8388
    %s8447 = scalar_lea.vmem [#allocation1], 1
    %8448 = vst [vmem:[%s8447] ss:$9 sm:$0xff] %v8389
    %s8449 = scalar_lea.vmem [#allocation1], 2
    %8450 = vst [vmem:[%s8449] ss:$9 sm:$0xff] %v8390
    %s8451 = scalar_lea.vmem [#allocation1], 3
    %8452 = vst [vmem:[%s8451] ss:$9 sm:$0xff] %v8391
    %s8453 = scalar_lea.vmem [#allocation1], 4
    %8454 = vst [vmem:[%s8453] ss:$9 sm:$0xff] %v8392
    %s8455 = scalar_lea.vmem [#allocation1], 5
    %8456 = vst [vmem:[%s8455] ss:$9 sm:$0xff] %v8393
    %s8457 = scalar_lea.vmem [#allocation1], 6
    %8458 = vst [vmem:[%s8457] ss:$9 sm:$0xff] %v8394
    %s8459 = scalar_lea.vmem [#allocation1], 7
    %8460 = vst [vmem:[%s8459] ss:$9 sm:$0xff] %v8395
    %v8461 = vld [vmem:[#allocation1] sm:$0xff]
    %8463 = vst [vmem:[#allocation3] sm:$0xff] %v8461
    %v8464 = vld [vmem:[%s949] sm:$0xff]
    %v8465 = vld [vmem:[%s951] sm:$0xff]
    %v8466 = vld [vmem:[#allocation9] sm:$0xff]
    %v8467 = vld [vmem:[#allocation9 + $0x8] sm:$0xff]
    %v8468 = vld [vmem:[#allocation9 + $0x10] sm:$0xff]
    %v8469 = vld [vmem:[#allocation9 + $0x18] sm:$0xff]
    %v8470 = vld [vmem:[#allocation9 + $0x20] sm:$0xff]
    %v8471 = vld [vmem:[#allocation9 + $0x28] sm:$0xff]
    %v8472 = vld [vmem:[#allocation9 + $0x30] sm:$0xff]
    %v8473 = vld [vmem:[#allocation9 + $0x38] sm:$0xff]
    %v8474 = vld [vmem:[#allocation9 + $0x40] sm:$0xff]
    %v8475 = vld [vmem:[#allocation9 + $0x48] sm:$0xff]
    %v8476 = vld [vmem:[#allocation9 + $0x50] sm:$0xff]
    %v8477 = vld [vmem:[#allocation9 + $0x58] sm:$0xff]
    %v8478 = vld [vmem:[#allocation9 + $0x60] sm:$0xff]
    %v8479 = vld [vmem:[#allocation9 + $0x68] sm:$0xff]
    %v8480 = vld [vmem:[#allocation9 + $0x70] sm:$0xff]
    %v8481 = vld [vmem:[#allocation9 + $0x78] sm:$0xff]
    %v8482 = vld [vmem:[#allocation9 + $0x80] sm:$0xff]
    %v8483 = vld [vmem:[#allocation9 + $0x88] sm:$0xff]
    %v8484 = vld [vmem:[#allocation9 + $0x90] sm:$0xff]
    %v8485 = vld [vmem:[#allocation9 + $0x98] sm:$0xff]
    %v8486 = vld [vmem:[#allocation9 + $0xa0] sm:$0xff]
    %v8487 = vld [vmem:[#allocation9 + $0xa8] sm:$0xff]
    %v8488 = vld [vmem:[#allocation9 + $0xb0] sm:$0xff]
    %v8489 = vld [vmem:[#allocation9 + $0xb8] sm:$0xff]
    %v8490 = vld [vmem:[#allocation9 + $0xc0] sm:$0xff]
    %v8491 = vld [vmem:[#allocation9 + $0xc8] sm:$0xff]
    %v8492 = vld [vmem:[#allocation9 + $0xd0] sm:$0xff]
    %v8493 = vld [vmem:[#allocation9 + $0xd8] sm:$0xff]
    %v8494 = vld [vmem:[#allocation9 + $0xe0] sm:$0xff]
    %v8495 = vld [vmem:[#allocation9 + $0xe8] sm:$0xff]
    %v8496 = vld [vmem:[#allocation9 + $0xf0] sm:$0xff]
    %v8497 = vld [vmem:[#allocation9 + $0xf8] sm:$0xff]
    %v8498 = vld [vmem:[#allocation9 + $0x100] sm:$0xff]
    %v8499 = vld [vmem:[#allocation9 + $0x108] sm:$0xff]
    %v8500 = vld [vmem:[#allocation9 + $0x110] sm:$0xff]
    %v8501 = vld [vmem:[#allocation9 + $0x118] sm:$0xff]
    %v8502 = vld [vmem:[#allocation9 + $0x120] sm:$0xff]
    %v8503 = vld [vmem:[#allocation9 + $0x128] sm:$0xff]
    %v8504 = vld [vmem:[#allocation9 + $0x130] sm:$0xff]
    %v8505 = vld [vmem:[#allocation9 + $0x138] sm:$0xff]
    %v8506 = vld [vmem:[#allocation9 + $0x140] sm:$0xff]
    %v8507 = vld [vmem:[#allocation9 + $0x148] sm:$0xff]
    %v8508 = vld [vmem:[#allocation9 + $0x150] sm:$0xff]
    %v8509 = vld [vmem:[#allocation9 + $0x158] sm:$0xff]
    %v8510 = vld [vmem:[#allocation9 + $0x160] sm:$0xff]
    %v8511 = vld [vmem:[#allocation9 + $0x168] sm:$0xff]
    %v8512 = vld [vmem:[#allocation9 + $0x170] sm:$0xff]
    %v8513 = vld [vmem:[#allocation9 + $0x178] sm:$0xff]
    %v8514 = vld [vmem:[#allocation9 + $0x180] sm:$0xff]
    %v8515 = vld [vmem:[#allocation9 + $0x188] sm:$0xff]
    %v8516 = vld [vmem:[#allocation9 + $0x190] sm:$0xff]
    %v8517 = vld [vmem:[#allocation9 + $0x198] sm:$0xff]
    %v8518 = vld [vmem:[#allocation9 + $0x1a0] sm:$0xff]
    %v8519 = vld [vmem:[#allocation9 + $0x1a8] sm:$0xff]
    %v8520 = vld [vmem:[#allocation9 + $0x1b0] sm:$0xff]
    %v8521 = vld [vmem:[#allocation9 + $0x1b8] sm:$0xff]
    %v8522 = vld [vmem:[#allocation9 + $0x1c0] sm:$0xff]
    %v8523 = vld [vmem:[#allocation9 + $0x1c8] sm:$0xff]
    %v8524 = vld [vmem:[#allocation9 + $0x1d0] sm:$0xff]
    %v8525 = vld [vmem:[#allocation9 + $0x1d8] sm:$0xff]
    %v8526 = vld [vmem:[#allocation9 + $0x1e0] sm:$0xff]
    %v8527 = vld [vmem:[#allocation9 + $0x1e8] sm:$0xff]
    %v8528 = vld [vmem:[#allocation9 + $0x1f0] sm:$0xff]
    %v8529 = vld [vmem:[#allocation9 + $0x1f8] sm:$0xff]
    %v8530 = vld [vmem:[#allocation10] sm:$0xf]
    %v8532 = vperm.slane %v8530, 0
    %v8533 = vperm.slane %v8530, 1
    %v8534 = vperm.slane %v8530, 2
    %v8535 = vperm.slane %v8530, 3
    %8540 = vst [vmem:[#allocation1] ss:$9 sm:$0xff] %v8404
    %s8541 = scalar_lea.vmem [#allocation1], 1
    %8542 = vst [vmem:[%s8541] ss:$9 sm:$0xff] %v8405
    %s8543 = scalar_lea.vmem [#allocation1], 2
    %8544 = vst [vmem:[%s8543] ss:$9 sm:$0xff] %v8406
    %s8545 = scalar_lea.vmem [#allocation1], 3
    %8546 = vst [vmem:[%s8545] ss:$9 sm:$0xff] %v8407
    %s8547 = scalar_lea.vmem [#allocation1], 4
    %8548 = vst [vmem:[%s8547] ss:$9 sm:$0xff] %v8408
    %s8549 = scalar_lea.vmem [#allocation1], 5
    %8550 = vst [vmem:[%s8549] ss:$9 sm:$0xff] %v8409
    %s8551 = scalar_lea.vmem [#allocation1], 6
    %8552 = vst [vmem:[%s8551] ss:$9 sm:$0xff] %v8410
    %s8553 = scalar_lea.vmem [#allocation1], 7
    %8554 = vst [vmem:[%s8553] ss:$9 sm:$0xff] %v8411
    %v8555 = vld [vmem:[#allocation1] sm:$0xff]
    %8557 = vmatpush.msra.mxu0 %v8526
    %8558 = vmatpush.msra.mxu0 %v8522
    %8559 = vmatpush.msra.mxu0 %v8518
    %8560 = vmatpush.msra.mxu0 %v8514
    %8561 = vmatpush.msra.mxu0 %v8510
    %8562 = vmatpush.msra.mxu0 %v8506
    %8563 = vmatpush.msra.mxu0 %v8502
    %8564 = vmatpush.msra.mxu0 %v8498
    %8565 = vmatpush.msra.mxu0 %v8494
    %8566 = vmatpush.msra.mxu0 %v8490
    %8567 = vmatpush.msra.mxu0 %v8486
    %8568 = vmatpush.msra.mxu0 %v8482
    %8569 = vmatpush.msra.mxu0 %v8478
    %8570 = vmatpush.msra.mxu0 %v8474
    %8571 = vmatpush.msra.mxu0 %v8470
    %8572 = vmatpush.msra.mxu0 %v8466
    %8573 = vmatmul.f32.gmra.mxu0 %v8555
    %v8574 = vpop.f32.mrf.mxu0
    %v8575 = vadd.f32 %v8532, %v8574
    %8576 = vdwg.mxu0
    %8577 = vmatpush.msra.mxu0 %v8527
    %8578 = vmatpush.msra.mxu0 %v8523
    %8579 = vmatpush.msra.mxu0 %v8519
    %8580 = vmatpush.msra.mxu0 %v8515
    %8581 = vmatpush.msra.mxu0 %v8511
    %8582 = vmatpush.msra.mxu0 %v8507
    %8583 = vmatpush.msra.mxu0 %v8503
    %8584 = vmatpush.msra.mxu0 %v8499
    %8585 = vmatpush.msra.mxu0 %v8495
    %8586 = vmatpush.msra.mxu0 %v8491
    %8587 = vmatpush.msra.mxu0 %v8487
    %8588 = vmatpush.msra.mxu0 %v8483
    %8589 = vmatpush.msra.mxu0 %v8479
    %8590 = vmatpush.msra.mxu0 %v8475
    %8591 = vmatpush.msra.mxu0 %v8471
    %8592 = vmatpush.msra.mxu0 %v8467
    %8593 = vmatmul.f32.gmra.mxu0 %v8555
    %v8594 = vpop.f32.mrf.mxu0
    %v8595 = vadd.f32 %v8533, %v8594
    %8596 = vdwg.mxu0
    %8597 = vmatpush.msra.mxu0 %v8528
    %8598 = vmatpush.msra.mxu0 %v8524
    %8599 = vmatpush.msra.mxu0 %v8520
    %8600 = vmatpush.msra.mxu0 %v8516
    %8601 = vmatpush.msra.mxu0 %v8512
    %8602 = vmatpush.msra.mxu0 %v8508
    %8603 = vmatpush.msra.mxu0 %v8504
    %8604 = vmatpush.msra.mxu0 %v8500
    %8605 = vmatpush.msra.mxu0 %v8496
    %8606 = vmatpush.msra.mxu0 %v8492
    %8607 = vmatpush.msra.mxu0 %v8488
    %8608 = vmatpush.msra.mxu0 %v8484
    %8609 = vmatpush.msra.mxu0 %v8480
    %8610 = vmatpush.msra.mxu0 %v8476
    %8611 = vmatpush.msra.mxu0 %v8472
    %8612 = vmatpush.msra.mxu0 %v8468
    %8613 = vmatmul.f32.gmra.mxu0 %v8555
    %v8614 = vpop.f32.mrf.mxu0
    %v8615 = vadd.f32 %v8534, %v8614
    %8616 = vdwg.mxu0
    %8617 = vmatpush.msra.mxu0 %v8529
    %8618 = vmatpush.msra.mxu0 %v8525
    %8619 = vmatpush.msra.mxu0 %v8521
    %8620 = vmatpush.msra.mxu0 %v8517
    %8621 = vmatpush.msra.mxu0 %v8513
    %8622 = vmatpush.msra.mxu0 %v8509
    %8623 = vmatpush.msra.mxu0 %v8505
    %8624 = vmatpush.msra.mxu0 %v8501
    %8625 = vmatpush.msra.mxu0 %v8497
    %8626 = vmatpush.msra.mxu0 %v8493
    %8627 = vmatpush.msra.mxu0 %v8489
    %8628 = vmatpush.msra.mxu0 %v8485
    %8629 = vmatpush.msra.mxu0 %v8481
    %8630 = vmatpush.msra.mxu0 %v8477
    %8631 = vmatpush.msra.mxu0 %v8473
    %8632 = vmatpush.msra.mxu0 %v8469
    %8633 = vmatmul.f32.gmra.mxu0 %v8555
    %v8634 = vpop.f32.mrf.mxu0
    %v8635 = vadd.f32 %v8535, %v8634
    %8636 = vdwg.mxu0
    %v8637 = vld [vmem:[%s1124] sm:$0xff]
    %v8638 = vld [vmem:[%s1124 + $0x8] sm:$0xff]
    %v8639 = vld [vmem:[%s1124 + $0x10] sm:$0xff]
    %v8640 = vld [vmem:[%s1124 + $0x18] sm:$0xff]
    %v8641 = vld [vmem:[%s1124 + $0x20] sm:$0xff]
    %v8642 = vld [vmem:[%s1124 + $0x28] sm:$0xff]
    %v8643 = vld [vmem:[%s1124 + $0x30] sm:$0xff]
    %v8644 = vld [vmem:[%s1124 + $0x38] sm:$0xff]
    %v8645 = vld [vmem:[%s1124 + $0x40] sm:$0xff]
    %v8646 = vld [vmem:[%s1124 + $0x48] sm:$0xff]
    %v8647 = vld [vmem:[%s1124 + $0x50] sm:$0xff]
    %v8648 = vld [vmem:[%s1124 + $0x58] sm:$0xff]
    %v8649 = vld [vmem:[%s1124 + $0x60] sm:$0xff]
    %v8650 = vld [vmem:[%s1124 + $0x68] sm:$0xff]
    %v8651 = vld [vmem:[%s1124 + $0x70] sm:$0xff]
    %v8652 = vld [vmem:[%s1124 + $0x78] sm:$0xff]
    %v8653 = vld [vmem:[%s1124 + $0x80] sm:$0xff]
    %v8654 = vld [vmem:[%s1124 + $0x88] sm:$0xff]
    %v8655 = vld [vmem:[%s1124 + $0x90] sm:$0xff]
    %v8656 = vld [vmem:[%s1124 + $0x98] sm:$0xff]
    %v8657 = vld [vmem:[%s1124 + $0xa0] sm:$0xff]
    %v8658 = vld [vmem:[%s1124 + $0xa8] sm:$0xff]
    %v8659 = vld [vmem:[%s1124 + $0xb0] sm:$0xff]
    %v8660 = vld [vmem:[%s1124 + $0xb8] sm:$0xff]
    %v8661 = vld [vmem:[%s1124 + $0xc0] sm:$0xff]
    %v8662 = vld [vmem:[%s1124 + $0xc8] sm:$0xff]
    %v8663 = vld [vmem:[%s1124 + $0xd0] sm:$0xff]
    %v8664 = vld [vmem:[%s1124 + $0xd8] sm:$0xff]
    %v8665 = vld [vmem:[%s1124 + $0xe0] sm:$0xff]
    %v8666 = vld [vmem:[%s1124 + $0xe8] sm:$0xff]
    %v8667 = vld [vmem:[%s1124 + $0xf0] sm:$0xff]
    %v8668 = vld [vmem:[%s1124 + $0xf8] sm:$0xff]
    %v8669 = vld [vmem:[%s1124 + $0x100] sm:$0xff]
    %v8670 = vld [vmem:[%s1124 + $0x108] sm:$0xff]
    %v8671 = vld [vmem:[%s1124 + $0x110] sm:$0xff]
    %v8672 = vld [vmem:[%s1124 + $0x118] sm:$0xff]
    %v8673 = vld [vmem:[%s1124 + $0x120] sm:$0xff]
    %v8674 = vld [vmem:[%s1124 + $0x128] sm:$0xff]
    %v8675 = vld [vmem:[%s1124 + $0x130] sm:$0xff]
    %v8676 = vld [vmem:[%s1124 + $0x138] sm:$0xff]
    %v8677 = vld [vmem:[%s1124 + $0x140] sm:$0xff]
    %v8678 = vld [vmem:[%s1124 + $0x148] sm:$0xff]
    %v8679 = vld [vmem:[%s1124 + $0x150] sm:$0xff]
    %v8680 = vld [vmem:[%s1124 + $0x158] sm:$0xff]
    %v8681 = vld [vmem:[%s1124 + $0x160] sm:$0xff]
    %v8682 = vld [vmem:[%s1124 + $0x168] sm:$0xff]
    %v8683 = vld [vmem:[%s1124 + $0x170] sm:$0xff]
    %v8684 = vld [vmem:[%s1124 + $0x178] sm:$0xff]
    %v8685 = vld [vmem:[%s1124 + $0x180] sm:$0xff]
    %v8686 = vld [vmem:[%s1124 + $0x188] sm:$0xff]
    %v8687 = vld [vmem:[%s1124 + $0x190] sm:$0xff]
    %v8688 = vld [vmem:[%s1124 + $0x198] sm:$0xff]
    %v8689 = vld [vmem:[%s1124 + $0x1a0] sm:$0xff]
    %v8690 = vld [vmem:[%s1124 + $0x1a8] sm:$0xff]
    %v8691 = vld [vmem:[%s1124 + $0x1b0] sm:$0xff]
    %v8692 = vld [vmem:[%s1124 + $0x1b8] sm:$0xff]
    %v8693 = vld [vmem:[%s1124 + $0x1c0] sm:$0xff]
    %v8694 = vld [vmem:[%s1124 + $0x1c8] sm:$0xff]
    %v8695 = vld [vmem:[%s1124 + $0x1d0] sm:$0xff]
    %v8696 = vld [vmem:[%s1124 + $0x1d8] sm:$0xff]
    %v8697 = vld [vmem:[%s1124 + $0x1e0] sm:$0xff]
    %v8698 = vld [vmem:[%s1124 + $0x1e8] sm:$0xff]
    %v8699 = vld [vmem:[%s1124 + $0x1f0] sm:$0xff]
    %v8700 = vld [vmem:[%s1124 + $0x1f8] sm:$0xff]
    %8701 = vmatpush.msra.mxu0 %v8697
    %8702 = vmatpush.msra.mxu0 %v8693
    %8703 = vmatpush.msra.mxu0 %v8689
    %8704 = vmatpush.msra.mxu0 %v8685
    %8705 = vmatpush.msra.mxu0 %v8681
    %8706 = vmatpush.msra.mxu0 %v8677
    %8707 = vmatpush.msra.mxu0 %v8673
    %8708 = vmatpush.msra.mxu0 %v8669
    %8709 = vmatpush.msra.mxu0 %v8665
    %8710 = vmatpush.msra.mxu0 %v8661
    %8711 = vmatpush.msra.mxu0 %v8657
    %8712 = vmatpush.msra.mxu0 %v8653
    %8713 = vmatpush.msra.mxu0 %v8649
    %8714 = vmatpush.msra.mxu0 %v8645
    %8715 = vmatpush.msra.mxu0 %v8641
    %8716 = vmatpush.msra.mxu0 %v8637
    %8717 = vmatmul.f32.gmra.mxu0 %v8464
    %v8718 = vpop.f32.mrf.mxu0
    %v8719 = vadd.f32 0.0, %v8718
    %8720 = vdwg.mxu0
    %8721 = vmatpush.msra.mxu0 %v8698
    %8722 = vmatpush.msra.mxu0 %v8694
    %8723 = vmatpush.msra.mxu0 %v8690
    %8724 = vmatpush.msra.mxu0 %v8686
    %8725 = vmatpush.msra.mxu0 %v8682
    %8726 = vmatpush.msra.mxu0 %v8678
    %8727 = vmatpush.msra.mxu0 %v8674
    %8728 = vmatpush.msra.mxu0 %v8670
    %8729 = vmatpush.msra.mxu0 %v8666
    %8730 = vmatpush.msra.mxu0 %v8662
    %8731 = vmatpush.msra.mxu0 %v8658
    %8732 = vmatpush.msra.mxu0 %v8654
    %8733 = vmatpush.msra.mxu0 %v8650
    %8734 = vmatpush.msra.mxu0 %v8646
    %8735 = vmatpush.msra.mxu0 %v8642
    %8736 = vmatpush.msra.mxu0 %v8638
    %8737 = vmatmul.f32.gmra.mxu0 %v8464
    %v8738 = vpop.f32.mrf.mxu0
    %v8739 = vadd.f32 0.0, %v8738
    %8740 = vdwg.mxu0
    %8741 = vmatpush.msra.mxu0 %v8699
    %8742 = vmatpush.msra.mxu0 %v8695
    %8743 = vmatpush.msra.mxu0 %v8691
    %8744 = vmatpush.msra.mxu0 %v8687
    %8745 = vmatpush.msra.mxu0 %v8683
    %8746 = vmatpush.msra.mxu0 %v8679
    %8747 = vmatpush.msra.mxu0 %v8675
    %8748 = vmatpush.msra.mxu0 %v8671
    %8749 = vmatpush.msra.mxu0 %v8667
    %8750 = vmatpush.msra.mxu0 %v8663
    %8751 = vmatpush.msra.mxu0 %v8659
    %8752 = vmatpush.msra.mxu0 %v8655
    %8753 = vmatpush.msra.mxu0 %v8651
    %8754 = vmatpush.msra.mxu0 %v8647
    %8755 = vmatpush.msra.mxu0 %v8643
    %8756 = vmatpush.msra.mxu0 %v8639
    %8757 = vmatmul.f32.gmra.mxu0 %v8464
    %v8758 = vpop.f32.mrf.mxu0
    %v8759 = vadd.f32 0.0, %v8758
    %8760 = vdwg.mxu0
    %8761 = vmatpush.msra.mxu0 %v8700
    %8762 = vmatpush.msra.mxu0 %v8696
    %8763 = vmatpush.msra.mxu0 %v8692
    %8764 = vmatpush.msra.mxu0 %v8688
    %8765 = vmatpush.msra.mxu0 %v8684
    %8766 = vmatpush.msra.mxu0 %v8680
    %8767 = vmatpush.msra.mxu0 %v8676
    %8768 = vmatpush.msra.mxu0 %v8672
    %8769 = vmatpush.msra.mxu0 %v8668
    %8770 = vmatpush.msra.mxu0 %v8664
    %8771 = vmatpush.msra.mxu0 %v8660
    %8772 = vmatpush.msra.mxu0 %v8656
    %8773 = vmatpush.msra.mxu0 %v8652
    %8774 = vmatpush.msra.mxu0 %v8648
    %8775 = vmatpush.msra.mxu0 %v8644
    %8776 = vmatpush.msra.mxu0 %v8640
    %8777 = vmatmul.f32.gmra.mxu0 %v8464
    %v8778 = vpop.f32.mrf.mxu0
    %v8779 = vadd.f32 0.0, %v8778
    %8780 = vdwg.mxu0
    %v8781 = vadd.f32 %v8575, %v8719
    %v8782 = vadd.f32 %v8595, %v8739
    %v8783 = vadd.f32 %v8615, %v8759
    %v8784 = vadd.f32 %v8635, %v8779
    %v8785 = vxor.u32 %v8781, 2147483648
    %v8786 = vmul.f32 %v8785, 1.442695
    %v8787 = vpow.pop %v8786
    %v8788 = vadd.f32 %v8787, 1.0
    %v8789 = vrcp.pop %v8788
    %v8790 = vmul.f32 %v8788, %v8789
    %v8791 = vsub.f32 1.0, %v8790
    %v8792 = vmul.f32 %v8789, %v8791
    %v8793 = vadd.f32 %v8789, %v8792
    %vm8794 = vweird.f32 %v8788
    %vm8795 = vweird.f32 %v8789
    %vm8796 = vmor %vm8794, %vm8795
    %v8797 = vsel %vm8796, %v8789, %v8793
    %v8798 = vand.u32 2147483647, %v8788
    %vm8799 = vcmp.eq.f32.partialorder %v8798, 8.507059e+37
    %v8800 = vand.u32 %v8788, 2147483648
    %v8801 = vor.u32 1.1754944e-38, %v8800
    %v8802 = vsel %vm8799, %v8801, %v8797
    %v8803 = vmul.f32 1.0, %v8802
    %v8804 = vxor.u32 %v8782, 2147483648
    %v8805 = vmul.f32 %v8804, 1.442695
    %v8806 = vpow.pop %v8805
    %v8807 = vadd.f32 %v8806, 1.0
    %v8808 = vrcp.pop %v8807
    %v8809 = vmul.f32 %v8807, %v8808
    %v8810 = vsub.f32 1.0, %v8809
    %v8811 = vmul.f32 %v8808, %v8810
    %v8812 = vadd.f32 %v8808, %v8811
    %vm8813 = vweird.f32 %v8807
    %vm8814 = vweird.f32 %v8808
    %vm8815 = vmor %vm8813, %vm8814
    %v8816 = vsel %vm8815, %v8808, %v8812
    %v8817 = vand.u32 2147483647, %v8807
    %vm8818 = vcmp.eq.f32.partialorder %v8817, 8.507059e+37
    %v8819 = vand.u32 %v8807, 2147483648
    %v8820 = vor.u32 1.1754944e-38, %v8819
    %v8821 = vsel %vm8818, %v8820, %v8816
    %v8822 = vmul.f32 1.0, %v8821
    %v8823 = vtanh.pop %v8783
    %v8824 = vxor.u32 %v8784, 2147483648
    %v8825 = vmul.f32 %v8824, 1.442695
    %v8826 = vpow.pop %v8825
    %v8827 = vadd.f32 %v8826, 1.0
    %v8828 = vrcp.pop %v8827
    %v8829 = vmul.f32 %v8827, %v8828
    %v8830 = vsub.f32 1.0, %v8829
    %v8831 = vmul.f32 %v8828, %v8830
    %v8832 = vadd.f32 %v8828, %v8831
    %vm8833 = vweird.f32 %v8827
    %vm8834 = vweird.f32 %v8828
    %vm8835 = vmor %vm8833, %vm8834
    %v8836 = vsel %vm8835, %v8828, %v8832
    %v8837 = vand.u32 2147483647, %v8827
    %vm8838 = vcmp.eq.f32.partialorder %v8837, 8.507059e+37
    %v8839 = vand.u32 %v8827, 2147483648
    %v8840 = vor.u32 1.1754944e-38, %v8839
    %v8841 = vsel %vm8838, %v8840, %v8836
    %v8842 = vmul.f32 1.0, %v8841
    %v8843 = vmul.f32 %v8822, %v8465
    %v8844 = vmul.f32 %v8803, %v8823
    %v8845 = vadd.f32 %v8843, %v8844
    %v8846 = vtanh.pop %v8845
    %v8847 = vmul.f32 %v8842, %v8846
    %8848 = vst [vmem:[%s949] sm:$0xff] %v8847
    %8849 = vst [vmem:[%s951] sm:$0xff] %v8845
    %v8851 = vrot.slane %v8847, 1
    %v8852 = vrot.slane %v8847, 2
    %v8853 = vrot.slane %v8847, 3
    %v8854 = vrot.slane %v8847, 4
    %v8855 = vrot.slane %v8847, 5
    %v8856 = vrot.slane %v8847, 6
    %v8857 = vrot.slane %v8847, 7
    %8865 = vst [vmem:[#allocation12 + $0x6] sm:$0x1] %v8847
    %8866 = vst [vmem:[#allocation12 + $0xe] sm:$0x1] %v8851
    %8867 = vst [vmem:[#allocation12 + $0x16] sm:$0x1] %v8852
    %8868 = vst [vmem:[#allocation12 + $0x1e] sm:$0x1] %v8853
    %8869 = vst [vmem:[#allocation12 + $0x26] sm:$0x1] %v8854
    %8870 = vst [vmem:[#allocation12 + $0x2e] sm:$0x1] %v8855
    %8871 = vst [vmem:[#allocation12 + $0x36] sm:$0x1] %v8856
    %8872 = vst [vmem:[#allocation12 + $0x3e] sm:$0x1] %v8857
    %s8873 = scalar_lea.vmem [#allocation4], 7
    %v8874 = vld [vmem:[%s8873] ss:$8 sm:$0xf]
    %s8875 = scalar_lea.vmem [#allocation4], 39
    %v8876 = vld [vmem:[%s8875] ss:$8 sm:$0xf]
    %s8877 = scalar_lea.vmem [#allocation4], 71
    %v8878 = vld [vmem:[%s8877] ss:$8 sm:$0xf]
    %s8879 = scalar_lea.vmem [#allocation4], 103
    %v8880 = vld [vmem:[%s8879] ss:$8 sm:$0xf]
    %s8881 = scalar_lea.vmem [#allocation4], 135
    %v8882 = vld [vmem:[%s8881] ss:$8 sm:$0xf]
    %s8883 = scalar_lea.vmem [#allocation4], 167
    %v8884 = vld [vmem:[%s8883] ss:$8 sm:$0xf]
    %s8885 = scalar_lea.vmem [#allocation4], 199
    %v8886 = vld [vmem:[%s8885] ss:$8 sm:$0xf]
    %s8887 = scalar_lea.vmem [#allocation4], 231
    %v8888 = vld [vmem:[%s8887] ss:$8 sm:$0xf]
    %v8889 = vld [vmem:[#allocation2] sm:$0xff]
    %v8890 = vld [vmem:[#allocation3] sm:$0xff]
    %v8891 = vld [vmem:[#allocation7] sm:$0xff]
    %v8892 = vld [vmem:[#allocation7 + $0x8] sm:$0xff]
    %v8893 = vld [vmem:[#allocation7 + $0x10] sm:$0xff]
    %v8894 = vld [vmem:[#allocation7 + $0x18] sm:$0xff]
    %v8895 = vld [vmem:[#allocation7 + $0x20] sm:$0xff]
    %v8896 = vld [vmem:[#allocation7 + $0x28] sm:$0xff]
    %v8897 = vld [vmem:[#allocation7 + $0x30] sm:$0xff]
    %v8898 = vld [vmem:[#allocation7 + $0x38] sm:$0xff]
    %v8899 = vld [vmem:[#allocation7 + $0x40] sm:$0xff]
    %v8900 = vld [vmem:[#allocation7 + $0x48] sm:$0xff]
    %v8901 = vld [vmem:[#allocation7 + $0x50] sm:$0xff]
    %v8902 = vld [vmem:[#allocation7 + $0x58] sm:$0xff]
    %v8903 = vld [vmem:[#allocation7 + $0x60] sm:$0xff]
    %v8904 = vld [vmem:[#allocation7 + $0x68] sm:$0xff]
    %v8905 = vld [vmem:[#allocation7 + $0x70] sm:$0xff]
    %v8906 = vld [vmem:[#allocation7 + $0x78] sm:$0xff]
    %v8907 = vld [vmem:[#allocation7 + $0x80] sm:$0xff]
    %v8908 = vld [vmem:[#allocation7 + $0x88] sm:$0xff]
    %v8909 = vld [vmem:[#allocation7 + $0x90] sm:$0xff]
    %v8910 = vld [vmem:[#allocation7 + $0x98] sm:$0xff]
    %v8911 = vld [vmem:[#allocation7 + $0xa0] sm:$0xff]
    %v8912 = vld [vmem:[#allocation7 + $0xa8] sm:$0xff]
    %v8913 = vld [vmem:[#allocation7 + $0xb0] sm:$0xff]
    %v8914 = vld [vmem:[#allocation7 + $0xb8] sm:$0xff]
    %v8915 = vld [vmem:[#allocation7 + $0xc0] sm:$0xff]
    %v8916 = vld [vmem:[#allocation7 + $0xc8] sm:$0xff]
    %v8917 = vld [vmem:[#allocation7 + $0xd0] sm:$0xff]
    %v8918 = vld [vmem:[#allocation7 + $0xd8] sm:$0xff]
    %v8919 = vld [vmem:[#allocation7 + $0xe0] sm:$0xff]
    %v8920 = vld [vmem:[#allocation7 + $0xe8] sm:$0xff]
    %v8921 = vld [vmem:[#allocation7 + $0xf0] sm:$0xff]
    %v8922 = vld [vmem:[#allocation7 + $0xf8] sm:$0xff]
    %v8923 = vld [vmem:[#allocation7 + $0x100] sm:$0xff]
    %v8924 = vld [vmem:[#allocation7 + $0x108] sm:$0xff]
    %v8925 = vld [vmem:[#allocation7 + $0x110] sm:$0xff]
    %v8926 = vld [vmem:[#allocation7 + $0x118] sm:$0xff]
    %v8927 = vld [vmem:[#allocation7 + $0x120] sm:$0xff]
    %v8928 = vld [vmem:[#allocation7 + $0x128] sm:$0xff]
    %v8929 = vld [vmem:[#allocation7 + $0x130] sm:$0xff]
    %v8930 = vld [vmem:[#allocation7 + $0x138] sm:$0xff]
    %v8931 = vld [vmem:[#allocation7 + $0x140] sm:$0xff]
    %v8932 = vld [vmem:[#allocation7 + $0x148] sm:$0xff]
    %v8933 = vld [vmem:[#allocation7 + $0x150] sm:$0xff]
    %v8934 = vld [vmem:[#allocation7 + $0x158] sm:$0xff]
    %v8935 = vld [vmem:[#allocation7 + $0x160] sm:$0xff]
    %v8936 = vld [vmem:[#allocation7 + $0x168] sm:$0xff]
    %v8937 = vld [vmem:[#allocation7 + $0x170] sm:$0xff]
    %v8938 = vld [vmem:[#allocation7 + $0x178] sm:$0xff]
    %v8939 = vld [vmem:[#allocation7 + $0x180] sm:$0xff]
    %v8940 = vld [vmem:[#allocation7 + $0x188] sm:$0xff]
    %v8941 = vld [vmem:[#allocation7 + $0x190] sm:$0xff]
    %v8942 = vld [vmem:[#allocation7 + $0x198] sm:$0xff]
    %v8943 = vld [vmem:[#allocation7 + $0x1a0] sm:$0xff]
    %v8944 = vld [vmem:[#allocation7 + $0x1a8] sm:$0xff]
    %v8945 = vld [vmem:[#allocation7 + $0x1b0] sm:$0xff]
    %v8946 = vld [vmem:[#allocation7 + $0x1b8] sm:$0xff]
    %v8947 = vld [vmem:[#allocation7 + $0x1c0] sm:$0xff]
    %v8948 = vld [vmem:[#allocation7 + $0x1c8] sm:$0xff]
    %v8949 = vld [vmem:[#allocation7 + $0x1d0] sm:$0xff]
    %v8950 = vld [vmem:[#allocation7 + $0x1d8] sm:$0xff]
    %v8951 = vld [vmem:[#allocation7 + $0x1e0] sm:$0xff]
    %v8952 = vld [vmem:[#allocation7 + $0x1e8] sm:$0xff]
    %v8953 = vld [vmem:[#allocation7 + $0x1f0] sm:$0xff]
    %v8954 = vld [vmem:[#allocation7 + $0x1f8] sm:$0xff]
    %8955 = vmatpush.msra.mxu0 %v8951
    %8956 = vmatpush.msra.mxu0 %v8947
    %8957 = vmatpush.msra.mxu0 %v8943
    %8958 = vmatpush.msra.mxu0 %v8939
    %8959 = vmatpush.msra.mxu0 %v8935
    %8960 = vmatpush.msra.mxu0 %v8931
    %8961 = vmatpush.msra.mxu0 %v8927
    %8962 = vmatpush.msra.mxu0 %v8923
    %8963 = vmatpush.msra.mxu0 %v8919
    %8964 = vmatpush.msra.mxu0 %v8915
    %8965 = vmatpush.msra.mxu0 %v8911
    %8966 = vmatpush.msra.mxu0 %v8907
    %8967 = vmatpush.msra.mxu0 %v8903
    %8968 = vmatpush.msra.mxu0 %v8899
    %8969 = vmatpush.msra.mxu0 %v8895
    %8970 = vmatpush.msra.mxu0 %v8891
    %8971 = vmatmul.f32.gmra.mxu0 %v8889
    %v8972 = vpop.f32.mrf.mxu0
    %v8973 = vadd.f32 0.0, %v8972
    %8974 = vdwg.mxu0
    %8975 = vmatpush.msra.mxu0 %v8952
    %8976 = vmatpush.msra.mxu0 %v8948
    %8977 = vmatpush.msra.mxu0 %v8944
    %8978 = vmatpush.msra.mxu0 %v8940
    %8979 = vmatpush.msra.mxu0 %v8936
    %8980 = vmatpush.msra.mxu0 %v8932
    %8981 = vmatpush.msra.mxu0 %v8928
    %8982 = vmatpush.msra.mxu0 %v8924
    %8983 = vmatpush.msra.mxu0 %v8920
    %8984 = vmatpush.msra.mxu0 %v8916
    %8985 = vmatpush.msra.mxu0 %v8912
    %8986 = vmatpush.msra.mxu0 %v8908
    %8987 = vmatpush.msra.mxu0 %v8904
    %8988 = vmatpush.msra.mxu0 %v8900
    %8989 = vmatpush.msra.mxu0 %v8896
    %8990 = vmatpush.msra.mxu0 %v8892
    %8991 = vmatmul.f32.gmra.mxu0 %v8889
    %v8992 = vpop.f32.mrf.mxu0
    %v8993 = vadd.f32 0.0, %v8992
    %8994 = vdwg.mxu0
    %8995 = vmatpush.msra.mxu0 %v8953
    %8996 = vmatpush.msra.mxu0 %v8949
    %8997 = vmatpush.msra.mxu0 %v8945
    %8998 = vmatpush.msra.mxu0 %v8941
    %8999 = vmatpush.msra.mxu0 %v8937
    %9000 = vmatpush.msra.mxu0 %v8933
    %9001 = vmatpush.msra.mxu0 %v8929
    %9002 = vmatpush.msra.mxu0 %v8925
    %9003 = vmatpush.msra.mxu0 %v8921
    %9004 = vmatpush.msra.mxu0 %v8917
    %9005 = vmatpush.msra.mxu0 %v8913
    %9006 = vmatpush.msra.mxu0 %v8909
    %9007 = vmatpush.msra.mxu0 %v8905
    %9008 = vmatpush.msra.mxu0 %v8901
    %9009 = vmatpush.msra.mxu0 %v8897
    %9010 = vmatpush.msra.mxu0 %v8893
    %9011 = vmatmul.f32.gmra.mxu0 %v8889
    %v9012 = vpop.f32.mrf.mxu0
    %v9013 = vadd.f32 0.0, %v9012
    %9014 = vdwg.mxu0
    %9015 = vmatpush.msra.mxu0 %v8954
    %9016 = vmatpush.msra.mxu0 %v8950
    %9017 = vmatpush.msra.mxu0 %v8946
    %9018 = vmatpush.msra.mxu0 %v8942
    %9019 = vmatpush.msra.mxu0 %v8938
    %9020 = vmatpush.msra.mxu0 %v8934
    %9021 = vmatpush.msra.mxu0 %v8930
    %9022 = vmatpush.msra.mxu0 %v8926
    %9023 = vmatpush.msra.mxu0 %v8922
    %9024 = vmatpush.msra.mxu0 %v8918
    %9025 = vmatpush.msra.mxu0 %v8914
    %9026 = vmatpush.msra.mxu0 %v8910
    %9027 = vmatpush.msra.mxu0 %v8906
    %9028 = vmatpush.msra.mxu0 %v8902
    %9029 = vmatpush.msra.mxu0 %v8898
    %9030 = vmatpush.msra.mxu0 %v8894
    %9031 = vmatmul.f32.gmra.mxu0 %v8889
    %v9032 = vpop.f32.mrf.mxu0
    %v9033 = vadd.f32 0.0, %v9032
    %9034 = vdwg.mxu0
    %v9039 = vrot.slane %v8993, 7
    %v9040 = vrot.slane %v9013, 6
    %v9041 = vrot.slane %v9033, 5
    %v9042 = vsel %vm259, %v8973, %v9039
    %v9043 = vsel %vm261, %v9040, %v9041
    %v9044 = vsel %vm263, %v9042, %v9043
    %v9045 = vsel %vm265, %v8973, %v9039
    %v9046 = vsel %vm267, %v9040, %v9041
    %v9047 = vsel %vm269, %v9045, %v9046
    %v9048 = vrot.slane %v9047, 1
    %v9049 = vsel %vm261, %v8973, %v9039
    %v9050 = vsel %vm273, %v9040, %v9041
    %v9051 = vsel %vm275, %v9049, %v9050
    %v9052 = vrot.slane %v9051, 2
    %v9053 = vsel %vm267, %v8973, %v9039
    %v9054 = vsel %vm279, %v9040, %v9041
    %v9055 = vsel %vm281, %v9053, %v9054
    %v9056 = vrot.slane %v9055, 3
    %v9057 = vsel %vm273, %v8973, %v9039
    %v9058 = vsel %vm285, %v9040, %v9041
    %v9059 = vsel %vm287, %v9057, %v9058
    %v9060 = vrot.slane %v9059, 4
    %v9061 = vsel %vm279, %v8973, %v9039
    %v9062 = vsel %vm291, %v9041, %v9040
    %v9063 = vsel %vm293, %v9061, %v9062
    %v9064 = vrot.slane %v9063, 5
    %v9065 = vsel %vm285, %v8973, %v9039
    %v9066 = vsel %vm259, %v9040, %v9041
    %v9067 = vsel %vm298, %v9066, %v9065
    %v9068 = vrot.slane %v9067, 6
    %v9069 = vsel %vm291, %v9039, %v8973
    %v9070 = vsel %vm265, %v9040, %v9041
    %v9071 = vsel %vm303, %v9070, %v9069
    %v9072 = vrot.slane %v9071, 7
    %v9081 = vadd.f32 %v8874, %v9044
    %v9082 = vadd.f32 %v8876, %v9048
    %v9083 = vadd.f32 %v8878, %v9052
    %v9084 = vadd.f32 %v8880, %v9056
    %v9085 = vadd.f32 %v8882, %v9060
    %v9086 = vadd.f32 %v8884, %v9064
    %v9087 = vadd.f32 %v8886, %v9068
    %v9088 = vadd.f32 %v8888, %v9072
    %v9089 = vxor.u32 %v9081, 2147483648
    %v9090 = vxor.u32 %v9082, 2147483648
    %v9091 = vxor.u32 %v9083, 2147483648
    %v9092 = vxor.u32 %v9084, 2147483648
    %v9093 = vxor.u32 %v9085, 2147483648
    %v9094 = vxor.u32 %v9086, 2147483648
    %v9095 = vxor.u32 %v9087, 2147483648
    %v9096 = vxor.u32 %v9088, 2147483648
    %v9097 = vmul.f32 %v9089, 1.442695
    %v9098 = vpow.pop %v9097
    %v9099 = vmul.f32 %v9090, 1.442695
    %v9100 = vpow.pop %v9099
    %v9101 = vmul.f32 %v9091, 1.442695
    %v9102 = vpow.pop %v9101
    %v9103 = vmul.f32 %v9092, 1.442695
    %v9104 = vpow.pop %v9103
    %v9105 = vmul.f32 %v9093, 1.442695
    %v9106 = vpow.pop %v9105
    %v9107 = vmul.f32 %v9094, 1.442695
    %v9108 = vpow.pop %v9107
    %v9109 = vmul.f32 %v9095, 1.442695
    %v9110 = vpow.pop %v9109
    %v9111 = vmul.f32 %v9096, 1.442695
    %v9112 = vpow.pop %v9111
    %v9113 = vadd.f32 %v9098, 1.0
    %v9114 = vadd.f32 %v9100, 1.0
    %v9115 = vadd.f32 %v9102, 1.0
    %v9116 = vadd.f32 %v9104, 1.0
    %v9117 = vadd.f32 %v9106, 1.0
    %v9118 = vadd.f32 %v9108, 1.0
    %v9119 = vadd.f32 %v9110, 1.0
    %v9120 = vadd.f32 %v9112, 1.0
    %v9121 = vrcp.pop %v9113
    %v9122 = vmul.f32 %v9113, %v9121
    %v9123 = vsub.f32 1.0, %v9122
    %v9124 = vmul.f32 %v9121, %v9123
    %v9125 = vadd.f32 %v9121, %v9124
    %vm9126 = vweird.f32 %v9113
    %vm9127 = vweird.f32 %v9121
    %vm9128 = vmor %vm9126, %vm9127
    %v9129 = vsel %vm9128, %v9121, %v9125
    %v9130 = vand.u32 2147483647, %v9113
    %vm9131 = vcmp.eq.f32.partialorder %v9130, 8.507059e+37
    %v9132 = vand.u32 %v9113, 2147483648
    %v9133 = vor.u32 1.1754944e-38, %v9132
    %v9134 = vsel %vm9131, %v9133, %v9129
    %v9135 = vmul.f32 1.0, %v9134
    %v9136 = vrcp.pop %v9114
    %v9137 = vmul.f32 %v9114, %v9136
    %v9138 = vsub.f32 1.0, %v9137
    %v9139 = vmul.f32 %v9136, %v9138
    %v9140 = vadd.f32 %v9136, %v9139
    %vm9141 = vweird.f32 %v9114
    %vm9142 = vweird.f32 %v9136
    %vm9143 = vmor %vm9141, %vm9142
    %v9144 = vsel %vm9143, %v9136, %v9140
    %v9145 = vand.u32 2147483647, %v9114
    %vm9146 = vcmp.eq.f32.partialorder %v9145, 8.507059e+37
    %v9147 = vand.u32 %v9114, 2147483648
    %v9148 = vor.u32 1.1754944e-38, %v9147
    %v9149 = vsel %vm9146, %v9148, %v9144
    %v9150 = vmul.f32 1.0, %v9149
    %v9151 = vrcp.pop %v9115
    %v9152 = vmul.f32 %v9115, %v9151
    %v9153 = vsub.f32 1.0, %v9152
    %v9154 = vmul.f32 %v9151, %v9153
    %v9155 = vadd.f32 %v9151, %v9154
    %vm9156 = vweird.f32 %v9115
    %vm9157 = vweird.f32 %v9151
    %vm9158 = vmor %vm9156, %vm9157
    %v9159 = vsel %vm9158, %v9151, %v9155
    %v9160 = vand.u32 2147483647, %v9115
    %vm9161 = vcmp.eq.f32.partialorder %v9160, 8.507059e+37
    %v9162 = vand.u32 %v9115, 2147483648
    %v9163 = vor.u32 1.1754944e-38, %v9162
    %v9164 = vsel %vm9161, %v9163, %v9159
    %v9165 = vmul.f32 1.0, %v9164
    %v9166 = vrcp.pop %v9116
    %v9167 = vmul.f32 %v9116, %v9166
    %v9168 = vsub.f32 1.0, %v9167
    %v9169 = vmul.f32 %v9166, %v9168
    %v9170 = vadd.f32 %v9166, %v9169
    %vm9171 = vweird.f32 %v9116
    %vm9172 = vweird.f32 %v9166
    %vm9173 = vmor %vm9171, %vm9172
    %v9174 = vsel %vm9173, %v9166, %v9170
    %v9175 = vand.u32 2147483647, %v9116
    %vm9176 = vcmp.eq.f32.partialorder %v9175, 8.507059e+37
    %v9177 = vand.u32 %v9116, 2147483648
    %v9178 = vor.u32 1.1754944e-38, %v9177
    %v9179 = vsel %vm9176, %v9178, %v9174
    %v9180 = vmul.f32 1.0, %v9179
    %v9181 = vrcp.pop %v9117
    %v9182 = vmul.f32 %v9117, %v9181
    %v9183 = vsub.f32 1.0, %v9182
    %v9184 = vmul.f32 %v9181, %v9183
    %v9185 = vadd.f32 %v9181, %v9184
    %vm9186 = vweird.f32 %v9117
    %vm9187 = vweird.f32 %v9181
    %vm9188 = vmor %vm9186, %vm9187
    %v9189 = vsel %vm9188, %v9181, %v9185
    %v9190 = vand.u32 2147483647, %v9117
    %vm9191 = vcmp.eq.f32.partialorder %v9190, 8.507059e+37
    %v9192 = vand.u32 %v9117, 2147483648
    %v9193 = vor.u32 1.1754944e-38, %v9192
    %v9194 = vsel %vm9191, %v9193, %v9189
    %v9195 = vmul.f32 1.0, %v9194
    %v9196 = vrcp.pop %v9118
    %v9197 = vmul.f32 %v9118, %v9196
    %v9198 = vsub.f32 1.0, %v9197
    %v9199 = vmul.f32 %v9196, %v9198
    %v9200 = vadd.f32 %v9196, %v9199
    %vm9201 = vweird.f32 %v9118
    %vm9202 = vweird.f32 %v9196
    %vm9203 = vmor %vm9201, %vm9202
    %v9204 = vsel %vm9203, %v9196, %v9200
    %v9205 = vand.u32 2147483647, %v9118
    %vm9206 = vcmp.eq.f32.partialorder %v9205, 8.507059e+37
    %v9207 = vand.u32 %v9118, 2147483648
    %v9208 = vor.u32 1.1754944e-38, %v9207
    %v9209 = vsel %vm9206, %v9208, %v9204
    %v9210 = vmul.f32 1.0, %v9209
    %v9211 = vrcp.pop %v9119
    %v9212 = vmul.f32 %v9119, %v9211
    %v9213 = vsub.f32 1.0, %v9212
    %v9214 = vmul.f32 %v9211, %v9213
    %v9215 = vadd.f32 %v9211, %v9214
    %vm9216 = vweird.f32 %v9119
    %vm9217 = vweird.f32 %v9211
    %vm9218 = vmor %vm9216, %vm9217
    %v9219 = vsel %vm9218, %v9211, %v9215
    %v9220 = vand.u32 2147483647, %v9119
    %vm9221 = vcmp.eq.f32.partialorder %v9220, 8.507059e+37
    %v9222 = vand.u32 %v9119, 2147483648
    %v9223 = vor.u32 1.1754944e-38, %v9222
    %v9224 = vsel %vm9221, %v9223, %v9219
    %v9225 = vmul.f32 1.0, %v9224
    %v9226 = vrcp.pop %v9120
    %v9227 = vmul.f32 %v9120, %v9226
    %v9228 = vsub.f32 1.0, %v9227
    %v9229 = vmul.f32 %v9226, %v9228
    %v9230 = vadd.f32 %v9226, %v9229
    %vm9231 = vweird.f32 %v9120
    %vm9232 = vweird.f32 %v9226
    %vm9233 = vmor %vm9231, %vm9232
    %v9234 = vsel %vm9233, %v9226, %v9230
    %v9235 = vand.u32 2147483647, %v9120
    %vm9236 = vcmp.eq.f32.partialorder %v9235, 8.507059e+37
    %v9237 = vand.u32 %v9120, 2147483648
    %v9238 = vor.u32 1.1754944e-38, %v9237
    %v9239 = vsel %vm9236, %v9238, %v9234
    %v9240 = vmul.f32 1.0, %v9239
    %v9249 = vrot.slane %v9081, 1
    %v9250 = vrot.slane %v9082, 1
    %v9251 = vrot.slane %v9083, 1
    %v9252 = vrot.slane %v9084, 1
    %v9253 = vrot.slane %v9085, 1
    %v9254 = vrot.slane %v9086, 1
    %v9255 = vrot.slane %v9087, 1
    %v9256 = vrot.slane %v9088, 1
    %v9265 = vxor.u32 %v9249, 2147483648
    %v9266 = vxor.u32 %v9250, 2147483648
    %v9267 = vxor.u32 %v9251, 2147483648
    %v9268 = vxor.u32 %v9252, 2147483648
    %v9269 = vxor.u32 %v9253, 2147483648
    %v9270 = vxor.u32 %v9254, 2147483648
    %v9271 = vxor.u32 %v9255, 2147483648
    %v9272 = vxor.u32 %v9256, 2147483648
    %v9273 = vmul.f32 %v9265, 1.442695
    %v9274 = vpow.pop %v9273
    %v9275 = vmul.f32 %v9266, 1.442695
    %v9276 = vpow.pop %v9275
    %v9277 = vmul.f32 %v9267, 1.442695
    %v9278 = vpow.pop %v9277
    %v9279 = vmul.f32 %v9268, 1.442695
    %v9280 = vpow.pop %v9279
    %v9281 = vmul.f32 %v9269, 1.442695
    %v9282 = vpow.pop %v9281
    %v9283 = vmul.f32 %v9270, 1.442695
    %v9284 = vpow.pop %v9283
    %v9285 = vmul.f32 %v9271, 1.442695
    %v9286 = vpow.pop %v9285
    %v9287 = vmul.f32 %v9272, 1.442695
    %v9288 = vpow.pop %v9287
    %v9289 = vadd.f32 %v9274, 1.0
    %v9290 = vadd.f32 %v9276, 1.0
    %v9291 = vadd.f32 %v9278, 1.0
    %v9292 = vadd.f32 %v9280, 1.0
    %v9293 = vadd.f32 %v9282, 1.0
    %v9294 = vadd.f32 %v9284, 1.0
    %v9295 = vadd.f32 %v9286, 1.0
    %v9296 = vadd.f32 %v9288, 1.0
    %v9297 = vrcp.pop %v9289
    %v9298 = vmul.f32 %v9289, %v9297
    %v9299 = vsub.f32 1.0, %v9298
    %v9300 = vmul.f32 %v9297, %v9299
    %v9301 = vadd.f32 %v9297, %v9300
    %vm9302 = vweird.f32 %v9289
    %vm9303 = vweird.f32 %v9297
    %vm9304 = vmor %vm9302, %vm9303
    %v9305 = vsel %vm9304, %v9297, %v9301
    %v9306 = vand.u32 2147483647, %v9289
    %vm9307 = vcmp.eq.f32.partialorder %v9306, 8.507059e+37
    %v9308 = vand.u32 %v9289, 2147483648
    %v9309 = vor.u32 1.1754944e-38, %v9308
    %v9310 = vsel %vm9307, %v9309, %v9305
    %v9311 = vmul.f32 1.0, %v9310
    %v9312 = vrcp.pop %v9290
    %v9313 = vmul.f32 %v9290, %v9312
    %v9314 = vsub.f32 1.0, %v9313
    %v9315 = vmul.f32 %v9312, %v9314
    %v9316 = vadd.f32 %v9312, %v9315
    %vm9317 = vweird.f32 %v9290
    %vm9318 = vweird.f32 %v9312
    %vm9319 = vmor %vm9317, %vm9318
    %v9320 = vsel %vm9319, %v9312, %v9316
    %v9321 = vand.u32 2147483647, %v9290
    %vm9322 = vcmp.eq.f32.partialorder %v9321, 8.507059e+37
    %v9323 = vand.u32 %v9290, 2147483648
    %v9324 = vor.u32 1.1754944e-38, %v9323
    %v9325 = vsel %vm9322, %v9324, %v9320
    %v9326 = vmul.f32 1.0, %v9325
    %v9327 = vrcp.pop %v9291
    %v9328 = vmul.f32 %v9291, %v9327
    %v9329 = vsub.f32 1.0, %v9328
    %v9330 = vmul.f32 %v9327, %v9329
    %v9331 = vadd.f32 %v9327, %v9330
    %vm9332 = vweird.f32 %v9291
    %vm9333 = vweird.f32 %v9327
    %vm9334 = vmor %vm9332, %vm9333
    %v9335 = vsel %vm9334, %v9327, %v9331
    %v9336 = vand.u32 2147483647, %v9291
    %vm9337 = vcmp.eq.f32.partialorder %v9336, 8.507059e+37
    %v9338 = vand.u32 %v9291, 2147483648
    %v9339 = vor.u32 1.1754944e-38, %v9338
    %v9340 = vsel %vm9337, %v9339, %v9335
    %v9341 = vmul.f32 1.0, %v9340
    %v9342 = vrcp.pop %v9292
    %v9343 = vmul.f32 %v9292, %v9342
    %v9344 = vsub.f32 1.0, %v9343
    %v9345 = vmul.f32 %v9342, %v9344
    %v9346 = vadd.f32 %v9342, %v9345
    %vm9347 = vweird.f32 %v9292
    %vm9348 = vweird.f32 %v9342
    %vm9349 = vmor %vm9347, %vm9348
    %v9350 = vsel %vm9349, %v9342, %v9346
    %v9351 = vand.u32 2147483647, %v9292
    %vm9352 = vcmp.eq.f32.partialorder %v9351, 8.507059e+37
    %v9353 = vand.u32 %v9292, 2147483648
    %v9354 = vor.u32 1.1754944e-38, %v9353
    %v9355 = vsel %vm9352, %v9354, %v9350
    %v9356 = vmul.f32 1.0, %v9355
    %v9357 = vrcp.pop %v9293
    %v9358 = vmul.f32 %v9293, %v9357
    %v9359 = vsub.f32 1.0, %v9358
    %v9360 = vmul.f32 %v9357, %v9359
    %v9361 = vadd.f32 %v9357, %v9360
    %vm9362 = vweird.f32 %v9293
    %vm9363 = vweird.f32 %v9357
    %vm9364 = vmor %vm9362, %vm9363
    %v9365 = vsel %vm9364, %v9357, %v9361
    %v9366 = vand.u32 2147483647, %v9293
    %vm9367 = vcmp.eq.f32.partialorder %v9366, 8.507059e+37
    %v9368 = vand.u32 %v9293, 2147483648
    %v9369 = vor.u32 1.1754944e-38, %v9368
    %v9370 = vsel %vm9367, %v9369, %v9365
    %v9371 = vmul.f32 1.0, %v9370
    %v9372 = vrcp.pop %v9294
    %v9373 = vmul.f32 %v9294, %v9372
    %v9374 = vsub.f32 1.0, %v9373
    %v9375 = vmul.f32 %v9372, %v9374
    %v9376 = vadd.f32 %v9372, %v9375
    %vm9377 = vweird.f32 %v9294
    %vm9378 = vweird.f32 %v9372
    %vm9379 = vmor %vm9377, %vm9378
    %v9380 = vsel %vm9379, %v9372, %v9376
    %v9381 = vand.u32 2147483647, %v9294
    %vm9382 = vcmp.eq.f32.partialorder %v9381, 8.507059e+37
    %v9383 = vand.u32 %v9294, 2147483648
    %v9384 = vor.u32 1.1754944e-38, %v9383
    %v9385 = vsel %vm9382, %v9384, %v9380
    %v9386 = vmul.f32 1.0, %v9385
    %v9387 = vrcp.pop %v9295
    %v9388 = vmul.f32 %v9295, %v9387
    %v9389 = vsub.f32 1.0, %v9388
    %v9390 = vmul.f32 %v9387, %v9389
    %v9391 = vadd.f32 %v9387, %v9390
    %vm9392 = vweird.f32 %v9295
    %vm9393 = vweird.f32 %v9387
    %vm9394 = vmor %vm9392, %vm9393
    %v9395 = vsel %vm9394, %v9387, %v9391
    %v9396 = vand.u32 2147483647, %v9295
    %vm9397 = vcmp.eq.f32.partialorder %v9396, 8.507059e+37
    %v9398 = vand.u32 %v9295, 2147483648
    %v9399 = vor.u32 1.1754944e-38, %v9398
    %v9400 = vsel %vm9397, %v9399, %v9395
    %v9401 = vmul.f32 1.0, %v9400
    %v9402 = vrcp.pop %v9296
    %v9403 = vmul.f32 %v9296, %v9402
    %v9404 = vsub.f32 1.0, %v9403
    %v9405 = vmul.f32 %v9402, %v9404
    %v9406 = vadd.f32 %v9402, %v9405
    %vm9407 = vweird.f32 %v9296
    %vm9408 = vweird.f32 %v9402
    %vm9409 = vmor %vm9407, %vm9408
    %v9410 = vsel %vm9409, %v9402, %v9406
    %v9411 = vand.u32 2147483647, %v9296
    %vm9412 = vcmp.eq.f32.partialorder %v9411, 8.507059e+37
    %v9413 = vand.u32 %v9296, 2147483648
    %v9414 = vor.u32 1.1754944e-38, %v9413
    %v9415 = vsel %vm9412, %v9414, %v9410
    %v9416 = vmul.f32 1.0, %v9415
    %v9417 = vrot.slane %v9081, 2
    %v9418 = vrot.slane %v9082, 2
    %v9419 = vrot.slane %v9083, 2
    %v9420 = vrot.slane %v9084, 2
    %v9421 = vrot.slane %v9085, 2
    %v9422 = vrot.slane %v9086, 2
    %v9423 = vrot.slane %v9087, 2
    %v9424 = vrot.slane %v9088, 2
    %v9433 = vtanh.pop %v9417
    %v9434 = vtanh.pop %v9418
    %v9435 = vtanh.pop %v9419
    %v9436 = vtanh.pop %v9420
    %v9437 = vtanh.pop %v9421
    %v9438 = vtanh.pop %v9422
    %v9439 = vtanh.pop %v9423
    %v9440 = vtanh.pop %v9424
    %v9441 = vrot.slane %v9081, 3
    %v9442 = vrot.slane %v9082, 3
    %v9443 = vrot.slane %v9083, 3
    %v9444 = vrot.slane %v9084, 3
    %v9445 = vrot.slane %v9085, 3
    %v9446 = vrot.slane %v9086, 3
    %v9447 = vrot.slane %v9087, 3
    %v9448 = vrot.slane %v9088, 3
    %v9457 = vxor.u32 %v9441, 2147483648
    %v9458 = vxor.u32 %v9442, 2147483648
    %v9459 = vxor.u32 %v9443, 2147483648
    %v9460 = vxor.u32 %v9444, 2147483648
    %v9461 = vxor.u32 %v9445, 2147483648
    %v9462 = vxor.u32 %v9446, 2147483648
    %v9463 = vxor.u32 %v9447, 2147483648
    %v9464 = vxor.u32 %v9448, 2147483648
    %v9465 = vmul.f32 %v9457, 1.442695
    %v9466 = vpow.pop %v9465
    %v9467 = vmul.f32 %v9458, 1.442695
    %v9468 = vpow.pop %v9467
    %v9469 = vmul.f32 %v9459, 1.442695
    %v9470 = vpow.pop %v9469
    %v9471 = vmul.f32 %v9460, 1.442695
    %v9472 = vpow.pop %v9471
    %v9473 = vmul.f32 %v9461, 1.442695
    %v9474 = vpow.pop %v9473
    %v9475 = vmul.f32 %v9462, 1.442695
    %v9476 = vpow.pop %v9475
    %v9477 = vmul.f32 %v9463, 1.442695
    %v9478 = vpow.pop %v9477
    %v9479 = vmul.f32 %v9464, 1.442695
    %v9480 = vpow.pop %v9479
    %v9481 = vadd.f32 %v9466, 1.0
    %v9482 = vadd.f32 %v9468, 1.0
    %v9483 = vadd.f32 %v9470, 1.0
    %v9484 = vadd.f32 %v9472, 1.0
    %v9485 = vadd.f32 %v9474, 1.0
    %v9486 = vadd.f32 %v9476, 1.0
    %v9487 = vadd.f32 %v9478, 1.0
    %v9488 = vadd.f32 %v9480, 1.0
    %v9489 = vrcp.pop %v9481
    %v9490 = vmul.f32 %v9481, %v9489
    %v9491 = vsub.f32 1.0, %v9490
    %v9492 = vmul.f32 %v9489, %v9491
    %v9493 = vadd.f32 %v9489, %v9492
    %vm9494 = vweird.f32 %v9481
    %vm9495 = vweird.f32 %v9489
    %vm9496 = vmor %vm9494, %vm9495
    %v9497 = vsel %vm9496, %v9489, %v9493
    %v9498 = vand.u32 2147483647, %v9481
    %vm9499 = vcmp.eq.f32.partialorder %v9498, 8.507059e+37
    %v9500 = vand.u32 %v9481, 2147483648
    %v9501 = vor.u32 1.1754944e-38, %v9500
    %v9502 = vsel %vm9499, %v9501, %v9497
    %v9503 = vmul.f32 1.0, %v9502
    %v9504 = vrcp.pop %v9482
    %v9505 = vmul.f32 %v9482, %v9504
    %v9506 = vsub.f32 1.0, %v9505
    %v9507 = vmul.f32 %v9504, %v9506
    %v9508 = vadd.f32 %v9504, %v9507
    %vm9509 = vweird.f32 %v9482
    %vm9510 = vweird.f32 %v9504
    %vm9511 = vmor %vm9509, %vm9510
    %v9512 = vsel %vm9511, %v9504, %v9508
    %v9513 = vand.u32 2147483647, %v9482
    %vm9514 = vcmp.eq.f32.partialorder %v9513, 8.507059e+37
    %v9515 = vand.u32 %v9482, 2147483648
    %v9516 = vor.u32 1.1754944e-38, %v9515
    %v9517 = vsel %vm9514, %v9516, %v9512
    %v9518 = vmul.f32 1.0, %v9517
    %v9519 = vrcp.pop %v9483
    %v9520 = vmul.f32 %v9483, %v9519
    %v9521 = vsub.f32 1.0, %v9520
    %v9522 = vmul.f32 %v9519, %v9521
    %v9523 = vadd.f32 %v9519, %v9522
    %vm9524 = vweird.f32 %v9483
    %vm9525 = vweird.f32 %v9519
    %vm9526 = vmor %vm9524, %vm9525
    %v9527 = vsel %vm9526, %v9519, %v9523
    %v9528 = vand.u32 2147483647, %v9483
    %vm9529 = vcmp.eq.f32.partialorder %v9528, 8.507059e+37
    %v9530 = vand.u32 %v9483, 2147483648
    %v9531 = vor.u32 1.1754944e-38, %v9530
    %v9532 = vsel %vm9529, %v9531, %v9527
    %v9533 = vmul.f32 1.0, %v9532
    %v9534 = vrcp.pop %v9484
    %v9535 = vmul.f32 %v9484, %v9534
    %v9536 = vsub.f32 1.0, %v9535
    %v9537 = vmul.f32 %v9534, %v9536
    %v9538 = vadd.f32 %v9534, %v9537
    %vm9539 = vweird.f32 %v9484
    %vm9540 = vweird.f32 %v9534
    %vm9541 = vmor %vm9539, %vm9540
    %v9542 = vsel %vm9541, %v9534, %v9538
    %v9543 = vand.u32 2147483647, %v9484
    %vm9544 = vcmp.eq.f32.partialorder %v9543, 8.507059e+37
    %v9545 = vand.u32 %v9484, 2147483648
    %v9546 = vor.u32 1.1754944e-38, %v9545
    %v9547 = vsel %vm9544, %v9546, %v9542
    %v9548 = vmul.f32 1.0, %v9547
    %v9549 = vrcp.pop %v9485
    %v9550 = vmul.f32 %v9485, %v9549
    %v9551 = vsub.f32 1.0, %v9550
    %v9552 = vmul.f32 %v9549, %v9551
    %v9553 = vadd.f32 %v9549, %v9552
    %vm9554 = vweird.f32 %v9485
    %vm9555 = vweird.f32 %v9549
    %vm9556 = vmor %vm9554, %vm9555
    %v9557 = vsel %vm9556, %v9549, %v9553
    %v9558 = vand.u32 2147483647, %v9485
    %vm9559 = vcmp.eq.f32.partialorder %v9558, 8.507059e+37
    %v9560 = vand.u32 %v9485, 2147483648
    %v9561 = vor.u32 1.1754944e-38, %v9560
    %v9562 = vsel %vm9559, %v9561, %v9557
    %v9563 = vmul.f32 1.0, %v9562
    %v9564 = vrcp.pop %v9486
    %v9565 = vmul.f32 %v9486, %v9564
    %v9566 = vsub.f32 1.0, %v9565
    %v9567 = vmul.f32 %v9564, %v9566
    %v9568 = vadd.f32 %v9564, %v9567
    %vm9569 = vweird.f32 %v9486
    %vm9570 = vweird.f32 %v9564
    %vm9571 = vmor %vm9569, %vm9570
    %v9572 = vsel %vm9571, %v9564, %v9568
    %v9573 = vand.u32 2147483647, %v9486
    %vm9574 = vcmp.eq.f32.partialorder %v9573, 8.507059e+37
    %v9575 = vand.u32 %v9486, 2147483648
    %v9576 = vor.u32 1.1754944e-38, %v9575
    %v9577 = vsel %vm9574, %v9576, %v9572
    %v9578 = vmul.f32 1.0, %v9577
    %v9579 = vrcp.pop %v9487
    %v9580 = vmul.f32 %v9487, %v9579
    %v9581 = vsub.f32 1.0, %v9580
    %v9582 = vmul.f32 %v9579, %v9581
    %v9583 = vadd.f32 %v9579, %v9582
    %vm9584 = vweird.f32 %v9487
    %vm9585 = vweird.f32 %v9579
    %vm9586 = vmor %vm9584, %vm9585
    %v9587 = vsel %vm9586, %v9579, %v9583
    %v9588 = vand.u32 2147483647, %v9487
    %vm9589 = vcmp.eq.f32.partialorder %v9588, 8.507059e+37
    %v9590 = vand.u32 %v9487, 2147483648
    %v9591 = vor.u32 1.1754944e-38, %v9590
    %v9592 = vsel %vm9589, %v9591, %v9587
    %v9593 = vmul.f32 1.0, %v9592
    %v9594 = vrcp.pop %v9488
    %v9595 = vmul.f32 %v9488, %v9594
    %v9596 = vsub.f32 1.0, %v9595
    %v9597 = vmul.f32 %v9594, %v9596
    %v9598 = vadd.f32 %v9594, %v9597
    %vm9599 = vweird.f32 %v9488
    %vm9600 = vweird.f32 %v9594
    %vm9601 = vmor %vm9599, %vm9600
    %v9602 = vsel %vm9601, %v9594, %v9598
    %v9603 = vand.u32 2147483647, %v9488
    %vm9604 = vcmp.eq.f32.partialorder %v9603, 8.507059e+37
    %v9605 = vand.u32 %v9488, 2147483648
    %v9606 = vor.u32 1.1754944e-38, %v9605
    %v9607 = vsel %vm9604, %v9606, %v9602
    %v9608 = vmul.f32 1.0, %v9607
    %v9610 = vrot.slane %v8890, 1
    %v9611 = vrot.slane %v8890, 2
    %v9612 = vrot.slane %v8890, 3
    %v9613 = vrot.slane %v8890, 4
    %v9614 = vrot.slane %v8890, 5
    %v9615 = vrot.slane %v8890, 6
    %v9616 = vrot.slane %v8890, 7
    %v9624 = vmul.f32 %v9311, %v8890
    %v9625 = vmul.f32 %v9326, %v9610
    %v9626 = vmul.f32 %v9341, %v9611
    %v9627 = vmul.f32 %v9356, %v9612
    %v9628 = vmul.f32 %v9371, %v9613
    %v9629 = vmul.f32 %v9386, %v9614
    %v9630 = vmul.f32 %v9401, %v9615
    %v9631 = vmul.f32 %v9416, %v9616
    %v9632 = vmul.f32 %v9135, %v9433
    %v9633 = vmul.f32 %v9150, %v9434
    %v9634 = vmul.f32 %v9165, %v9435
    %v9635 = vmul.f32 %v9180, %v9436
    %v9636 = vmul.f32 %v9195, %v9437
    %v9637 = vmul.f32 %v9210, %v9438
    %v9638 = vmul.f32 %v9225, %v9439
    %v9639 = vmul.f32 %v9240, %v9440
    %v9640 = vadd.f32 %v9624, %v9632
    %v9641 = vadd.f32 %v9625, %v9633
    %v9642 = vadd.f32 %v9626, %v9634
    %v9643 = vadd.f32 %v9627, %v9635
    %v9644 = vadd.f32 %v9628, %v9636
    %v9645 = vadd.f32 %v9629, %v9637
    %v9646 = vadd.f32 %v9630, %v9638
    %v9647 = vadd.f32 %v9631, %v9639
    %v9648 = vtanh.pop %v9640
    %v9649 = vtanh.pop %v9641
    %v9650 = vtanh.pop %v9642
    %v9651 = vtanh.pop %v9643
    %v9652 = vtanh.pop %v9644
    %v9653 = vtanh.pop %v9645
    %v9654 = vtanh.pop %v9646
    %v9655 = vtanh.pop %v9647
    %v9656 = vmul.f32 %v9503, %v9648
    %v9657 = vmul.f32 %v9518, %v9649
    %v9658 = vmul.f32 %v9533, %v9650
    %v9659 = vmul.f32 %v9548, %v9651
    %v9660 = vmul.f32 %v9563, %v9652
    %v9661 = vmul.f32 %v9578, %v9653
    %v9662 = vmul.f32 %v9593, %v9654
    %v9663 = vmul.f32 %v9608, %v9655
    %9672 = vst [vmem:[#allocation1] ss:$9 sm:$0xff] %v9656
    %s9673 = scalar_lea.vmem [#allocation1], 1
    %9674 = vst [vmem:[%s9673] ss:$9 sm:$0xff] %v9657
    %s9675 = scalar_lea.vmem [#allocation1], 2
    %9676 = vst [vmem:[%s9675] ss:$9 sm:$0xff] %v9658
    %s9677 = scalar_lea.vmem [#allocation1], 3
    %9678 = vst [vmem:[%s9677] ss:$9 sm:$0xff] %v9659
    %s9679 = scalar_lea.vmem [#allocation1], 4
    %9680 = vst [vmem:[%s9679] ss:$9 sm:$0xff] %v9660
    %s9681 = scalar_lea.vmem [#allocation1], 5
    %9682 = vst [vmem:[%s9681] ss:$9 sm:$0xff] %v9661
    %s9683 = scalar_lea.vmem [#allocation1], 6
    %9684 = vst [vmem:[%s9683] ss:$9 sm:$0xff] %v9662
    %s9685 = scalar_lea.vmem [#allocation1], 7
    %9686 = vst [vmem:[%s9685] ss:$9 sm:$0xff] %v9663
    %v9687 = vld [vmem:[#allocation1] sm:$0xff]
    %9689 = vst [vmem:[#allocation2] sm:$0xff] %v9687
    %9698 = vst [vmem:[#allocation1] ss:$9 sm:$0xff] %v9640
    %s9699 = scalar_lea.vmem [#allocation1], 1
    %9700 = vst [vmem:[%s9699] ss:$9 sm:$0xff] %v9641
    %s9701 = scalar_lea.vmem [#allocation1], 2
    %9702 = vst [vmem:[%s9701] ss:$9 sm:$0xff] %v9642
    %s9703 = scalar_lea.vmem [#allocation1], 3
    %9704 = vst [vmem:[%s9703] ss:$9 sm:$0xff] %v9643
    %s9705 = scalar_lea.vmem [#allocation1], 4
    %9706 = vst [vmem:[%s9705] ss:$9 sm:$0xff] %v9644
    %s9707 = scalar_lea.vmem [#allocation1], 5
    %9708 = vst [vmem:[%s9707] ss:$9 sm:$0xff] %v9645
    %s9709 = scalar_lea.vmem [#allocation1], 6
    %9710 = vst [vmem:[%s9709] ss:$9 sm:$0xff] %v9646
    %s9711 = scalar_lea.vmem [#allocation1], 7
    %9712 = vst [vmem:[%s9711] ss:$9 sm:$0xff] %v9647
    %v9713 = vld [vmem:[#allocation1] sm:$0xff]
    %9715 = vst [vmem:[#allocation3] sm:$0xff] %v9713
    %v9716 = vld [vmem:[%s949] sm:$0xff]
    %v9717 = vld [vmem:[%s951] sm:$0xff]
    %v9718 = vld [vmem:[#allocation9] sm:$0xff]
    %v9719 = vld [vmem:[#allocation9 + $0x8] sm:$0xff]
    %v9720 = vld [vmem:[#allocation9 + $0x10] sm:$0xff]
    %v9721 = vld [vmem:[#allocation9 + $0x18] sm:$0xff]
    %v9722 = vld [vmem:[#allocation9 + $0x20] sm:$0xff]
    %v9723 = vld [vmem:[#allocation9 + $0x28] sm:$0xff]
    %v9724 = vld [vmem:[#allocation9 + $0x30] sm:$0xff]
    %v9725 = vld [vmem:[#allocation9 + $0x38] sm:$0xff]
    %v9726 = vld [vmem:[#allocation9 + $0x40] sm:$0xff]
    %v9727 = vld [vmem:[#allocation9 + $0x48] sm:$0xff]
    %v9728 = vld [vmem:[#allocation9 + $0x50] sm:$0xff]
    %v9729 = vld [vmem:[#allocation9 + $0x58] sm:$0xff]
    %v9730 = vld [vmem:[#allocation9 + $0x60] sm:$0xff]
    %v9731 = vld [vmem:[#allocation9 + $0x68] sm:$0xff]
    %v9732 = vld [vmem:[#allocation9 + $0x70] sm:$0xff]
    %v9733 = vld [vmem:[#allocation9 + $0x78] sm:$0xff]
    %v9734 = vld [vmem:[#allocation9 + $0x80] sm:$0xff]
    %v9735 = vld [vmem:[#allocation9 + $0x88] sm:$0xff]
    %v9736 = vld [vmem:[#allocation9 + $0x90] sm:$0xff]
    %v9737 = vld [vmem:[#allocation9 + $0x98] sm:$0xff]
    %v9738 = vld [vmem:[#allocation9 + $0xa0] sm:$0xff]
    %v9739 = vld [vmem:[#allocation9 + $0xa8] sm:$0xff]
    %v9740 = vld [vmem:[#allocation9 + $0xb0] sm:$0xff]
    %v9741 = vld [vmem:[#allocation9 + $0xb8] sm:$0xff]
    %v9742 = vld [vmem:[#allocation9 + $0xc0] sm:$0xff]
    %v9743 = vld [vmem:[#allocation9 + $0xc8] sm:$0xff]
    %v9744 = vld [vmem:[#allocation9 + $0xd0] sm:$0xff]
    %v9745 = vld [vmem:[#allocation9 + $0xd8] sm:$0xff]
    %v9746 = vld [vmem:[#allocation9 + $0xe0] sm:$0xff]
    %v9747 = vld [vmem:[#allocation9 + $0xe8] sm:$0xff]
    %v9748 = vld [vmem:[#allocation9 + $0xf0] sm:$0xff]
    %v9749 = vld [vmem:[#allocation9 + $0xf8] sm:$0xff]
    %v9750 = vld [vmem:[#allocation9 + $0x100] sm:$0xff]
    %v9751 = vld [vmem:[#allocation9 + $0x108] sm:$0xff]
    %v9752 = vld [vmem:[#allocation9 + $0x110] sm:$0xff]
    %v9753 = vld [vmem:[#allocation9 + $0x118] sm:$0xff]
    %v9754 = vld [vmem:[#allocation9 + $0x120] sm:$0xff]
    %v9755 = vld [vmem:[#allocation9 + $0x128] sm:$0xff]
    %v9756 = vld [vmem:[#allocation9 + $0x130] sm:$0xff]
    %v9757 = vld [vmem:[#allocation9 + $0x138] sm:$0xff]
    %v9758 = vld [vmem:[#allocation9 + $0x140] sm:$0xff]
    %v9759 = vld [vmem:[#allocation9 + $0x148] sm:$0xff]
    %v9760 = vld [vmem:[#allocation9 + $0x150] sm:$0xff]
    %v9761 = vld [vmem:[#allocation9 + $0x158] sm:$0xff]
    %v9762 = vld [vmem:[#allocation9 + $0x160] sm:$0xff]
    %v9763 = vld [vmem:[#allocation9 + $0x168] sm:$0xff]
    %v9764 = vld [vmem:[#allocation9 + $0x170] sm:$0xff]
    %v9765 = vld [vmem:[#allocation9 + $0x178] sm:$0xff]
    %v9766 = vld [vmem:[#allocation9 + $0x180] sm:$0xff]
    %v9767 = vld [vmem:[#allocation9 + $0x188] sm:$0xff]
    %v9768 = vld [vmem:[#allocation9 + $0x190] sm:$0xff]
    %v9769 = vld [vmem:[#allocation9 + $0x198] sm:$0xff]
    %v9770 = vld [vmem:[#allocation9 + $0x1a0] sm:$0xff]
    %v9771 = vld [vmem:[#allocation9 + $0x1a8] sm:$0xff]
    %v9772 = vld [vmem:[#allocation9 + $0x1b0] sm:$0xff]
    %v9773 = vld [vmem:[#allocation9 + $0x1b8] sm:$0xff]
    %v9774 = vld [vmem:[#allocation9 + $0x1c0] sm:$0xff]
    %v9775 = vld [vmem:[#allocation9 + $0x1c8] sm:$0xff]
    %v9776 = vld [vmem:[#allocation9 + $0x1d0] sm:$0xff]
    %v9777 = vld [vmem:[#allocation9 + $0x1d8] sm:$0xff]
    %v9778 = vld [vmem:[#allocation9 + $0x1e0] sm:$0xff]
    %v9779 = vld [vmem:[#allocation9 + $0x1e8] sm:$0xff]
    %v9780 = vld [vmem:[#allocation9 + $0x1f0] sm:$0xff]
    %v9781 = vld [vmem:[#allocation9 + $0x1f8] sm:$0xff]
    %v9782 = vld [vmem:[#allocation10] sm:$0xf]
    %v9784 = vperm.slane %v9782, 0
    %v9785 = vperm.slane %v9782, 1
    %v9786 = vperm.slane %v9782, 2
    %v9787 = vperm.slane %v9782, 3
    %9792 = vst [vmem:[#allocation1] ss:$9 sm:$0xff] %v9656
    %s9793 = scalar_lea.vmem [#allocation1], 1
    %9794 = vst [vmem:[%s9793] ss:$9 sm:$0xff] %v9657
    %s9795 = scalar_lea.vmem [#allocation1], 2
    %9796 = vst [vmem:[%s9795] ss:$9 sm:$0xff] %v9658
    %s9797 = scalar_lea.vmem [#allocation1], 3
    %9798 = vst [vmem:[%s9797] ss:$9 sm:$0xff] %v9659
    %s9799 = scalar_lea.vmem [#allocation1], 4
    %9800 = vst [vmem:[%s9799] ss:$9 sm:$0xff] %v9660
    %s9801 = scalar_lea.vmem [#allocation1], 5
    %9802 = vst [vmem:[%s9801] ss:$9 sm:$0xff] %v9661
    %s9803 = scalar_lea.vmem [#allocation1], 6
    %9804 = vst [vmem:[%s9803] ss:$9 sm:$0xff] %v9662
    %s9805 = scalar_lea.vmem [#allocation1], 7
    %9806 = vst [vmem:[%s9805] ss:$9 sm:$0xff] %v9663
    %v9807 = vld [vmem:[#allocation1] sm:$0xff]
    %9809 = vmatpush.msra.mxu0 %v9778
    %9810 = vmatpush.msra.mxu0 %v9774
    %9811 = vmatpush.msra.mxu0 %v9770
    %9812 = vmatpush.msra.mxu0 %v9766
    %9813 = vmatpush.msra.mxu0 %v9762
    %9814 = vmatpush.msra.mxu0 %v9758
    %9815 = vmatpush.msra.mxu0 %v9754
    %9816 = vmatpush.msra.mxu0 %v9750
    %9817 = vmatpush.msra.mxu0 %v9746
    %9818 = vmatpush.msra.mxu0 %v9742
    %9819 = vmatpush.msra.mxu0 %v9738
    %9820 = vmatpush.msra.mxu0 %v9734
    %9821 = vmatpush.msra.mxu0 %v9730
    %9822 = vmatpush.msra.mxu0 %v9726
    %9823 = vmatpush.msra.mxu0 %v9722
    %9824 = vmatpush.msra.mxu0 %v9718
    %9825 = vmatmul.f32.gmra.mxu0 %v9807
    %v9826 = vpop.f32.mrf.mxu0
    %v9827 = vadd.f32 %v9784, %v9826
    %9828 = vdwg.mxu0
    %9829 = vmatpush.msra.mxu0 %v9779
    %9830 = vmatpush.msra.mxu0 %v9775
    %9831 = vmatpush.msra.mxu0 %v9771
    %9832 = vmatpush.msra.mxu0 %v9767
    %9833 = vmatpush.msra.mxu0 %v9763
    %9834 = vmatpush.msra.mxu0 %v9759
    %9835 = vmatpush.msra.mxu0 %v9755
    %9836 = vmatpush.msra.mxu0 %v9751
    %9837 = vmatpush.msra.mxu0 %v9747
    %9838 = vmatpush.msra.mxu0 %v9743
    %9839 = vmatpush.msra.mxu0 %v9739
    %9840 = vmatpush.msra.mxu0 %v9735
    %9841 = vmatpush.msra.mxu0 %v9731
    %9842 = vmatpush.msra.mxu0 %v9727
    %9843 = vmatpush.msra.mxu0 %v9723
    %9844 = vmatpush.msra.mxu0 %v9719
    %9845 = vmatmul.f32.gmra.mxu0 %v9807
    %v9846 = vpop.f32.mrf.mxu0
    %v9847 = vadd.f32 %v9785, %v9846
    %9848 = vdwg.mxu0
    %9849 = vmatpush.msra.mxu0 %v9780
    %9850 = vmatpush.msra.mxu0 %v9776
    %9851 = vmatpush.msra.mxu0 %v9772
    %9852 = vmatpush.msra.mxu0 %v9768
    %9853 = vmatpush.msra.mxu0 %v9764
    %9854 = vmatpush.msra.mxu0 %v9760
    %9855 = vmatpush.msra.mxu0 %v9756
    %9856 = vmatpush.msra.mxu0 %v9752
    %9857 = vmatpush.msra.mxu0 %v9748
    %9858 = vmatpush.msra.mxu0 %v9744
    %9859 = vmatpush.msra.mxu0 %v9740
    %9860 = vmatpush.msra.mxu0 %v9736
    %9861 = vmatpush.msra.mxu0 %v9732
    %9862 = vmatpush.msra.mxu0 %v9728
    %9863 = vmatpush.msra.mxu0 %v9724
    %9864 = vmatpush.msra.mxu0 %v9720
    %9865 = vmatmul.f32.gmra.mxu0 %v9807
    %v9866 = vpop.f32.mrf.mxu0
    %v9867 = vadd.f32 %v9786, %v9866
    %9868 = vdwg.mxu0
    %9869 = vmatpush.msra.mxu0 %v9781
    %9870 = vmatpush.msra.mxu0 %v9777
    %9871 = vmatpush.msra.mxu0 %v9773
    %9872 = vmatpush.msra.mxu0 %v9769
    %9873 = vmatpush.msra.mxu0 %v9765
    %9874 = vmatpush.msra.mxu0 %v9761
    %9875 = vmatpush.msra.mxu0 %v9757
    %9876 = vmatpush.msra.mxu0 %v9753
    %9877 = vmatpush.msra.mxu0 %v9749
    %9878 = vmatpush.msra.mxu0 %v9745
    %9879 = vmatpush.msra.mxu0 %v9741
    %9880 = vmatpush.msra.mxu0 %v9737
    %9881 = vmatpush.msra.mxu0 %v9733
    %9882 = vmatpush.msra.mxu0 %v9729
    %9883 = vmatpush.msra.mxu0 %v9725
    %9884 = vmatpush.msra.mxu0 %v9721
    %9885 = vmatmul.f32.gmra.mxu0 %v9807
    %v9886 = vpop.f32.mrf.mxu0
    %v9887 = vadd.f32 %v9787, %v9886
    %9888 = vdwg.mxu0
    %v9889 = vld [vmem:[%s1124] sm:$0xff]
    %v9890 = vld [vmem:[%s1124 + $0x8] sm:$0xff]
    %v9891 = vld [vmem:[%s1124 + $0x10] sm:$0xff]
    %v9892 = vld [vmem:[%s1124 + $0x18] sm:$0xff]
    %v9893 = vld [vmem:[%s1124 + $0x20] sm:$0xff]
    %v9894 = vld [vmem:[%s1124 + $0x28] sm:$0xff]
    %v9895 = vld [vmem:[%s1124 + $0x30] sm:$0xff]
    %v9896 = vld [vmem:[%s1124 + $0x38] sm:$0xff]
    %v9897 = vld [vmem:[%s1124 + $0x40] sm:$0xff]
    %v9898 = vld [vmem:[%s1124 + $0x48] sm:$0xff]
    %v9899 = vld [vmem:[%s1124 + $0x50] sm:$0xff]
    %v9900 = vld [vmem:[%s1124 + $0x58] sm:$0xff]
    %v9901 = vld [vmem:[%s1124 + $0x60] sm:$0xff]
    %v9902 = vld [vmem:[%s1124 + $0x68] sm:$0xff]
    %v9903 = vld [vmem:[%s1124 + $0x70] sm:$0xff]
    %v9904 = vld [vmem:[%s1124 + $0x78] sm:$0xff]
    %v9905 = vld [vmem:[%s1124 + $0x80] sm:$0xff]
    %v9906 = vld [vmem:[%s1124 + $0x88] sm:$0xff]
    %v9907 = vld [vmem:[%s1124 + $0x90] sm:$0xff]
    %v9908 = vld [vmem:[%s1124 + $0x98] sm:$0xff]
    %v9909 = vld [vmem:[%s1124 + $0xa0] sm:$0xff]
    %v9910 = vld [vmem:[%s1124 + $0xa8] sm:$0xff]
    %v9911 = vld [vmem:[%s1124 + $0xb0] sm:$0xff]
    %v9912 = vld [vmem:[%s1124 + $0xb8] sm:$0xff]
    %v9913 = vld [vmem:[%s1124 + $0xc0] sm:$0xff]
    %v9914 = vld [vmem:[%s1124 + $0xc8] sm:$0xff]
    %v9915 = vld [vmem:[%s1124 + $0xd0] sm:$0xff]
    %v9916 = vld [vmem:[%s1124 + $0xd8] sm:$0xff]
    %v9917 = vld [vmem:[%s1124 + $0xe0] sm:$0xff]
    %v9918 = vld [vmem:[%s1124 + $0xe8] sm:$0xff]
    %v9919 = vld [vmem:[%s1124 + $0xf0] sm:$0xff]
    %v9920 = vld [vmem:[%s1124 + $0xf8] sm:$0xff]
    %v9921 = vld [vmem:[%s1124 + $0x100] sm:$0xff]
    %v9922 = vld [vmem:[%s1124 + $0x108] sm:$0xff]
    %v9923 = vld [vmem:[%s1124 + $0x110] sm:$0xff]
    %v9924 = vld [vmem:[%s1124 + $0x118] sm:$0xff]
    %v9925 = vld [vmem:[%s1124 + $0x120] sm:$0xff]
    %v9926 = vld [vmem:[%s1124 + $0x128] sm:$0xff]
    %v9927 = vld [vmem:[%s1124 + $0x130] sm:$0xff]
    %v9928 = vld [vmem:[%s1124 + $0x138] sm:$0xff]
    %v9929 = vld [vmem:[%s1124 + $0x140] sm:$0xff]
    %v9930 = vld [vmem:[%s1124 + $0x148] sm:$0xff]
    %v9931 = vld [vmem:[%s1124 + $0x150] sm:$0xff]
    %v9932 = vld [vmem:[%s1124 + $0x158] sm:$0xff]
    %v9933 = vld [vmem:[%s1124 + $0x160] sm:$0xff]
    %v9934 = vld [vmem:[%s1124 + $0x168] sm:$0xff]
    %v9935 = vld [vmem:[%s1124 + $0x170] sm:$0xff]
    %v9936 = vld [vmem:[%s1124 + $0x178] sm:$0xff]
    %v9937 = vld [vmem:[%s1124 + $0x180] sm:$0xff]
    %v9938 = vld [vmem:[%s1124 + $0x188] sm:$0xff]
    %v9939 = vld [vmem:[%s1124 + $0x190] sm:$0xff]
    %v9940 = vld [vmem:[%s1124 + $0x198] sm:$0xff]
    %v9941 = vld [vmem:[%s1124 + $0x1a0] sm:$0xff]
    %v9942 = vld [vmem:[%s1124 + $0x1a8] sm:$0xff]
    %v9943 = vld [vmem:[%s1124 + $0x1b0] sm:$0xff]
    %v9944 = vld [vmem:[%s1124 + $0x1b8] sm:$0xff]
    %v9945 = vld [vmem:[%s1124 + $0x1c0] sm:$0xff]
    %v9946 = vld [vmem:[%s1124 + $0x1c8] sm:$0xff]
    %v9947 = vld [vmem:[%s1124 + $0x1d0] sm:$0xff]
    %v9948 = vld [vmem:[%s1124 + $0x1d8] sm:$0xff]
    %v9949 = vld [vmem:[%s1124 + $0x1e0] sm:$0xff]
    %v9950 = vld [vmem:[%s1124 + $0x1e8] sm:$0xff]
    %v9951 = vld [vmem:[%s1124 + $0x1f0] sm:$0xff]
    %v9952 = vld [vmem:[%s1124 + $0x1f8] sm:$0xff]
    %9953 = vmatpush.msra.mxu0 %v9949
    %9954 = vmatpush.msra.mxu0 %v9945
    %9955 = vmatpush.msra.mxu0 %v9941
    %9956 = vmatpush.msra.mxu0 %v9937
    %9957 = vmatpush.msra.mxu0 %v9933
    %9958 = vmatpush.msra.mxu0 %v9929
    %9959 = vmatpush.msra.mxu0 %v9925
    %9960 = vmatpush.msra.mxu0 %v9921
    %9961 = vmatpush.msra.mxu0 %v9917
    %9962 = vmatpush.msra.mxu0 %v9913
    %9963 = vmatpush.msra.mxu0 %v9909
    %9964 = vmatpush.msra.mxu0 %v9905
    %9965 = vmatpush.msra.mxu0 %v9901
    %9966 = vmatpush.msra.mxu0 %v9897
    %9967 = vmatpush.msra.mxu0 %v9893
    %9968 = vmatpush.msra.mxu0 %v9889
    %9969 = vmatmul.f32.gmra.mxu0 %v9716
    %v9970 = vpop.f32.mrf.mxu0
    %v9971 = vadd.f32 0.0, %v9970
    %9972 = vdwg.mxu0
    %9973 = vmatpush.msra.mxu0 %v9950
    %9974 = vmatpush.msra.mxu0 %v9946
    %9975 = vmatpush.msra.mxu0 %v9942
    %9976 = vmatpush.msra.mxu0 %v9938
    %9977 = vmatpush.msra.mxu0 %v9934
    %9978 = vmatpush.msra.mxu0 %v9930
    %9979 = vmatpush.msra.mxu0 %v9926
    %9980 = vmatpush.msra.mxu0 %v9922
    %9981 = vmatpush.msra.mxu0 %v9918
    %9982 = vmatpush.msra.mxu0 %v9914
    %9983 = vmatpush.msra.mxu0 %v9910
    %9984 = vmatpush.msra.mxu0 %v9906
    %9985 = vmatpush.msra.mxu0 %v9902
    %9986 = vmatpush.msra.mxu0 %v9898
    %9987 = vmatpush.msra.mxu0 %v9894
    %9988 = vmatpush.msra.mxu0 %v9890
    %9989 = vmatmul.f32.gmra.mxu0 %v9716
    %v9990 = vpop.f32.mrf.mxu0
    %v9991 = vadd.f32 0.0, %v9990
    %9992 = vdwg.mxu0
    %9993 = vmatpush.msra.mxu0 %v9951
    %9994 = vmatpush.msra.mxu0 %v9947
    %9995 = vmatpush.msra.mxu0 %v9943
    %9996 = vmatpush.msra.mxu0 %v9939
    %9997 = vmatpush.msra.mxu0 %v9935
    %9998 = vmatpush.msra.mxu0 %v9931
    %9999 = vmatpush.msra.mxu0 %v9927
    %10000 = vmatpush.msra.mxu0 %v9923
    %10001 = vmatpush.msra.mxu0 %v9919
    %10002 = vmatpush.msra.mxu0 %v9915
    %10003 = vmatpush.msra.mxu0 %v9911
    %10004 = vmatpush.msra.mxu0 %v9907
    %10005 = vmatpush.msra.mxu0 %v9903
    %10006 = vmatpush.msra.mxu0 %v9899
    %10007 = vmatpush.msra.mxu0 %v9895
    %10008 = vmatpush.msra.mxu0 %v9891
    %10009 = vmatmul.f32.gmra.mxu0 %v9716
    %v10010 = vpop.f32.mrf.mxu0
    %v10011 = vadd.f32 0.0, %v10010
    %10012 = vdwg.mxu0
    %10013 = vmatpush.msra.mxu0 %v9952
    %10014 = vmatpush.msra.mxu0 %v9948
    %10015 = vmatpush.msra.mxu0 %v9944
    %10016 = vmatpush.msra.mxu0 %v9940
    %10017 = vmatpush.msra.mxu0 %v9936
    %10018 = vmatpush.msra.mxu0 %v9932
    %10019 = vmatpush.msra.mxu0 %v9928
    %10020 = vmatpush.msra.mxu0 %v9924
    %10021 = vmatpush.msra.mxu0 %v9920
    %10022 = vmatpush.msra.mxu0 %v9916
    %10023 = vmatpush.msra.mxu0 %v9912
    %10024 = vmatpush.msra.mxu0 %v9908
    %10025 = vmatpush.msra.mxu0 %v9904
    %10026 = vmatpush.msra.mxu0 %v9900
    %10027 = vmatpush.msra.mxu0 %v9896
    %10028 = vmatpush.msra.mxu0 %v9892
    %10029 = vmatmul.f32.gmra.mxu0 %v9716
    %v10030 = vpop.f32.mrf.mxu0
    %v10031 = vadd.f32 0.0, %v10030
    %10032 = vdwg.mxu0
    %v10033 = vadd.f32 %v9827, %v9971
    %v10034 = vadd.f32 %v9847, %v9991
    %v10035 = vadd.f32 %v9867, %v10011
    %v10036 = vadd.f32 %v9887, %v10031
    %v10037 = vxor.u32 %v10033, 2147483648
    %v10038 = vmul.f32 %v10037, 1.442695
    %v10039 = vpow.pop %v10038
    %v10040 = vadd.f32 %v10039, 1.0
    %v10041 = vrcp.pop %v10040
    %v10042 = vmul.f32 %v10040, %v10041
    %v10043 = vsub.f32 1.0, %v10042
    %v10044 = vmul.f32 %v10041, %v10043
    %v10045 = vadd.f32 %v10041, %v10044
    %vm10046 = vweird.f32 %v10040
    %vm10047 = vweird.f32 %v10041
    %vm10048 = vmor %vm10046, %vm10047
    %v10049 = vsel %vm10048, %v10041, %v10045
    %v10050 = vand.u32 2147483647, %v10040
    %vm10051 = vcmp.eq.f32.partialorder %v10050, 8.507059e+37
    %v10052 = vand.u32 %v10040, 2147483648
    %v10053 = vor.u32 1.1754944e-38, %v10052
    %v10054 = vsel %vm10051, %v10053, %v10049
    %v10055 = vmul.f32 1.0, %v10054
    %v10056 = vxor.u32 %v10034, 2147483648
    %v10057 = vmul.f32 %v10056, 1.442695
    %v10058 = vpow.pop %v10057
    %v10059 = vadd.f32 %v10058, 1.0
    %v10060 = vrcp.pop %v10059
    %v10061 = vmul.f32 %v10059, %v10060
    %v10062 = vsub.f32 1.0, %v10061
    %v10063 = vmul.f32 %v10060, %v10062
    %v10064 = vadd.f32 %v10060, %v10063
    %vm10065 = vweird.f32 %v10059
    %vm10066 = vweird.f32 %v10060
    %vm10067 = vmor %vm10065, %vm10066
    %v10068 = vsel %vm10067, %v10060, %v10064
    %v10069 = vand.u32 2147483647, %v10059
    %vm10070 = vcmp.eq.f32.partialorder %v10069, 8.507059e+37
    %v10071 = vand.u32 %v10059, 2147483648
    %v10072 = vor.u32 1.1754944e-38, %v10071
    %v10073 = vsel %vm10070, %v10072, %v10068
    %v10074 = vmul.f32 1.0, %v10073
    %v10075 = vtanh.pop %v10035
    %v10076 = vxor.u32 %v10036, 2147483648
    %v10077 = vmul.f32 %v10076, 1.442695
    %v10078 = vpow.pop %v10077
    %v10079 = vadd.f32 %v10078, 1.0
    %v10080 = vrcp.pop %v10079
    %v10081 = vmul.f32 %v10079, %v10080
    %v10082 = vsub.f32 1.0, %v10081
    %v10083 = vmul.f32 %v10080, %v10082
    %v10084 = vadd.f32 %v10080, %v10083
    %vm10085 = vweird.f32 %v10079
    %vm10086 = vweird.f32 %v10080
    %vm10087 = vmor %vm10085, %vm10086
    %v10088 = vsel %vm10087, %v10080, %v10084
    %v10089 = vand.u32 2147483647, %v10079
    %vm10090 = vcmp.eq.f32.partialorder %v10089, 8.507059e+37
    %v10091 = vand.u32 %v10079, 2147483648
    %v10092 = vor.u32 1.1754944e-38, %v10091
    %v10093 = vsel %vm10090, %v10092, %v10088
    %v10094 = vmul.f32 1.0, %v10093
    %v10095 = vmul.f32 %v10074, %v9717
    %v10096 = vmul.f32 %v10055, %v10075
    %v10097 = vadd.f32 %v10095, %v10096
    %v10098 = vtanh.pop %v10097
    %v10099 = vmul.f32 %v10094, %v10098
    %10100 = vst [vmem:[%s949] sm:$0xff] %v10099
    %10101 = vst [vmem:[%s951] sm:$0xff] %v10097
    %v10103 = vrot.slane %v10099, 1
    %v10104 = vrot.slane %v10099, 2
    %v10105 = vrot.slane %v10099, 3
    %v10106 = vrot.slane %v10099, 4
    %v10107 = vrot.slane %v10099, 5
    %v10108 = vrot.slane %v10099, 6
    %v10109 = vrot.slane %v10099, 7
    %10117 = vst [vmem:[#allocation12 + $0x7] sm:$0x1] %v10099
    %10118 = vst [vmem:[#allocation12 + $0xf] sm:$0x1] %v10103
    %10119 = vst [vmem:[#allocation12 + $0x17] sm:$0x1] %v10104
    %10120 = vst [vmem:[#allocation12 + $0x1f] sm:$0x1] %v10105
    %10121 = vst [vmem:[#allocation12 + $0x27] sm:$0x1] %v10106
    %10122 = vst [vmem:[#allocation12 + $0x2f] sm:$0x1] %v10107
    %10123 = vst [vmem:[#allocation12 + $0x37] sm:$0x1] %v10108
    %10124 = vst [vmem:[#allocation12 + $0x3f] sm:$0x1] %v10109
    // Predicated region
    $region38: #{tpu_custom_call.1} parent=1 // pred_check
      %p10125 = pneg %p83
    $region39: #{tpu_custom_call.1} parent=1 // pred_check_branch
      %10127 = sbr.rel (%p10125) target = $region41
    $region40: #{tpu_custom_call.1} parent=1 // pred_region
      %v10128 = vld [vmem:[#allocation2] sm:$0xff]
      %v10129 = vld [vmem:[#allocation2 + $0x8] sm:$0xff]
      %10130 = vst [vmem:[#allocation13] sm:$0xff] %v10128
      %10131 = vst [vmem:[#allocation13 + $0x8] sm:$0xff] %v10129
      %v10132 = vld [vmem:[#allocation3] sm:$0xff]
      %v10133 = vld [vmem:[#allocation3 + $0x8] sm:$0xff]
      %10134 = vst [vmem:[#allocation15] sm:$0xff] %v10132
      %10135 = vst [vmem:[#allocation15 + $0x8] sm:$0xff] %v10133
    $region41: #{tpu_custom_call.1} parent=1 // pred_fallthru
      _
    // Predicated region
    $region42: #{tpu_custom_call.1} parent=1 // pred_check
      _
    $region43: #{tpu_custom_call.1} parent=1 // pred_check_branch
      %10137 = sbr.rel (0) target = $region45
    $region44: #{tpu_custom_call.1} parent=1 // pred_region
      %10139 = vsyncadd [#allocation6], 0
      %s10140 = sshll.u32 [#allocation12], 4
      %s10141 = int_to_ptr.vmem [resolvable:$true] %s10140
      %s10142 = sshll.u32 %s4, 4
      %s10143 = int_to_ptr.hbm [resolvable:$true] %s10142
      %10148 = dma.vmem_to_hbm [thread:$0]  %s10141, 1024, %s10143, [#allocation6], 128, 128, 8
    $region45: #{tpu_custom_call.1} parent=1 // pred_fallthru
      _
    // Predicated region
    $region46: #{tpu_custom_call.1} parent=1 // pred_check
      _
    $region47: #{tpu_custom_call.1} parent=1 // pred_check_branch
      %10150 = sbr.rel (0) target = $region49
    $region48: #{tpu_custom_call.1} parent=1 // pred_region
      %10152 = vsyncadd [#allocation14], 0
      %s10153 = sshll.u32 [#allocation13], 4
      %s10154 = int_to_ptr.vmem [resolvable:$true] %s10153
      %s10155 = sshll.u32 %s5, 4
      %s10156 = int_to_ptr.hbm [resolvable:$true] %s10155
      %10161 = dma.vmem_to_hbm [thread:$0]  %s10154, 256, %s10156, [#allocation14], 128, 128, 8
    $region49: #{tpu_custom_call.1} parent=1 // pred_fallthru
      _
    // Predicated region
    $region50: #{tpu_custom_call.1} parent=1 // pred_check
      _
    $region51: #{tpu_custom_call.1} parent=1 // pred_check_branch
      %10163 = sbr.rel (0) target = $region53
    $region52: #{tpu_custom_call.1} parent=1 // pred_region
      %10165 = vsyncadd [#allocation14], 0
      %s10166 = sshll.u32 [#allocation15], 4
      %s10167 = int_to_ptr.vmem [resolvable:$true] %s10166
      %s10168 = sshll.u32 %s6, 4
      %s10169 = int_to_ptr.hbm [resolvable:$true] %s10168
      %10174 = dma.vmem_to_hbm [thread:$0]  %s10167, 256, %s10169, [#allocation14], 128, 128, 8
    $region53: #{tpu_custom_call.1} parent=1 // pred_fallthru
      _
    // Predicated region
    $region54: #{tpu_custom_call.1} parent=1 // pred_check
      _
    $region55: #{tpu_custom_call.1} parent=1 // pred_check_branch
      %10176 = sbr.rel (0) target = $region57
    $region56: #{tpu_custom_call.1} parent=1 // pred_region
      %10178 = dma.done [#allocation6], 1024
    $region57: #{tpu_custom_call.1} parent=1 // pred_fallthru
      _
    // Predicated region
    $region58: #{tpu_custom_call.1} parent=1 // pred_check
      _
    $region59: #{tpu_custom_call.1} parent=1 // pred_check_branch
      %10180 = sbr.rel (0) target = $region61
    $region60: #{tpu_custom_call.1} parent=1 // pred_region
      %10182 = dma.done [#allocation14], 256
    $region61: #{tpu_custom_call.1} parent=1 // pred_fallthru
      _
    // Predicated region
    $region62: #{tpu_custom_call.1} parent=1 // pred_check
      _
    $region63: #{tpu_custom_call.1} parent=1 // pred_check_branch
      %10184 = sbr.rel (0) target = $region65
    $region64: #{tpu_custom_call.1} parent=1 // pred_region
      %10186 = dma.done [#allocation14], 256
    $region65: #{tpu_custom_call.1} parent=1 // pred_fallthru
      _
    %10187 = vsyncpa [#allocation5], 1
    %10188 = vsyncpa [#allocation8], 1
    %10189 = vsyncpa [#allocation11], 1
    %10190 = vsyncpa [#allocation6], 1
    %10191 = vsyncpa [#allocation14], 1

</llo_original>
